<compile_context>
chip_gen: v7x
topology: tpu7x:2x2x1
jax: 0.10.0
libtpu: 0.0.40
codegen_flags: <defaults>
</compile_context>

<pallas_src>
import functools

import numpy as np
import jax
import jax.numpy as jnp
from jax.experimental import pallas as pl
from jax.experimental.pallas import tpu as pltpu


# ---------------------------------------------------------------------------
# Helpers
# ---------------------------------------------------------------------------
@functools.lru_cache(maxsize=None)
def _vmem_limit_bytes():
    """Per-chip scoped-VMEM budget (v5e/v6e: ~96 MiB, v7x: ~48 MiB)."""
    try:
        cap = int(pltpu.get_tpu_info().vmem_capacity_bytes)
        return int(min(cap * 3 // 4, 100 * 1024 * 1024))
    except Exception:
        return 64 * 1024 * 1024


def _compiler_params():
    return pltpu.CompilerParams(
        dimension_semantics=("parallel",),          # batch axis -> v7x megacore
        vmem_limit_bytes=_vmem_limit_bytes())


@functools.lru_cache(maxsize=None)
def _roll_mode():
    """Probe pltpu.roll's rotation convention once (tiny kernel, run eagerly)."""
    try:
        x = np.arange(8 * 128, dtype=np.float32).reshape(8, 128)

        def k(x_ref, o_ref):
            o_ref[...] = pltpu.roll(x_ref[...], 1, 1)

        y = np.asarray(pl.pallas_call(
            k, out_shape=jax.ShapeDtypeStruct((8, 128), jnp.float32))(jnp.asarray(x)))
        if np.array_equal(y, np.roll(x, 1, axis=1)):
            return "roll_fwd"       # out[p] = in[(p - shift) % L]  (numpy roll)
        if np.array_equal(y, np.roll(x, -1, axis=1)):
            return "roll_rev"
    except Exception:
        pass
    return "slice"                  # safe fallback: lane slice + zero fill


@functools.lru_cache(maxsize=None)
def _conv_masks(H, W):
    """(9, H*W) f32 validity masks for the 3x3 SAME-conv taps (tap-major)."""
    yy, xx = np.meshgrid(np.arange(H), np.arange(W), indexing="ij")
    yy = yy.reshape(-1)
    xx = xx.reshape(-1)
    rows = []
    for dy in (-1, 0, 1):
        for dx in (-1, 0, 1):
            ok = ((yy + dy >= 0) & (yy + dy < H) & (xx + dx >= 0) & (xx + dx < W))
            rows.append(ok.astype(np.float32))
    return jnp.asarray(np.stack(rows, axis=0))


def _wt(w):
    """(3,3,Cin,Cout) HWIO conv weight -> (Cout, 9*Cin), tap-major/channel-minor."""
    cout = w.shape[-1]
    return jnp.transpose(w, (3, 0, 1, 2)).reshape(cout, -1).astype(jnp.float32)


def _col(b):
    return jnp.asarray(b, jnp.float32).reshape(-1, 1)


# ---------------------------------------------------------------------------
# In-kernel building blocks (traced inside Pallas kernel bodies).
# ---------------------------------------------------------------------------
def _shift_lanes(a, d, hw, mode):
    """out[:, p] = a[:, p + d]; positions whose source lies outside [0, hw)
    may hold wrapped data -- the caller's tap mask zeroes them."""
    if d == 0:
        return a
    if mode == "roll_fwd":
        return pltpu.roll(a, (-d) % hw, 1)
    if mode == "roll_rev":
        return pltpu.roll(a, d % hw, 1)
    # Fallback: lane slice + zero fill (relayout copy; slower but always valid).
    z = jnp.zeros((a.shape[0], abs(d)), a.dtype)
    if d > 0:
        return jnp.concatenate([a[:, d:], z], axis=1)
    return jnp.concatenate([z, a[:, :hw + d]], axis=1)


def _taps3x3(a, masks, H, W, mode):
    """In-VMEM im2col: (Cin, H*W) -> (9*Cin, H*W) patch matrix for a 3x3
    SAME conv (zero padding realised via the per-tap masks)."""
    hw = H * W
    taps = []
    t = 0
    for dy in (-1, 0, 1):
        for dx in (-1, 0, 1):
            s = _shift_lanes(a, dy * W + dx, hw, mode)
            taps.append(s if (dy == 0 and dx == 0) else s * masks[t:t + 1])
            t += 1
    return jnp.concatenate(taps, axis=0)


# ---------------------------------------------------------------------------
# Kernel 1: standalone 3x3 conv (optional fused PReLU on input, residual add).
# ---------------------------------------------------------------------------
def conv3x3(x, w, b, *, H, W, prelu_alpha=None, residual=None):
    N, Cin, HW = x.shape
    Cout = w.shape[-1]
    mode = _roll_mode()
    has_prelu = prelu_alpha is not None
    has_res = residual is not None

    def kernel(*refs):
        x_ref, m_ref, w_ref, b_ref = refs[:4]
        idx = 4
        alpha_ref = res_ref = None
        if has_prelu:
            alpha_ref = refs[idx]
            idx += 1
        if has_res:
            res_ref = refs[idx]
            idx += 1
        o_ref = refs[idx]

        mk = m_ref[...]
        xt = x_ref[0]
        if has_prelu:
            a = alpha_ref[0]                          # scalar from SMEM
            xt = jnp.where(xt >= 0, xt, a * xt)
        acc = jnp.dot(w_ref[...], _taps3x3(xt, mk, H, W, mode),
                      preferred_element_type=jnp.float32) + b_ref[...]
        if has_res:
            acc = acc + res_ref[0]
        o_ref[0] = acc.astype(o_ref.dtype)

    in_specs = [
        pl.BlockSpec((1, Cin, HW), lambda n: (n, 0, 0)),
        pl.BlockSpec((9, HW), lambda n: (0, 0)),
        pl.BlockSpec((Cout, 9 * Cin), lambda n: (0, 0)),
        pl.BlockSpec((Cout, 1), lambda n: (0, 0)),
    ]
    inputs = [x, _conv_masks(H, W), _wt(w), _col(b)]
    if has_prelu:
        in_specs.append(pl.BlockSpec(memory_space=pltpu.MemorySpace.SMEM))
        inputs.append(jnp.asarray(prelu_alpha, jnp.float32).reshape(1))
    if has_res:
        in_specs.append(pl.BlockSpec((1, Cout, HW), lambda n: (n, 0, 0)))
        inputs.append(residual)

    flops = 2 * N * HW * 9 * Cin * Cout
    bytes_accessed = 4 * (N * HW * (Cin + Cout * (2 if has_res else 1))
                          + 9 * Cin * Cout + Cout + 9 * HW)
    return pl.pallas_call(
        kernel,
        grid=(N,),
        in_specs=in_specs,
        out_specs=pl.BlockSpec((1, Cout, HW), lambda n: (n, 0, 0)),
        out_shape=jax.ShapeDtypeStruct((N, Cout, HW), jnp.float32),
        compiler_params=_compiler_params(),
        cost_estimate=pl.CostEstimate(flops=flops, transcendentals=0,
                                      bytes_accessed=bytes_accessed),
    )(*inputs)


# ---------------------------------------------------------------------------
# Kernel 2: fused RDDABlock = Sequential(PReLU, Conv3x3, Conv3x3)(x) + x.
# The intermediate activation never leaves VMEM.
# ---------------------------------------------------------------------------
def rddablock(x, p, *, H, W):
    N, C, HW = x.shape
    mode = _roll_mode()

    def kernel(x_ref, m_ref, w1_ref, b1_ref, w2_ref, b2_ref, a_ref, o_ref):
        mk = m_ref[...]
        x0 = x_ref[0]
        a = a_ref[0]
        t = jnp.where(x0 >= 0, x0, a * x0)                        # PReLU
        t = jnp.dot(w1_ref[...], _taps3x3(t, mk, H, W, mode),
                    preferred_element_type=jnp.float32) + b1_ref[...]
        t = jnp.dot(w2_ref[...], _taps3x3(t, mk, H, W, mode),
                    preferred_element_type=jnp.float32) + b2_ref[...]
        o_ref[0] = x0 + t

    flops = 2 * 2 * N * HW * 9 * C * C
    bytes_accessed = 4 * (2 * N * HW * C + 2 * 9 * C * C + 2 * C + 9 * HW)
    return pl.pallas_call(
        kernel,
        grid=(N,),
        in_specs=[pl.BlockSpec((1, C, HW), lambda n: (n, 0, 0)),
                  pl.BlockSpec((9, HW), lambda n: (0, 0)),
                  pl.BlockSpec((C, 9 * C), lambda n: (0, 0)),
                  pl.BlockSpec((C, 1), lambda n: (0, 0)),
                  pl.BlockSpec((C, 9 * C), lambda n: (0, 0)),
                  pl.BlockSpec((C, 1), lambda n: (0, 0)),
                  pl.BlockSpec(memory_space=pltpu.MemorySpace.SMEM)],
        out_specs=pl.BlockSpec((1, C, HW), lambda n: (n, 0, 0)),
        out_shape=jax.ShapeDtypeStruct((N, C, HW), jnp.float32),
        compiler_params=_compiler_params(),
        cost_estimate=pl.CostEstimate(flops=flops, transcendentals=0,
                                      bytes_accessed=bytes_accessed),
    )(x, _conv_masks(H, W), _wt(p["w1"]), _col(p["b1"]),
      _wt(p["w2"]), _col(p["b2"]),
      jnp.asarray(p["alpha"], jnp.float32).reshape(1))


# ---------------------------------------------------------------------------
# Kernel 3: fused RDDAB tail.
#   atten = conv_attn(cat[x, out1, out2, b3])   (K-split; 13c never in HBM)
#   cab   = ChannelAttention(atten);  pab = PixelAttention(atten)
#   out   = x + conv_e(cat[cab, pab])
# ---------------------------------------------------------------------------
def rddab_tail(x, out1, out2, b3, p, *, H, W):
    N, C, HW = x.shape
    mode = _roll_mode()
    wa = p["wa"]                                   # (3, 3, 13C, C) HWIO
    wax = _wt(wa[:, :, 0:C, :])
    wao1 = _wt(wa[:, :, C:3 * C, :])
    wao2 = _wt(wa[:, :, 3 * C:8 * C, :])
    wab3 = _wt(wa[:, :, 8 * C:13 * C, :])
    inv_hw = 1.0 / float(HW)

    def kernel(x_ref, o1_ref, o2_ref, b3_ref, m_ref,
               wax_ref, wao1_ref, wao2_ref, wab3_ref, ba_ref,
               cw1_ref, cw2_ref, pw1_ref, pb1_ref, pw2_ref, pb2_ref,
               we_ref, be_ref, o_ref):
        mk = m_ref[...]
        x0 = x_ref[0]
        # conv_attn, accumulated over the concat groups (one big-K dot each).
        atten = jnp.dot(wax_ref[...], _taps3x3(x0, mk, H, W, mode),
                        preferred_element_type=jnp.float32)
        atten += jnp.dot(wao1_ref[...], _taps3x3(o1_ref[0], mk, H, W, mode),
                         preferred_element_type=jnp.float32)
        atten += jnp.dot(wao2_ref[...], _taps3x3(o2_ref[0], mk, H, W, mode),
                         preferred_element_type=jnp.float32)
        atten += jnp.dot(wab3_ref[...], _taps3x3(b3_ref[0], mk, H, W, mode),
                         preferred_element_type=jnp.float32)
        atten += ba_ref[...]                                      # (C, HW)

        # Channel attention: global mean -> 1x1 -> ReLU -> 1x1 -> sigmoid.
        m = jnp.sum(atten, axis=1, keepdims=True) * inv_hw        # (C, 1)
        y = jnp.maximum(jnp.dot(cw1_ref[...], m,
                                preferred_element_type=jnp.float32), 0.0)
        g = jnp.dot(cw2_ref[...], y, preferred_element_type=jnp.float32)
        g = 1.0 / (1.0 + jnp.exp(-g))                             # (C, 1)
        cab = atten * g

        # Pixel attention: 1x1 (C->C,+b) -> ReLU -> 1x1 (C->1,+b) -> sigmoid.
        t = jnp.maximum(jnp.dot(pw1_ref[...], atten,
                                preferred_element_type=jnp.float32)
                        + pb1_ref[...], 0.0)
        s = jnp.dot(pw2_ref[...], t, preferred_element_type=jnp.float32) + pb2_ref[0]
        s = 1.0 / (1.0 + jnp.exp(-s))                             # (1, HW) lane-dense
        pab = atten * s

        # conv_e over cat([cab, pab]) + residual x.
        cat = jnp.concatenate([cab, pab], axis=0)                 # (2C, HW)
        out = jnp.dot(we_ref[...], _taps3x3(cat, mk, H, W, mode),
                      preferred_element_type=jnp.float32) + be_ref[...]
        o_ref[0] = x0 + out

    def full(shape):
        return pl.BlockSpec(shape, lambda n: (0,) * len(shape))

    def per_n(c):
        return pl.BlockSpec((1, c, HW), lambda n: (n, 0, 0))

    in_specs = [per_n(C), per_n(2 * C), per_n(5 * C), per_n(5 * C),
                full((9, HW)),
                full((C, 9 * C)), full((C, 18 * C)), full((C, 45 * C)),
                full((C, 45 * C)), full((C, 1)),
                full((C, C)), full((C, C)),
                full((C, C)), full((C, 1)), full((1, C)),
                pl.BlockSpec(memory_space=pltpu.MemorySpace.SMEM),
                full((C, 18 * C)), full((C, 1))]
    inputs = [x, out1, out2, b3,
              _conv_masks(H, W),
              wax, wao1, wao2, wab3, _col(p["ba"]),
              jnp.asarray(p["ca_w1"], jnp.float32).T,
              jnp.asarray(p["ca_w2"], jnp.float32).T,
              jnp.asarray(p["pa_w1"], jnp.float32).T,
              _col(p["pa_b1"]),
              jnp.asarray(p["pa_w2"], jnp.float32).T,
              jnp.asarray(p["pa_b2"], jnp.float32).reshape(1),
              _wt(p["we"]), _col(p["be"])]

    flops = 2 * N * HW * 9 * C * (13 * C + 2 * C) + 2 * N * HW * C * (C + 1)
    bytes_accessed = 4 * (N * HW * 14 * C + 9 * 15 * C * C + 9 * HW)
    return pl.pallas_call(
        kernel,
        grid=(N,),
        in_specs=in_specs,
        out_specs=per_n(C),
        out_shape=jax.ShapeDtypeStruct((N, C, HW), jnp.float32),
        compiler_params=_compiler_params(),
        cost_estimate=pl.CostEstimate(flops=flops,
                                      transcendentals=N * (HW + C),
                                      bytes_accessed=bytes_accessed),
    )(*inputs)


# ---------------------------------------------------------------------------
# Module composition (only the cheap out1/out2 concats are plain JAX glue).
# ---------------------------------------------------------------------------
def rddab_forward(x, p, *, H, W):
    b1 = rddablock(x, p["block1"], H=H, W=W)
    out1 = jnp.concatenate([x, b1], axis=1)
    b2 = rddablock(out1, p["block2"], H=H, W=W)
    out2 = jnp.concatenate([x, out1, b2], axis=1)
    b3 = rddablock(out2, p["block3"], H=H, W=W)
    # out3 (13C) is never materialised: the tail kernel K-splits conv_attn and
    # fuses channel/pixel attention and conv_e (+ residual).
    return rddab_tail(x, out1, out2, b3, p, H=H, W=W)


@jax.jit
def rdb_forward_nchw(x_nchw, params):
    N, C, H, W = x_nchw.shape
    x = x_nchw.reshape(N, C, H * W).astype(jnp.float32)   # lane-dense (N, C, H*W)
    t = rddab_forward(x, params["rddab1"], H=H, W=W)
    t = rddab_forward(t, params["rddab2"], H=H, W=W)
    y = conv3x3(t, params["wf"], params["bf"], residual=x, H=H, W=W)
    return y.reshape(N, C, H, W)


# ---------------------------------------------------------------------------
# Deterministic parameter init (synthetic; mirrors the nn.Module shapes).
# ---------------------------------------------------------------------------
def _init_conv3x3(key, cin, cout):
    k1, k2 = jax.random.split(key)
    w = jax.random.normal(k1, (3, 3, cin, cout), jnp.float32) * 0.05
    b = jax.random.normal(k2, (cout,), jnp.float32) * 0.05
    return w, b


def _init_rddablock(key, c):
    k1, k2 = jax.random.split(key)
    w1, b1 = _init_conv3x3(k1, c, c)
    w2, b2 = _init_conv3x3(k2, c, c)
    return {"alpha": jnp.float32(0.25), "w1": w1, "b1": b1, "w2": w2, "b2": b2}


def _init_rddab(key, c):
    ks = jax.random.split(key, 8)
    wa, ba = _init_conv3x3(ks[3], 13 * c, c)
    we, be = _init_conv3x3(ks[4], 2 * c, c)
    k5a, k5b = jax.random.split(ks[5])
    k6a, k6b, k6c, k6d = jax.random.split(ks[6], 4)
    return {
        "block1": _init_rddablock(ks[0], c),
        "block2": _init_rddablock(ks[1], 2 * c),
        "block3": _init_rddablock(ks[2], 5 * c),
        "wa": wa, "ba": ba,
        # ChannelAttention: two 1x1 convs, no bias  (stored as (Cin, Cout))
        "ca_w1": jax.random.normal(k5a, (c, c), jnp.float32) * 0.1,
        "ca_w2": jax.random.normal(k5b, (c, c), jnp.float32) * 0.1,
        # PixelAttention: 1x1 (C->C, bias) then 1x1 (C->1, bias)
        "pa_w1": jax.random.normal(k6a, (c, c), jnp.float32) * 0.1,
        "pa_b1": jax.random.normal(k6b, (c,), jnp.float32) * 0.05,
        "pa_w2": jax.random.normal(k6c, (c, 1), jnp.float32) * 0.1,
        "pa_b2": jax.random.normal(k6d, (1,), jnp.float32) * 0.05,
        "we": we, "be": be,
    }


def init_rdb_params(key, c):
    k1, k2, k3 = jax.random.split(key, 3)
    wf, bf = _init_conv3x3(k3, c, c)
    return {"rddab1": _init_rddab(k1, c), "rddab2": _init_rddab(k2, c),
            "wf": wf, "bf": bf}


# ---------------------------------------------------------------------------
# Pure-JAX reference (numerical validation of the Pallas path).
# ---------------------------------------------------------------------------
def _ref_conv3x3(x, w, b):
    y = jax.lax.conv_general_dilated(
        x, w, (1, 1), "SAME", dimension_numbers=("NHWC", "HWIO", "NHWC"))
    return y + b


def _ref_rddablock(x, p):
    t = jnp.where(x >= 0, x, p["alpha"] * x)
    t = _ref_conv3x3(t, p["w1"], p["b1"])
    t = _ref_conv3x3(t, p["w2"], p["b2"])
    return t + x


def _ref_rddab(x, p):
    out1 = jnp.concatenate([x, _ref_rddablock(x, p["block1"])], axis=-1)
    out2 = jnp.concatenate([x, out1, _ref_rddablock(out1, p["block2"])], axis=-1)
    out3 = jnp.concatenate([x, out1, out2, _ref_rddablock(out2, p["block3"])], axis=-1)
    a = _ref_conv3x3(out3, p["wa"], p["ba"])
    # channel attention
    m = jnp.mean(a, axis=(1, 2))
    y = jnp.maximum(m @ p["ca_w1"], 0.0)
    y = jax.nn.sigmoid(y @ p["ca_w2"])
    cab = a * y[:, None, None, :]
    # pixel attention
    t = jnp.maximum(jnp.einsum("nhwc,cd->nhwd", a, p["pa_w1"]) + p["pa_b1"], 0.0)
    s = jax.nn.sigmoid(jnp.einsum("nhwc,cd->nhwd", t, p["pa_w2"]) + p["pa_b2"])
    pab = a * s
    out = jnp.concatenate([cab, pab], axis=-1)
    return x + _ref_conv3x3(out, p["we"], p["be"])


def _ref_rdb_nchw(x_nchw, params):
    x = jnp.transpose(x_nchw, (0, 2, 3, 1))
    t = _ref_rddab(x, params["rddab1"])
    t = _ref_rddab(t, params["rddab2"])
    y = x + _ref_conv3x3(t, params["wf"], params["bf"])
    return jnp.transpose(y, (0, 3, 1, 2))


if __name__ == "__main__":
    key = jax.random.PRNGKey(0)
    k_x, k_p = jax.random.split(key)

    in_channels = 4
    x = jax.random.normal(k_x, (2, in_channels, 16, 16), jnp.float32)  # NCHW
    params = init_rdb_params(k_p, in_channels)

    # Prime the probe / hw queries outside the jit trace.
    _roll_mode()
    _vmem_limit_bytes()

    out = jax.block_until_ready(rdb_forward_nchw(x, params))

    ref = _ref_rdb_nchw(x, params)
    assert out.shape == ref.shape == x.shape
    err = float(jnp.max(jnp.abs(out - ref)))
    assert err < 1e-3, err

    print("KERNEL_OK")
</pallas_src>

<mosaic_0001>
module attributes {stable_mosaic.version = 11 : i64} {
  func.func @k(%arg0: memref<8x128xf32, #tpu.memory_space<vmem>>, %arg1: memref<8x128xf32, #tpu.memory_space<vmem>>) attributes {dimension_semantics = [], scalar_prefetch = 0 : i64, scratch_operands = 0 : i64, tpu.core_type = #tpu.core_type<tc>} {
    %c0 = arith.constant 0 : index
    %c0_0 = arith.constant 0 : index
    %0 = vector.load %arg0[%c0, %c0_0] : memref<8x128xf32, #tpu.memory_space<vmem>>, vector<8x128xf32>
    %c1_i32 = arith.constant 1 : i32
    %1 = tpu.dynamic_rotate %0 by %c1_i32 dim 1 : vector<8x128xf32>, i32 -> vector<8x128xf32>
    %c0_1 = arith.constant 0 : index
    %c0_2 = arith.constant 0 : index
    %2 = vector.load %arg1[%c0_1, %c0_2] : memref<8x128xf32, #tpu.memory_space<vmem>>, vector<8x128xf32>
    tpu.vector_store %arg1[%c0_1, %c0_2], %1 {strides = array<i32>} : memref<8x128xf32, #tpu.memory_space<vmem>>, vector<8x128xf32>,
    return
  }
}

module attributes {stable_mosaic.version = 11 : i64} {
  func.func @kernel(%arg0: i32, %arg1: memref<1x4x256xf32, #tpu.memory_space<vmem>>, %arg2: memref<9x256xf32, #tpu.memory_space<vmem>>, %arg3: memref<4x36xf32, #tpu.memory_space<vmem>>, %arg4: memref<4x1xf32, #tpu.memory_space<vmem>>, %arg5: memref<4x36xf32, #tpu.memory_space<vmem>>, %arg6: memref<4x1xf32, #tpu.memory_space<vmem>>, %arg7: memref<1xf32, #tpu.memory_space<smem>>, %arg8: memref<1x4x256xf32, #tpu.memory_space<vmem>>) attributes {dimension_semantics = [#tpu.dimension_semantics<parallel>], iteration_bounds = array<i64: 2>, scalar_prefetch = 0 : i64, scratch_operands = 0 : i64, tpu.core_type = #tpu.core_type<tc>, window_params = [{transform_indices = @transform_0, window_bounds = array<i64: 1, 4, 256>}, {pipeline_mode = #tpu.pipeline_mode<synchronous>, transform_indices = @transform_1, window_bounds = array<i64: 9, 256>}, {pipeline_mode = #tpu.pipeline_mode<synchronous>, transform_indices = @transform_2, window_bounds = array<i64: 4, 36>}, {pipeline_mode = #tpu.pipeline_mode<synchronous>, transform_indices = @transform_3, window_bounds = array<i64: 4, 1>}, {pipeline_mode = #tpu.pipeline_mode<synchronous>, transform_indices = @transform_4, window_bounds = array<i64: 4, 36>}, {pipeline_mode = #tpu.pipeline_mode<synchronous>, transform_indices = @transform_5, window_bounds = array<i64: 4, 1>}, {transform_indices = @transform_6, window_bounds = array<i64: 1>}, {transform_indices = @transform_7, window_bounds = array<i64: 1, 4, 256>}]} {
    %c0 = arith.constant 0 : index
    %c0_0 = arith.constant 0 : index
    %0 = vector.load %arg2[%c0, %c0_0] : memref<9x256xf32, #tpu.memory_space<vmem>>, vector<9x256xf32>
    %c0_1 = arith.constant 0 : index
    %c0_2 = arith.constant 0 : index
    %c0_3 = arith.constant 0 : index
    %1 = vector.load %arg1[%c0_1, %c0_2, %c0_3] : memref<1x4x256xf32, #tpu.memory_space<vmem>>, vector<1x4x256xf32>
    %2 = vector.shape_cast %1 : vector<1x4x256xf32> to vector<4x256xf32>
    %c0_4 = arith.constant 0 : index
    %3 = memref.load %arg7[%c0_4] : memref<1xf32, #tpu.memory_space<smem>>
    %cst = arith.constant 0.000000e+00 : f32
    %4 = vector.broadcast %cst : f32 to vector<4x256xf32>
    %5 = arith.cmpf oge, %2, %4 : vector<4x256xf32>
    %6 = vector.broadcast %3 : f32 to vector<4x256xf32>
    %7 = arith.mulf %6, %2 : vector<4x256xf32>
    %8 = arith.select %5, %2, %7 : vector<4x256xi1>, vector<4x256xf32>
    %c0_5 = arith.constant 0 : index
    %c0_6 = arith.constant 0 : index
    %9 = vector.load %arg3[%c0_5, %c0_6] : memref<4x36xf32, #tpu.memory_space<vmem>>, vector<4x36xf32>
    %cst_7 = arith.constant 0.000000e+00 : f32
    %10 = vector.broadcast %cst_7 : f32 to vector<4x17xf32>
    %11 = vector.extract_strided_slice %8 {offsets = [0, 0], sizes = [4, 239], strides = [1, 1]} : vector<4x256xf32> to vector<4x239xf32>
    %12 = tpu.concatenate %10, %11 in 1 : vector<4x17xf32>, vector<4x239xf32> -> vector<4x256xf32>
    %13 = vector.extract_strided_slice %0 {offsets = [0, 0], sizes = [1, 256], strides = [1, 1]} : vector<9x256xf32> to vector<1x256xf32>
    %14 = vector.broadcast %13 : vector<1x256xf32> to vector<4x256xf32>
    %15 = arith.mulf %12, %14 : vector<4x256xf32>
    %cst_8 = arith.constant 0.000000e+00 : f32
    %16 = vector.broadcast %cst_8 : f32 to vector<4x16xf32>
    %17 = vector.extract_strided_slice %8 {offsets = [0, 0], sizes = [4, 240], strides = [1, 1]} : vector<4x256xf32> to vector<4x240xf32>
    %18 = tpu.concatenate %16, %17 in 1 : vector<4x16xf32>, vector<4x240xf32> -> vector<4x256xf32>
    %19 = vector.extract_strided_slice %0 {offsets = [1, 0], sizes = [1, 256], strides = [1, 1]} : vector<9x256xf32> to vector<1x256xf32>
    %20 = vector.broadcast %19 : vector<1x256xf32> to vector<4x256xf32>
    %21 = arith.mulf %18, %20 : vector<4x256xf32>
    %cst_9 = arith.constant 0.000000e+00 : f32
    %22 = vector.broadcast %cst_9 : f32 to vector<4x15xf32>
    %23 = vector.extract_strided_slice %8 {offsets = [0, 0], sizes = [4, 241], strides = [1, 1]} : vector<4x256xf32> to vector<4x241xf32>
    %24 = tpu.concatenate %22, %23 in 1 : vector<4x15xf32>, vector<4x241xf32> -> vector<4x256xf32>
    %25 = vector.extract_strided_slice %0 {offsets = [2, 0], sizes = [1, 256], strides = [1, 1]} : vector<9x256xf32> to vector<1x256xf32>
    %26 = vector.broadcast %25 : vector<1x256xf32> to vector<4x256xf32>
    %27 = arith.mulf %24, %26 : vector<4x256xf32>
    %cst_10 = arith.constant 0.000000e+00 : f32
    %28 = vector.broadcast %cst_10 : f32 to vector<4x1xf32>
    %29 = vector.extract_strided_slice %8 {offsets = [0, 0], sizes = [4, 255], strides = [1, 1]} : vector<4x256xf32> to vector<4x255xf32>
    %30 = tpu.concatenate %28, %29 in 1 : vector<4x1xf32>, vector<4x255xf32> -> vector<4x256xf32>
    %31 = vector.extract_strided_slice %0 {offsets = [3, 0], sizes = [1, 256], strides = [1, 1]} : vector<9x256xf32> to vector<1x256xf32>
    %32 = vector.broadcast %31 : vector<1x256xf32> to vector<4x256xf32>
    %33 = arith.mulf %30, %32 : vector<4x256xf32>
    %cst_11 = arith.constant 0.000000e+00 : f32
    %34 = vector.broadcast %cst_11 : f32 to vector<4x1xf32>
    %35 = vector.extract_strided_slice %8 {offsets = [0, 1], sizes = [4, 255], strides = [1, 1]} : vector<4x256xf32> to vector<4x255xf32>
    %36 = tpu.concatenate %35, %34 in 1 : vector<4x255xf32>, vector<4x1xf32> -> vector<4x256xf32>
    %37 = vector.extract_strided_slice %0 {offsets = [5, 0], sizes = [1, 256], strides = [1, 1]} : vector<9x256xf32> to vector<1x256xf32>
    %38 = vector.broadcast %37 : vector<1x256xf32> to vector<4x256xf32>
    %39 = arith.mulf %36, %38 : vector<4x256xf32>
    %cst_12 = arith.constant 0.000000e+00 : f32
    %40 = vector.broadcast %cst_12 : f32 to vector<4x15xf32>
    %41 = vector.extract_strided_slice %8 {offsets = [0, 15], sizes = [4, 241], strides = [1, 1]} : vector<4x256xf32> to vector<4x241xf32>
    %42 = tpu.concatenate %41, %40 in 1 : vector<4x241xf32>, vector<4x15xf32> -> vector<4x256xf32>
    %43 = vector.extract_strided_slice %0 {offsets = [6, 0], sizes = [1, 256], strides = [1, 1]} : vector<9x256xf32> to vector<1x256xf32>
    %44 = vector.broadcast %43 : vector<1x256xf32> to vector<4x256xf32>
    %45 = arith.mulf %42, %44 : vector<4x256xf32>
    %cst_13 = arith.constant 0.000000e+00 : f32
    %46 = vector.broadcast %cst_13 : f32 to vector<4x16xf32>
    %47 = vector.extract_strided_slice %8 {offsets = [0, 16], sizes = [4, 240], strides = [1, 1]} : vector<4x256xf32> to vector<4x240xf32>
    %48 = tpu.concatenate %47, %46 in 1 : vector<4x240xf32>, vector<4x16xf32> -> vector<4x256xf32>
    %49 = vector.extract_strided_slice %0 {offsets = [7, 0], sizes = [1, 256], strides = [1, 1]} : vector<9x256xf32> to vector<1x256xf32>
    %50 = vector.broadcast %49 : vector<1x256xf32> to vector<4x256xf32>
    %51 = arith.mulf %48, %50 : vector<4x256xf32>
    %cst_14 = arith.constant 0.000000e+00 : f32
    %52 = vector.broadcast %cst_14 : f32 to vector<4x17xf32>
    %53 = vector.extract_strided_slice %8 {offsets = [0, 17], sizes = [4, 239], strides = [1, 1]} : vector<4x256xf32> to vector<4x239xf32>
    %54 = tpu.concatenate %53, %52 in 1 : vector<4x239xf32>, vector<4x17xf32> -> vector<4x256xf32>
    %55 = vector.extract_strided_slice %0 {offsets = [8, 0], sizes = [1, 256], strides = [1, 1]} : vector<9x256xf32> to vector<1x256xf32>
    %56 = vector.broadcast %55 : vector<1x256xf32> to vector<4x256xf32>
    %57 = arith.mulf %54, %56 : vector<4x256xf32>
    %58 = tpu.concatenate %15, %21, %27, %33, %8, %39, %45, %51, %57 in 0 : vector<4x256xf32>, vector<4x256xf32>, vector<4x256xf32>, vector<4x256xf32>, vector<4x256xf32>, vector<4x256xf32>, vector<4x256xf32>, vector<4x256xf32>, vector<4x256xf32> -> vector<36x256xf32>
    %cst_15 = arith.constant dense<0.000000e+00> : vector<4x256xf32>
    %59 = tpu.matmul %9, %58, %cst_15 {dimension_numbers = #tpu.dot_dimension_numbers<[1], [0], [0], [1], [0, 0, 1, 1], [], []>} : vector<4x36xf32>, vector<36x256xf32>, vector<4x256xf32> -> vector<4x256xf32>
    %c0_16 = arith.constant 0 : index
    %c0_17 = arith.constant 0 : index
    %60 = vector.load %arg4[%c0_16, %c0_17] : memref<4x1xf32, #tpu.memory_space<vmem>>, vector<4x1xf32>
    %61 = vector.broadcast %60 : vector<4x1xf32> to vector<4x256xf32>
    %62 = arith.addf %59, %61 : vector<4x256xf32>
    %c0_18 = arith.constant 0 : index
    %c0_19 = arith.constant 0 : index
    %63 = vector.load %arg5[%c0_18, %c0_19] : memref<4x36xf32, #tpu.memory_space<vmem>>, vector<4x36xf32>
    %cst_20 = arith.constant 0.000000e+00 : f32
    %64 = vector.broadcast %cst_20 : f32 to vector<4x17xf32>
    %65 = vector.extract_strided_slice %62 {offsets = [0, 0], sizes = [4, 239], strides = [1, 1]} : vector<4x256xf32> to vector<4x239xf32>
    %66 = tpu.concatenate %64, %65 in 1 : vector<4x17xf32>, vector<4x239xf32> -> vector<4x256xf32>
    %67 = vector.extract_strided_slice %0 {offsets = [0, 0], sizes = [1, 256], strides = [1, 1]} : vector<9x256xf32> to vector<1x256xf32>
    %68 = vector.broadcast %67 : vector<1x256xf32> to vector<4x256xf32>
    %69 = arith.mulf %66, %68 : vector<4x256xf32>
    %cst_21 = arith.constant 0.000000e+00 : f32
    %70 = vector.broadcast %cst_21 : f32 to vector<4x16xf32>
    %71 = vector.extract_strided_slice %62 {offsets = [0, 0], sizes = [4, 240], strides = [1, 1]} : vector<4x256xf32> to vector<4x240xf32>
    %72 = tpu.concatenate %70, %71 in 1 : vector<4x16xf32>, vector<4x240xf32> -> vector<4x256xf32>
    %73 = vector.extract_strided_slice %0 {offsets = [1, 0], sizes = [1, 256], strides = [1, 1]} : vector<9x256xf32> to vector<1x256xf32>
    %74 = vector.broadcast %73 : vector<1x256xf32> to vector<4x256xf32>
    %75 = arith.mulf %72, %74 : vector<4x256xf32>
    %cst_22 = arith.constant 0.000000e+00 : f32
    %76 = vector.broadcast %cst_22 : f32 to vector<4x15xf32>
    %77 = vector.extract_strided_slice %62 {offsets = [0, 0], sizes = [4, 241], strides = [1, 1]} : vector<4x256xf32> to vector<4x241xf32>
    %78 = tpu.concatenate %76, %77 in 1 : vector<4x15xf32>, vector<4x241xf32> -> vector<4x256xf32>
    %79 = vector.extract_strided_slice %0 {offsets = [2, 0], sizes = [1, 256], strides = [1, 1]} : vector<9x256xf32> to vector<1x256xf32>
    %80 = vector.broadcast %79 : vector<1x256xf32> to vector<4x256xf32>
    %81 = arith.mulf %78, %80 : vector<4x256xf32>
    %cst_23 = arith.constant 0.000000e+00 : f32
    %82 = vector.broadcast %cst_23 : f32 to vector<4x1xf32>
    %83 = vector.extract_strided_slice %62 {offsets = [0, 0], sizes = [4, 255], strides = [1, 1]} : vector<4x256xf32> to vector<4x255xf32>
    %84 = tpu.concatenate %82, %83 in 1 : vector<4x1xf32>, vector<4x255xf32> -> vector<4x256xf32>
    %85 = vector.extract_strided_slice %0 {offsets = [3, 0], sizes = [1, 256], strides = [1, 1]} : vector<9x256xf32> to vector<1x256xf32>
    %86 = vector.broadcast %85 : vector<1x256xf32> to vector<4x256xf32>
    %87 = arith.mulf %84, %86 : vector<4x256xf32>
    %cst_24 = arith.constant 0.000000e+00 : f32
    %88 = vector.broadcast %cst_24 : f32 to vector<4x1xf32>
    %89 = vector.extract_strided_slice %62 {offsets = [0, 1], sizes = [4, 255], strides = [1, 1]} : vector<4x256xf32> to vector<4x255xf32>
    %90 = tpu.concatenate %89, %88 in 1 : vector<4x255xf32>, vector<4x1xf32> -> vector<4x256xf32>
    %91 = vector.extract_strided_slice %0 {offsets = [5, 0], sizes = [1, 256], strides = [1, 1]} : vector<9x256xf32> to vector<1x256xf32>
    %92 = vector.broadcast %91 : vector<1x256xf32> to vector<4x256xf32>
    %93 = arith.mulf %90, %92 : vector<4x256xf32>
    %cst_25 = arith.constant 0.000000e+00 : f32
    %94 = vector.broadcast %cst_25 : f32 to vector<4x15xf32>
    %95 = vector.extract_strided_slice %62 {offsets = [0, 15], sizes = [4, 241], strides = [1, 1]} : vector<4x256xf32> to vector<4x241xf32>
    %96 = tpu.concatenate %95, %94 in 1 : vector<4x241xf32>, vector<4x15xf32> -> vector<4x256xf32>
    %97 = vector.extract_strided_slice %0 {offsets = [6, 0], sizes = [1, 256], strides = [1, 1]} : vector<9x256xf32> to vector<1x256xf32>
    %98 = vector.broadcast %97 : vector<1x256xf32> to vector<4x256xf32>
    %99 = arith.mulf %96, %98 : vector<4x256xf32>
    %cst_26 = arith.constant 0.000000e+00 : f32
    %100 = vector.broadcast %cst_26 : f32 to vector<4x16xf32>
    %101 = vector.extract_strided_slice %62 {offsets = [0, 16], sizes = [4, 240], strides = [1, 1]} : vector<4x256xf32> to vector<4x240xf32>
    %102 = tpu.concatenate %101, %100 in 1 : vector<4x240xf32>, vector<4x16xf32> -> vector<4x256xf32>
    %103 = vector.extract_strided_slice %0 {offsets = [7, 0], sizes = [1, 256], strides = [1, 1]} : vector<9x256xf32> to vector<1x256xf32>
    %104 = vector.broadcast %103 : vector<1x256xf32> to vector<4x256xf32>
    %105 = arith.mulf %102, %104 : vector<4x256xf32>
    %cst_27 = arith.constant 0.000000e+00 : f32
    %106 = vector.broadcast %cst_27 : f32 to vector<4x17xf32>
    %107 = vector.extract_strided_slice %62 {offsets = [0, 17], sizes = [4, 239], strides = [1, 1]} : vector<4x256xf32> to vector<4x239xf32>
    %108 = tpu.concatenate %107, %106 in 1 : vector<4x239xf32>, vector<4x17xf32> -> vector<4x256xf32>
    %109 = vector.extract_strided_slice %0 {offsets = [8, 0], sizes = [1, 256], strides = [1, 1]} : vector<9x256xf32> to vector<1x256xf32>
    %110 = vector.broadcast %109 : vector<1x256xf32> to vector<4x256xf32>
    %111 = arith.mulf %108, %110 : vector<4x256xf32>
    %112 = tpu.concatenate %69, %75, %81, %87, %62, %93, %99, %105, %111 in 0 : vector<4x256xf32>, vector<4x256xf32>, vector<4x256xf32>, vector<4x256xf32>, vector<4x256xf32>, vector<4x256xf32>, vector<4x256xf32>, vector<4x256xf32>, vector<4x256xf32> -> vector<36x256xf32>
    %cst_28 = arith.constant dense<0.000000e+00> : vector<4x256xf32>
    %113 = tpu.matmul %63, %112, %cst_28 {dimension_numbers = #tpu.dot_dimension_numbers<[1], [0], [0], [1], [0, 0, 1, 1], [], []>} : vector<4x36xf32>, vector<36x256xf32>, vector<4x256xf32> -> vector<4x256xf32>
    %c0_29 = arith.constant 0 : index
    %c0_30 = arith.constant 0 : index
    %114 = vector.load %arg6[%c0_29, %c0_30] : memref<4x1xf32, #tpu.memory_space<vmem>>, vector<4x1xf32>
    %115 = vector.broadcast %114 : vector<4x1xf32> to vector<4x256xf32>
    %116 = arith.addf %113, %115 : vector<4x256xf32>
    %117 = arith.addf %2, %116 : vector<4x256xf32>
    %c0_31 = arith.constant 0 : index
    %c0_32 = arith.constant 0 : index
    %c0_33 = arith.constant 0 : index
    %118 = vector.load %arg8[%c0_31, %c0_32, %c0_33] : memref<1x4x256xf32, #tpu.memory_space<vmem>>, vector<1x4x256xf32>
    %119 = vector.shape_cast %118 : vector<1x4x256xf32> to vector<4x256xf32>
    %120 = vector.shape_cast %117 : vector<4x256xf32> to vector<1x4x256xf32>
    tpu.vector_store %arg8[%c0_31, %c0_32, %c0_33], %120 {strides = array<i32>} : memref<1x4x256xf32, #tpu.memory_space<vmem>>, vector<1x4x256xf32>,
    return
  }
  func.func @transform_0(%arg0: i32) -> (i32, i32, i32) {
    %c0_i32 = arith.constant 0 : i32
    %c0_i32_0 = arith.constant 0 : i32
    %c0_i32_1 = arith.constant 0 : i32
    return %arg0, %c0_i32, %c0_i32_0 : i32, i32, i32
  }
  func.func @transform_1(%arg0: i32) -> (i32, i32) {
    %c0_i32 = arith.constant 0 : i32
    %c0_i32_0 = arith.constant 0 : i32
    %c0_i32_1 = arith.constant 0 : i32
    return %c0_i32, %c0_i32_0 : i32, i32
  }
  func.func @transform_2(%arg0: i32) -> (i32, i32) {
    %c0_i32 = arith.constant 0 : i32
    %c0_i32_0 = arith.constant 0 : i32
    %c0_i32_1 = arith.constant 0 : i32
    return %c0_i32, %c0_i32_0 : i32, i32
  }
  func.func @transform_3(%arg0: i32) -> (i32, i32) {
    %c0_i32 = arith.constant 0 : i32
    %c0_i32_0 = arith.constant 0 : i32
    %c0_i32_1 = arith.constant 0 : i32
    return %c0_i32, %c0_i32_0 : i32, i32
  }
  func.func @transform_4(%arg0: i32) -> (i32, i32) {
    %c0_i32 = arith.constant 0 : i32
    %c0_i32_0 = arith.constant 0 : i32
    %c0_i32_1 = arith.constant 0 : i32
    return %c0_i32, %c0_i32_0 : i32, i32
  }
  func.func @transform_5(%arg0: i32) -> (i32, i32) {
    %c0_i32 = arith.constant 0 : i32
    %c0_i32_0 = arith.constant 0 : i32
    %c0_i32_1 = arith.constant 0 : i32
    return %c0_i32, %c0_i32_0 : i32, i32
  }
  func.func @transform_6(%arg0: i32) -> i32 {
    %c0_i32 = arith.constant 0 : i32
    %c0_i32_0 = arith.constant 0 : i32
    return %c0_i32 : i32
  }
  func.func @transform_7(%arg0: i32) -> (i32, i32, i32) {
    %c0_i32 = arith.constant 0 : i32
    %c0_i32_0 = arith.constant 0 : i32
    %c0_i32_1 = arith.constant 0 : i32
    return %arg0, %c0_i32, %c0_i32_0 : i32, i32, i32
  }
}

module attributes {stable_mosaic.version = 11 : i64} {
  func.func @kernel(%arg0: i32, %arg1: memref<1x8x256xf32, #tpu.memory_space<vmem>>, %arg2: memref<9x256xf32, #tpu.memory_space<vmem>>, %arg3: memref<8x72xf32, #tpu.memory_space<vmem>>, %arg4: memref<8x1xf32, #tpu.memory_space<vmem>>, %arg5: memref<8x72xf32, #tpu.memory_space<vmem>>, %arg6: memref<8x1xf32, #tpu.memory_space<vmem>>, %arg7: memref<1xf32, #tpu.memory_space<smem>>, %arg8: memref<1x8x256xf32, #tpu.memory_space<vmem>>) attributes {dimension_semantics = [#tpu.dimension_semantics<parallel>], iteration_bounds = array<i64: 2>, scalar_prefetch = 0 : i64, scratch_operands = 0 : i64, tpu.core_type = #tpu.core_type<tc>, window_params = [{transform_indices = @transform_0, window_bounds = array<i64: 1, 8, 256>}, {pipeline_mode = #tpu.pipeline_mode<synchronous>, transform_indices = @transform_1, window_bounds = array<i64: 9, 256>}, {pipeline_mode = #tpu.pipeline_mode<synchronous>, transform_indices = @transform_2, window_bounds = array<i64: 8, 72>}, {pipeline_mode = #tpu.pipeline_mode<synchronous>, transform_indices = @transform_3, window_bounds = array<i64: 8, 1>}, {pipeline_mode = #tpu.pipeline_mode<synchronous>, transform_indices = @transform_4, window_bounds = array<i64: 8, 72>}, {pipeline_mode = #tpu.pipeline_mode<synchronous>, transform_indices = @transform_5, window_bounds = array<i64: 8, 1>}, {transform_indices = @transform_6, window_bounds = array<i64: 1>}, {transform_indices = @transform_7, window_bounds = array<i64: 1, 8, 256>}]} {
    %c0 = arith.constant 0 : index
    %c0_0 = arith.constant 0 : index
    %0 = vector.load %arg2[%c0, %c0_0] : memref<9x256xf32, #tpu.memory_space<vmem>>, vector<9x256xf32>
    %c0_1 = arith.constant 0 : index
    %c0_2 = arith.constant 0 : index
    %c0_3 = arith.constant 0 : index
    %1 = vector.load %arg1[%c0_1, %c0_2, %c0_3] : memref<1x8x256xf32, #tpu.memory_space<vmem>>, vector<1x8x256xf32>
    %2 = vector.shape_cast %1 : vector<1x8x256xf32> to vector<8x256xf32>
    %c0_4 = arith.constant 0 : index
    %3 = memref.load %arg7[%c0_4] : memref<1xf32, #tpu.memory_space<smem>>
    %cst = arith.constant 0.000000e+00 : f32
    %4 = vector.broadcast %cst : f32 to vector<8x256xf32>
    %5 = arith.cmpf oge, %2, %4 : vector<8x256xf32>
    %6 = vector.broadcast %3 : f32 to vector<8x256xf32>
    %7 = arith.mulf %6, %2 : vector<8x256xf32>
    %8 = arith.select %5, %2, %7 : vector<8x256xi1>, vector<8x256xf32>
    %c0_5 = arith.constant 0 : index
    %c0_6 = arith.constant 0 : index
    %9 = vector.load %arg3[%c0_5, %c0_6] : memref<8x72xf32, #tpu.memory_space<vmem>>, vector<8x72xf32>
    %cst_7 = arith.constant 0.000000e+00 : f32
    %10 = vector.broadcast %cst_7 : f32 to vector<8x17xf32>
    %11 = vector.extract_strided_slice %8 {offsets = [0, 0], sizes = [8, 239], strides = [1, 1]} : vector<8x256xf32> to vector<8x239xf32>
    %12 = tpu.concatenate %10, %11 in 1 : vector<8x17xf32>, vector<8x239xf32> -> vector<8x256xf32>
    %13 = vector.extract_strided_slice %0 {offsets = [0, 0], sizes = [1, 256], strides = [1, 1]} : vector<9x256xf32> to vector<1x256xf32>
    %14 = vector.broadcast %13 : vector<1x256xf32> to vector<8x256xf32>
    %15 = arith.mulf %12, %14 : vector<8x256xf32>
    %cst_8 = arith.constant 0.000000e+00 : f32
    %16 = vector.broadcast %cst_8 : f32 to vector<8x16xf32>
    %17 = vector.extract_strided_slice %8 {offsets = [0, 0], sizes = [8, 240], strides = [1, 1]} : vector<8x256xf32> to vector<8x240xf32>
    %18 = tpu.concatenate %16, %17 in 1 : vector<8x16xf32>, vector<8x240xf32> -> vector<8x256xf32>
    %19 = vector.extract_strided_slice %0 {offsets = [1, 0], sizes = [1, 256], strides = [1, 1]} : vector<9x256xf32> to vector<1x256xf32>
    %20 = vector.broadcast %19 : vector<1x256xf32> to vector<8x256xf32>
    %21 = arith.mulf %18, %20 : vector<8x256xf32>
    %cst_9 = arith.constant 0.000000e+00 : f32
    %22 = vector.broadcast %cst_9 : f32 to vector<8x15xf32>
    %23 = vector.extract_strided_slice %8 {offsets = [0, 0], sizes = [8, 241], strides = [1, 1]} : vector<8x256xf32> to vector<8x241xf32>
    %24 = tpu.concatenate %22, %23 in 1 : vector<8x15xf32>, vector<8x241xf32> -> vector<8x256xf32>
    %25 = vector.extract_strided_slice %0 {offsets = [2, 0], sizes = [1, 256], strides = [1, 1]} : vector<9x256xf32> to vector<1x256xf32>
    %26 = vector.broadcast %25 : vector<1x256xf32> to vector<8x256xf32>
    %27 = arith.mulf %24, %26 : vector<8x256xf32>
    %cst_10 = arith.constant 0.000000e+00 : f32
    %28 = vector.broadcast %cst_10 : f32 to vector<8x1xf32>
    %29 = vector.extract_strided_slice %8 {offsets = [0, 0], sizes = [8, 255], strides = [1, 1]} : vector<8x256xf32> to vector<8x255xf32>
    %30 = tpu.concatenate %28, %29 in 1 : vector<8x1xf32>, vector<8x255xf32> -> vector<8x256xf32>
    %31 = vector.extract_strided_slice %0 {offsets = [3, 0], sizes = [1, 256], strides = [1, 1]} : vector<9x256xf32> to vector<1x256xf32>
    %32 = vector.broadcast %31 : vector<1x256xf32> to vector<8x256xf32>
    %33 = arith.mulf %30, %32 : vector<8x256xf32>
    %cst_11 = arith.constant 0.000000e+00 : f32
    %34 = vector.broadcast %cst_11 : f32 to vector<8x1xf32>
    %35 = vector.extract_strided_slice %8 {offsets = [0, 1], sizes = [8, 255], strides = [1, 1]} : vector<8x256xf32> to vector<8x255xf32>
    %36 = tpu.concatenate %35, %34 in 1 : vector<8x255xf32>, vector<8x1xf32> -> vector<8x256xf32>
    %37 = vector.extract_strided_slice %0 {offsets = [5, 0], sizes = [1, 256], strides = [1, 1]} : vector<9x256xf32> to vector<1x256xf32>
    %38 = vector.broadcast %37 : vector<1x256xf32> to vector<8x256xf32>
    %39 = arith.mulf %36, %38 : vector<8x256xf32>
    %cst_12 = arith.constant 0.000000e+00 : f32
    %40 = vector.broadcast %cst_12 : f32 to vector<8x15xf32>
    %41 = vector.extract_strided_slice %8 {offsets = [0, 15], sizes = [8, 241], strides = [1, 1]} : vector<8x256xf32> to vector<8x241xf32>
    %42 = tpu.concatenate %41, %40 in 1 : vector<8x241xf32>, vector<8x15xf32> -> vector<8x256xf32>
    %43 = vector.extract_strided_slice %0 {offsets = [6, 0], sizes = [1, 256], strides = [1, 1]} : vector<9x256xf32> to vector<1x256xf32>
    %44 = vector.broadcast %43 : vector<1x256xf32> to vector<8x256xf32>
    %45 = arith.mulf %42, %44 : vector<8x256xf32>
    %cst_13 = arith.constant 0.000000e+00 : f32
    %46 = vector.broadcast %cst_13 : f32 to vector<8x16xf32>
    %47 = vector.extract_strided_slice %8 {offsets = [0, 16], sizes = [8, 240], strides = [1, 1]} : vector<8x256xf32> to vector<8x240xf32>
    %48 = tpu.concatenate %47, %46 in 1 : vector<8x240xf32>, vector<8x16xf32> -> vector<8x256xf32>
    %49 = vector.extract_strided_slice %0 {offsets = [7, 0], sizes = [1, 256], strides = [1, 1]} : vector<9x256xf32> to vector<1x256xf32>
    %50 = vector.broadcast %49 : vector<1x256xf32> to vector<8x256xf32>
    %51 = arith.mulf %48, %50 : vector<8x256xf32>
    %cst_14 = arith.constant 0.000000e+00 : f32
    %52 = vector.broadcast %cst_14 : f32 to vector<8x17xf32>
    %53 = vector.extract_strided_slice %8 {offsets = [0, 17], sizes = [8, 239], strides = [1, 1]} : vector<8x256xf32> to vector<8x239xf32>
    %54 = tpu.concatenate %53, %52 in 1 : vector<8x239xf32>, vector<8x17xf32> -> vector<8x256xf32>
    %55 = vector.extract_strided_slice %0 {offsets = [8, 0], sizes = [1, 256], strides = [1, 1]} : vector<9x256xf32> to vector<1x256xf32>
    %56 = vector.broadcast %55 : vector<1x256xf32> to vector<8x256xf32>
    %57 = arith.mulf %54, %56 : vector<8x256xf32>
    %58 = tpu.concatenate %15, %21, %27, %33, %8, %39, %45, %51, %57 in 0 : vector<8x256xf32>, vector<8x256xf32>, vector<8x256xf32>, vector<8x256xf32>, vector<8x256xf32>, vector<8x256xf32>, vector<8x256xf32>, vector<8x256xf32>, vector<8x256xf32> -> vector<72x256xf32>
    %cst_15 = arith.constant dense<0.000000e+00> : vector<8x256xf32>
    %59 = tpu.matmul %9, %58, %cst_15 {dimension_numbers = #tpu.dot_dimension_numbers<[1], [0], [0], [1], [0, 0, 1, 1], [], []>} : vector<8x72xf32>, vector<72x256xf32>, vector<8x256xf32> -> vector<8x256xf32>
    %c0_16 = arith.constant 0 : index
    %c0_17 = arith.constant 0 : index
    %60 = vector.load %arg4[%c0_16, %c0_17] : memref<8x1xf32, #tpu.memory_space<vmem>>, vector<8x1xf32>
    %61 = vector.broadcast %60 : vector<8x1xf32> to vector<8x256xf32>
    %62 = arith.addf %59, %61 : vector<8x256xf32>
    %c0_18 = arith.constant 0 : index
    %c0_19 = arith.constant 0 : index
    %63 = vector.load %arg5[%c0_18, %c0_19] : memref<8x72xf32, #tpu.memory_space<vmem>>, vector<8x72xf32>
    %cst_20 = arith.constant 0.000000e+00 : f32
    %64 = vector.broadcast %cst_20 : f32 to vector<8x17xf32>
    %65 = vector.extract_strided_slice %62 {offsets = [0, 0], sizes = [8, 239], strides = [1, 1]} : vector<8x256xf32> to vector<8x239xf32>
    %66 = tpu.concatenate %64, %65 in 1 : vector<8x17xf32>, vector<8x239xf32> -> vector<8x256xf32>
    %67 = vector.extract_strided_slice %0 {offsets = [0, 0], sizes = [1, 256], strides = [1, 1]} : vector<9x256xf32> to vector<1x256xf32>
    %68 = vector.broadcast %67 : vector<1x256xf32> to vector<8x256xf32>
    %69 = arith.mulf %66, %68 : vector<8x256xf32>
    %cst_21 = arith.constant 0.000000e+00 : f32
    %70 = vector.broadcast %cst_21 : f32 to vector<8x16xf32>
    %71 = vector.extract_strided_slice %62 {offsets = [0, 0], sizes = [8, 240], strides = [1, 1]} : vector<8x256xf32> to vector<8x240xf32>
    %72 = tpu.concatenate %70, %71 in 1 : vector<8x16xf32>, vector<8x240xf32> -> vector<8x256xf32>
    %73 = vector.extract_strided_slice %0 {offsets = [1, 0], sizes = [1, 256], strides = [1, 1]} : vector<9x256xf32> to vector<1x256xf32>
    %74 = vector.broadcast %73 : vector<1x256xf32> to vector<8x256xf32>
    %75 = arith.mulf %72, %74 : vector<8x256xf32>
    %cst_22 = arith.constant 0.000000e+00 : f32
    %76 = vector.broadcast %cst_22 : f32 to vector<8x15xf32>
    %77 = vector.extract_strided_slice %62 {offsets = [0, 0], sizes = [8, 241], strides = [1, 1]} : vector<8x256xf32> to vector<8x241xf32>
    %78 = tpu.concatenate %76, %77 in 1 : vector<8x15xf32>, vector<8x241xf32> -> vector<8x256xf32>
    %79 = vector.extract_strided_slice %0 {offsets = [2, 0], sizes = [1, 256], strides = [1, 1]} : vector<9x256xf32> to vector<1x256xf32>
    %80 = vector.broadcast %79 : vector<1x256xf32> to vector<8x256xf32>
    %81 = arith.mulf %78, %80 : vector<8x256xf32>
    %cst_23 = arith.constant 0.000000e+00 : f32
    %82 = vector.broadcast %cst_23 : f32 to vector<8x1xf32>
    %83 = vector.extract_strided_slice %62 {offsets = [0, 0], sizes = [8, 255], strides = [1, 1]} : vector<8x256xf32> to vector<8x255xf32>
    %84 = tpu.concatenate %82, %83 in 1 : vector<8x1xf32>, vector<8x255xf32> -> vector<8x256xf32>
    %85 = vector.extract_strided_slice %0 {offsets = [3, 0], sizes = [1, 256], strides = [1, 1]} : vector<9x256xf32> to vector<1x256xf32>
    %86 = vector.broadcast %85 : vector<1x256xf32> to vector<8x256xf32>
    %87 = arith.mulf %84, %86 : vector<8x256xf32>
    %cst_24 = arith.constant 0.000000e+00 : f32
    %88 = vector.broadcast %cst_24 : f32 to vector<8x1xf32>
    %89 = vector.extract_strided_slice %62 {offsets = [0, 1], sizes = [8, 255], strides = [1, 1]} : vector<8x256xf32> to vector<8x255xf32>
    %90 = tpu.concatenate %89, %88 in 1 : vector<8x255xf32>, vector<8x1xf32> -> vector<8x256xf32>
    %91 = vector.extract_strided_slice %0 {offsets = [5, 0], sizes = [1, 256], strides = [1, 1]} : vector<9x256xf32> to vector<1x256xf32>
    %92 = vector.broadcast %91 : vector<1x256xf32> to vector<8x256xf32>
    %93 = arith.mulf %90, %92 : vector<8x256xf32>
    %cst_25 = arith.constant 0.000000e+00 : f32
    %94 = vector.broadcast %cst_25 : f32 to vector<8x15xf32>
    %95 = vector.extract_strided_slice %62 {offsets = [0, 15], sizes = [8, 241], strides = [1, 1]} : vector<8x256xf32> to vector<8x241xf32>
    %96 = tpu.concatenate %95, %94 in 1 : vector<8x241xf32>, vector<8x15xf32> -> vector<8x256xf32>
    %97 = vector.extract_strided_slice %0 {offsets = [6, 0], sizes = [1, 256], strides = [1, 1]} : vector<9x256xf32> to vector<1x256xf32>
    %98 = vector.broadcast %97 : vector<1x256xf32> to vector<8x256xf32>
    %99 = arith.mulf %96, %98 : vector<8x256xf32>
    %cst_26 = arith.constant 0.000000e+00 : f32
    %100 = vector.broadcast %cst_26 : f32 to vector<8x16xf32>
    %101 = vector.extract_strided_slice %62 {offsets = [0, 16], sizes = [8, 240], strides = [1, 1]} : vector<8x256xf32> to vector<8x240xf32>
    %102 = tpu.concatenate %101, %100 in 1 : vector<8x240xf32>, vector<8x16xf32> -> vector<8x256xf32>
    %103 = vector.extract_strided_slice %0 {offsets = [7, 0], sizes = [1, 256], strides = [1, 1]} : vector<9x256xf32> to vector<1x256xf32>
    %104 = vector.broadcast %103 : vector<1x256xf32> to vector<8x256xf32>
    %105 = arith.mulf %102, %104 : vector<8x256xf32>
    %cst_27 = arith.constant 0.000000e+00 : f32
    %106 = vector.broadcast %cst_27 : f32 to vector<8x17xf32>
    %107 = vector.extract_strided_slice %62 {offsets = [0, 17], sizes = [8, 239], strides = [1, 1]} : vector<8x256xf32> to vector<8x239xf32>
    %108 = tpu.concatenate %107, %106 in 1 : vector<8x239xf32>, vector<8x17xf32> -> vector<8x256xf32>
    %109 = vector.extract_strided_slice %0 {offsets = [8, 0], sizes = [1, 256], strides = [1, 1]} : vector<9x256xf32> to vector<1x256xf32>
    %110 = vector.broadcast %109 : vector<1x256xf32> to vector<8x256xf32>
    %111 = arith.mulf %108, %110 : vector<8x256xf32>
    %112 = tpu.concatenate %69, %75, %81, %87, %62, %93, %99, %105, %111 in 0 : vector<8x256xf32>, vector<8x256xf32>, vector<8x256xf32>, vector<8x256xf32>, vector<8x256xf32>, vector<8x256xf32>, vector<8x256xf32>, vector<8x256xf32>, vector<8x256xf32> -> vector<72x256xf32>
    %cst_28 = arith.constant dense<0.000000e+00> : vector<8x256xf32>
    %113 = tpu.matmul %63, %112, %cst_28 {dimension_numbers = #tpu.dot_dimension_numbers<[1], [0], [0], [1], [0, 0, 1, 1], [], []>} : vector<8x72xf32>, vector<72x256xf32>, vector<8x256xf32> -> vector<8x256xf32>
    %c0_29 = arith.constant 0 : index
    %c0_30 = arith.constant 0 : index
    %114 = vector.load %arg6[%c0_29, %c0_30] : memref<8x1xf32, #tpu.memory_space<vmem>>, vector<8x1xf32>
    %115 = vector.broadcast %114 : vector<8x1xf32> to vector<8x256xf32>
    %116 = arith.addf %113, %115 : vector<8x256xf32>
    %117 = arith.addf %2, %116 : vector<8x256xf32>
    %c0_31 = arith.constant 0 : index
    %c0_32 = arith.constant 0 : index
    %c0_33 = arith.constant 0 : index
    %118 = vector.load %arg8[%c0_31, %c0_32, %c0_33] : memref<1x8x256xf32, #tpu.memory_space<vmem>>, vector<1x8x256xf32>
    %119 = vector.shape_cast %118 : vector<1x8x256xf32> to vector<8x256xf32>
    %120 = vector.shape_cast %117 : vector<8x256xf32> to vector<1x8x256xf32>
    tpu.vector_store %arg8[%c0_31, %c0_32, %c0_33], %120 {strides = array<i32>} : memref<1x8x256xf32, #tpu.memory_space<vmem>>, vector<1x8x256xf32>,
    return
  }
  func.func @transform_0(%arg0: i32) -> (i32, i32, i32) {
    %c0_i32 = arith.constant 0 : i32
    %c0_i32_0 = arith.constant 0 : i32
    %c0_i32_1 = arith.constant 0 : i32
    return %arg0, %c0_i32, %c0_i32_0 : i32, i32, i32
  }
  func.func @transform_1(%arg0: i32) -> (i32, i32) {
    %c0_i32 = arith.constant 0 : i32
    %c0_i32_0 = arith.constant 0 : i32
    %c0_i32_1 = arith.constant 0 : i32
    return %c0_i32, %c0_i32_0 : i32, i32
  }
  func.func @transform_2(%arg0: i32) -> (i32, i32) {
    %c0_i32 = arith.constant 0 : i32
    %c0_i32_0 = arith.constant 0 : i32
    %c0_i32_1 = arith.constant 0 : i32
    return %c0_i32, %c0_i32_0 : i32, i32
  }
  func.func @transform_3(%arg0: i32) -> (i32, i32) {
    %c0_i32 = arith.constant 0 : i32
    %c0_i32_0 = arith.constant 0 : i32
    %c0_i32_1 = arith.constant 0 : i32
    return %c0_i32, %c0_i32_0 : i32, i32
  }
  func.func @transform_4(%arg0: i32) -> (i32, i32) {
    %c0_i32 = arith.constant 0 : i32
    %c0_i32_0 = arith.constant 0 : i32
    %c0_i32_1 = arith.constant 0 : i32
    return %c0_i32, %c0_i32_0 : i32, i32
  }
  func.func @transform_5(%arg0: i32) -> (i32, i32) {
    %c0_i32 = arith.constant 0 : i32
    %c0_i32_0 = arith.constant 0 : i32
    %c0_i32_1 = arith.constant 0 : i32
    return %c0_i32, %c0_i32_0 : i32, i32
  }
  func.func @transform_6(%arg0: i32) -> i32 {
    %c0_i32 = arith.constant 0 : i32
    %c0_i32_0 = arith.constant 0 : i32
    return %c0_i32 : i32
  }
  func.func @transform_7(%arg0: i32) -> (i32, i32, i32) {
    %c0_i32 = arith.constant 0 : i32
    %c0_i32_0 = arith.constant 0 : i32
    %c0_i32_1 = arith.constant 0 : i32
    return %arg0, %c0_i32, %c0_i32_0 : i32, i32, i32
  }
}

module attributes {stable_mosaic.version = 11 : i64} {
  func.func @kernel(%arg0: i32, %arg1: memref<1x20x256xf32, #tpu.memory_space<vmem>>, %arg2: memref<9x256xf32, #tpu.memory_space<vmem>>, %arg3: memref<20x180xf32, #tpu.memory_space<vmem>>, %arg4: memref<20x1xf32, #tpu.memory_space<vmem>>, %arg5: memref<20x180xf32, #tpu.memory_space<vmem>>, %arg6: memref<20x1xf32, #tpu.memory_space<vmem>>, %arg7: memref<1xf32, #tpu.memory_space<smem>>, %arg8: memref<1x20x256xf32, #tpu.memory_space<vmem>>) attributes {dimension_semantics = [#tpu.dimension_semantics<parallel>], iteration_bounds = array<i64: 2>, scalar_prefetch = 0 : i64, scratch_operands = 0 : i64, tpu.core_type = #tpu.core_type<tc>, window_params = [{transform_indices = @transform_0, window_bounds = array<i64: 1, 20, 256>}, {pipeline_mode = #tpu.pipeline_mode<synchronous>, transform_indices = @transform_1, window_bounds = array<i64: 9, 256>}, {pipeline_mode = #tpu.pipeline_mode<synchronous>, transform_indices = @transform_2, window_bounds = array<i64: 20, 180>}, {pipeline_mode = #tpu.pipeline_mode<synchronous>, transform_indices = @transform_3, window_bounds = array<i64: 20, 1>}, {pipeline_mode = #tpu.pipeline_mode<synchronous>, transform_indices = @transform_4, window_bounds = array<i64: 20, 180>}, {pipeline_mode = #tpu.pipeline_mode<synchronous>, transform_indices = @transform_5, window_bounds = array<i64: 20, 1>}, {transform_indices = @transform_6, window_bounds = array<i64: 1>}, {transform_indices = @transform_7, window_bounds = array<i64: 1, 20, 256>}]} {
    %c0 = arith.constant 0 : index
    %c0_0 = arith.constant 0 : index
    %0 = vector.load %arg2[%c0, %c0_0] : memref<9x256xf32, #tpu.memory_space<vmem>>, vector<9x256xf32>
    %c0_1 = arith.constant 0 : index
    %c0_2 = arith.constant 0 : index
    %c0_3 = arith.constant 0 : index
    %1 = vector.load %arg1[%c0_1, %c0_2, %c0_3] : memref<1x20x256xf32, #tpu.memory_space<vmem>>, vector<1x20x256xf32>
    %2 = vector.shape_cast %1 : vector<1x20x256xf32> to vector<20x256xf32>
    %c0_4 = arith.constant 0 : index
    %3 = memref.load %arg7[%c0_4] : memref<1xf32, #tpu.memory_space<smem>>
    %cst = arith.constant 0.000000e+00 : f32
    %4 = vector.broadcast %cst : f32 to vector<20x256xf32>
    %5 = arith.cmpf oge, %2, %4 : vector<20x256xf32>
    %6 = vector.broadcast %3 : f32 to vector<20x256xf32>
    %7 = arith.mulf %6, %2 : vector<20x256xf32>
    %8 = arith.select %5, %2, %7 : vector<20x256xi1>, vector<20x256xf32>
    %c0_5 = arith.constant 0 : index
    %c0_6 = arith.constant 0 : index
    %9 = vector.load %arg3[%c0_5, %c0_6] : memref<20x180xf32, #tpu.memory_space<vmem>>, vector<20x180xf32>
    %cst_7 = arith.constant 0.000000e+00 : f32
    %10 = vector.broadcast %cst_7 : f32 to vector<20x17xf32>
    %11 = vector.extract_strided_slice %8 {offsets = [0, 0], sizes = [20, 239], strides = [1, 1]} : vector<20x256xf32> to vector<20x239xf32>
    %12 = tpu.concatenate %10, %11 in 1 : vector<20x17xf32>, vector<20x239xf32> -> vector<20x256xf32>
    %13 = vector.extract_strided_slice %0 {offsets = [0, 0], sizes = [1, 256], strides = [1, 1]} : vector<9x256xf32> to vector<1x256xf32>
    %14 = vector.broadcast %13 : vector<1x256xf32> to vector<20x256xf32>
    %15 = arith.mulf %12, %14 : vector<20x256xf32>
    %cst_8 = arith.constant 0.000000e+00 : f32
    %16 = vector.broadcast %cst_8 : f32 to vector<20x16xf32>
    %17 = vector.extract_strided_slice %8 {offsets = [0, 0], sizes = [20, 240], strides = [1, 1]} : vector<20x256xf32> to vector<20x240xf32>
    %18 = tpu.concatenate %16, %17 in 1 : vector<20x16xf32>, vector<20x240xf32> -> vector<20x256xf32>
    %19 = vector.extract_strided_slice %0 {offsets = [1, 0], sizes = [1, 256], strides = [1, 1]} : vector<9x256xf32> to vector<1x256xf32>
    %20 = vector.broadcast %19 : vector<1x256xf32> to vector<20x256xf32>
    %21 = arith.mulf %18, %20 : vector<20x256xf32>
    %cst_9 = arith.constant 0.000000e+00 : f32
    %22 = vector.broadcast %cst_9 : f32 to vector<20x15xf32>
    %23 = vector.extract_strided_slice %8 {offsets = [0, 0], sizes = [20, 241], strides = [1, 1]} : vector<20x256xf32> to vector<20x241xf32>
    %24 = tpu.concatenate %22, %23 in 1 : vector<20x15xf32>, vector<20x241xf32> -> vector<20x256xf32>
    %25 = vector.extract_strided_slice %0 {offsets = [2, 0], sizes = [1, 256], strides = [1, 1]} : vector<9x256xf32> to vector<1x256xf32>
    %26 = vector.broadcast %25 : vector<1x256xf32> to vector<20x256xf32>
    %27 = arith.mulf %24, %26 : vector<20x256xf32>
    %cst_10 = arith.constant 0.000000e+00 : f32
    %28 = vector.broadcast %cst_10 : f32 to vector<20x1xf32>
    %29 = vector.extract_strided_slice %8 {offsets = [0, 0], sizes = [20, 255], strides = [1, 1]} : vector<20x256xf32> to vector<20x255xf32>
    %30 = tpu.concatenate %28, %29 in 1 : vector<20x1xf32>, vector<20x255xf32> -> vector<20x256xf32>
    %31 = vector.extract_strided_slice %0 {offsets = [3, 0], sizes = [1, 256], strides = [1, 1]} : vector<9x256xf32> to vector<1x256xf32>
    %32 = vector.broadcast %31 : vector<1x256xf32> to vector<20x256xf32>
    %33 = arith.mulf %30, %32 : vector<20x256xf32>
    %cst_11 = arith.constant 0.000000e+00 : f32
    %34 = vector.broadcast %cst_11 : f32 to vector<20x1xf32>
    %35 = vector.extract_strided_slice %8 {offsets = [0, 1], sizes = [20, 255], strides = [1, 1]} : vector<20x256xf32> to vector<20x255xf32>
    %36 = tpu.concatenate %35, %34 in 1 : vector<20x255xf32>, vector<20x1xf32> -> vector<20x256xf32>
    %37 = vector.extract_strided_slice %0 {offsets = [5, 0], sizes = [1, 256], strides = [1, 1]} : vector<9x256xf32> to vector<1x256xf32>
    %38 = vector.broadcast %37 : vector<1x256xf32> to vector<20x256xf32>
    %39 = arith.mulf %36, %38 : vector<20x256xf32>
    %cst_12 = arith.constant 0.000000e+00 : f32
    %40 = vector.broadcast %cst_12 : f32 to vector<20x15xf32>
    %41 = vector.extract_strided_slice %8 {offsets = [0, 15], sizes = [20, 241], strides = [1, 1]} : vector<20x256xf32> to vector<20x241xf32>
    %42 = tpu.concatenate %41, %40 in 1 : vector<20x241xf32>, vector<20x15xf32> -> vector<20x256xf32>
    %43 = vector.extract_strided_slice %0 {offsets = [6, 0], sizes = [1, 256], strides = [1, 1]} : vector<9x256xf32> to vector<1x256xf32>
    %44 = vector.broadcast %43 : vector<1x256xf32> to vector<20x256xf32>
    %45 = arith.mulf %42, %44 : vector<20x256xf32>
    %cst_13 = arith.constant 0.000000e+00 : f32
    %46 = vector.broadcast %cst_13 : f32 to vector<20x16xf32>
    %47 = vector.extract_strided_slice %8 {offsets = [0, 16], sizes = [20, 240], strides = [1, 1]} : vector<20x256xf32> to vector<20x240xf32>
    %48 = tpu.concatenate %47, %46 in 1 : vector<20x240xf32>, vector<20x16xf32> -> vector<20x256xf32>
    %49 = vector.extract_strided_slice %0 {offsets = [7, 0], sizes = [1, 256], strides = [1, 1]} : vector<9x256xf32> to vector<1x256xf32>
    %50 = vector.broadcast %49 : vector<1x256xf32> to vector<20x256xf32>
    %51 = arith.mulf %48, %50 : vector<20x256xf32>
    %cst_14 = arith.constant 0.000000e+00 : f32
    %52 = vector.broadcast %cst_14 : f32 to vector<20x17xf32>
    %53 = vector.extract_strided_slice %8 {offsets = [0, 17], sizes = [20, 239], strides = [1, 1]} : vector<20x256xf32> to vector<20x239xf32>
    %54 = tpu.concatenate %53, %52 in 1 : vector<20x239xf32>, vector<20x17xf32> -> vector<20x256xf32>
    %55 = vector.extract_strided_slice %0 {offsets = [8, 0], sizes = [1, 256], strides = [1, 1]} : vector<9x256xf32> to vector<1x256xf32>
    %56 = vector.broadcast %55 : vector<1x256xf32> to vector<20x256xf32>
    %57 = arith.mulf %54, %56 : vector<20x256xf32>
    %58 = tpu.concatenate %15, %21, %27, %33, %8, %39, %45, %51, %57 in 0 : vector<20x256xf32>, vector<20x256xf32>, vector<20x256xf32>, vector<20x256xf32>, vector<20x256xf32>, vector<20x256xf32>, vector<20x256xf32>, vector<20x256xf32>, vector<20x256xf32> -> vector<180x256xf32>
    %cst_15 = arith.constant dense<0.000000e+00> : vector<20x256xf32>
    %59 = tpu.matmul %9, %58, %cst_15 {dimension_numbers = #tpu.dot_dimension_numbers<[1], [0], [0], [1], [0, 0, 1, 1], [], []>} : vector<20x180xf32>, vector<180x256xf32>, vector<20x256xf32> -> vector<20x256xf32>
    %c0_16 = arith.constant 0 : index
    %c0_17 = arith.constant 0 : index
    %60 = vector.load %arg4[%c0_16, %c0_17] : memref<20x1xf32, #tpu.memory_space<vmem>>, vector<20x1xf32>
    %61 = vector.broadcast %60 : vector<20x1xf32> to vector<20x256xf32>
    %62 = arith.addf %59, %61 : vector<20x256xf32>
    %c0_18 = arith.constant 0 : index
    %c0_19 = arith.constant 0 : index
    %63 = vector.load %arg5[%c0_18, %c0_19] : memref<20x180xf32, #tpu.memory_space<vmem>>, vector<20x180xf32>
    %cst_20 = arith.constant 0.000000e+00 : f32
    %64 = vector.broadcast %cst_20 : f32 to vector<20x17xf32>
    %65 = vector.extract_strided_slice %62 {offsets = [0, 0], sizes = [20, 239], strides = [1, 1]} : vector<20x256xf32> to vector<20x239xf32>
    %66 = tpu.concatenate %64, %65 in 1 : vector<20x17xf32>, vector<20x239xf32> -> vector<20x256xf32>
    %67 = vector.extract_strided_slice %0 {offsets = [0, 0], sizes = [1, 256], strides = [1, 1]} : vector<9x256xf32> to vector<1x256xf32>
    %68 = vector.broadcast %67 : vector<1x256xf32> to vector<20x256xf32>
    %69 = arith.mulf %66, %68 : vector<20x256xf32>
    %cst_21 = arith.constant 0.000000e+00 : f32
    %70 = vector.broadcast %cst_21 : f32 to vector<20x16xf32>
    %71 = vector.extract_strided_slice %62 {offsets = [0, 0], sizes = [20, 240], strides = [1, 1]} : vector<20x256xf32> to vector<20x240xf32>
    %72 = tpu.concatenate %70, %71 in 1 : vector<20x16xf32>, vector<20x240xf32> -> vector<20x256xf32>
    %73 = vector.extract_strided_slice %0 {offsets = [1, 0], sizes = [1, 256], strides = [1, 1]} : vector<9x256xf32> to vector<1x256xf32>
    %74 = vector.broadcast %73 : vector<1x256xf32> to vector<20x256xf32>
    %75 = arith.mulf %72, %74 : vector<20x256xf32>
    %cst_22 = arith.constant 0.000000e+00 : f32
    %76 = vector.broadcast %cst_22 : f32 to vector<20x15xf32>
    %77 = vector.extract_strided_slice %62 {offsets = [0, 0], sizes = [20, 241], strides = [1, 1]} : vector<20x256xf32> to vector<20x241xf32>
    %78 = tpu.concatenate %76, %77 in 1 : vector<20x15xf32>, vector<20x241xf32> -> vector<20x256xf32>
    %79 = vector.extract_strided_slice %0 {offsets = [2, 0], sizes = [1, 256], strides = [1, 1]} : vector<9x256xf32> to vector<1x256xf32>
    %80 = vector.broadcast %79 : vector<1x256xf32> to vector<20x256xf32>
    %81 = arith.mulf %78, %80 : vector<20x256xf32>
    %cst_23 = arith.constant 0.000000e+00 : f32
    %82 = vector.broadcast %cst_23 : f32 to vector<20x1xf32>
    %83 = vector.extract_strided_slice %62 {offsets = [0, 0], sizes = [20, 255], strides = [1, 1]} : vector<20x256xf32> to vector<20x255xf32>
    %84 = tpu.concatenate %82, %83 in 1 : vector<20x1xf32>, vector<20x255xf32> -> vector<20x256xf32>
    %85 = vector.extract_strided_slice %0 {offsets = [3, 0], sizes = [1, 256], strides = [1, 1]} : vector<9x256xf32> to vector<1x256xf32>
    %86 = vector.broadcast %85 : vector<1x256xf32> to vector<20x256xf32>
    %87 = arith.mulf %84, %86 : vector<20x256xf32>
    %cst_24 = arith.constant 0.000000e+00 : f32
    %88 = vector.broadcast %cst_24 : f32 to vector<20x1xf32>
    %89 = vector.extract_strided_slice %62 {offsets = [0, 1], sizes = [20, 255], strides = [1, 1]} : vector<20x256xf32> to vector<20x255xf32>
    %90 = tpu.concatenate %89, %88 in 1 : vector<20x255xf32>, vector<20x1xf32> -> vector<20x256xf32>
    %91 = vector.extract_strided_slice %0 {offsets = [5, 0], sizes = [1, 256], strides = [1, 1]} : vector<9x256xf32> to vector<1x256xf32>
    %92 = vector.broadcast %91 : vector<1x256xf32> to vector<20x256xf32>
    %93 = arith.mulf %90, %92 : vector<20x256xf32>
    %cst_25 = arith.constant 0.000000e+00 : f32
    %94 = vector.broadcast %cst_25 : f32 to vector<20x15xf32>
    %95 = vector.extract_strided_slice %62 {offsets = [0, 15], sizes = [20, 241], strides = [1, 1]} : vector<20x256xf32> to vector<20x241xf32>
    %96 = tpu.concatenate %95, %94 in 1 : vector<20x241xf32>, vector<20x15xf32> -> vector<20x256xf32>
    %97 = vector.extract_strided_slice %0 {offsets = [6, 0], sizes = [1, 256], strides = [1, 1]} : vector<9x256xf32> to vector<1x256xf32>
    %98 = vector.broadcast %97 : vector<1x256xf32> to vector<20x256xf32>
    %99 = arith.mulf %96, %98 : vector<20x256xf32>
    %cst_26 = arith.constant 0.000000e+00 : f32
    %100 = vector.broadcast %cst_26 : f32 to vector<20x16xf32>
    %101 = vector.extract_strided_slice %62 {offsets = [0, 16], sizes = [20, 240], strides = [1, 1]} : vector<20x256xf32> to vector<20x240xf32>
    %102 = tpu.concatenate %101, %100 in 1 : vector<20x240xf32>, vector<20x16xf32> -> vector<20x256xf32>
    %103 = vector.extract_strided_slice %0 {offsets = [7, 0], sizes = [1, 256], strides = [1, 1]} : vector<9x256xf32> to vector<1x256xf32>
    %104 = vector.broadcast %103 : vector<1x256xf32> to vector<20x256xf32>
    %105 = arith.mulf %102, %104 : vector<20x256xf32>
    %cst_27 = arith.constant 0.000000e+00 : f32
    %106 = vector.broadcast %cst_27 : f32 to vector<20x17xf32>
    %107 = vector.extract_strided_slice %62 {offsets = [0, 17], sizes = [20, 239], strides = [1, 1]} : vector<20x256xf32> to vector<20x239xf32>
    %108 = tpu.concatenate %107, %106 in 1 : vector<20x239xf32>, vector<20x17xf32> -> vector<20x256xf32>
    %109 = vector.extract_strided_slice %0 {offsets = [8, 0], sizes = [1, 256], strides = [1, 1]} : vector<9x256xf32> to vector<1x256xf32>
    %110 = vector.broadcast %109 : vector<1x256xf32> to vector<20x256xf32>
    %111 = arith.mulf %108, %110 : vector<20x256xf32>
    %112 = tpu.concatenate %69, %75, %81, %87, %62, %93, %99, %105, %111 in 0 : vector<20x256xf32>, vector<20x256xf32>, vector<20x256xf32>, vector<20x256xf32>, vector<20x256xf32>, vector<20x256xf32>, vector<20x256xf32>, vector<20x256xf32>, vector<20x256xf32> -> vector<180x256xf32>
    %cst_28 = arith.constant dense<0.000000e+00> : vector<20x256xf32>
    %113 = tpu.matmul %63, %112, %cst_28 {dimension_numbers = #tpu.dot_dimension_numbers<[1], [0], [0], [1], [0, 0, 1, 1], [], []>} : vector<20x180xf32>, vector<180x256xf32>, vector<20x256xf32> -> vector<20x256xf32>
    %c0_29 = arith.constant 0 : index
    %c0_30 = arith.constant 0 : index
    %114 = vector.load %arg6[%c0_29, %c0_30] : memref<20x1xf32, #tpu.memory_space<vmem>>, vector<20x1xf32>
    %115 = vector.broadcast %114 : vector<20x1xf32> to vector<20x256xf32>
    %116 = arith.addf %113, %115 : vector<20x256xf32>
    %117 = arith.addf %2, %116 : vector<20x256xf32>
    %c0_31 = arith.constant 0 : index
    %c0_32 = arith.constant 0 : index
    %c0_33 = arith.constant 0 : index
    %118 = vector.load %arg8[%c0_31, %c0_32, %c0_33] : memref<1x20x256xf32, #tpu.memory_space<vmem>>, vector<1x20x256xf32>
    %119 = vector.shape_cast %118 : vector<1x20x256xf32> to vector<20x256xf32>
    %120 = vector.shape_cast %117 : vector<20x256xf32> to vector<1x20x256xf32>
    tpu.vector_store %arg8[%c0_31, %c0_32, %c0_33], %120 {strides = array<i32>} : memref<1x20x256xf32, #tpu.memory_space<vmem>>, vector<1x20x256xf32>,
    return
  }
  func.func @transform_0(%arg0: i32) -> (i32, i32, i32) {
    %c0_i32 = arith.constant 0 : i32
    %c0_i32_0 = arith.constant 0 : i32
    %c0_i32_1 = arith.constant 0 : i32
    return %arg0, %c0_i32, %c0_i32_0 : i32, i32, i32
  }
  func.func @transform_1(%arg0: i32) -> (i32, i32) {
    %c0_i32 = arith.constant 0 : i32
    %c0_i32_0 = arith.constant 0 : i32
    %c0_i32_1 = arith.constant 0 : i32
    return %c0_i32, %c0_i32_0 : i32, i32
  }
  func.func @transform_2(%arg0: i32) -> (i32, i32) {
    %c0_i32 = arith.constant 0 : i32
    %c0_i32_0 = arith.constant 0 : i32
    %c0_i32_1 = arith.constant 0 : i32
    return %c0_i32, %c0_i32_0 : i32, i32
  }
  func.func @transform_3(%arg0: i32) -> (i32, i32) {
    %c0_i32 = arith.constant 0 : i32
    %c0_i32_0 = arith.constant 0 : i32
    %c0_i32_1 = arith.constant 0 : i32
    return %c0_i32, %c0_i32_0 : i32, i32
  }
  func.func @transform_4(%arg0: i32) -> (i32, i32) {
    %c0_i32 = arith.constant 0 : i32
    %c0_i32_0 = arith.constant 0 : i32
    %c0_i32_1 = arith.constant 0 : i32
    return %c0_i32, %c0_i32_0 : i32, i32
  }
  func.func @transform_5(%arg0: i32) -> (i32, i32) {
    %c0_i32 = arith.constant 0 : i32
    %c0_i32_0 = arith.constant 0 : i32
    %c0_i32_1 = arith.constant 0 : i32
    return %c0_i32, %c0_i32_0 : i32, i32
  }
  func.func @transform_6(%arg0: i32) -> i32 {
    %c0_i32 = arith.constant 0 : i32
    %c0_i32_0 = arith.constant 0 : i32
    return %c0_i32 : i32
  }
  func.func @transform_7(%arg0: i32) -> (i32, i32, i32) {
    %c0_i32 = arith.constant 0 : i32
    %c0_i32_0 = arith.constant 0 : i32
    %c0_i32_1 = arith.constant 0 : i32
    return %arg0, %c0_i32, %c0_i32_0 : i32, i32, i32
  }
}

module attributes {stable_mosaic.version = 11 : i64} {
  func.func @kernel(%arg0: i32, %arg1: memref<1x4x256xf32, #tpu.memory_space<vmem>>, %arg2: memref<9x256xf32, #tpu.memory_space<vmem>>, %arg3: memref<4x36xf32, #tpu.memory_space<vmem>>, %arg4: memref<4x1xf32, #tpu.memory_space<vmem>>, %arg5: memref<1x4x256xf32, #tpu.memory_space<vmem>>, %arg6: memref<1x4x256xf32, #tpu.memory_space<vmem>>) attributes {dimension_semantics = [#tpu.dimension_semantics<parallel>], iteration_bounds = array<i64: 2>, scalar_prefetch = 0 : i64, scratch_operands = 0 : i64, tpu.core_type = #tpu.core_type<tc>, window_params = [{transform_indices = @transform_0, window_bounds = array<i64: 1, 4, 256>}, {pipeline_mode = #tpu.pipeline_mode<synchronous>, transform_indices = @transform_1, window_bounds = array<i64: 9, 256>}, {pipeline_mode = #tpu.pipeline_mode<synchronous>, transform_indices = @transform_2, window_bounds = array<i64: 4, 36>}, {pipeline_mode = #tpu.pipeline_mode<synchronous>, transform_indices = @transform_3, window_bounds = array<i64: 4, 1>}, {transform_indices = @transform_4, window_bounds = array<i64: 1, 4, 256>}, {transform_indices = @transform_5, window_bounds = array<i64: 1, 4, 256>}]} {
    %c0 = arith.constant 0 : index
    %c0_0 = arith.constant 0 : index
    %0 = vector.load %arg2[%c0, %c0_0] : memref<9x256xf32, #tpu.memory_space<vmem>>, vector<9x256xf32>
    %c0_1 = arith.constant 0 : index
    %c0_2 = arith.constant 0 : index
    %c0_3 = arith.constant 0 : index
    %1 = vector.load %arg1[%c0_1, %c0_2, %c0_3] : memref<1x4x256xf32, #tpu.memory_space<vmem>>, vector<1x4x256xf32>
    %2 = vector.shape_cast %1 : vector<1x4x256xf32> to vector<4x256xf32>
    %c0_4 = arith.constant 0 : index
    %c0_5 = arith.constant 0 : index
    %3 = vector.load %arg3[%c0_4, %c0_5] : memref<4x36xf32, #tpu.memory_space<vmem>>, vector<4x36xf32>
    %cst = arith.constant 0.000000e+00 : f32
    %4 = vector.broadcast %cst : f32 to vector<4x17xf32>
    %5 = vector.extract_strided_slice %2 {offsets = [0, 0], sizes = [4, 239], strides = [1, 1]} : vector<4x256xf32> to vector<4x239xf32>
    %6 = tpu.concatenate %4, %5 in 1 : vector<4x17xf32>, vector<4x239xf32> -> vector<4x256xf32>
    %7 = vector.extract_strided_slice %0 {offsets = [0, 0], sizes = [1, 256], strides = [1, 1]} : vector<9x256xf32> to vector<1x256xf32>
    %8 = vector.broadcast %7 : vector<1x256xf32> to vector<4x256xf32>
    %9 = arith.mulf %6, %8 : vector<4x256xf32>
    %cst_6 = arith.constant 0.000000e+00 : f32
    %10 = vector.broadcast %cst_6 : f32 to vector<4x16xf32>
    %11 = vector.extract_strided_slice %2 {offsets = [0, 0], sizes = [4, 240], strides = [1, 1]} : vector<4x256xf32> to vector<4x240xf32>
    %12 = tpu.concatenate %10, %11 in 1 : vector<4x16xf32>, vector<4x240xf32> -> vector<4x256xf32>
    %13 = vector.extract_strided_slice %0 {offsets = [1, 0], sizes = [1, 256], strides = [1, 1]} : vector<9x256xf32> to vector<1x256xf32>
    %14 = vector.broadcast %13 : vector<1x256xf32> to vector<4x256xf32>
    %15 = arith.mulf %12, %14 : vector<4x256xf32>
    %cst_7 = arith.constant 0.000000e+00 : f32
    %16 = vector.broadcast %cst_7 : f32 to vector<4x15xf32>
    %17 = vector.extract_strided_slice %2 {offsets = [0, 0], sizes = [4, 241], strides = [1, 1]} : vector<4x256xf32> to vector<4x241xf32>
    %18 = tpu.concatenate %16, %17 in 1 : vector<4x15xf32>, vector<4x241xf32> -> vector<4x256xf32>
    %19 = vector.extract_strided_slice %0 {offsets = [2, 0], sizes = [1, 256], strides = [1, 1]} : vector<9x256xf32> to vector<1x256xf32>
    %20 = vector.broadcast %19 : vector<1x256xf32> to vector<4x256xf32>
    %21 = arith.mulf %18, %20 : vector<4x256xf32>
    %cst_8 = arith.constant 0.000000e+00 : f32
    %22 = vector.broadcast %cst_8 : f32 to vector<4x1xf32>
    %23 = vector.extract_strided_slice %2 {offsets = [0, 0], sizes = [4, 255], strides = [1, 1]} : vector<4x256xf32> to vector<4x255xf32>
    %24 = tpu.concatenate %22, %23 in 1 : vector<4x1xf32>, vector<4x255xf32> -> vector<4x256xf32>
    %25 = vector.extract_strided_slice %0 {offsets = [3, 0], sizes = [1, 256], strides = [1, 1]} : vector<9x256xf32> to vector<1x256xf32>
    %26 = vector.broadcast %25 : vector<1x256xf32> to vector<4x256xf32>
    %27 = arith.mulf %24, %26 : vector<4x256xf32>
    %cst_9 = arith.constant 0.000000e+00 : f32
    %28 = vector.broadcast %cst_9 : f32 to vector<4x1xf32>
    %29 = vector.extract_strided_slice %2 {offsets = [0, 1], sizes = [4, 255], strides = [1, 1]} : vector<4x256xf32> to vector<4x255xf32>
    %30 = tpu.concatenate %29, %28 in 1 : vector<4x255xf32>, vector<4x1xf32> -> vector<4x256xf32>
    %31 = vector.extract_strided_slice %0 {offsets = [5, 0], sizes = [1, 256], strides = [1, 1]} : vector<9x256xf32> to vector<1x256xf32>
    %32 = vector.broadcast %31 : vector<1x256xf32> to vector<4x256xf32>
    %33 = arith.mulf %30, %32 : vector<4x256xf32>
    %cst_10 = arith.constant 0.000000e+00 : f32
    %34 = vector.broadcast %cst_10 : f32 to vector<4x15xf32>
    %35 = vector.extract_strided_slice %2 {offsets = [0, 15], sizes = [4, 241], strides = [1, 1]} : vector<4x256xf32> to vector<4x241xf32>
    %36 = tpu.concatenate %35, %34 in 1 : vector<4x241xf32>, vector<4x15xf32> -> vector<4x256xf32>
    %37 = vector.extract_strided_slice %0 {offsets = [6, 0], sizes = [1, 256], strides = [1, 1]} : vector<9x256xf32> to vector<1x256xf32>
    %38 = vector.broadcast %37 : vector<1x256xf32> to vector<4x256xf32>
    %39 = arith.mulf %36, %38 : vector<4x256xf32>
    %cst_11 = arith.constant 0.000000e+00 : f32
    %40 = vector.broadcast %cst_11 : f32 to vector<4x16xf32>
    %41 = vector.extract_strided_slice %2 {offsets = [0, 16], sizes = [4, 240], strides = [1, 1]} : vector<4x256xf32> to vector<4x240xf32>
    %42 = tpu.concatenate %41, %40 in 1 : vector<4x240xf32>, vector<4x16xf32> -> vector<4x256xf32>
    %43 = vector.extract_strided_slice %0 {offsets = [7, 0], sizes = [1, 256], strides = [1, 1]} : vector<9x256xf32> to vector<1x256xf32>
    %44 = vector.broadcast %43 : vector<1x256xf32> to vector<4x256xf32>
    %45 = arith.mulf %42, %44 : vector<4x256xf32>
    %cst_12 = arith.constant 0.000000e+00 : f32
    %46 = vector.broadcast %cst_12 : f32 to vector<4x17xf32>
    %47 = vector.extract_strided_slice %2 {offsets = [0, 17], sizes = [4, 239], strides = [1, 1]} : vector<4x256xf32> to vector<4x239xf32>
    %48 = tpu.concatenate %47, %46 in 1 : vector<4x239xf32>, vector<4x17xf32> -> vector<4x256xf32>
    %49 = vector.extract_strided_slice %0 {offsets = [8, 0], sizes = [1, 256], strides = [1, 1]} : vector<9x256xf32> to vector<1x256xf32>
    %50 = vector.broadcast %49 : vector<1x256xf32> to vector<4x256xf32>
    %51 = arith.mulf %48, %50 : vector<4x256xf32>
    %52 = tpu.concatenate %9, %15, %21, %27, %2, %33, %39, %45, %51 in 0 : vector<4x256xf32>, vector<4x256xf32>, vector<4x256xf32>, vector<4x256xf32>, vector<4x256xf32>, vector<4x256xf32>, vector<4x256xf32>, vector<4x256xf32>, vector<4x256xf32> -> vector<36x256xf32>
    %cst_13 = arith.constant dense<0.000000e+00> : vector<4x256xf32>
    %53 = tpu.matmul %3, %52, %cst_13 {dimension_numbers = #tpu.dot_dimension_numbers<[1], [0], [0], [1], [0, 0, 1, 1], [], []>} : vector<4x36xf32>, vector<36x256xf32>, vector<4x256xf32> -> vector<4x256xf32>
    %c0_14 = arith.constant 0 : index
    %c0_15 = arith.constant 0 : index
    %54 = vector.load %arg4[%c0_14, %c0_15] : memref<4x1xf32, #tpu.memory_space<vmem>>, vector<4x1xf32>
    %55 = vector.broadcast %54 : vector<4x1xf32> to vector<4x256xf32>
    %56 = arith.addf %53, %55 : vector<4x256xf32>
    %c0_16 = arith.constant 0 : index
    %c0_17 = arith.constant 0 : index
    %c0_18 = arith.constant 0 : index
    %57 = vector.load %arg5[%c0_16, %c0_17, %c0_18] : memref<1x4x256xf32, #tpu.memory_space<vmem>>, vector<1x4x256xf32>
    %58 = vector.shape_cast %57 : vector<1x4x256xf32> to vector<4x256xf32>
    %59 = arith.addf %56, %58 : vector<4x256xf32>
    %c0_19 = arith.constant 0 : index
    %c0_20 = arith.constant 0 : index
    %c0_21 = arith.constant 0 : index
    %60 = vector.load %arg6[%c0_19, %c0_20, %c0_21] : memref<1x4x256xf32, #tpu.memory_space<vmem>>, vector<1x4x256xf32>
    %61 = vector.shape_cast %60 : vector<1x4x256xf32> to vector<4x256xf32>
    %62 = vector.shape_cast %59 : vector<4x256xf32> to vector<1x4x256xf32>
    tpu.vector_store %arg6[%c0_19, %c0_20, %c0_21], %62 {strides = array<i32>} : memref<1x4x256xf32, #tpu.memory_space<vmem>>, vector<1x4x256xf32>,
    return
  }
  func.func @transform_0(%arg0: i32) -> (i32, i32, i32) {
    %c0_i32 = arith.constant 0 : i32
    %c0_i32_0 = arith.constant 0 : i32
    %c0_i32_1 = arith.constant 0 : i32
    return %arg0, %c0_i32, %c0_i32_0 : i32, i32, i32
  }
  func.func @transform_1(%arg0: i32) -> (i32, i32) {
    %c0_i32 = arith.constant 0 : i32
    %c0_i32_0 = arith.constant 0 : i32
    %c0_i32_1 = arith.constant 0 : i32
    return %c0_i32, %c0_i32_0 : i32, i32
  }
  func.func @transform_2(%arg0: i32) -> (i32, i32) {
    %c0_i32 = arith.constant 0 : i32
    %c0_i32_0 = arith.constant 0 : i32
    %c0_i32_1 = arith.constant 0 : i32
    return %c0_i32, %c0_i32_0 : i32, i32
  }
  func.func @transform_3(%arg0: i32) -> (i32, i32) {
    %c0_i32 = arith.constant 0 : i32
    %c0_i32_0 = arith.constant 0 : i32
    %c0_i32_1 = arith.constant 0 : i32
    return %c0_i32, %c0_i32_0 : i32, i32
  }
  func.func @transform_4(%arg0: i32) -> (i32, i32, i32) {
    %c0_i32 = arith.constant 0 : i32
    %c0_i32_0 = arith.constant 0 : i32
    %c0_i32_1 = arith.constant 0 : i32
    return %arg0, %c0_i32, %c0_i32_0 : i32, i32, i32
  }
  func.func @transform_5(%arg0: i32) -> (i32, i32, i32) {
    %c0_i32 = arith.constant 0 : i32
    %c0_i32_0 = arith.constant 0 : i32
    %c0_i32_1 = arith.constant 0 : i32
    return %arg0, %c0_i32, %c0_i32_0 : i32, i32, i32
  }
}

module attributes {stable_mosaic.version = 11 : i64} {
  func.func @kernel(%arg0: i32, %arg1: memref<1x4x256xf32, #tpu.memory_space<vmem>>, %arg2: memref<1x8x256xf32, #tpu.memory_space<vmem>>, %arg3: memref<1x20x256xf32, #tpu.memory_space<vmem>>, %arg4: memref<1x20x256xf32, #tpu.memory_space<vmem>>, %arg5: memref<9x256xf32, #tpu.memory_space<vmem>>, %arg6: memref<4x36xf32, #tpu.memory_space<vmem>>, %arg7: memref<4x72xf32, #tpu.memory_space<vmem>>, %arg8: memref<4x180xf32, #tpu.memory_space<vmem>>, %arg9: memref<4x180xf32, #tpu.memory_space<vmem>>, %arg10: memref<4x1xf32, #tpu.memory_space<vmem>>, %arg11: memref<4x4xf32, #tpu.memory_space<vmem>>, %arg12: memref<4x4xf32, #tpu.memory_space<vmem>>, %arg13: memref<4x4xf32, #tpu.memory_space<vmem>>, %arg14: memref<4x1xf32, #tpu.memory_space<vmem>>, %arg15: memref<1x4xf32, #tpu.memory_space<vmem>>, %arg16: memref<1xf32, #tpu.memory_space<smem>>, %arg17: memref<4x72xf32, #tpu.memory_space<vmem>>, %arg18: memref<4x1xf32, #tpu.memory_space<vmem>>, %arg19: memref<1x4x256xf32, #tpu.memory_space<vmem>>) attributes {dimension_semantics = [#tpu.dimension_semantics<parallel>], iteration_bounds = array<i64: 2>, scalar_prefetch = 0 : i64, scratch_operands = 0 : i64, tpu.core_type = #tpu.core_type<tc>, window_params = [{transform_indices = @transform_0, window_bounds = array<i64: 1, 4, 256>}, {transform_indices = @transform_1, window_bounds = array<i64: 1, 8, 256>}, {transform_indices = @transform_2, window_bounds = array<i64: 1, 20, 256>}, {transform_indices = @transform_3, window_bounds = array<i64: 1, 20, 256>}, {pipeline_mode = #tpu.pipeline_mode<synchronous>, transform_indices = @transform_4, window_bounds = array<i64: 9, 256>}, {pipeline_mode = #tpu.pipeline_mode<synchronous>, transform_indices = @transform_5, window_bounds = array<i64: 4, 36>}, {pipeline_mode = #tpu.pipeline_mode<synchronous>, transform_indices = @transform_6, window_bounds = array<i64: 4, 72>}, {pipeline_mode = #tpu.pipeline_mode<synchronous>, transform_indices = @transform_7, window_bounds = array<i64: 4, 180>}, {pipeline_mode = #tpu.pipeline_mode<synchronous>, transform_indices = @transform_8, window_bounds = array<i64: 4, 180>}, {pipeline_mode = #tpu.pipeline_mode<synchronous>, transform_indices = @transform_9, window_bounds = array<i64: 4, 1>}, {pipeline_mode = #tpu.pipeline_mode<synchronous>, transform_indices = @transform_10, window_bounds = array<i64: 4, 4>}, {pipeline_mode = #tpu.pipeline_mode<synchronous>, transform_indices = @transform_11, window_bounds = array<i64: 4, 4>}, {pipeline_mode = #tpu.pipeline_mode<synchronous>, transform_indices = @transform_12, window_bounds = array<i64: 4, 4>}, {pipeline_mode = #tpu.pipeline_mode<synchronous>, transform_indices = @transform_13, window_bounds = array<i64: 4, 1>}, {pipeline_mode = #tpu.pipeline_mode<synchronous>, transform_indices = @transform_14, window_bounds = array<i64: 1, 4>}, {transform_indices = @transform_15, window_bounds = array<i64: 1>}, {pipeline_mode = #tpu.pipeline_mode<synchronous>, transform_indices = @transform_16, window_bounds = array<i64: 4, 72>}, {pipeline_mode = #tpu.pipeline_mode<synchronous>, transform_indices = @transform_17, window_bounds = array<i64: 4, 1>}, {transform_indices = @transform_18, window_bounds = array<i64: 1, 4, 256>}]} {
    %c0 = arith.constant 0 : index
    %c0_0 = arith.constant 0 : index
    %0 = vector.load %arg5[%c0, %c0_0] : memref<9x256xf32, #tpu.memory_space<vmem>>, vector<9x256xf32>
    %c0_1 = arith.constant 0 : index
    %c0_2 = arith.constant 0 : index
    %c0_3 = arith.constant 0 : index
    %1 = vector.load %arg1[%c0_1, %c0_2, %c0_3] : memref<1x4x256xf32, #tpu.memory_space<vmem>>, vector<1x4x256xf32>
    %2 = vector.shape_cast %1 : vector<1x4x256xf32> to vector<4x256xf32>
    %c0_4 = arith.constant 0 : index
    %c0_5 = arith.constant 0 : index
    %3 = vector.load %arg6[%c0_4, %c0_5] : memref<4x36xf32, #tpu.memory_space<vmem>>, vector<4x36xf32>
    %cst = arith.constant 0.000000e+00 : f32
    %4 = vector.broadcast %cst : f32 to vector<4x17xf32>
    %5 = vector.extract_strided_slice %2 {offsets = [0, 0], sizes = [4, 239], strides = [1, 1]} : vector<4x256xf32> to vector<4x239xf32>
    %6 = tpu.concatenate %4, %5 in 1 : vector<4x17xf32>, vector<4x239xf32> -> vector<4x256xf32>
    %7 = vector.extract_strided_slice %0 {offsets = [0, 0], sizes = [1, 256], strides = [1, 1]} : vector<9x256xf32> to vector<1x256xf32>
    %8 = vector.broadcast %7 : vector<1x256xf32> to vector<4x256xf32>
    %9 = arith.mulf %6, %8 : vector<4x256xf32>
    %cst_6 = arith.constant 0.000000e+00 : f32
    %10 = vector.broadcast %cst_6 : f32 to vector<4x16xf32>
    %11 = vector.extract_strided_slice %2 {offsets = [0, 0], sizes = [4, 240], strides = [1, 1]} : vector<4x256xf32> to vector<4x240xf32>
    %12 = tpu.concatenate %10, %11 in 1 : vector<4x16xf32>, vector<4x240xf32> -> vector<4x256xf32>
    %13 = vector.extract_strided_slice %0 {offsets = [1, 0], sizes = [1, 256], strides = [1, 1]} : vector<9x256xf32> to vector<1x256xf32>
    %14 = vector.broadcast %13 : vector<1x256xf32> to vector<4x256xf32>
    %15 = arith.mulf %12, %14 : vector<4x256xf32>
    %cst_7 = arith.constant 0.000000e+00 : f32
    %16 = vector.broadcast %cst_7 : f32 to vector<4x15xf32>
    %17 = vector.extract_strided_slice %2 {offsets = [0, 0], sizes = [4, 241], strides = [1, 1]} : vector<4x256xf32> to vector<4x241xf32>
    %18 = tpu.concatenate %16, %17 in 1 : vector<4x15xf32>, vector<4x241xf32> -> vector<4x256xf32>
    %19 = vector.extract_strided_slice %0 {offsets = [2, 0], sizes = [1, 256], strides = [1, 1]} : vector<9x256xf32> to vector<1x256xf32>
    %20 = vector.broadcast %19 : vector<1x256xf32> to vector<4x256xf32>
    %21 = arith.mulf %18, %20 : vector<4x256xf32>
    %cst_8 = arith.constant 0.000000e+00 : f32
    %22 = vector.broadcast %cst_8 : f32 to vector<4x1xf32>
    %23 = vector.extract_strided_slice %2 {offsets = [0, 0], sizes = [4, 255], strides = [1, 1]} : vector<4x256xf32> to vector<4x255xf32>
    %24 = tpu.concatenate %22, %23 in 1 : vector<4x1xf32>, vector<4x255xf32> -> vector<4x256xf32>
    %25 = vector.extract_strided_slice %0 {offsets = [3, 0], sizes = [1, 256], strides = [1, 1]} : vector<9x256xf32> to vector<1x256xf32>
    %26 = vector.broadcast %25 : vector<1x256xf32> to vector<4x256xf32>
    %27 = arith.mulf %24, %26 : vector<4x256xf32>
    %cst_9 = arith.constant 0.000000e+00 : f32
    %28 = vector.broadcast %cst_9 : f32 to vector<4x1xf32>
    %29 = vector.extract_strided_slice %2 {offsets = [0, 1], sizes = [4, 255], strides = [1, 1]} : vector<4x256xf32> to vector<4x255xf32>
    %30 = tpu.concatenate %29, %28 in 1 : vector<4x255xf32>, vector<4x1xf32> -> vector<4x256xf32>
    %31 = vector.extract_strided_slice %0 {offsets = [5, 0], sizes = [1, 256], strides = [1, 1]} : vector<9x256xf32> to vector<1x256xf32>
    %32 = vector.broadcast %31 : vector<1x256xf32> to vector<4x256xf32>
    %33 = arith.mulf %30, %32 : vector<4x256xf32>
    %cst_10 = arith.constant 0.000000e+00 : f32
    %34 = vector.broadcast %cst_10 : f32 to vector<4x15xf32>
    %35 = vector.extract_strided_slice %2 {offsets = [0, 15], sizes = [4, 241], strides = [1, 1]} : vector<4x256xf32> to vector<4x241xf32>
    %36 = tpu.concatenate %35, %34 in 1 : vector<4x241xf32>, vector<4x15xf32> -> vector<4x256xf32>
    %37 = vector.extract_strided_slice %0 {offsets = [6, 0], sizes = [1, 256], strides = [1, 1]} : vector<9x256xf32> to vector<1x256xf32>
    %38 = vector.broadcast %37 : vector<1x256xf32> to vector<4x256xf32>
    %39 = arith.mulf %36, %38 : vector<4x256xf32>
    %cst_11 = arith.constant 0.000000e+00 : f32
    %40 = vector.broadcast %cst_11 : f32 to vector<4x16xf32>
    %41 = vector.extract_strided_slice %2 {offsets = [0, 16], sizes = [4, 240], strides = [1, 1]} : vector<4x256xf32> to vector<4x240xf32>
    %42 = tpu.concatenate %41, %40 in 1 : vector<4x240xf32>, vector<4x16xf32> -> vector<4x256xf32>
    %43 = vector.extract_strided_slice %0 {offsets = [7, 0], sizes = [1, 256], strides = [1, 1]} : vector<9x256xf32> to vector<1x256xf32>
    %44 = vector.broadcast %43 : vector<1x256xf32> to vector<4x256xf32>
    %45 = arith.mulf %42, %44 : vector<4x256xf32>
    %cst_12 = arith.constant 0.000000e+00 : f32
    %46 = vector.broadcast %cst_12 : f32 to vector<4x17xf32>
    %47 = vector.extract_strided_slice %2 {offsets = [0, 17], sizes = [4, 239], strides = [1, 1]} : vector<4x256xf32> to vector<4x239xf32>
    %48 = tpu.concatenate %47, %46 in 1 : vector<4x239xf32>, vector<4x17xf32> -> vector<4x256xf32>
    %49 = vector.extract_strided_slice %0 {offsets = [8, 0], sizes = [1, 256], strides = [1, 1]} : vector<9x256xf32> to vector<1x256xf32>
    %50 = vector.broadcast %49 : vector<1x256xf32> to vector<4x256xf32>
    %51 = arith.mulf %48, %50 : vector<4x256xf32>
    %52 = tpu.concatenate %9, %15, %21, %27, %2, %33, %39, %45, %51 in 0 : vector<4x256xf32>, vector<4x256xf32>, vector<4x256xf32>, vector<4x256xf32>, vector<4x256xf32>, vector<4x256xf32>, vector<4x256xf32>, vector<4x256xf32>, vector<4x256xf32> -> vector<36x256xf32>
    %cst_13 = arith.constant dense<0.000000e+00> : vector<4x256xf32>
    %53 = tpu.matmul %3, %52, %cst_13 {dimension_numbers = #tpu.dot_dimension_numbers<[1], [0], [0], [1], [0, 0, 1, 1], [], []>} : vector<4x36xf32>, vector<36x256xf32>, vector<4x256xf32> -> vector<4x256xf32>
    %c0_14 = arith.constant 0 : index
    %c0_15 = arith.constant 0 : index
    %54 = vector.load %arg7[%c0_14, %c0_15] : memref<4x72xf32, #tpu.memory_space<vmem>>, vector<4x72xf32>
    %c0_16 = arith.constant 0 : index
    %c0_17 = arith.constant 0 : index
    %c0_18 = arith.constant 0 : index
    %55 = vector.load %arg2[%c0_16, %c0_17, %c0_18] : memref<1x8x256xf32, #tpu.memory_space<vmem>>, vector<1x8x256xf32>
    %56 = vector.shape_cast %55 : vector<1x8x256xf32> to vector<8x256xf32>
    %cst_19 = arith.constant 0.000000e+00 : f32
    %57 = vector.broadcast %cst_19 : f32 to vector<8x17xf32>
    %58 = vector.extract_strided_slice %56 {offsets = [0, 0], sizes = [8, 239], strides = [1, 1]} : vector<8x256xf32> to vector<8x239xf32>
    %59 = tpu.concatenate %57, %58 in 1 : vector<8x17xf32>, vector<8x239xf32> -> vector<8x256xf32>
    %60 = vector.extract_strided_slice %0 {offsets = [0, 0], sizes = [1, 256], strides = [1, 1]} : vector<9x256xf32> to vector<1x256xf32>
    %61 = vector.broadcast %60 : vector<1x256xf32> to vector<8x256xf32>
    %62 = arith.mulf %59, %61 : vector<8x256xf32>
    %cst_20 = arith.constant 0.000000e+00 : f32
    %63 = vector.broadcast %cst_20 : f32 to vector<8x16xf32>
    %64 = vector.extract_strided_slice %56 {offsets = [0, 0], sizes = [8, 240], strides = [1, 1]} : vector<8x256xf32> to vector<8x240xf32>
    %65 = tpu.concatenate %63, %64 in 1 : vector<8x16xf32>, vector<8x240xf32> -> vector<8x256xf32>
    %66 = vector.extract_strided_slice %0 {offsets = [1, 0], sizes = [1, 256], strides = [1, 1]} : vector<9x256xf32> to vector<1x256xf32>
    %67 = vector.broadcast %66 : vector<1x256xf32> to vector<8x256xf32>
    %68 = arith.mulf %65, %67 : vector<8x256xf32>
    %cst_21 = arith.constant 0.000000e+00 : f32
    %69 = vector.broadcast %cst_21 : f32 to vector<8x15xf32>
    %70 = vector.extract_strided_slice %56 {offsets = [0, 0], sizes = [8, 241], strides = [1, 1]} : vector<8x256xf32> to vector<8x241xf32>
    %71 = tpu.concatenate %69, %70 in 1 : vector<8x15xf32>, vector<8x241xf32> -> vector<8x256xf32>
    %72 = vector.extract_strided_slice %0 {offsets = [2, 0], sizes = [1, 256], strides = [1, 1]} : vector<9x256xf32> to vector<1x256xf32>
    %73 = vector.broadcast %72 : vector<1x256xf32> to vector<8x256xf32>
    %74 = arith.mulf %71, %73 : vector<8x256xf32>
    %cst_22 = arith.constant 0.000000e+00 : f32
    %75 = vector.broadcast %cst_22 : f32 to vector<8x1xf32>
    %76 = vector.extract_strided_slice %56 {offsets = [0, 0], sizes = [8, 255], strides = [1, 1]} : vector<8x256xf32> to vector<8x255xf32>
    %77 = tpu.concatenate %75, %76 in 1 : vector<8x1xf32>, vector<8x255xf32> -> vector<8x256xf32>
    %78 = vector.extract_strided_slice %0 {offsets = [3, 0], sizes = [1, 256], strides = [1, 1]} : vector<9x256xf32> to vector<1x256xf32>
    %79 = vector.broadcast %78 : vector<1x256xf32> to vector<8x256xf32>
    %80 = arith.mulf %77, %79 : vector<8x256xf32>
    %cst_23 = arith.constant 0.000000e+00 : f32
    %81 = vector.broadcast %cst_23 : f32 to vector<8x1xf32>
    %82 = vector.extract_strided_slice %56 {offsets = [0, 1], sizes = [8, 255], strides = [1, 1]} : vector<8x256xf32> to vector<8x255xf32>
    %83 = tpu.concatenate %82, %81 in 1 : vector<8x255xf32>, vector<8x1xf32> -> vector<8x256xf32>
    %84 = vector.extract_strided_slice %0 {offsets = [5, 0], sizes = [1, 256], strides = [1, 1]} : vector<9x256xf32> to vector<1x256xf32>
    %85 = vector.broadcast %84 : vector<1x256xf32> to vector<8x256xf32>
    %86 = arith.mulf %83, %85 : vector<8x256xf32>
    %cst_24 = arith.constant 0.000000e+00 : f32
    %87 = vector.broadcast %cst_24 : f32 to vector<8x15xf32>
    %88 = vector.extract_strided_slice %56 {offsets = [0, 15], sizes = [8, 241], strides = [1, 1]} : vector<8x256xf32> to vector<8x241xf32>
    %89 = tpu.concatenate %88, %87 in 1 : vector<8x241xf32>, vector<8x15xf32> -> vector<8x256xf32>
    %90 = vector.extract_strided_slice %0 {offsets = [6, 0], sizes = [1, 256], strides = [1, 1]} : vector<9x256xf32> to vector<1x256xf32>
    %91 = vector.broadcast %90 : vector<1x256xf32> to vector<8x256xf32>
    %92 = arith.mulf %89, %91 : vector<8x256xf32>
    %cst_25 = arith.constant 0.000000e+00 : f32
    %93 = vector.broadcast %cst_25 : f32 to vector<8x16xf32>
    %94 = vector.extract_strided_slice %56 {offsets = [0, 16], sizes = [8, 240], strides = [1, 1]} : vector<8x256xf32> to vector<8x240xf32>
    %95 = tpu.concatenate %94, %93 in 1 : vector<8x240xf32>, vector<8x16xf32> -> vector<8x256xf32>
    %96 = vector.extract_strided_slice %0 {offsets = [7, 0], sizes = [1, 256], strides = [1, 1]} : vector<9x256xf32> to vector<1x256xf32>
    %97 = vector.broadcast %96 : vector<1x256xf32> to vector<8x256xf32>
    %98 = arith.mulf %95, %97 : vector<8x256xf32>
    %cst_26 = arith.constant 0.000000e+00 : f32
    %99 = vector.broadcast %cst_26 : f32 to vector<8x17xf32>
    %100 = vector.extract_strided_slice %56 {offsets = [0, 17], sizes = [8, 239], strides = [1, 1]} : vector<8x256xf32> to vector<8x239xf32>
    %101 = tpu.concatenate %100, %99 in 1 : vector<8x239xf32>, vector<8x17xf32> -> vector<8x256xf32>
    %102 = vector.extract_strided_slice %0 {offsets = [8, 0], sizes = [1, 256], strides = [1, 1]} : vector<9x256xf32> to vector<1x256xf32>
    %103 = vector.broadcast %102 : vector<1x256xf32> to vector<8x256xf32>
    %104 = arith.mulf %101, %103 : vector<8x256xf32>
    %105 = tpu.concatenate %62, %68, %74, %80, %56, %86, %92, %98, %104 in 0 : vector<8x256xf32>, vector<8x256xf32>, vector<8x256xf32>, vector<8x256xf32>, vector<8x256xf32>, vector<8x256xf32>, vector<8x256xf32>, vector<8x256xf32>, vector<8x256xf32> -> vector<72x256xf32>
    %cst_27 = arith.constant dense<0.000000e+00> : vector<4x256xf32>
    %106 = tpu.matmul %54, %105, %cst_27 {dimension_numbers = #tpu.dot_dimension_numbers<[1], [0], [0], [1], [0, 0, 1, 1], [], []>} : vector<4x72xf32>, vector<72x256xf32>, vector<4x256xf32> -> vector<4x256xf32>
    %107 = arith.addf %53, %106 : vector<4x256xf32>
    %c0_28 = arith.constant 0 : index
    %c0_29 = arith.constant 0 : index
    %108 = vector.load %arg8[%c0_28, %c0_29] : memref<4x180xf32, #tpu.memory_space<vmem>>, vector<4x180xf32>
    %c0_30 = arith.constant 0 : index
    %c0_31 = arith.constant 0 : index
    %c0_32 = arith.constant 0 : index
    %109 = vector.load %arg3[%c0_30, %c0_31, %c0_32] : memref<1x20x256xf32, #tpu.memory_space<vmem>>, vector<1x20x256xf32>
    %110 = vector.shape_cast %109 : vector<1x20x256xf32> to vector<20x256xf32>
    %cst_33 = arith.constant 0.000000e+00 : f32
    %111 = vector.broadcast %cst_33 : f32 to vector<20x17xf32>
    %112 = vector.extract_strided_slice %110 {offsets = [0, 0], sizes = [20, 239], strides = [1, 1]} : vector<20x256xf32> to vector<20x239xf32>
    %113 = tpu.concatenate %111, %112 in 1 : vector<20x17xf32>, vector<20x239xf32> -> vector<20x256xf32>
    %114 = vector.extract_strided_slice %0 {offsets = [0, 0], sizes = [1, 256], strides = [1, 1]} : vector<9x256xf32> to vector<1x256xf32>
    %115 = vector.broadcast %114 : vector<1x256xf32> to vector<20x256xf32>
    %116 = arith.mulf %113, %115 : vector<20x256xf32>
    %cst_34 = arith.constant 0.000000e+00 : f32
    %117 = vector.broadcast %cst_34 : f32 to vector<20x16xf32>
    %118 = vector.extract_strided_slice %110 {offsets = [0, 0], sizes = [20, 240], strides = [1, 1]} : vector<20x256xf32> to vector<20x240xf32>
    %119 = tpu.concatenate %117, %118 in 1 : vector<20x16xf32>, vector<20x240xf32> -> vector<20x256xf32>
    %120 = vector.extract_strided_slice %0 {offsets = [1, 0], sizes = [1, 256], strides = [1, 1]} : vector<9x256xf32> to vector<1x256xf32>
    %121 = vector.broadcast %120 : vector<1x256xf32> to vector<20x256xf32>
    %122 = arith.mulf %119, %121 : vector<20x256xf32>
    %cst_35 = arith.constant 0.000000e+00 : f32
    %123 = vector.broadcast %cst_35 : f32 to vector<20x15xf32>
    %124 = vector.extract_strided_slice %110 {offsets = [0, 0], sizes = [20, 241], strides = [1, 1]} : vector<20x256xf32> to vector<20x241xf32>
    %125 = tpu.concatenate %123, %124 in 1 : vector<20x15xf32>, vector<20x241xf32> -> vector<20x256xf32>
    %126 = vector.extract_strided_slice %0 {offsets = [2, 0], sizes = [1, 256], strides = [1, 1]} : vector<9x256xf32> to vector<1x256xf32>
    %127 = vector.broadcast %126 : vector<1x256xf32> to vector<20x256xf32>
    %128 = arith.mulf %125, %127 : vector<20x256xf32>
    %cst_36 = arith.constant 0.000000e+00 : f32
    %129 = vector.broadcast %cst_36 : f32 to vector<20x1xf32>
    %130 = vector.extract_strided_slice %110 {offsets = [0, 0], sizes = [20, 255], strides = [1, 1]} : vector<20x256xf32> to vector<20x255xf32>
    %131 = tpu.concatenate %129, %130 in 1 : vector<20x1xf32>, vector<20x255xf32> -> vector<20x256xf32>
    %132 = vector.extract_strided_slice %0 {offsets = [3, 0], sizes = [1, 256], strides = [1, 1]} : vector<9x256xf32> to vector<1x256xf32>
    %133 = vector.broadcast %132 : vector<1x256xf32> to vector<20x256xf32>
    %134 = arith.mulf %131, %133 : vector<20x256xf32>
    %cst_37 = arith.constant 0.000000e+00 : f32
    %135 = vector.broadcast %cst_37 : f32 to vector<20x1xf32>
    %136 = vector.extract_strided_slice %110 {offsets = [0, 1], sizes = [20, 255], strides = [1, 1]} : vector<20x256xf32> to vector<20x255xf32>
    %137 = tpu.concatenate %136, %135 in 1 : vector<20x255xf32>, vector<20x1xf32> -> vector<20x256xf32>
    %138 = vector.extract_strided_slice %0 {offsets = [5, 0], sizes = [1, 256], strides = [1, 1]} : vector<9x256xf32> to vector<1x256xf32>
    %139 = vector.broadcast %138 : vector<1x256xf32> to vector<20x256xf32>
    %140 = arith.mulf %137, %139 : vector<20x256xf32>
    %cst_38 = arith.constant 0.000000e+00 : f32
    %141 = vector.broadcast %cst_38 : f32 to vector<20x15xf32>
    %142 = vector.extract_strided_slice %110 {offsets = [0, 15], sizes = [20, 241], strides = [1, 1]} : vector<20x256xf32> to vector<20x241xf32>
    %143 = tpu.concatenate %142, %141 in 1 : vector<20x241xf32>, vector<20x15xf32> -> vector<20x256xf32>
    %144 = vector.extract_strided_slice %0 {offsets = [6, 0], sizes = [1, 256], strides = [1, 1]} : vector<9x256xf32> to vector<1x256xf32>
    %145 = vector.broadcast %144 : vector<1x256xf32> to vector<20x256xf32>
    %146 = arith.mulf %143, %145 : vector<20x256xf32>
    %cst_39 = arith.constant 0.000000e+00 : f32
    %147 = vector.broadcast %cst_39 : f32 to vector<20x16xf32>
    %148 = vector.extract_strided_slice %110 {offsets = [0, 16], sizes = [20, 240], strides = [1, 1]} : vector<20x256xf32> to vector<20x240xf32>
    %149 = tpu.concatenate %148, %147 in 1 : vector<20x240xf32>, vector<20x16xf32> -> vector<20x256xf32>
    %150 = vector.extract_strided_slice %0 {offsets = [7, 0], sizes = [1, 256], strides = [1, 1]} : vector<9x256xf32> to vector<1x256xf32>
    %151 = vector.broadcast %150 : vector<1x256xf32> to vector<20x256xf32>
    %152 = arith.mulf %149, %151 : vector<20x256xf32>
    %cst_40 = arith.constant 0.000000e+00 : f32
    %153 = vector.broadcast %cst_40 : f32 to vector<20x17xf32>
    %154 = vector.extract_strided_slice %110 {offsets = [0, 17], sizes = [20, 239], strides = [1, 1]} : vector<20x256xf32> to vector<20x239xf32>
    %155 = tpu.concatenate %154, %153 in 1 : vector<20x239xf32>, vector<20x17xf32> -> vector<20x256xf32>
    %156 = vector.extract_strided_slice %0 {offsets = [8, 0], sizes = [1, 256], strides = [1, 1]} : vector<9x256xf32> to vector<1x256xf32>
    %157 = vector.broadcast %156 : vector<1x256xf32> to vector<20x256xf32>
    %158 = arith.mulf %155, %157 : vector<20x256xf32>
    %159 = tpu.concatenate %116, %122, %128, %134, %110, %140, %146, %152, %158 in 0 : vector<20x256xf32>, vector<20x256xf32>, vector<20x256xf32>, vector<20x256xf32>, vector<20x256xf32>, vector<20x256xf32>, vector<20x256xf32>, vector<20x256xf32>, vector<20x256xf32> -> vector<180x256xf32>
    %cst_41 = arith.constant dense<0.000000e+00> : vector<4x256xf32>
    %160 = tpu.matmul %108, %159, %cst_41 {dimension_numbers = #tpu.dot_dimension_numbers<[1], [0], [0], [1], [0, 0, 1, 1], [], []>} : vector<4x180xf32>, vector<180x256xf32>, vector<4x256xf32> -> vector<4x256xf32>
    %161 = arith.addf %107, %160 : vector<4x256xf32>
    %c0_42 = arith.constant 0 : index
    %c0_43 = arith.constant 0 : index
    %162 = vector.load %arg9[%c0_42, %c0_43] : memref<4x180xf32, #tpu.memory_space<vmem>>, vector<4x180xf32>
    %c0_44 = arith.constant 0 : index
    %c0_45 = arith.constant 0 : index
    %c0_46 = arith.constant 0 : index
    %163 = vector.load %arg4[%c0_44, %c0_45, %c0_46] : memref<1x20x256xf32, #tpu.memory_space<vmem>>, vector<1x20x256xf32>
    %164 = vector.shape_cast %163 : vector<1x20x256xf32> to vector<20x256xf32>
    %cst_47 = arith.constant 0.000000e+00 : f32
    %165 = vector.broadcast %cst_47 : f32 to vector<20x17xf32>
    %166 = vector.extract_strided_slice %164 {offsets = [0, 0], sizes = [20, 239], strides = [1, 1]} : vector<20x256xf32> to vector<20x239xf32>
    %167 = tpu.concatenate %165, %166 in 1 : vector<20x17xf32>, vector<20x239xf32> -> vector<20x256xf32>
    %168 = vector.extract_strided_slice %0 {offsets = [0, 0], sizes = [1, 256], strides = [1, 1]} : vector<9x256xf32> to vector<1x256xf32>
    %169 = vector.broadcast %168 : vector<1x256xf32> to vector<20x256xf32>
    %170 = arith.mulf %167, %169 : vector<20x256xf32>
    %cst_48 = arith.constant 0.000000e+00 : f32
    %171 = vector.broadcast %cst_48 : f32 to vector<20x16xf32>
    %172 = vector.extract_strided_slice %164 {offsets = [0, 0], sizes = [20, 240], strides = [1, 1]} : vector<20x256xf32> to vector<20x240xf32>
    %173 = tpu.concatenate %171, %172 in 1 : vector<20x16xf32>, vector<20x240xf32> -> vector<20x256xf32>
    %174 = vector.extract_strided_slice %0 {offsets = [1, 0], sizes = [1, 256], strides = [1, 1]} : vector<9x256xf32> to vector<1x256xf32>
    %175 = vector.broadcast %174 : vector<1x256xf32> to vector<20x256xf32>
    %176 = arith.mulf %173, %175 : vector<20x256xf32>
    %cst_49 = arith.constant 0.000000e+00 : f32
    %177 = vector.broadcast %cst_49 : f32 to vector<20x15xf32>
    %178 = vector.extract_strided_slice %164 {offsets = [0, 0], sizes = [20, 241], strides = [1, 1]} : vector<20x256xf32> to vector<20x241xf32>
    %179 = tpu.concatenate %177, %178 in 1 : vector<20x15xf32>, vector<20x241xf32> -> vector<20x256xf32>
    %180 = vector.extract_strided_slice %0 {offsets = [2, 0], sizes = [1, 256], strides = [1, 1]} : vector<9x256xf32> to vector<1x256xf32>
    %181 = vector.broadcast %180 : vector<1x256xf32> to vector<20x256xf32>
    %182 = arith.mulf %179, %181 : vector<20x256xf32>
    %cst_50 = arith.constant 0.000000e+00 : f32
    %183 = vector.broadcast %cst_50 : f32 to vector<20x1xf32>
    %184 = vector.extract_strided_slice %164 {offsets = [0, 0], sizes = [20, 255], strides = [1, 1]} : vector<20x256xf32> to vector<20x255xf32>
    %185 = tpu.concatenate %183, %184 in 1 : vector<20x1xf32>, vector<20x255xf32> -> vector<20x256xf32>
    %186 = vector.extract_strided_slice %0 {offsets = [3, 0], sizes = [1, 256], strides = [1, 1]} : vector<9x256xf32> to vector<1x256xf32>
    %187 = vector.broadcast %186 : vector<1x256xf32> to vector<20x256xf32>
    %188 = arith.mulf %185, %187 : vector<20x256xf32>
    %cst_51 = arith.constant 0.000000e+00 : f32
    %189 = vector.broadcast %cst_51 : f32 to vector<20x1xf32>
    %190 = vector.extract_strided_slice %164 {offsets = [0, 1], sizes = [20, 255], strides = [1, 1]} : vector<20x256xf32> to vector<20x255xf32>
    %191 = tpu.concatenate %190, %189 in 1 : vector<20x255xf32>, vector<20x1xf32> -> vector<20x256xf32>
    %192 = vector.extract_strided_slice %0 {offsets = [5, 0], sizes = [1, 256], strides = [1, 1]} : vector<9x256xf32> to vector<1x256xf32>
    %193 = vector.broadcast %192 : vector<1x256xf32> to vector<20x256xf32>
    %194 = arith.mulf %191, %193 : vector<20x256xf32>
    %cst_52 = arith.constant 0.000000e+00 : f32
    %195 = vector.broadcast %cst_52 : f32 to vector<20x15xf32>
    %196 = vector.extract_strided_slice %164 {offsets = [0, 15], sizes = [20, 241], strides = [1, 1]} : vector<20x256xf32> to vector<20x241xf32>
    %197 = tpu.concatenate %196, %195 in 1 : vector<20x241xf32>, vector<20x15xf32> -> vector<20x256xf32>
    %198 = vector.extract_strided_slice %0 {offsets = [6, 0], sizes = [1, 256], strides = [1, 1]} : vector<9x256xf32> to vector<1x256xf32>
    %199 = vector.broadcast %198 : vector<1x256xf32> to vector<20x256xf32>
    %200 = arith.mulf %197, %199 : vector<20x256xf32>
    %cst_53 = arith.constant 0.000000e+00 : f32
    %201 = vector.broadcast %cst_53 : f32 to vector<20x16xf32>
    %202 = vector.extract_strided_slice %164 {offsets = [0, 16], sizes = [20, 240], strides = [1, 1]} : vector<20x256xf32> to vector<20x240xf32>
    %203 = tpu.concatenate %202, %201 in 1 : vector<20x240xf32>, vector<20x16xf32> -> vector<20x256xf32>
    %204 = vector.extract_strided_slice %0 {offsets = [7, 0], sizes = [1, 256], strides = [1, 1]} : vector<9x256xf32> to vector<1x256xf32>
    %205 = vector.broadcast %204 : vector<1x256xf32> to vector<20x256xf32>
    %206 = arith.mulf %203, %205 : vector<20x256xf32>
    %cst_54 = arith.constant 0.000000e+00 : f32
    %207 = vector.broadcast %cst_54 : f32 to vector<20x17xf32>
    %208 = vector.extract_strided_slice %164 {offsets = [0, 17], sizes = [20, 239], strides = [1, 1]} : vector<20x256xf32> to vector<20x239xf32>
    %209 = tpu.concatenate %208, %207 in 1 : vector<20x239xf32>, vector<20x17xf32> -> vector<20x256xf32>
    %210 = vector.extract_strided_slice %0 {offsets = [8, 0], sizes = [1, 256], strides = [1, 1]} : vector<9x256xf32> to vector<1x256xf32>
    %211 = vector.broadcast %210 : vector<1x256xf32> to vector<20x256xf32>
    %212 = arith.mulf %209, %211 : vector<20x256xf32>
    %213 = tpu.concatenate %170, %176, %182, %188, %164, %194, %200, %206, %212 in 0 : vector<20x256xf32>, vector<20x256xf32>, vector<20x256xf32>, vector<20x256xf32>, vector<20x256xf32>, vector<20x256xf32>, vector<20x256xf32>, vector<20x256xf32>, vector<20x256xf32> -> vector<180x256xf32>
    %cst_55 = arith.constant dense<0.000000e+00> : vector<4x256xf32>
    %214 = tpu.matmul %162, %213, %cst_55 {dimension_numbers = #tpu.dot_dimension_numbers<[1], [0], [0], [1], [0, 0, 1, 1], [], []>} : vector<4x180xf32>, vector<180x256xf32>, vector<4x256xf32> -> vector<4x256xf32>
    %215 = arith.addf %161, %214 : vector<4x256xf32>
    %c0_56 = arith.constant 0 : index
    %c0_57 = arith.constant 0 : index
    %216 = vector.load %arg10[%c0_56, %c0_57] : memref<4x1xf32, #tpu.memory_space<vmem>>, vector<4x1xf32>
    %217 = vector.broadcast %216 : vector<4x1xf32> to vector<4x256xf32>
    %218 = arith.addf %215, %217 : vector<4x256xf32>
    %cst_58 = arith.constant dense<0.000000e+00> : vector<4xf32>
    %219 = vector.multi_reduction <add>, %218, %cst_58 [1] : vector<4x256xf32> to vector<4xf32>
    %220 = vector.shape_cast %219 : vector<4xf32> to vector<4x1xf32>
    %cst_59 = arith.constant 3.906250e-03 : f32
    %221 = vector.broadcast %cst_59 : f32 to vector<4x1xf32>
    %222 = arith.mulf %220, %221 : vector<4x1xf32>
    %c0_60 = arith.constant 0 : index
    %c0_61 = arith.constant 0 : index
    %223 = vector.load %arg11[%c0_60, %c0_61] : memref<4x4xf32, #tpu.memory_space<vmem>>, vector<4x4xf32>
    %cst_62 = arith.constant dense<0.000000e+00> : vector<4x1xf32>
    %224 = tpu.matmul %223, %222, %cst_62 {dimension_numbers = #tpu.dot_dimension_numbers<[1], [0], [0], [1], [0, 0, 1, 1], [], []>} : vector<4x4xf32>, vector<4x1xf32>, vector<4x1xf32> -> vector<4x1xf32>
    %cst_63 = arith.constant 0.000000e+00 : f32
    %225 = vector.broadcast %cst_63 : f32 to vector<4x1xf32>
    %226 = arith.maximumf %224, %225 : vector<4x1xf32>
    %c0_64 = arith.constant 0 : index
    %c0_65 = arith.constant 0 : index
    %227 = vector.load %arg12[%c0_64, %c0_65] : memref<4x4xf32, #tpu.memory_space<vmem>>, vector<4x4xf32>
    %cst_66 = arith.constant dense<0.000000e+00> : vector<4x1xf32>
    %228 = tpu.matmul %227, %226, %cst_66 {dimension_numbers = #tpu.dot_dimension_numbers<[1], [0], [0], [1], [0, 0, 1, 1], [], []>} : vector<4x4xf32>, vector<4x1xf32>, vector<4x1xf32> -> vector<4x1xf32>
    %cst_67 = arith.constant 0.000000e+00 : f32
    %229 = vector.broadcast %cst_67 : f32 to vector<4x1xf32>
    %230 = arith.subf %229, %228 : vector<4x1xf32>
    %231 = math.exp %230 : vector<4x1xf32>
    %cst_68 = arith.constant 1.000000e+00 : f32
    %232 = vector.broadcast %cst_68 : f32 to vector<4x1xf32>
    %233 = arith.addf %232, %231 : vector<4x1xf32>
    %cst_69 = arith.constant 1.000000e+00 : f32
    %234 = vector.broadcast %cst_69 : f32 to vector<4x1xf32>
    %235 = arith.divf %234, %233 : vector<4x1xf32>
    %236 = vector.broadcast %235 : vector<4x1xf32> to vector<4x256xf32>
    %237 = arith.mulf %218, %236 : vector<4x256xf32>
    %c0_70 = arith.constant 0 : index
    %c0_71 = arith.constant 0 : index
    %238 = vector.load %arg13[%c0_70, %c0_71] : memref<4x4xf32, #tpu.memory_space<vmem>>, vector<4x4xf32>
    %cst_72 = arith.constant dense<0.000000e+00> : vector<4x256xf32>
    %239 = tpu.matmul %238, %218, %cst_72 {dimension_numbers = #tpu.dot_dimension_numbers<[1], [0], [0], [1], [0, 0, 1, 1], [], []>} : vector<4x4xf32>, vector<4x256xf32>, vector<4x256xf32> -> vector<4x256xf32>
    %c0_73 = arith.constant 0 : index
    %c0_74 = arith.constant 0 : index
    %240 = vector.load %arg14[%c0_73, %c0_74] : memref<4x1xf32, #tpu.memory_space<vmem>>, vector<4x1xf32>
    %241 = vector.broadcast %240 : vector<4x1xf32> to vector<4x256xf32>
    %242 = arith.addf %239, %241 : vector<4x256xf32>
    %cst_75 = arith.constant 0.000000e+00 : f32
    %243 = vector.broadcast %cst_75 : f32 to vector<4x256xf32>
    %244 = arith.maximumf %242, %243 : vector<4x256xf32>
    %c0_76 = arith.constant 0 : index
    %c0_77 = arith.constant 0 : index
    %245 = vector.load %arg15[%c0_76, %c0_77] : memref<1x4xf32, #tpu.memory_space<vmem>>, vector<1x4xf32>
    %cst_78 = arith.constant dense<0.000000e+00> : vector<1x256xf32>
    %246 = tpu.matmul %245, %244, %cst_78 {dimension_numbers = #tpu.dot_dimension_numbers<[1], [0], [0], [1], [0, 0, 1, 1], [], []>} : vector<1x4xf32>, vector<4x256xf32>, vector<1x256xf32> -> vector<1x256xf32>
    %c0_79 = arith.constant 0 : index
    %247 = memref.load %arg16[%c0_79] : memref<1xf32, #tpu.memory_space<smem>>
    %248 = vector.broadcast %247 : f32 to vector<1x256xf32>
    %249 = arith.addf %246, %248 : vector<1x256xf32>
    %cst_80 = arith.constant 0.000000e+00 : f32
    %250 = vector.broadcast %cst_80 : f32 to vector<1x256xf32>
    %251 = arith.subf %250, %249 : vector<1x256xf32>
    %252 = math.exp %251 : vector<1x256xf32>
    %cst_81 = arith.constant 1.000000e+00 : f32
    %253 = vector.broadcast %cst_81 : f32 to vector<1x256xf32>
    %254 = arith.addf %253, %252 : vector<1x256xf32>
    %cst_82 = arith.constant 1.000000e+00 : f32
    %255 = vector.broadcast %cst_82 : f32 to vector<1x256xf32>
    %256 = arith.divf %255, %254 : vector<1x256xf32>
    %257 = vector.broadcast %256 : vector<1x256xf32> to vector<4x256xf32>
    %258 = arith.mulf %218, %257 : vector<4x256xf32>
    %259 = tpu.concatenate %237, %258 in 0 : vector<4x256xf32>, vector<4x256xf32> -> vector<8x256xf32>
    %c0_83 = arith.constant 0 : index
    %c0_84 = arith.constant 0 : index
    %260 = vector.load %arg17[%c0_83, %c0_84] : memref<4x72xf32, #tpu.memory_space<vmem>>, vector<4x72xf32>
    %cst_85 = arith.constant 0.000000e+00 : f32
    %261 = vector.broadcast %cst_85 : f32 to vector<8x17xf32>
    %262 = vector.extract_strided_slice %259 {offsets = [0, 0], sizes = [8, 239], strides = [1, 1]} : vector<8x256xf32> to vector<8x239xf32>
    %263 = tpu.concatenate %261, %262 in 1 : vector<8x17xf32>, vector<8x239xf32> -> vector<8x256xf32>
    %264 = vector.extract_strided_slice %0 {offsets = [0, 0], sizes = [1, 256], strides = [1, 1]} : vector<9x256xf32> to vector<1x256xf32>
    %265 = vector.broadcast %264 : vector<1x256xf32> to vector<8x256xf32>
    %266 = arith.mulf %263, %265 : vector<8x256xf32>
    %cst_86 = arith.constant 0.000000e+00 : f32
    %267 = vector.broadcast %cst_86 : f32 to vector<8x16xf32>
    %268 = vector.extract_strided_slice %259 {offsets = [0, 0], sizes = [8, 240], strides = [1, 1]} : vector<8x256xf32> to vector<8x240xf32>
    %269 = tpu.concatenate %267, %268 in 1 : vector<8x16xf32>, vector<8x240xf32> -> vector<8x256xf32>
    %270 = vector.extract_strided_slice %0 {offsets = [1, 0], sizes = [1, 256], strides = [1, 1]} : vector<9x256xf32> to vector<1x256xf32>
    %271 = vector.broadcast %270 : vector<1x256xf32> to vector<8x256xf32>
    %272 = arith.mulf %269, %271 : vector<8x256xf32>
    %cst_87 = arith.constant 0.000000e+00 : f32
    %273 = vector.broadcast %cst_87 : f32 to vector<8x15xf32>
    %274 = vector.extract_strided_slice %259 {offsets = [0, 0], sizes = [8, 241], strides = [1, 1]} : vector<8x256xf32> to vector<8x241xf32>
    %275 = tpu.concatenate %273, %274 in 1 : vector<8x15xf32>, vector<8x241xf32> -> vector<8x256xf32>
    %276 = vector.extract_strided_slice %0 {offsets = [2, 0], sizes = [1, 256], strides = [1, 1]} : vector<9x256xf32> to vector<1x256xf32>
    %277 = vector.broadcast %276 : vector<1x256xf32> to vector<8x256xf32>
    %278 = arith.mulf %275, %277 : vector<8x256xf32>
    %cst_88 = arith.constant 0.000000e+00 : f32
    %279 = vector.broadcast %cst_88 : f32 to vector<8x1xf32>
    %280 = vector.extract_strided_slice %259 {offsets = [0, 0], sizes = [8, 255], strides = [1, 1]} : vector<8x256xf32> to vector<8x255xf32>
    %281 = tpu.concatenate %279, %280 in 1 : vector<8x1xf32>, vector<8x255xf32> -> vector<8x256xf32>
    %282 = vector.extract_strided_slice %0 {offsets = [3, 0], sizes = [1, 256], strides = [1, 1]} : vector<9x256xf32> to vector<1x256xf32>
    %283 = vector.broadcast %282 : vector<1x256xf32> to vector<8x256xf32>
    %284 = arith.mulf %281, %283 : vector<8x256xf32>
    %cst_89 = arith.constant 0.000000e+00 : f32
    %285 = vector.broadcast %cst_89 : f32 to vector<8x1xf32>
    %286 = vector.extract_strided_slice %259 {offsets = [0, 1], sizes = [8, 255], strides = [1, 1]} : vector<8x256xf32> to vector<8x255xf32>
    %287 = tpu.concatenate %286, %285 in 1 : vector<8x255xf32>, vector<8x1xf32> -> vector<8x256xf32>
    %288 = vector.extract_strided_slice %0 {offsets = [5, 0], sizes = [1, 256], strides = [1, 1]} : vector<9x256xf32> to vector<1x256xf32>
    %289 = vector.broadcast %288 : vector<1x256xf32> to vector<8x256xf32>
    %290 = arith.mulf %287, %289 : vector<8x256xf32>
    %cst_90 = arith.constant 0.000000e+00 : f32
    %291 = vector.broadcast %cst_90 : f32 to vector<8x15xf32>
    %292 = vector.extract_strided_slice %259 {offsets = [0, 15], sizes = [8, 241], strides = [1, 1]} : vector<8x256xf32> to vector<8x241xf32>
    %293 = tpu.concatenate %292, %291 in 1 : vector<8x241xf32>, vector<8x15xf32> -> vector<8x256xf32>
    %294 = vector.extract_strided_slice %0 {offsets = [6, 0], sizes = [1, 256], strides = [1, 1]} : vector<9x256xf32> to vector<1x256xf32>
    %295 = vector.broadcast %294 : vector<1x256xf32> to vector<8x256xf32>
    %296 = arith.mulf %293, %295 : vector<8x256xf32>
    %cst_91 = arith.constant 0.000000e+00 : f32
    %297 = vector.broadcast %cst_91 : f32 to vector<8x16xf32>
    %298 = vector.extract_strided_slice %259 {offsets = [0, 16], sizes = [8, 240], strides = [1, 1]} : vector<8x256xf32> to vector<8x240xf32>
    %299 = tpu.concatenate %298, %297 in 1 : vector<8x240xf32>, vector<8x16xf32> -> vector<8x256xf32>
    %300 = vector.extract_strided_slice %0 {offsets = [7, 0], sizes = [1, 256], strides = [1, 1]} : vector<9x256xf32> to vector<1x256xf32>
    %301 = vector.broadcast %300 : vector<1x256xf32> to vector<8x256xf32>
    %302 = arith.mulf %299, %301 : vector<8x256xf32>
    %cst_92 = arith.constant 0.000000e+00 : f32
    %303 = vector.broadcast %cst_92 : f32 to vector<8x17xf32>
    %304 = vector.extract_strided_slice %259 {offsets = [0, 17], sizes = [8, 239], strides = [1, 1]} : vector<8x256xf32> to vector<8x239xf32>
    %305 = tpu.concatenate %304, %303 in 1 : vector<8x239xf32>, vector<8x17xf32> -> vector<8x256xf32>
    %306 = vector.extract_strided_slice %0 {offsets = [8, 0], sizes = [1, 256], strides = [1, 1]} : vector<9x256xf32> to vector<1x256xf32>
    %307 = vector.broadcast %306 : vector<1x256xf32> to vector<8x256xf32>
    %308 = arith.mulf %305, %307 : vector<8x256xf32>
    %309 = tpu.concatenate %266, %272, %278, %284, %259, %290, %296, %302, %308 in 0 : vector<8x256xf32>, vector<8x256xf32>, vector<8x256xf32>, vector<8x256xf32>, vector<8x256xf32>, vector<8x256xf32>, vector<8x256xf32>, vector<8x256xf32>, vector<8x256xf32> -> vector<72x256xf32>
    %cst_93 = arith.constant dense<0.000000e+00> : vector<4x256xf32>
    %310 = tpu.matmul %260, %309, %cst_93 {dimension_numbers = #tpu.dot_dimension_numbers<[1], [0], [0], [1], [0, 0, 1, 1], [], []>} : vector<4x72xf32>, vector<72x256xf32>, vector<4x256xf32> -> vector<4x256xf32>
    %c0_94 = arith.constant 0 : index
    %c0_95 = arith.constant 0 : index
    %311 = vector.load %arg18[%c0_94, %c0_95] : memref<4x1xf32, #tpu.memory_space<vmem>>, vector<4x1xf32>
    %312 = vector.broadcast %311 : vector<4x1xf32> to vector<4x256xf32>
    %313 = arith.addf %310, %312 : vector<4x256xf32>
    %314 = arith.addf %2, %313 : vector<4x256xf32>
    %c0_96 = arith.constant 0 : index
    %c0_97 = arith.constant 0 : index
    %c0_98 = arith.constant 0 : index
    %315 = vector.load %arg19[%c0_96, %c0_97, %c0_98] : memref<1x4x256xf32, #tpu.memory_space<vmem>>, vector<1x4x256xf32>
    %316 = vector.shape_cast %315 : vector<1x4x256xf32> to vector<4x256xf32>
    %317 = vector.shape_cast %314 : vector<4x256xf32> to vector<1x4x256xf32>
    tpu.vector_store %arg19[%c0_96, %c0_97, %c0_98], %317 {strides = array<i32>} : memref<1x4x256xf32, #tpu.memory_space<vmem>>, vector<1x4x256xf32>,
    return
  }
  func.func @transform_0(%arg0: i32) -> (i32, i32, i32) {
    %c0_i32 = arith.constant 0 : i32
    %c0_i32_0 = arith.constant 0 : i32
    %c0_i32_1 = arith.constant 0 : i32
    return %arg0, %c0_i32, %c0_i32_0 : i32, i32, i32
  }
  func.func @transform_1(%arg0: i32) -> (i32, i32, i32) {
    %c0_i32 = arith.constant 0 : i32
    %c0_i32_0 = arith.constant 0 : i32
    %c0_i32_1 = arith.constant 0 : i32
    return %arg0, %c0_i32, %c0_i32_0 : i32, i32, i32
  }
  func.func @transform_2(%arg0: i32) -> (i32, i32, i32) {
    %c0_i32 = arith.constant 0 : i32
    %c0_i32_0 = arith.constant 0 : i32
    %c0_i32_1 = arith.constant 0 : i32
    return %arg0, %c0_i32, %c0_i32_0 : i32, i32, i32
  }
  func.func @transform_3(%arg0: i32) -> (i32, i32, i32) {
    %c0_i32 = arith.constant 0 : i32
    %c0_i32_0 = arith.constant 0 : i32
    %c0_i32_1 = arith.constant 0 : i32
    return %arg0, %c0_i32, %c0_i32_0 : i32, i32, i32
  }
  func.func @transform_4(%arg0: i32) -> (i32, i32) {
    %c0_i32 = arith.constant 0 : i32
    %c0_i32_0 = arith.constant 0 : i32
    %c0_i32_1 = arith.constant 0 : i32
    return %c0_i32, %c0_i32_0 : i32, i32
  }
  func.func @transform_5(%arg0: i32) -> (i32, i32) {
    %c0_i32 = arith.constant 0 : i32
    %c0_i32_0 = arith.constant 0 : i32
    %c0_i32_1 = arith.constant 0 : i32
    return %c0_i32, %c0_i32_0 : i32, i32
  }
  func.func @transform_6(%arg0: i32) -> (i32, i32) {
    %c0_i32 = arith.constant 0 : i32
    %c0_i32_0 = arith.constant 0 : i32
    %c0_i32_1 = arith.constant 0 : i32
    return %c0_i32, %c0_i32_0 : i32, i32
  }
  func.func @transform_7(%arg0: i32) -> (i32, i32) {
    %c0_i32 = arith.constant 0 : i32
    %c0_i32_0 = arith.constant 0 : i32
    %c0_i32_1 = arith.constant 0 : i32
    return %c0_i32, %c0_i32_0 : i32, i32
  }
  func.func @transform_8(%arg0: i32) -> (i32, i32) {
    %c0_i32 = arith.constant 0 : i32
    %c0_i32_0 = arith.constant 0 : i32
    %c0_i32_1 = arith.constant 0 : i32
    return %c0_i32, %c0_i32_0 : i32, i32
  }
  func.func @transform_9(%arg0: i32) -> (i32, i32) {
    %c0_i32 = arith.constant 0 : i32
    %c0_i32_0 = arith.constant 0 : i32
    %c0_i32_1 = arith.constant 0 : i32
    return %c0_i32, %c0_i32_0 : i32, i32
  }
  func.func @transform_10(%arg0: i32) -> (i32, i32) {
    %c0_i32 = arith.constant 0 : i32
    %c0_i32_0 = arith.constant 0 : i32
    %c0_i32_1 = arith.constant 0 : i32
    return %c0_i32, %c0_i32_0 : i32, i32
  }
  func.func @transform_11(%arg0: i32) -> (i32, i32) {
    %c0_i32 = arith.constant 0 : i32
    %c0_i32_0 = arith.constant 0 : i32
    %c0_i32_1 = arith.constant 0 : i32
    return %c0_i32, %c0_i32_0 : i32, i32
  }
  func.func @transform_12(%arg0: i32) -> (i32, i32) {
    %c0_i32 = arith.constant 0 : i32
    %c0_i32_0 = arith.constant 0 : i32
    %c0_i32_1 = arith.constant 0 : i32
    return %c0_i32, %c0_i32_0 : i32, i32
  }
  func.func @transform_13(%arg0: i32) -> (i32, i32) {
    %c0_i32 = arith.constant 0 : i32
    %c0_i32_0 = arith.constant 0 : i32
    %c0_i32_1 = arith.constant 0 : i32
    return %c0_i32, %c0_i32_0 : i32, i32
  }
  func.func @transform_14(%arg0: i32) -> (i32, i32) {
    %c0_i32 = arith.constant 0 : i32
    %c0_i32_0 = arith.constant 0 : i32
    %c0_i32_1 = arith.constant 0 : i32
    return %c0_i32, %c0_i32_0 : i32, i32
  }
  func.func @transform_15(%arg0: i32) -> i32 {
    %c0_i32 = arith.constant 0 : i32
    %c0_i32_0 = arith.constant 0 : i32
    return %c0_i32 : i32
  }
  func.func @transform_16(%arg0: i32) -> (i32, i32) {
    %c0_i32 = arith.constant 0 : i32
    %c0_i32_0 = arith.constant 0 : i32
    %c0_i32_1 = arith.constant 0 : i32
    return %c0_i32, %c0_i32_0 : i32, i32
  }
  func.func @transform_17(%arg0: i32) -> (i32, i32) {
    %c0_i32 = arith.constant 0 : i32
    %c0_i32_0 = arith.constant 0 : i32
    %c0_i32_1 = arith.constant 0 : i32
    return %c0_i32, %c0_i32_0 : i32, i32
  }
  func.func @transform_18(%arg0: i32) -> (i32, i32, i32) {
    %c0_i32 = arith.constant 0 : i32
    %c0_i32_0 = arith.constant 0 : i32
    %c0_i32_1 = arith.constant 0 : i32
    return %arg0, %c0_i32, %c0_i32_0 : i32, i32, i32
  }
}

</mosaic_0001>

<llo_original>
// kernel: tpu_custom_call.1
$region0: #{tpu_custom_call.1}
  #allocation0 [shape = 'u32[]', space=smem, size = 0x4, offset = 0x4, fixed_abs, tag = 'smem constant byte address 0x4 - core index']
  #allocation1 [shape = 'u32[144,128]{1,0:T(1,128)}', space=vmem, size = 0x12000, scoped, tag = 'internal scratch']
  %s0 = inlined_call_operand.hbm [shape: f32[8,128], index: 0, kind: input, shape index: {}]
  %s1 = inlined_call_operand.hbm [shape: f32[8,128], index: 1, kind: output, shape index: {}]
  %s2 = sld [smem:[#allocation0]]
  $region18: #{tpu_custom_call.1} parent=0
    _
  %s4 = ssub.s32 1, %s2
  %s5 = scalar_select 0, %s4, %s2
  $region1: #{tpu_custom_call.1} parent=0
    #allocation2 [shape = 'u8[4096]{0}', space=vmem, size = 0x1000, scoped, tag = 'input window, operand 0, single buffered']
    #allocation3 [shape = 's32[1]{0}', space=sflag, size = 0x4, scoped, tag = 'scoped memory for tpu_custom_call.1']
    #allocation4 [shape = 's32[1]{0}', space=sflag, size = 0x4, scoped, tag = 'scoped memory for tpu_custom_call.1']
    #allocation5 [shape = 'u8[4096]{0}', space=vmem, size = 0x1000, scoped, tag = 'output window, operand 0, single buffered']
    %6 = vsyncpa [#allocation3], 0
    %7 = vsyncpa [#allocation4], 0
    // Predicated region
    $region2: #{tpu_custom_call.1} parent=1 // pred_check
      _
    $region3: #{tpu_custom_call.1} parent=1 // pred_check_branch
      %9 = sbr.rel (0) target = $region5
    $region4: #{tpu_custom_call.1} parent=1 // pred_region
      %s11 = ssub.s32 128, 128
      %12 = vsyncadd [#allocation3], %s11
      %s14 = sshll.u32 [#allocation2], 4
      %s15 = int_to_ptr.vmem [resolvable:$true] %s14
      %17 = dma.hbm_to_vmem [thread:$0]  %s0, 128, %s15, [#allocation3]
    $region5: #{tpu_custom_call.1} parent=1 // pred_fallthru
      _
    // Predicated region
    $region6: #{tpu_custom_call.1} parent=1 // pred_check
      _
    $region7: #{tpu_custom_call.1} parent=1 // pred_check_branch
      %19 = sbr.rel (0) target = $region9
    $region8: #{tpu_custom_call.1} parent=1 // pred_region
      %20 = dma.done [#allocation3], 128
    $region9: #{tpu_custom_call.1} parent=1 // pred_fallthru
      _
    %v21 = vld [vmem:[#allocation2] sm:$0xff]
    %22 = vrot.lane.b32.xlu0 %v21, 1
    %v23 = vpop.permute.xlu0 %22
    %24 = vst [vmem:[#allocation5] sm:$0xff] %v23
    // Predicated region
    $region10: #{tpu_custom_call.1} parent=1 // pred_check
      _
    $region11: #{tpu_custom_call.1} parent=1 // pred_check_branch
      %26 = sbr.rel (0) target = $region13
    $region12: #{tpu_custom_call.1} parent=1 // pred_region
      %s28 = ssub.s32 128, 128
      %29 = vsyncadd [#allocation4], %s28
      %s31 = sshll.u32 [#allocation5], 4
      %s32 = int_to_ptr.vmem [resolvable:$true] %s31
      %34 = dma.vmem_to_hbm [thread:$0]  %s32, 128, %s1, [#allocation4]
    $region13: #{tpu_custom_call.1} parent=1 // pred_fallthru
      _
    // Predicated region
    $region14: #{tpu_custom_call.1} parent=1 // pred_check
      _
    $region15: #{tpu_custom_call.1} parent=1 // pred_check_branch
      %36 = sbr.rel (0) target = $region17
    $region16: #{tpu_custom_call.1} parent=1 // pred_region
      %37 = dma.done [#allocation4], 128
    $region17: #{tpu_custom_call.1} parent=1 // pred_fallthru
      _
    %38 = vsyncpa [#allocation3], 1
    %39 = vsyncpa [#allocation4], 1

// kernel: rdb_forward_nchw.9
$region0: #{rdb_forward_nchw.9}
  #allocation0 [shape = 'u32[]', space=smem, size = 0x4, offset = 0x4, fixed_abs, tag = 'smem constant byte address 0x4 - core index']
  #allocation1 [shape = 'u32[144,128]{1,0:T(1,128)}', space=vmem, size = 0x12000, scoped, tag = 'internal scratch']
  #allocation2 [shape = 'f32[1]{0:T(128)S(6)}', space=smem, size = 0x200, scoped, tag = 'scoped memory for rdb_forward_nchw.9']
  %s0 = inlined_call_operand.hbm [shape: f32[2,4,256], index: 0, kind: input, shape index: {}]
  %s1 = inlined_call_operand.hbm [shape: f32[9,256], index: 1, kind: input, shape index: {}]
  %s2 = inlined_call_operand.hbm [shape: f32[4,36], index: 2, kind: input, shape index: {}]
  %s3 = inlined_call_operand.hbm [shape: f32[4,1], index: 3, kind: input, shape index: {}]
  %s4 = inlined_call_operand.hbm [shape: f32[4,36], index: 4, kind: input, shape index: {}]
  %s5 = inlined_call_operand.hbm [shape: f32[4,1], index: 5, kind: input, shape index: {}]
  %s6 = inlined_call_operand.<no memory space> [shape: f32[1], index: 6, kind: input, shape index: {}]
  %s7 = inlined_call_operand.hbm [shape: f32[2,4,256], index: 7, kind: output, shape index: {}]
  %s8 = sld [smem:[#allocation0]]
  $region85: #{rdb_forward_nchw.9} parent=0
    _
  %s10 = ssub.s32 1, %s8
  %s11 = scalar_select 0, %s10, %s8
  %12 = sst [smem:[#allocation2]] %s6
  $region1: #{rdb_forward_nchw.9} parent=0
    #allocation3 [shape = 'u8[8192]{0}', space=vmem, size = 0x2000, scoped, tag = 'input window, operand 0']
    #allocation4 [shape = 's32[2]{0}', space=sflag, size = 0x8, scoped, tag = 'scoped memory for rdb_forward_nchw.9']
    #allocation5 [shape = 's32[2]{0}', space=sflag, size = 0x8, scoped, tag = 'scoped memory for rdb_forward_nchw.9']
    #allocation6 [shape = 'u8[16384]{0}', space=vmem, size = 0x4000, scoped, tag = 'input window, operand 1, single buffered']
    #allocation7 [shape = 's32[1]{0}', space=sflag, size = 0x4, scoped, tag = 'scoped memory for rdb_forward_nchw.9']
    #allocation8 [shape = 'u8[2048]{0}', space=vmem, size = 0x800, scoped, tag = 'input window, operand 2, single buffered']
    #allocation9 [shape = 'u8[2048]{0}', space=vmem, size = 0x800, scoped, tag = 'input window, operand 3, single buffered']
    #allocation10 [shape = 's32[1]{0}', space=sflag, size = 0x4, scoped, tag = 'scoped memory for rdb_forward_nchw.9']
    #allocation11 [shape = 'u8[2048]{0}', space=vmem, size = 0x800, scoped, tag = 'input window, operand 4, single buffered']
    #allocation12 [shape = 'u8[2048]{0}', space=vmem, size = 0x800, scoped, tag = 'input window, operand 5, single buffered']
    #allocation13 [shape = 's32[1]{0}', space=sflag, size = 0x4, scoped, tag = 'scoped memory for rdb_forward_nchw.9']
    #allocation14 [shape = 'u8[8192]{0}', space=vmem, size = 0x2000, scoped, tag = 'output window, operand 0']
    %13 = vsyncpa [#allocation4], 0
    %s14 = scalar_lea.sflag [#allocation4], 1
    %15 = vsyncpa %s14, 0
    %16 = vsyncpa [#allocation7], 0
    %17 = vsyncpa [#allocation10], 0
    %18 = vsyncpa [#allocation13], 0
    %19 = vsyncpa [#allocation5], 0
    %s20 = scalar_lea.sflag [#allocation5], 1
    %21 = vsyncpa %s20, 0
    loop: start=0, step=1, limit=4
    $region2: #{rdb_forward_nchw.9} parent=1 // loop_pre_header
      _
    $region3: #{rdb_forward_nchw.9} parent=1 // loop_header
      %s23 = sphi 0, %s27
      %p24 = scmp.ge.s32.totalorder %s23, 4
      %s33 = sphi 0, %s35
      %s36 = sphi 0, %s33
      %s37 = sphi 0, %s36
      %s53 = sphi 0, %s37
      %s57 = sphi 0, %s57
      %s59 = sphi 0, %s57
      %s60 = sphi 0, %s59
      %s74 = sphi 0, %s60
      %s78 = sphi 0, %s78
      %s80 = sphi 0, %s78
      %s81 = sphi 0, %s80
      %s95 = sphi 0, %s81
      %s99 = sphi 0, %s99
      %s101 = sphi 0, %s99
      %s102 = sphi 0, %s101
      %s116 = sphi 0, %s102
      %s120 = sphi 0, %s120
      %s122 = sphi 0, %s120
      %s123 = sphi 0, %s122
      %s137 = sphi 0, %s123
      %s141 = sphi 0, %s141
      %s143 = sphi 0, %s141
      %s144 = sphi 0, %s143
      %s158 = sphi 0, %s144
      %s162 = sphi 0, %s162
      %s164 = sphi 0, %s162
      %s165 = sphi 0, %s164
      %s179 = sphi 0, %s165
      %s185 = sphi 0, %s187
      %s188 = sphi 0, %s185
      %s189 = sphi 0, %s188
      %s205 = sphi 0, %s189
    $region4: #{rdb_forward_nchw.9} parent=1 // loop_header_branch
      %26 = sbr.rel (%p24) target = $region8
    $region5: #{rdb_forward_nchw.9} parent=1 // loop_body
      %s28 = ssub.s32 %s23, 1
      %s29 = ssub.s32 %s23, 2
      %s30 = sadd.s32 %s23, 1
      %s31 = ssub.s32 %s23, %s30
      %p32 = scmp.eq.s32.totalorder %s31, 0
      %s34 = sadd.s32 %s33, 1
      %s35 = scalar_select %p32, %s33, %s34
      %p38 = pneg %p32
      %p39 = scmp.eq.s32.totalorder %s23, 1
      %p40 = por %p38, %p39
      %p41 = scmp.ne.s32.totalorder %s33, %s36
      %p42 = scmp.eq.s32.totalorder %s23, 0
      %p43 = por %p41, %p42
      %p44 = scmp.ne.s32.totalorder %s33, %s36
      %p45 = scmp.eq.s32.totalorder %s28, 1
      %p46 = por %p44, %p45
      %p47 = scmp.ne.s32.totalorder %s36, %s37
      %p48 = scmp.eq.s32.totalorder %s28, 0
      %p49 = por %p47, %p48
      %p50 = scmp.ne.s32.totalorder %s36, %s37
      %p51 = scmp.eq.s32.totalorder %s29, 1
      %p52 = por %p50, %p51
      %p54 = scmp.ne.s32.totalorder %s37, %s53
      %p55 = scmp.eq.s32.totalorder %s29, 0
      %p56 = por %p54, %p55
      %s58 = sadd.s32 %s57, 1
      %p61 = scmp.eq.s32.totalorder %s23, 1
      %p62 = scmp.ne.s32.totalorder %s57, %s59
      %p63 = scmp.eq.s32.totalorder %s23, 0
      %p64 = por %p62, %p63
      %p65 = scmp.ne.s32.totalorder %s57, %s59
      %p66 = scmp.eq.s32.totalorder %s28, 1
      %p67 = por %p65, %p66
      %p68 = scmp.ne.s32.totalorder %s59, %s60
      %p69 = scmp.eq.s32.totalorder %s28, 0
      %p70 = por %p68, %p69
      %p71 = scmp.ne.s32.totalorder %s59, %s60
      %p72 = scmp.eq.s32.totalorder %s29, 1
      %p73 = por %p71, %p72
      %p75 = scmp.ne.s32.totalorder %s60, %s74
      %p76 = scmp.eq.s32.totalorder %s29, 0
      %p77 = por %p75, %p76
      %s79 = sadd.s32 %s78, 1
      %p82 = scmp.eq.s32.totalorder %s23, 1
      %p83 = scmp.ne.s32.totalorder %s78, %s80
      %p84 = scmp.eq.s32.totalorder %s23, 0
      %p85 = por %p83, %p84
      %p86 = scmp.ne.s32.totalorder %s78, %s80
      %p87 = scmp.eq.s32.totalorder %s28, 1
      %p88 = por %p86, %p87
      %p89 = scmp.ne.s32.totalorder %s80, %s81
      %p90 = scmp.eq.s32.totalorder %s28, 0
      %p91 = por %p89, %p90
      %p92 = scmp.ne.s32.totalorder %s80, %s81
      %p93 = scmp.eq.s32.totalorder %s29, 1
      %p94 = por %p92, %p93
      %p96 = scmp.ne.s32.totalorder %s81, %s95
      %p97 = scmp.eq.s32.totalorder %s29, 0
      %p98 = por %p96, %p97
      %s100 = sadd.s32 %s99, 1
      %p103 = scmp.eq.s32.totalorder %s23, 1
      %p104 = scmp.ne.s32.totalorder %s99, %s101
      %p105 = scmp.eq.s32.totalorder %s23, 0
      %p106 = por %p104, %p105
      %p107 = scmp.ne.s32.totalorder %s99, %s101
      %p108 = scmp.eq.s32.totalorder %s28, 1
      %p109 = por %p107, %p108
      %p110 = scmp.ne.s32.totalorder %s101, %s102
      %p111 = scmp.eq.s32.totalorder %s28, 0
      %p112 = por %p110, %p111
      %p113 = scmp.ne.s32.totalorder %s101, %s102
      %p114 = scmp.eq.s32.totalorder %s29, 1
      %p115 = por %p113, %p114
      %p117 = scmp.ne.s32.totalorder %s102, %s116
      %p118 = scmp.eq.s32.totalorder %s29, 0
      %p119 = por %p117, %p118
      %s121 = sadd.s32 %s120, 1
      %p124 = scmp.eq.s32.totalorder %s23, 1
      %p125 = scmp.ne.s32.totalorder %s120, %s122
      %p126 = scmp.eq.s32.totalorder %s23, 0
      %p127 = por %p125, %p126
      %p128 = scmp.ne.s32.totalorder %s120, %s122
      %p129 = scmp.eq.s32.totalorder %s28, 1
      %p130 = por %p128, %p129
      %p131 = scmp.ne.s32.totalorder %s122, %s123
      %p132 = scmp.eq.s32.totalorder %s28, 0
      %p133 = por %p131, %p132
      %p134 = scmp.ne.s32.totalorder %s122, %s123
      %p135 = scmp.eq.s32.totalorder %s29, 1
      %p136 = por %p134, %p135
      %p138 = scmp.ne.s32.totalorder %s123, %s137
      %p139 = scmp.eq.s32.totalorder %s29, 0
      %p140 = por %p138, %p139
      %s142 = sadd.s32 %s141, 1
      %p145 = scmp.eq.s32.totalorder %s23, 1
      %p146 = scmp.ne.s32.totalorder %s141, %s143
      %p147 = scmp.eq.s32.totalorder %s23, 0
      %p148 = por %p146, %p147
      %p149 = scmp.ne.s32.totalorder %s141, %s143
      %p150 = scmp.eq.s32.totalorder %s28, 1
      %p151 = por %p149, %p150
      %p152 = scmp.ne.s32.totalorder %s143, %s144
      %p153 = scmp.eq.s32.totalorder %s28, 0
      %p154 = por %p152, %p153
      %p155 = scmp.ne.s32.totalorder %s143, %s144
      %p156 = scmp.eq.s32.totalorder %s29, 1
      %p157 = por %p155, %p156
      %p159 = scmp.ne.s32.totalorder %s144, %s158
      %p160 = scmp.eq.s32.totalorder %s29, 0
      %p161 = por %p159, %p160
      %s163 = sadd.s32 %s162, 1
      %p166 = scmp.eq.s32.totalorder %s23, 1
      %p167 = scmp.ne.s32.totalorder %s162, %s164
      %p168 = scmp.eq.s32.totalorder %s23, 0
      %p169 = por %p167, %p168
      %p170 = scmp.ne.s32.totalorder %s162, %s164
      %p171 = scmp.eq.s32.totalorder %s28, 1
      %p172 = por %p170, %p171
      %p173 = scmp.ne.s32.totalorder %s164, %s165
      %p174 = scmp.eq.s32.totalorder %s28, 0
      %p175 = por %p173, %p174
      %p176 = scmp.ne.s32.totalorder %s164, %s165
      %p177 = scmp.eq.s32.totalorder %s29, 1
      %p178 = por %p176, %p177
      %p180 = scmp.ne.s32.totalorder %s165, %s179
      %p181 = scmp.eq.s32.totalorder %s29, 0
      %p182 = por %p180, %p181
      %s183 = ssub.s32 %s23, %s30
      %p184 = scmp.eq.s32.totalorder %s183, 0
      %s186 = sadd.s32 %s185, 1
      %s187 = scalar_select %p184, %s185, %s186
      %p190 = pneg %p184
      %p191 = scmp.eq.s32.totalorder %s23, 1
      %p192 = por %p190, %p191
      %p193 = scmp.ne.s32.totalorder %s185, %s188
      %p194 = scmp.eq.s32.totalorder %s23, 0
      %p195 = por %p193, %p194
      %p196 = scmp.ne.s32.totalorder %s185, %s188
      %p197 = scmp.eq.s32.totalorder %s28, 1
      %p198 = por %p196, %p197
      %p199 = scmp.ne.s32.totalorder %s188, %s189
      %p200 = scmp.eq.s32.totalorder %s28, 0
      %p201 = por %p199, %p200
      %p202 = scmp.ne.s32.totalorder %s188, %s189
      %p203 = scmp.eq.s32.totalorder %s29, 1
      %p204 = por %p202, %p203
      %p206 = scmp.ne.s32.totalorder %s189, %s205
      %p207 = scmp.eq.s32.totalorder %s29, 0
      %p208 = por %p206, %p207
      %p209 = scmp.le.s32.totalorder 1, %s23
      %p210 = scmp.lt.s32.totalorder %s23, 3
      %p211 = pnand %p209, %p210
      %p212 = pneg %p211
      // Predicated region
      $region9: #{rdb_forward_nchw.9} parent=5 // pred_check
        _
      $region10: #{rdb_forward_nchw.9} parent=5 // pred_check_branch
        %214 = sbr.rel (%p211) target = $region12
      $region11: #{rdb_forward_nchw.9} parent=5 // pred_region
        %s215 = ssub.s32 %s23, 1
        // Predicated region
        $region13: #{rdb_forward_nchw.9} parent=11 // pred_check
          %p216 = pneg %p70
        $region14: #{rdb_forward_nchw.9} parent=11 // pred_check_branch
          %218 = sbr.rel (%p216) target = $region16
        $region15: #{rdb_forward_nchw.9} parent=11 // pred_region
          %s220 = ssub.s32 512, 512
          %221 = vsyncadd [#allocation7], %s220
          %s222 = sshll.u32 [#allocation6], 4
          %s223 = int_to_ptr.vmem [resolvable:$true] %s222
          %228 = dma.hbm_to_vmem [thread:$0]  %s1, 512, %s223, [#allocation7], 256, 256, 16
        $region16: #{rdb_forward_nchw.9} parent=11 // pred_fallthru
          _
        // Predicated region
        $region17: #{rdb_forward_nchw.9} parent=11 // pred_check
          %p229 = pneg %p91
        $region18: #{rdb_forward_nchw.9} parent=11 // pred_check_branch
          %231 = sbr.rel (%p229) target = $region20
        $region19: #{rdb_forward_nchw.9} parent=11 // pred_region
          %s233 = ssub.s32 64, 64
          %234 = vsyncadd [#allocation7], %s233
          %s236 = sshll.u32 [#allocation8], 4
          %s237 = int_to_ptr.vmem [resolvable:$true] %s236
          %239 = dma.hbm_to_vmem [thread:$0]  %s2, 64, %s237, [#allocation7]
        $region20: #{rdb_forward_nchw.9} parent=11 // pred_fallthru
          _
        // Predicated region
        $region21: #{rdb_forward_nchw.9} parent=11 // pred_check
          %p240 = pneg %p112
        $region22: #{rdb_forward_nchw.9} parent=11 // pred_check_branch
          %242 = sbr.rel (%p240) target = $region24
        $region23: #{rdb_forward_nchw.9} parent=11 // pred_region
          %s244 = ssub.s32 64, 64
          %245 = vsyncadd [#allocation10], %s244
          %s247 = sshll.u32 [#allocation9], 4
          %s248 = int_to_ptr.vmem [resolvable:$true] %s247
          %250 = dma.hbm_to_vmem [thread:$0]  %s3, 64, %s248, [#allocation10]
        $region24: #{rdb_forward_nchw.9} parent=11 // pred_fallthru
          _
        // Predicated region
        $region25: #{rdb_forward_nchw.9} parent=11 // pred_check
          %p251 = pneg %p133
        $region26: #{rdb_forward_nchw.9} parent=11 // pred_check_branch
          %253 = sbr.rel (%p251) target = $region28
        $region27: #{rdb_forward_nchw.9} parent=11 // pred_region
          %s255 = ssub.s32 64, 64
          %256 = vsyncadd [#allocation10], %s255
          %s258 = sshll.u32 [#allocation11], 4
          %s259 = int_to_ptr.vmem [resolvable:$true] %s258
          %261 = dma.hbm_to_vmem [thread:$0]  %s4, 64, %s259, [#allocation10]
        $region28: #{rdb_forward_nchw.9} parent=11 // pred_fallthru
          _
        // Predicated region
        $region29: #{rdb_forward_nchw.9} parent=11 // pred_check
          %p262 = pneg %p154
        $region30: #{rdb_forward_nchw.9} parent=11 // pred_check_branch
          %264 = sbr.rel (%p262) target = $region32
        $region31: #{rdb_forward_nchw.9} parent=11 // pred_region
          %s266 = ssub.s32 64, 64
          %267 = vsyncadd [#allocation13], %s266
          %s269 = sshll.u32 [#allocation12], 4
          %s270 = int_to_ptr.vmem [resolvable:$true] %s269
          %272 = dma.hbm_to_vmem [thread:$0]  %s5, 64, %s270, [#allocation13]
        $region32: #{rdb_forward_nchw.9} parent=11 // pred_fallthru
          _
        // Predicated region
        $region33: #{rdb_forward_nchw.9} parent=11 // pred_check
          %p273 = pneg %p175
        $region34: #{rdb_forward_nchw.9} parent=11 // pred_check_branch
          %275 = sbr.rel (%p273) target = $region36
        $region35: #{rdb_forward_nchw.9} parent=11 // pred_region
          _
        $region36: #{rdb_forward_nchw.9} parent=11 // pred_fallthru
          _
      $region12: #{rdb_forward_nchw.9} parent=5 // pred_fallthru
        _
      %p276 = scmp.lt.s32.totalorder %s23, 2
      // Predicated region
      $region37: #{rdb_forward_nchw.9} parent=5 // pred_check
        %p277 = pneg %p276
      $region38: #{rdb_forward_nchw.9} parent=5 // pred_check_branch
        %279 = sbr.rel (%p277) target = $region40
      $region39: #{rdb_forward_nchw.9} parent=5 // pred_region
        // Predicated region
        $region41: #{rdb_forward_nchw.9} parent=39 // pred_check
          %p280 = pneg %p43
        $region42: #{rdb_forward_nchw.9} parent=39 // pred_check_branch
          %282 = sbr.rel (%p280) target = $region44
        $region43: #{rdb_forward_nchw.9} parent=39 // pred_region
          %s283 = sand.u32 %s33, 1
          %s284 = scalar_lea.sflag [#allocation4], %s283
          %s285 = sand.u32 %s33, 1
          %s286 = smul.addr %s285, 8
          %s287 = scalar_lea.vmem [#allocation3], %s286
          %s289 = ssub.s32 128, 128
          %290 = vsyncadd %s284, %s289
          %s291 = smul.addr %s23, 2
          %s292 = smul.addr %s291, 64
          %s293 = scalar_lea.hbm %s0, %s292
          %s295 = sshll.u32 %s287, 4
          %s296 = int_to_ptr.vmem [resolvable:$true] %s295
          %298 = dma.hbm_to_vmem [thread:$0]  %s293, 128, %s296, %s284
        $region44: #{rdb_forward_nchw.9} parent=39 // pred_fallthru
          _
      $region40: #{rdb_forward_nchw.9} parent=5 // pred_fallthru
        _
      %p299 = scmp.le.s32.totalorder 1, %s23
      %p300 = scmp.lt.s32.totalorder %s23, 3
      %p301 = pnand %p299, %p300
      %p302 = pneg %p301
      // Predicated region
      $region45: #{rdb_forward_nchw.9} parent=5 // pred_check
        _
      $region46: #{rdb_forward_nchw.9} parent=5 // pred_check_branch
        %304 = sbr.rel (%p301) target = $region48
      $region47: #{rdb_forward_nchw.9} parent=5 // pred_region
        %s305 = ssub.s32 %s23, 1
        %s306 = sand.u32 %s36, 1
        %s307 = scalar_lea.sflag [#allocation4], %s306
        %s308 = sand.u32 %s36, 1
        %s309 = smul.addr %s308, 8
        %s310 = scalar_lea.vmem [#allocation3], %s309
        // Predicated region
        $region49: #{rdb_forward_nchw.9} parent=47 // pred_check
          %p311 = pneg %p49
        $region50: #{rdb_forward_nchw.9} parent=47 // pred_check_branch
          %313 = sbr.rel (%p311) target = $region52
        $region51: #{rdb_forward_nchw.9} parent=47 // pred_region
          %314 = dma.done %s307, 128
        $region52: #{rdb_forward_nchw.9} parent=47 // pred_fallthru
          _
        // Predicated region
        $region53: #{rdb_forward_nchw.9} parent=47 // pred_check
          %p315 = pneg %p70
        $region54: #{rdb_forward_nchw.9} parent=47 // pred_check_branch
          %317 = sbr.rel (%p315) target = $region56
        $region55: #{rdb_forward_nchw.9} parent=47 // pred_region
          %318 = dma.done [#allocation7], 512
        $region56: #{rdb_forward_nchw.9} parent=47 // pred_fallthru
          _
        // Predicated region
        $region57: #{rdb_forward_nchw.9} parent=47 // pred_check
          %p319 = pneg %p91
        $region58: #{rdb_forward_nchw.9} parent=47 // pred_check_branch
          %321 = sbr.rel (%p319) target = $region60
        $region59: #{rdb_forward_nchw.9} parent=47 // pred_region
          %322 = dma.done [#allocation7], 64
        $region60: #{rdb_forward_nchw.9} parent=47 // pred_fallthru
          _
        // Predicated region
        $region61: #{rdb_forward_nchw.9} parent=47 // pred_check
          %p323 = pneg %p112
        $region62: #{rdb_forward_nchw.9} parent=47 // pred_check_branch
          %325 = sbr.rel (%p323) target = $region64
        $region63: #{rdb_forward_nchw.9} parent=47 // pred_region
          %326 = dma.done [#allocation10], 64
        $region64: #{rdb_forward_nchw.9} parent=47 // pred_fallthru
          _
        // Predicated region
        $region65: #{rdb_forward_nchw.9} parent=47 // pred_check
          %p327 = pneg %p133
        $region66: #{rdb_forward_nchw.9} parent=47 // pred_check_branch
          %329 = sbr.rel (%p327) target = $region68
        $region67: #{rdb_forward_nchw.9} parent=47 // pred_region
          %330 = dma.done [#allocation10], 64
        $region68: #{rdb_forward_nchw.9} parent=47 // pred_fallthru
          _
        // Predicated region
        $region69: #{rdb_forward_nchw.9} parent=47 // pred_check
          %p331 = pneg %p154
        $region70: #{rdb_forward_nchw.9} parent=47 // pred_check_branch
          %333 = sbr.rel (%p331) target = $region72
        $region71: #{rdb_forward_nchw.9} parent=47 // pred_region
          %334 = dma.done [#allocation13], 64
        $region72: #{rdb_forward_nchw.9} parent=47 // pred_fallthru
          _
        %s335 = sand.u32 %s36, 1
        %s336 = scalar_lea.sflag [#allocation4], %s335
        %s337 = sand.u32 %s36, 1
        %s338 = smul.addr %s337, 8
        %s339 = scalar_lea.vmem [#allocation3], %s338
        %p340 = pneg %p49
        %p341 = pneg %p46
        %p342 = pneg %p70
        %p343 = pneg %p67
        %p344 = pneg %p91
        %p345 = pneg %p88
        %p346 = pneg %p112
        %p347 = pneg %p109
        %p348 = pneg %p133
        %p349 = pneg %p130
        %p350 = pneg %p154
        %p351 = pneg %p151
        %p352 = pneg %p175
        %p353 = pneg %p172
        %p354 = pneg %p201
        %p355 = pneg %p198
        %s356 = sand.u32 %s188, 1
        %s357 = scalar_lea.sflag [#allocation5], %s356
        %s358 = sand.u32 %s188, 1
        %s359 = smul.addr %s358, 8
        %s360 = scalar_lea.vmem [#allocation14], %s359
        %v361 = vld [vmem:[#allocation6] sm:$0xff]
        %v362 = vld [vmem:[#allocation6 + $0x8] sm:$0xff]
        %v363 = vld [vmem:[#allocation6 + $0x10] sm:$0x1]
        %v364 = vld [vmem:[#allocation6 + $0x18] sm:$0x1]
        %v365 = vld [vmem:[%s310] sm:$0xff]
        %s366 = sld [smem:[#allocation2]]
        %vm367 = vcmp.ge.f32.partialorder %v365, 0.0
        %v368 = vstv %s366
        %v369 = vmul.f32 %v368, %v365
        %v370 = vsel %vm367, %v365, %v369
        %v371 = vld [vmem:[#allocation8] sm:$0xf]
        %v373 = vcombine.high %v370, %v370
        %374 = vrot.lane.b32.xlu0 %v370, 17
        %v375 = vpop.permute.xlu0 %374
        %376 = vrot.lane.b32.xlu0 %v373, 17
        %v377 = vpop.permute.xlu0 %376
        %vm378 = vcmask 138240
        %v379 = vsel %vm378, %v375, %v377
        %v382 = vsel %vm378, 0.0, %v375
        %v383 = vlaneseq
        %v384 = vshrl.u32 %v383, 7
        %v385 = vsub.s32 0, %v384
        %v386 = vrot.slane %v361, %v385
        %v387 = vlaneseq
        %v388 = vshrl.u32 %v387, 7
        %v389 = vsub.s32 0, %v388
        %v390 = vrot.slane %v362, %v389
        %v391 = vmul.f32 %v382, %v386
        %v392 = vmul.f32 %v379, %v390
        %393 = vrot.lane.b32.xlu0 %v370, 16
        %v394 = vpop.permute.xlu0 %393
        %395 = vrot.lane.b32.xlu0 %v373, 16
        %v396 = vpop.permute.xlu0 %395
        %vm397 = vcmask 130048
        %v398 = vsel %vm397, %v394, %v396
        %v401 = vsel %vm397, 0.0, %v394
        %v402 = vlaneseq
        %v403 = vshrl.u32 %v402, 7
        %v404 = vsub.s32 1, %v403
        %v405 = vrot.slane %v361, %v404
        %v406 = vlaneseq
        %v407 = vshrl.u32 %v406, 7
        %v408 = vsub.s32 1, %v407
        %v409 = vrot.slane %v362, %v408
        %v410 = vmul.f32 %v401, %v405
        %v411 = vmul.f32 %v398, %v409
        %412 = vrot.lane.b32.xlu0 %v370, 15
        %v413 = vpop.permute.xlu0 %412
        %414 = vrot.lane.b32.xlu0 %v373, 15
        %v415 = vpop.permute.xlu0 %414
        %vm416 = vcmask 121856
        %v417 = vsel %vm416, %v413, %v415
        %v420 = vsel %vm416, 0.0, %v413
        %v421 = vlaneseq
        %v422 = vshrl.u32 %v421, 7
        %v423 = vsub.s32 2, %v422
        %v424 = vrot.slane %v361, %v423
        %v425 = vlaneseq
        %v426 = vshrl.u32 %v425, 7
        %v427 = vsub.s32 2, %v426
        %v428 = vrot.slane %v362, %v427
        %v429 = vmul.f32 %v420, %v424
        %v430 = vmul.f32 %v417, %v428
        %431 = vrot.lane.b32.xlu0 %v370, 1
        %v432 = vpop.permute.xlu0 %431
        %433 = vrot.lane.b32.xlu0 %v373, 1
        %v434 = vpop.permute.xlu0 %433
        %vm435 = vcmask 7168
        %v436 = vsel %vm435, %v432, %v434
        %v439 = vsel %vm435, 0.0, %v432
        %v440 = vlaneseq
        %v441 = vshrl.u32 %v440, 7
        %v442 = vsub.s32 3, %v441
        %v443 = vrot.slane %v361, %v442
        %v444 = vlaneseq
        %v445 = vshrl.u32 %v444, 7
        %v446 = vsub.s32 3, %v445
        %v447 = vrot.slane %v362, %v446
        %v448 = vmul.f32 %v439, %v443
        %v449 = vmul.f32 %v436, %v447
        %450 = vrot.lane.b32.xlu0 %v370, 127
        %v451 = vpop.permute.xlu0 %450
        %452 = vrot.lane.b32.xlu0 %v373, 127
        %v453 = vpop.permute.xlu0 %452
        %vm454 = vcmask 1039360
        %v455 = vsel %vm454, %v451, %v453
        %v458 = vsel %vm454, %v453, 0.0
        %v459 = vlaneseq
        %v460 = vshrl.u32 %v459, 7
        %v461 = vsub.s32 5, %v460
        %v462 = vrot.slane %v361, %v461
        %v463 = vlaneseq
        %v464 = vshrl.u32 %v463, 7
        %v465 = vsub.s32 5, %v464
        %v466 = vrot.slane %v362, %v465
        %v467 = vmul.f32 %v455, %v462
        %v468 = vmul.f32 %v458, %v466
        %469 = vrot.lane.b32.xlu0 %v370, 113
        %v470 = vpop.permute.xlu0 %469
        %471 = vrot.lane.b32.xlu0 %v373, 113
        %v472 = vpop.permute.xlu0 %471
        %vm473 = vcmask 924672
        %v474 = vsel %vm473, %v470, %v472
        %v477 = vsel %vm473, %v472, 0.0
        %v478 = vlaneseq
        %v479 = vshrl.u32 %v478, 7
        %v480 = vsub.s32 6, %v479
        %v481 = vrot.slane %v361, %v480
        %v482 = vlaneseq
        %v483 = vshrl.u32 %v482, 7
        %v484 = vsub.s32 6, %v483
        %v485 = vrot.slane %v362, %v484
        %v486 = vmul.f32 %v474, %v481
        %v487 = vmul.f32 %v477, %v485
        %488 = vrot.lane.b32.xlu0 %v370, 112
        %v489 = vpop.permute.xlu0 %488
        %490 = vrot.lane.b32.xlu0 %v373, 112
        %v491 = vpop.permute.xlu0 %490
        %vm492 = vcmask 916480
        %v493 = vsel %vm492, %v489, %v491
        %v496 = vsel %vm492, %v491, 0.0
        %v497 = vlaneseq
        %v498 = vshrl.u32 %v497, 7
        %v499 = vsub.s32 7, %v498
        %v500 = vrot.slane %v361, %v499
        %v501 = vlaneseq
        %v502 = vshrl.u32 %v501, 7
        %v503 = vsub.s32 7, %v502
        %v504 = vrot.slane %v362, %v503
        %v505 = vmul.f32 %v493, %v500
        %v506 = vmul.f32 %v496, %v504
        %507 = vrot.lane.b32.xlu0 %v370, 111
        %v508 = vpop.permute.xlu0 %507
        %509 = vrot.lane.b32.xlu0 %v373, 111
        %v510 = vpop.permute.xlu0 %509
        %vm511 = vcmask 908288
        %v512 = vsel %vm511, %v508, %v510
        %v515 = vsel %vm511, %v510, 0.0
        %v516 = vlaneseq
        %v517 = vshrl.u32 %v516, 7
        %v518 = vsub.s32 0, %v517
        %v519 = vrot.slane %v363, %v518
        %v520 = vlaneseq
        %v521 = vshrl.u32 %v520, 7
        %v522 = vsub.s32 0, %v521
        %v523 = vrot.slane %v364, %v522
        %v524 = vmul.f32 %v512, %v519
        %v525 = vmul.f32 %v515, %v523
        %v528 = vrot.slane %v410, 4
        %v529 = vrot.slane %v411, 4
        %v534 = vrot.slane %v448, 4
        %v535 = vrot.slane %v449, 4
        %v541 = vrot.slane %v467, 4
        %v542 = vrot.slane %v468, 4
        %v547 = vrot.slane %v505, 4
        %v548 = vrot.slane %v506, 4
        %vm551 = vcmask 1043456
        %v552 = vsel %vm551, %v391, %v528
        %v553 = vsel %vm551, %v392, %v529
        %v554 = vsel %vm551, %v429, %v534
        %v555 = vsel %vm551, %v430, %v535
        %v556 = vsel %vm551, %v370, %v541
        %v557 = vsel %vm551, %v373, %v542
        %v558 = vsel %vm551, %v486, %v547
        %v559 = vsel %vm551, %v487, %v548
        %v560 = vld [vmem:[#allocation9] sm:$0xf]
        %562 = vset.pattern.permute.xlu0 0
        %563 = vperm.xlu0 %562, %v560
        %v564 = vpop.permute.xlu0 %563
        %vm566 = vcmask 293888
        %v568 = vsel %vm566, %v371, 0
        %v571 = vsel %vm551, %v524, 0
        %v574 = vsel %vm551, %v525, 0
        %576 = vmatprep.subr.mxu0 %v553
        %577 = vmatpush1.msra.mxu0 %v552
        %578 = vmatprep.subr.mxu0 %v555
        %579 = vmatpush1.msra.mxu0 %v554
        %580 = vmatprep.subr.mxu0 %v557
        %581 = vmatpush1.msra.mxu0 %v556
        %582 = vmatprep.subr.mxu0 %v559
        %583 = vmatpush1.msra.mxu0 %v558
        %584 = vmatprep.subr.mxu0 %v574
        %585 = vmatpush1.msra.mxu0 %v571
        %586 = vmatprep.subr.mxu0 0.0
        %587 = vmatpush1.msra.mxu0 0.0
        %588 = vmatprep.subr.mxu0 0.0
        %589 = vmatpush1.msra.mxu0 0.0
        %590 = vmatprep.subr.mxu0 0.0
        %591 = vmatpush1.msra.mxu0 0.0
        %592 = vmatprep.subr.mxu0 0.0
        %593 = vmatpush1.msra.mxu0 0.0
        %594 = vmatprep.subr.mxu0 0.0
        %595 = vmatpush1.msra.mxu0 0.0
        %596 = vmatprep.subr.mxu0 0.0
        %597 = vmatpush1.msra.mxu0 0.0
        %598 = vmatprep.subr.mxu0 0.0
        %599 = vmatpush1.msra.mxu0 0.0
        %600 = vmatprep.subr.mxu0 0.0
        %601 = vmatpush1.msra.mxu0 0.0
        %602 = vmatprep.subr.mxu0 0.0
        %603 = vmatpush1.msra.mxu0 0.0
        %604 = vmatprep.subr.mxu0 0.0
        %605 = vmatpush1.msra.mxu0 0.0
        %606 = vmatprep.subr.mxu0 0.0
        %607 = vmatpush1.msra.mxu0 0.0
        %608 = vmatprep.subr.mxu0 0.0
        %609 = vmatpush1.msra.mxu0 0.0
        %610 = vmatprep.subr.mxu0 0.0
        %611 = vmatpush1.msra.mxu0 0.0
        %612 = vmatprep.subr.mxu0 0.0
        %613 = vmatpush1.msra.mxu0 0.0
        %614 = vmatprep.subr.mxu0 0.0
        %615 = vmatpush1.msra.mxu0 0.0
        %616 = vmatprep.subr.mxu0 0.0
        %617 = vmatpush1.msra.mxu0 0.0
        %618 = vmatprep.subr.mxu0 0.0
        %619 = vmatpush1.msra.mxu0 0.0
        %620 = vmatprep.subr.mxu0 0.0
        %621 = vmatpush1.msra.mxu0 0.0
        %622 = vmatprep.subr.mxu0 0.0
        %623 = vmatpush1.msra.mxu0 0.0
        %624 = vmatprep.subr.mxu0 0.0
        %625 = vmatpush1.msra.mxu0 0.0
        %626 = vmatprep.subr.mxu0 0.0
        %627 = vmatpush1.msra.mxu0 0.0
        %628 = vmatprep.subr.mxu0 0.0
        %629 = vmatpush1.msra.mxu0 0.0
        %630 = vmatprep.subr.mxu0 0.0
        %631 = vmatpush1.msra.mxu0 0.0
        %632 = vmatprep.subr.mxu0 0.0
        %633 = vmatpush1.msra.mxu0 0.0
        %634 = vmatprep.subr.mxu0 0.0
        %635 = vmatpush1.msra.mxu0 0.0
        %636 = vmatprep.subr.mxu0 0.0
        %637 = vmatpush1.msra.mxu0 0.0
        %638 = vmatprep.subr.mxu0 0.0
        %639 = vmatpush1.msra.mxu0 0.0
        %640 = vmatprep.mubr.f32.mxu0 0.0
        %641 = vmatmul.mubr.f32.gmra.mrb[0].mxu0 %v568
        %v642 = vpop.f32.mrb[0].mxu0
        %v643 = vadd.f32 %v564, %v642
        %v644 = vpop.f32.mrb[0].mxu0
        %v645 = vadd.f32 %v564, %v644
        %646 = vdwg.mxu0
        %v647 = vld [vmem:[#allocation11] sm:$0xf]
        %650 = vrot.lane.b32.xlu0 %v643, 17
        %v651 = vpop.permute.xlu0 %650
        %652 = vrot.lane.b32.xlu0 %v645, 17
        %v653 = vpop.permute.xlu0 %652
        %v654 = vsel %vm378, %v651, %v653
        %v657 = vsel %vm378, 0.0, %v651
        %v658 = vmul.f32 %v657, %v386
        %v659 = vmul.f32 %v654, %v390
        %660 = vrot.lane.b32.xlu0 %v643, 16
        %v661 = vpop.permute.xlu0 %660
        %662 = vrot.lane.b32.xlu0 %v645, 16
        %v663 = vpop.permute.xlu0 %662
        %v664 = vsel %vm397, %v661, %v663
        %v667 = vsel %vm397, 0.0, %v661
        %v668 = vmul.f32 %v667, %v405
        %v669 = vmul.f32 %v664, %v409
        %670 = vrot.lane.b32.xlu0 %v643, 15
        %v671 = vpop.permute.xlu0 %670
        %672 = vrot.lane.b32.xlu0 %v645, 15
        %v673 = vpop.permute.xlu0 %672
        %v674 = vsel %vm416, %v671, %v673
        %v677 = vsel %vm416, 0.0, %v671
        %v678 = vmul.f32 %v677, %v424
        %v679 = vmul.f32 %v674, %v428
        %680 = vrot.lane.b32.xlu0 %v643, 1
        %v681 = vpop.permute.xlu0 %680
        %682 = vrot.lane.b32.xlu0 %v645, 1
        %v683 = vpop.permute.xlu0 %682
        %v684 = vsel %vm435, %v681, %v683
        %v687 = vsel %vm435, 0.0, %v681
        %v688 = vmul.f32 %v687, %v443
        %v689 = vmul.f32 %v684, %v447
        %690 = vrot.lane.b32.xlu0 %v643, 127
        %v691 = vpop.permute.xlu0 %690
        %692 = vrot.lane.b32.xlu0 %v645, 127
        %v693 = vpop.permute.xlu0 %692
        %v694 = vsel %vm454, %v691, %v693
        %v697 = vsel %vm454, %v693, 0.0
        %v698 = vmul.f32 %v694, %v462
        %v699 = vmul.f32 %v697, %v466
        %700 = vrot.lane.b32.xlu0 %v643, 113
        %v701 = vpop.permute.xlu0 %700
        %702 = vrot.lane.b32.xlu0 %v645, 113
        %v703 = vpop.permute.xlu0 %702
        %v704 = vsel %vm473, %v701, %v703
        %v707 = vsel %vm473, %v703, 0.0
        %v708 = vmul.f32 %v704, %v481
        %v709 = vmul.f32 %v707, %v485
        %710 = vrot.lane.b32.xlu0 %v643, 112
        %v711 = vpop.permute.xlu0 %710
        %712 = vrot.lane.b32.xlu0 %v645, 112
        %v713 = vpop.permute.xlu0 %712
        %v714 = vsel %vm492, %v711, %v713
        %v717 = vsel %vm492, %v713, 0.0
        %v718 = vmul.f32 %v714, %v500
        %v719 = vmul.f32 %v717, %v504
        %720 = vrot.lane.b32.xlu0 %v643, 111
        %v721 = vpop.permute.xlu0 %720
        %722 = vrot.lane.b32.xlu0 %v645, 111
        %v723 = vpop.permute.xlu0 %722
        %v724 = vsel %vm511, %v721, %v723
        %v727 = vsel %vm511, %v723, 0.0
        %v728 = vmul.f32 %v724, %v519
        %v729 = vmul.f32 %v727, %v523
        %v732 = vrot.slane %v668, 4
        %v733 = vrot.slane %v669, 4
        %v738 = vrot.slane %v688, 4
        %v739 = vrot.slane %v689, 4
        %v744 = vrot.slane %v698, 4
        %v745 = vrot.slane %v699, 4
        %v750 = vrot.slane %v718, 4
        %v751 = vrot.slane %v719, 4
        %v754 = vsel %vm551, %v658, %v732
        %v755 = vsel %vm551, %v659, %v733
        %v756 = vsel %vm551, %v678, %v738
        %v757 = vsel %vm551, %v679, %v739
        %v758 = vsel %vm551, %v643, %v744
        %v759 = vsel %vm551, %v645, %v745
        %v760 = vsel %vm551, %v708, %v750
        %v761 = vsel %vm551, %v709, %v751
        %v762 = vld [vmem:[#allocation12] sm:$0xf]
        %764 = vset.pattern.permute.xlu0 0
        %765 = vperm.xlu0 %764, %v762
        %v766 = vpop.permute.xlu0 %765
        %v769 = vsel %vm566, %v647, 0
        %v772 = vsel %vm551, %v728, 0
        %v775 = vsel %vm551, %v729, 0
        %777 = vmatprep.subr.mxu0 %v755
        %778 = vmatpush1.msra.mxu0 %v754
        %779 = vmatprep.subr.mxu0 %v757
        %780 = vmatpush1.msra.mxu0 %v756
        %781 = vmatprep.subr.mxu0 %v759
        %782 = vmatpush1.msra.mxu0 %v758
        %783 = vmatprep.subr.mxu0 %v761
        %784 = vmatpush1.msra.mxu0 %v760
        %785 = vmatprep.subr.mxu0 %v775
        %786 = vmatpush1.msra.mxu0 %v772
        %787 = vmatprep.subr.mxu0 0.0
        %788 = vmatpush1.msra.mxu0 0.0
        %789 = vmatprep.subr.mxu0 0.0
        %790 = vmatpush1.msra.mxu0 0.0
        %791 = vmatprep.subr.mxu0 0.0
        %792 = vmatpush1.msra.mxu0 0.0
        %793 = vmatprep.subr.mxu0 0.0
        %794 = vmatpush1.msra.mxu0 0.0
        %795 = vmatprep.subr.mxu0 0.0
        %796 = vmatpush1.msra.mxu0 0.0
        %797 = vmatprep.subr.mxu0 0.0
        %798 = vmatpush1.msra.mxu0 0.0
        %799 = vmatprep.subr.mxu0 0.0
        %800 = vmatpush1.msra.mxu0 0.0
        %801 = vmatprep.subr.mxu0 0.0
        %802 = vmatpush1.msra.mxu0 0.0
        %803 = vmatprep.subr.mxu0 0.0
        %804 = vmatpush1.msra.mxu0 0.0
        %805 = vmatprep.subr.mxu0 0.0
        %806 = vmatpush1.msra.mxu0 0.0
        %807 = vmatprep.subr.mxu0 0.0
        %808 = vmatpush1.msra.mxu0 0.0
        %809 = vmatprep.subr.mxu0 0.0
        %810 = vmatpush1.msra.mxu0 0.0
        %811 = vmatprep.subr.mxu0 0.0
        %812 = vmatpush1.msra.mxu0 0.0
        %813 = vmatprep.subr.mxu0 0.0
        %814 = vmatpush1.msra.mxu0 0.0
        %815 = vmatprep.subr.mxu0 0.0
        %816 = vmatpush1.msra.mxu0 0.0
        %817 = vmatprep.subr.mxu0 0.0
        %818 = vmatpush1.msra.mxu0 0.0
        %819 = vmatprep.subr.mxu0 0.0
        %820 = vmatpush1.msra.mxu0 0.0
        %821 = vmatprep.subr.mxu0 0.0
        %822 = vmatpush1.msra.mxu0 0.0
        %823 = vmatprep.subr.mxu0 0.0
        %824 = vmatpush1.msra.mxu0 0.0
        %825 = vmatprep.subr.mxu0 0.0
        %826 = vmatpush1.msra.mxu0 0.0
        %827 = vmatprep.subr.mxu0 0.0
        %828 = vmatpush1.msra.mxu0 0.0
        %829 = vmatprep.subr.mxu0 0.0
        %830 = vmatpush1.msra.mxu0 0.0
        %831 = vmatprep.subr.mxu0 0.0
        %832 = vmatpush1.msra.mxu0 0.0
        %833 = vmatprep.subr.mxu0 0.0
        %834 = vmatpush1.msra.mxu0 0.0
        %835 = vmatprep.subr.mxu0 0.0
        %836 = vmatpush1.msra.mxu0 0.0
        %837 = vmatprep.subr.mxu0 0.0
        %838 = vmatpush1.msra.mxu0 0.0
        %839 = vmatprep.subr.mxu0 0.0
        %840 = vmatpush1.msra.mxu0 0.0
        %841 = vmatprep.mubr.f32.mxu0 0.0
        %842 = vmatmul.mubr.f32.gmra.mrb[0].mxu0 %v769
        %v843 = vpop.f32.mrb[0].mxu0
        %v844 = vadd.f32 %v766, %v843
        %v845 = vpop.f32.mrb[0].mxu0
        %v846 = vadd.f32 %v766, %v845
        %847 = vdwg.mxu0
        %v850 = vcombine.low %v844, %v846
        %v852 = vadd.f32 %v365, %v850
        %853 = vst [vmem:[%s360] sm:$0xff] %v852
        %s854 = sand.u32 %s188, 1
        %s855 = scalar_lea.sflag [#allocation5], %s854
        %s856 = sand.u32 %s188, 1
        %s857 = smul.addr %s856, 8
        %s858 = scalar_lea.vmem [#allocation14], %s857
        // Predicated region
        $region73: #{rdb_forward_nchw.9} parent=47 // pred_check
          %p859 = pneg %p198
        $region74: #{rdb_forward_nchw.9} parent=47 // pred_check_branch
          %861 = sbr.rel (%p859) target = $region76
        $region75: #{rdb_forward_nchw.9} parent=47 // pred_region
          %s863 = ssub.s32 128, 128
          %864 = vsyncadd %s855, %s863
          %s865 = smul.addr %s28, 2
          %s866 = smul.addr %s865, 64
          %s867 = scalar_lea.hbm %s7, %s866
          %s869 = sshll.u32 %s858, 4
          %s870 = int_to_ptr.vmem [resolvable:$true] %s869
          %872 = dma.vmem_to_hbm [thread:$0]  %s870, 128, %s867, %s855
        $region76: #{rdb_forward_nchw.9} parent=47 // pred_fallthru
          _
      $region48: #{rdb_forward_nchw.9} parent=5 // pred_fallthru
        _
      %p873 = scmp.le.s32.totalorder 2, %s23
      // Predicated region
      $region77: #{rdb_forward_nchw.9} parent=5 // pred_check
        %p874 = pneg %p873
      $region78: #{rdb_forward_nchw.9} parent=5 // pred_check_branch
        %876 = sbr.rel (%p874) target = $region80
      $region79: #{rdb_forward_nchw.9} parent=5 // pred_region
        %s877 = ssub.s32 %s23, 2
        // Predicated region
        $region81: #{rdb_forward_nchw.9} parent=79 // pred_check
          %p878 = pneg %p204
        $region82: #{rdb_forward_nchw.9} parent=79 // pred_check_branch
          %880 = sbr.rel (%p878) target = $region84
        $region83: #{rdb_forward_nchw.9} parent=79 // pred_region
          %s881 = sand.u32 %s189, 1
          %s882 = scalar_lea.sflag [#allocation5], %s881
          %s883 = sand.u32 %s189, 1
          %s884 = smul.addr %s883, 8
          %s885 = scalar_lea.vmem [#allocation14], %s884
          %886 = dma.done %s882, 128
        $region84: #{rdb_forward_nchw.9} parent=79 // pred_fallthru
          _
      $region80: #{rdb_forward_nchw.9} parent=5 // pred_fallthru
        _
    $region6: #{rdb_forward_nchw.9} parent=1 // loop_footer
      %s27 = sadd.s32 1, %s23
    $region7: #{rdb_forward_nchw.9} parent=1 // loop_footer_branch
      %22 = sbr.rel target = $region3
    $region8: #{rdb_forward_nchw.9} parent=1 // loop_exit
      _
    %887 = vsyncpa [#allocation4], 1
    %s888 = scalar_lea.sflag [#allocation4], 1
    %889 = vsyncpa %s888, 1
    %890 = vsyncpa [#allocation7], 1
    %891 = vsyncpa [#allocation10], 1
    %892 = vsyncpa [#allocation13], 1
    %893 = vsyncpa [#allocation5], 1
    %s894 = scalar_lea.sflag [#allocation5], 1
    %895 = vsyncpa %s894, 1

// kernel: rdb_forward_nchw.10
$region0: #{rdb_forward_nchw.10}
  #allocation0 [shape = 'u32[]', space=smem, size = 0x4, offset = 0x4, fixed_abs, tag = 'smem constant byte address 0x4 - core index']
  #allocation1 [shape = 'u32[144,128]{1,0:T(1,128)}', space=vmem, size = 0x12000, scoped, tag = 'internal scratch']
  #allocation2 [shape = 'f32[1]{0:T(128)S(6)}', space=smem, size = 0x200, scoped, tag = 'scoped memory for rdb_forward_nchw.10']
  %s0 = inlined_call_operand.hbm [shape: f32[2,8,256], index: 0, kind: input, shape index: {}]
  %s1 = inlined_call_operand.hbm [shape: f32[9,256], index: 1, kind: input, shape index: {}]
  %s2 = inlined_call_operand.hbm [shape: f32[8,72], index: 2, kind: input, shape index: {}]
  %s3 = inlined_call_operand.hbm [shape: f32[8,1], index: 3, kind: input, shape index: {}]
  %s4 = inlined_call_operand.hbm [shape: f32[8,72], index: 4, kind: input, shape index: {}]
  %s5 = inlined_call_operand.hbm [shape: f32[8,1], index: 5, kind: input, shape index: {}]
  %s6 = inlined_call_operand.<no memory space> [shape: f32[1], index: 6, kind: input, shape index: {}]
  %s7 = inlined_call_operand.hbm [shape: f32[2,8,256], index: 7, kind: output, shape index: {}]
  %s8 = sld [smem:[#allocation0]]
  $region85: #{rdb_forward_nchw.10} parent=0
    _
  %s10 = ssub.s32 1, %s8
  %s11 = scalar_select 0, %s10, %s8
  %12 = sst [smem:[#allocation2]] %s6
  $region1: #{rdb_forward_nchw.10} parent=0
    #allocation3 [shape = 'u8[16384]{0}', space=vmem, size = 0x4000, scoped, tag = 'input window, operand 0']
    #allocation4 [shape = 's32[2]{0}', space=sflag, size = 0x8, scoped, tag = 'scoped memory for rdb_forward_nchw.10']
    #allocation5 [shape = 's32[2]{0}', space=sflag, size = 0x8, scoped, tag = 'scoped memory for rdb_forward_nchw.10']
    #allocation6 [shape = 'u8[16384]{0}', space=vmem, size = 0x4000, scoped, tag = 'input window, operand 1, single buffered']
    #allocation7 [shape = 's32[1]{0}', space=sflag, size = 0x4, scoped, tag = 'scoped memory for rdb_forward_nchw.10']
    #allocation8 [shape = 'u8[4096]{0}', space=vmem, size = 0x1000, scoped, tag = 'input window, operand 2, single buffered']
    #allocation9 [shape = 'u8[4096]{0}', space=vmem, size = 0x1000, scoped, tag = 'input window, operand 3, single buffered']
    #allocation10 [shape = 's32[1]{0}', space=sflag, size = 0x4, scoped, tag = 'scoped memory for rdb_forward_nchw.10']
    #allocation11 [shape = 'u8[4096]{0}', space=vmem, size = 0x1000, scoped, tag = 'input window, operand 4, single buffered']
    #allocation12 [shape = 'u8[4096]{0}', space=vmem, size = 0x1000, scoped, tag = 'input window, operand 5, single buffered']
    #allocation13 [shape = 's32[1]{0}', space=sflag, size = 0x4, scoped, tag = 'scoped memory for rdb_forward_nchw.10']
    #allocation14 [shape = 'u8[16384]{0}', space=vmem, size = 0x4000, scoped, tag = 'output window, operand 0']
    %13 = vsyncpa [#allocation4], 0
    %s14 = scalar_lea.sflag [#allocation4], 1
    %15 = vsyncpa %s14, 0
    %16 = vsyncpa [#allocation7], 0
    %17 = vsyncpa [#allocation10], 0
    %18 = vsyncpa [#allocation13], 0
    %19 = vsyncpa [#allocation5], 0
    %s20 = scalar_lea.sflag [#allocation5], 1
    %21 = vsyncpa %s20, 0
    loop: start=0, step=1, limit=4
    $region2: #{rdb_forward_nchw.10} parent=1 // loop_pre_header
      _
    $region3: #{rdb_forward_nchw.10} parent=1 // loop_header
      %s23 = sphi 0, %s27
      %p24 = scmp.ge.s32.totalorder %s23, 4
      %s33 = sphi 0, %s35
      %s36 = sphi 0, %s33
      %s37 = sphi 0, %s36
      %s53 = sphi 0, %s37
      %s57 = sphi 0, %s57
      %s59 = sphi 0, %s57
      %s60 = sphi 0, %s59
      %s74 = sphi 0, %s60
      %s78 = sphi 0, %s78
      %s80 = sphi 0, %s78
      %s81 = sphi 0, %s80
      %s95 = sphi 0, %s81
      %s99 = sphi 0, %s99
      %s101 = sphi 0, %s99
      %s102 = sphi 0, %s101
      %s116 = sphi 0, %s102
      %s120 = sphi 0, %s120
      %s122 = sphi 0, %s120
      %s123 = sphi 0, %s122
      %s137 = sphi 0, %s123
      %s141 = sphi 0, %s141
      %s143 = sphi 0, %s141
      %s144 = sphi 0, %s143
      %s158 = sphi 0, %s144
      %s162 = sphi 0, %s162
      %s164 = sphi 0, %s162
      %s165 = sphi 0, %s164
      %s179 = sphi 0, %s165
      %s185 = sphi 0, %s187
      %s188 = sphi 0, %s185
      %s189 = sphi 0, %s188
      %s205 = sphi 0, %s189
    $region4: #{rdb_forward_nchw.10} parent=1 // loop_header_branch
      %26 = sbr.rel (%p24) target = $region8
    $region5: #{rdb_forward_nchw.10} parent=1 // loop_body
      %s28 = ssub.s32 %s23, 1
      %s29 = ssub.s32 %s23, 2
      %s30 = sadd.s32 %s23, 1
      %s31 = ssub.s32 %s23, %s30
      %p32 = scmp.eq.s32.totalorder %s31, 0
      %s34 = sadd.s32 %s33, 1
      %s35 = scalar_select %p32, %s33, %s34
      %p38 = pneg %p32
      %p39 = scmp.eq.s32.totalorder %s23, 1
      %p40 = por %p38, %p39
      %p41 = scmp.ne.s32.totalorder %s33, %s36
      %p42 = scmp.eq.s32.totalorder %s23, 0
      %p43 = por %p41, %p42
      %p44 = scmp.ne.s32.totalorder %s33, %s36
      %p45 = scmp.eq.s32.totalorder %s28, 1
      %p46 = por %p44, %p45
      %p47 = scmp.ne.s32.totalorder %s36, %s37
      %p48 = scmp.eq.s32.totalorder %s28, 0
      %p49 = por %p47, %p48
      %p50 = scmp.ne.s32.totalorder %s36, %s37
      %p51 = scmp.eq.s32.totalorder %s29, 1
      %p52 = por %p50, %p51
      %p54 = scmp.ne.s32.totalorder %s37, %s53
      %p55 = scmp.eq.s32.totalorder %s29, 0
      %p56 = por %p54, %p55
      %s58 = sadd.s32 %s57, 1
      %p61 = scmp.eq.s32.totalorder %s23, 1
      %p62 = scmp.ne.s32.totalorder %s57, %s59
      %p63 = scmp.eq.s32.totalorder %s23, 0
      %p64 = por %p62, %p63
      %p65 = scmp.ne.s32.totalorder %s57, %s59
      %p66 = scmp.eq.s32.totalorder %s28, 1
      %p67 = por %p65, %p66
      %p68 = scmp.ne.s32.totalorder %s59, %s60
      %p69 = scmp.eq.s32.totalorder %s28, 0
      %p70 = por %p68, %p69
      %p71 = scmp.ne.s32.totalorder %s59, %s60
      %p72 = scmp.eq.s32.totalorder %s29, 1
      %p73 = por %p71, %p72
      %p75 = scmp.ne.s32.totalorder %s60, %s74
      %p76 = scmp.eq.s32.totalorder %s29, 0
      %p77 = por %p75, %p76
      %s79 = sadd.s32 %s78, 1
      %p82 = scmp.eq.s32.totalorder %s23, 1
      %p83 = scmp.ne.s32.totalorder %s78, %s80
      %p84 = scmp.eq.s32.totalorder %s23, 0
      %p85 = por %p83, %p84
      %p86 = scmp.ne.s32.totalorder %s78, %s80
      %p87 = scmp.eq.s32.totalorder %s28, 1
      %p88 = por %p86, %p87
      %p89 = scmp.ne.s32.totalorder %s80, %s81
      %p90 = scmp.eq.s32.totalorder %s28, 0
      %p91 = por %p89, %p90
      %p92 = scmp.ne.s32.totalorder %s80, %s81
      %p93 = scmp.eq.s32.totalorder %s29, 1
      %p94 = por %p92, %p93
      %p96 = scmp.ne.s32.totalorder %s81, %s95
      %p97 = scmp.eq.s32.totalorder %s29, 0
      %p98 = por %p96, %p97
      %s100 = sadd.s32 %s99, 1
      %p103 = scmp.eq.s32.totalorder %s23, 1
      %p104 = scmp.ne.s32.totalorder %s99, %s101
      %p105 = scmp.eq.s32.totalorder %s23, 0
      %p106 = por %p104, %p105
      %p107 = scmp.ne.s32.totalorder %s99, %s101
      %p108 = scmp.eq.s32.totalorder %s28, 1
      %p109 = por %p107, %p108
      %p110 = scmp.ne.s32.totalorder %s101, %s102
      %p111 = scmp.eq.s32.totalorder %s28, 0
      %p112 = por %p110, %p111
      %p113 = scmp.ne.s32.totalorder %s101, %s102
      %p114 = scmp.eq.s32.totalorder %s29, 1
      %p115 = por %p113, %p114
      %p117 = scmp.ne.s32.totalorder %s102, %s116
      %p118 = scmp.eq.s32.totalorder %s29, 0
      %p119 = por %p117, %p118
      %s121 = sadd.s32 %s120, 1
      %p124 = scmp.eq.s32.totalorder %s23, 1
      %p125 = scmp.ne.s32.totalorder %s120, %s122
      %p126 = scmp.eq.s32.totalorder %s23, 0
      %p127 = por %p125, %p126
      %p128 = scmp.ne.s32.totalorder %s120, %s122
      %p129 = scmp.eq.s32.totalorder %s28, 1
      %p130 = por %p128, %p129
      %p131 = scmp.ne.s32.totalorder %s122, %s123
      %p132 = scmp.eq.s32.totalorder %s28, 0
      %p133 = por %p131, %p132
      %p134 = scmp.ne.s32.totalorder %s122, %s123
      %p135 = scmp.eq.s32.totalorder %s29, 1
      %p136 = por %p134, %p135
      %p138 = scmp.ne.s32.totalorder %s123, %s137
      %p139 = scmp.eq.s32.totalorder %s29, 0
      %p140 = por %p138, %p139
      %s142 = sadd.s32 %s141, 1
      %p145 = scmp.eq.s32.totalorder %s23, 1
      %p146 = scmp.ne.s32.totalorder %s141, %s143
      %p147 = scmp.eq.s32.totalorder %s23, 0
      %p148 = por %p146, %p147
      %p149 = scmp.ne.s32.totalorder %s141, %s143
      %p150 = scmp.eq.s32.totalorder %s28, 1
      %p151 = por %p149, %p150
      %p152 = scmp.ne.s32.totalorder %s143, %s144
      %p153 = scmp.eq.s32.totalorder %s28, 0
      %p154 = por %p152, %p153
      %p155 = scmp.ne.s32.totalorder %s143, %s144
      %p156 = scmp.eq.s32.totalorder %s29, 1
      %p157 = por %p155, %p156
      %p159 = scmp.ne.s32.totalorder %s144, %s158
      %p160 = scmp.eq.s32.totalorder %s29, 0
      %p161 = por %p159, %p160
      %s163 = sadd.s32 %s162, 1
      %p166 = scmp.eq.s32.totalorder %s23, 1
      %p167 = scmp.ne.s32.totalorder %s162, %s164
      %p168 = scmp.eq.s32.totalorder %s23, 0
      %p169 = por %p167, %p168
      %p170 = scmp.ne.s32.totalorder %s162, %s164
      %p171 = scmp.eq.s32.totalorder %s28, 1
      %p172 = por %p170, %p171
      %p173 = scmp.ne.s32.totalorder %s164, %s165
      %p174 = scmp.eq.s32.totalorder %s28, 0
      %p175 = por %p173, %p174
      %p176 = scmp.ne.s32.totalorder %s164, %s165
      %p177 = scmp.eq.s32.totalorder %s29, 1
      %p178 = por %p176, %p177
      %p180 = scmp.ne.s32.totalorder %s165, %s179
      %p181 = scmp.eq.s32.totalorder %s29, 0
      %p182 = por %p180, %p181
      %s183 = ssub.s32 %s23, %s30
      %p184 = scmp.eq.s32.totalorder %s183, 0
      %s186 = sadd.s32 %s185, 1
      %s187 = scalar_select %p184, %s185, %s186
      %p190 = pneg %p184
      %p191 = scmp.eq.s32.totalorder %s23, 1
      %p192 = por %p190, %p191
      %p193 = scmp.ne.s32.totalorder %s185, %s188
      %p194 = scmp.eq.s32.totalorder %s23, 0
      %p195 = por %p193, %p194
      %p196 = scmp.ne.s32.totalorder %s185, %s188
      %p197 = scmp.eq.s32.totalorder %s28, 1
      %p198 = por %p196, %p197
      %p199 = scmp.ne.s32.totalorder %s188, %s189
      %p200 = scmp.eq.s32.totalorder %s28, 0
      %p201 = por %p199, %p200
      %p202 = scmp.ne.s32.totalorder %s188, %s189
      %p203 = scmp.eq.s32.totalorder %s29, 1
      %p204 = por %p202, %p203
      %p206 = scmp.ne.s32.totalorder %s189, %s205
      %p207 = scmp.eq.s32.totalorder %s29, 0
      %p208 = por %p206, %p207
      %p209 = scmp.le.s32.totalorder 1, %s23
      %p210 = scmp.lt.s32.totalorder %s23, 3
      %p211 = pnand %p209, %p210
      %p212 = pneg %p211
      // Predicated region
      $region9: #{rdb_forward_nchw.10} parent=5 // pred_check
        _
      $region10: #{rdb_forward_nchw.10} parent=5 // pred_check_branch
        %214 = sbr.rel (%p211) target = $region12
      $region11: #{rdb_forward_nchw.10} parent=5 // pred_region
        %s215 = ssub.s32 %s23, 1
        // Predicated region
        $region13: #{rdb_forward_nchw.10} parent=11 // pred_check
          %p216 = pneg %p70
        $region14: #{rdb_forward_nchw.10} parent=11 // pred_check_branch
          %218 = sbr.rel (%p216) target = $region16
        $region15: #{rdb_forward_nchw.10} parent=11 // pred_region
          %s220 = ssub.s32 512, 512
          %221 = vsyncadd [#allocation7], %s220
          %s222 = sshll.u32 [#allocation6], 4
          %s223 = int_to_ptr.vmem [resolvable:$true] %s222
          %228 = dma.hbm_to_vmem [thread:$0]  %s1, 512, %s223, [#allocation7], 256, 256, 16
        $region16: #{rdb_forward_nchw.10} parent=11 // pred_fallthru
          _
        // Predicated region
        $region17: #{rdb_forward_nchw.10} parent=11 // pred_check
          %p229 = pneg %p91
        $region18: #{rdb_forward_nchw.10} parent=11 // pred_check_branch
          %231 = sbr.rel (%p229) target = $region20
        $region19: #{rdb_forward_nchw.10} parent=11 // pred_region
          %s233 = ssub.s32 128, 128
          %234 = vsyncadd [#allocation7], %s233
          %s236 = sshll.u32 [#allocation8], 4
          %s237 = int_to_ptr.vmem [resolvable:$true] %s236
          %239 = dma.hbm_to_vmem [thread:$0]  %s2, 128, %s237, [#allocation7]
        $region20: #{rdb_forward_nchw.10} parent=11 // pred_fallthru
          _
        // Predicated region
        $region21: #{rdb_forward_nchw.10} parent=11 // pred_check
          %p240 = pneg %p112
        $region22: #{rdb_forward_nchw.10} parent=11 // pred_check_branch
          %242 = sbr.rel (%p240) target = $region24
        $region23: #{rdb_forward_nchw.10} parent=11 // pred_region
          %s244 = ssub.s32 128, 128
          %245 = vsyncadd [#allocation10], %s244
          %s247 = sshll.u32 [#allocation9], 4
          %s248 = int_to_ptr.vmem [resolvable:$true] %s247
          %250 = dma.hbm_to_vmem [thread:$0]  %s3, 128, %s248, [#allocation10]
        $region24: #{rdb_forward_nchw.10} parent=11 // pred_fallthru
          _
        // Predicated region
        $region25: #{rdb_forward_nchw.10} parent=11 // pred_check
          %p251 = pneg %p133
        $region26: #{rdb_forward_nchw.10} parent=11 // pred_check_branch
          %253 = sbr.rel (%p251) target = $region28
        $region27: #{rdb_forward_nchw.10} parent=11 // pred_region
          %s255 = ssub.s32 128, 128
          %256 = vsyncadd [#allocation10], %s255
          %s258 = sshll.u32 [#allocation11], 4
          %s259 = int_to_ptr.vmem [resolvable:$true] %s258
          %261 = dma.hbm_to_vmem [thread:$0]  %s4, 128, %s259, [#allocation10]
        $region28: #{rdb_forward_nchw.10} parent=11 // pred_fallthru
          _
        // Predicated region
        $region29: #{rdb_forward_nchw.10} parent=11 // pred_check
          %p262 = pneg %p154
        $region30: #{rdb_forward_nchw.10} parent=11 // pred_check_branch
          %264 = sbr.rel (%p262) target = $region32
        $region31: #{rdb_forward_nchw.10} parent=11 // pred_region
          %s266 = ssub.s32 128, 128
          %267 = vsyncadd [#allocation13], %s266
          %s269 = sshll.u32 [#allocation12], 4
          %s270 = int_to_ptr.vmem [resolvable:$true] %s269
          %272 = dma.hbm_to_vmem [thread:$0]  %s5, 128, %s270, [#allocation13]
        $region32: #{rdb_forward_nchw.10} parent=11 // pred_fallthru
          _
        // Predicated region
        $region33: #{rdb_forward_nchw.10} parent=11 // pred_check
          %p273 = pneg %p175
        $region34: #{rdb_forward_nchw.10} parent=11 // pred_check_branch
          %275 = sbr.rel (%p273) target = $region36
        $region35: #{rdb_forward_nchw.10} parent=11 // pred_region
          _
        $region36: #{rdb_forward_nchw.10} parent=11 // pred_fallthru
          _
      $region12: #{rdb_forward_nchw.10} parent=5 // pred_fallthru
        _
      %p276 = scmp.lt.s32.totalorder %s23, 2
      // Predicated region
      $region37: #{rdb_forward_nchw.10} parent=5 // pred_check
        %p277 = pneg %p276
      $region38: #{rdb_forward_nchw.10} parent=5 // pred_check_branch
        %279 = sbr.rel (%p277) target = $region40
      $region39: #{rdb_forward_nchw.10} parent=5 // pred_region
        // Predicated region
        $region41: #{rdb_forward_nchw.10} parent=39 // pred_check
          %p280 = pneg %p43
        $region42: #{rdb_forward_nchw.10} parent=39 // pred_check_branch
          %282 = sbr.rel (%p280) target = $region44
        $region43: #{rdb_forward_nchw.10} parent=39 // pred_region
          %s283 = sand.u32 %s33, 1
          %s284 = scalar_lea.sflag [#allocation4], %s283
          %s285 = sand.u32 %s33, 1
          %s286 = smul.addr %s285, 16
          %s287 = scalar_lea.vmem [#allocation3], %s286
          %s289 = ssub.s32 256, 256
          %290 = vsyncadd %s284, %s289
          %s291 = smul.addr %s23, 2
          %s292 = smul.addr %s291, 128
          %s293 = scalar_lea.hbm %s0, %s292
          %s295 = sshll.u32 %s287, 4
          %s296 = int_to_ptr.vmem [resolvable:$true] %s295
          %298 = dma.hbm_to_vmem [thread:$0]  %s293, 256, %s296, %s284
        $region44: #{rdb_forward_nchw.10} parent=39 // pred_fallthru
          _
      $region40: #{rdb_forward_nchw.10} parent=5 // pred_fallthru
        _
      %p299 = scmp.le.s32.totalorder 1, %s23
      %p300 = scmp.lt.s32.totalorder %s23, 3
      %p301 = pnand %p299, %p300
      %p302 = pneg %p301
      // Predicated region
      $region45: #{rdb_forward_nchw.10} parent=5 // pred_check
        _
      $region46: #{rdb_forward_nchw.10} parent=5 // pred_check_branch
        %304 = sbr.rel (%p301) target = $region48
      $region47: #{rdb_forward_nchw.10} parent=5 // pred_region
        %s305 = ssub.s32 %s23, 1
        %s306 = sand.u32 %s36, 1
        %s307 = scalar_lea.sflag [#allocation4], %s306
        %s308 = sand.u32 %s36, 1
        %s309 = smul.addr %s308, 16
        %s310 = scalar_lea.vmem [#allocation3], %s309
        // Predicated region
        $region49: #{rdb_forward_nchw.10} parent=47 // pred_check
          %p311 = pneg %p49
        $region50: #{rdb_forward_nchw.10} parent=47 // pred_check_branch
          %313 = sbr.rel (%p311) target = $region52
        $region51: #{rdb_forward_nchw.10} parent=47 // pred_region
          %314 = dma.done %s307, 256
        $region52: #{rdb_forward_nchw.10} parent=47 // pred_fallthru
          _
        // Predicated region
        $region53: #{rdb_forward_nchw.10} parent=47 // pred_check
          %p315 = pneg %p70
        $region54: #{rdb_forward_nchw.10} parent=47 // pred_check_branch
          %317 = sbr.rel (%p315) target = $region56
        $region55: #{rdb_forward_nchw.10} parent=47 // pred_region
          %318 = dma.done [#allocation7], 512
        $region56: #{rdb_forward_nchw.10} parent=47 // pred_fallthru
          _
        // Predicated region
        $region57: #{rdb_forward_nchw.10} parent=47 // pred_check
          %p319 = pneg %p91
        $region58: #{rdb_forward_nchw.10} parent=47 // pred_check_branch
          %321 = sbr.rel (%p319) target = $region60
        $region59: #{rdb_forward_nchw.10} parent=47 // pred_region
          %322 = dma.done [#allocation7], 128
        $region60: #{rdb_forward_nchw.10} parent=47 // pred_fallthru
          _
        // Predicated region
        $region61: #{rdb_forward_nchw.10} parent=47 // pred_check
          %p323 = pneg %p112
        $region62: #{rdb_forward_nchw.10} parent=47 // pred_check_branch
          %325 = sbr.rel (%p323) target = $region64
        $region63: #{rdb_forward_nchw.10} parent=47 // pred_region
          %326 = dma.done [#allocation10], 128
        $region64: #{rdb_forward_nchw.10} parent=47 // pred_fallthru
          _
        // Predicated region
        $region65: #{rdb_forward_nchw.10} parent=47 // pred_check
          %p327 = pneg %p133
        $region66: #{rdb_forward_nchw.10} parent=47 // pred_check_branch
          %329 = sbr.rel (%p327) target = $region68
        $region67: #{rdb_forward_nchw.10} parent=47 // pred_region
          %330 = dma.done [#allocation10], 128
        $region68: #{rdb_forward_nchw.10} parent=47 // pred_fallthru
          _
        // Predicated region
        $region69: #{rdb_forward_nchw.10} parent=47 // pred_check
          %p331 = pneg %p154
        $region70: #{rdb_forward_nchw.10} parent=47 // pred_check_branch
          %333 = sbr.rel (%p331) target = $region72
        $region71: #{rdb_forward_nchw.10} parent=47 // pred_region
          %334 = dma.done [#allocation13], 128
        $region72: #{rdb_forward_nchw.10} parent=47 // pred_fallthru
          _
        %s335 = sand.u32 %s36, 1
        %s336 = scalar_lea.sflag [#allocation4], %s335
        %s337 = sand.u32 %s36, 1
        %s338 = smul.addr %s337, 16
        %s339 = scalar_lea.vmem [#allocation3], %s338
        %p340 = pneg %p49
        %p341 = pneg %p46
        %p342 = pneg %p70
        %p343 = pneg %p67
        %p344 = pneg %p91
        %p345 = pneg %p88
        %p346 = pneg %p112
        %p347 = pneg %p109
        %p348 = pneg %p133
        %p349 = pneg %p130
        %p350 = pneg %p154
        %p351 = pneg %p151
        %p352 = pneg %p175
        %p353 = pneg %p172
        %p354 = pneg %p201
        %p355 = pneg %p198
        %s356 = sand.u32 %s188, 1
        %s357 = scalar_lea.sflag [#allocation5], %s356
        %s358 = sand.u32 %s188, 1
        %s359 = smul.addr %s358, 16
        %s360 = scalar_lea.vmem [#allocation14], %s359
        %v361 = vld [vmem:[#allocation6] sm:$0xff]
        %v362 = vld [vmem:[#allocation6 + $0x8] sm:$0xff]
        %v363 = vld [vmem:[#allocation6 + $0x10] sm:$0x1]
        %v364 = vld [vmem:[#allocation6 + $0x18] sm:$0x1]
        %v365 = vld [vmem:[%s310] sm:$0xff]
        %v366 = vld [vmem:[%s310 + $0x8] sm:$0xff]
        %s367 = sld [smem:[#allocation2]]
        %vm368 = vcmp.ge.f32.partialorder %v365, 0.0
        %vm369 = vcmp.ge.f32.partialorder %v366, 0.0
        %v370 = vstv %s367
        %v371 = vmul.f32 %v370, %v365
        %v372 = vmul.f32 %v370, %v366
        %v373 = vsel %vm368, %v365, %v371
        %v374 = vsel %vm369, %v366, %v372
        %v375 = vld [vmem:[#allocation8] sm:$0xff]
        %378 = vrot.lane.b32.xlu0 %v373, 17
        %v379 = vpop.permute.xlu0 %378
        %380 = vrot.lane.b32.xlu0 %v374, 17
        %v381 = vpop.permute.xlu0 %380
        %vm382 = vcmask 138240
        %v383 = vsel %vm382, %v379, %v381
        %v386 = vsel %vm382, 0.0, %v379
        %v387 = vlaneseq
        %v388 = vshrl.u32 %v387, 7
        %v389 = vsub.s32 0, %v388
        %v390 = vrot.slane %v361, %v389
        %v391 = vlaneseq
        %v392 = vshrl.u32 %v391, 7
        %v393 = vsub.s32 0, %v392
        %v394 = vrot.slane %v362, %v393
        %v395 = vmul.f32 %v386, %v390
        %v396 = vmul.f32 %v383, %v394
        %397 = vrot.lane.b32.xlu0 %v373, 16
        %v398 = vpop.permute.xlu0 %397
        %399 = vrot.lane.b32.xlu0 %v374, 16
        %v400 = vpop.permute.xlu0 %399
        %vm401 = vcmask 130048
        %v402 = vsel %vm401, %v398, %v400
        %v405 = vsel %vm401, 0.0, %v398
        %v406 = vlaneseq
        %v407 = vshrl.u32 %v406, 7
        %v408 = vsub.s32 1, %v407
        %v409 = vrot.slane %v361, %v408
        %v410 = vlaneseq
        %v411 = vshrl.u32 %v410, 7
        %v412 = vsub.s32 1, %v411
        %v413 = vrot.slane %v362, %v412
        %v414 = vmul.f32 %v405, %v409
        %v415 = vmul.f32 %v402, %v413
        %416 = vrot.lane.b32.xlu0 %v373, 15
        %v417 = vpop.permute.xlu0 %416
        %418 = vrot.lane.b32.xlu0 %v374, 15
        %v419 = vpop.permute.xlu0 %418
        %vm420 = vcmask 121856
        %v421 = vsel %vm420, %v417, %v419
        %v424 = vsel %vm420, 0.0, %v417
        %v425 = vlaneseq
        %v426 = vshrl.u32 %v425, 7
        %v427 = vsub.s32 2, %v426
        %v428 = vrot.slane %v361, %v427
        %v429 = vlaneseq
        %v430 = vshrl.u32 %v429, 7
        %v431 = vsub.s32 2, %v430
        %v432 = vrot.slane %v362, %v431
        %v433 = vmul.f32 %v424, %v428
        %v434 = vmul.f32 %v421, %v432
        %435 = vrot.lane.b32.xlu0 %v373, 1
        %v436 = vpop.permute.xlu0 %435
        %437 = vrot.lane.b32.xlu0 %v374, 1
        %v438 = vpop.permute.xlu0 %437
        %vm439 = vcmask 7168
        %v440 = vsel %vm439, %v436, %v438
        %v443 = vsel %vm439, 0.0, %v436
        %v444 = vlaneseq
        %v445 = vshrl.u32 %v444, 7
        %v446 = vsub.s32 3, %v445
        %v447 = vrot.slane %v361, %v446
        %v448 = vlaneseq
        %v449 = vshrl.u32 %v448, 7
        %v450 = vsub.s32 3, %v449
        %v451 = vrot.slane %v362, %v450
        %v452 = vmul.f32 %v443, %v447
        %v453 = vmul.f32 %v440, %v451
        %454 = vrot.lane.b32.xlu0 %v373, 127
        %v455 = vpop.permute.xlu0 %454
        %456 = vrot.lane.b32.xlu0 %v374, 127
        %v457 = vpop.permute.xlu0 %456
        %vm458 = vcmask 1039360
        %v459 = vsel %vm458, %v455, %v457
        %v462 = vsel %vm458, %v457, 0.0
        %v463 = vlaneseq
        %v464 = vshrl.u32 %v463, 7
        %v465 = vsub.s32 5, %v464
        %v466 = vrot.slane %v361, %v465
        %v467 = vlaneseq
        %v468 = vshrl.u32 %v467, 7
        %v469 = vsub.s32 5, %v468
        %v470 = vrot.slane %v362, %v469
        %v471 = vmul.f32 %v459, %v466
        %v472 = vmul.f32 %v462, %v470
        %473 = vrot.lane.b32.xlu0 %v373, 113
        %v474 = vpop.permute.xlu0 %473
        %475 = vrot.lane.b32.xlu0 %v374, 113
        %v476 = vpop.permute.xlu0 %475
        %vm477 = vcmask 924672
        %v478 = vsel %vm477, %v474, %v476
        %v481 = vsel %vm477, %v476, 0.0
        %v482 = vlaneseq
        %v483 = vshrl.u32 %v482, 7
        %v484 = vsub.s32 6, %v483
        %v485 = vrot.slane %v361, %v484
        %v486 = vlaneseq
        %v487 = vshrl.u32 %v486, 7
        %v488 = vsub.s32 6, %v487
        %v489 = vrot.slane %v362, %v488
        %v490 = vmul.f32 %v478, %v485
        %v491 = vmul.f32 %v481, %v489
        %492 = vrot.lane.b32.xlu0 %v373, 112
        %v493 = vpop.permute.xlu0 %492
        %494 = vrot.lane.b32.xlu0 %v374, 112
        %v495 = vpop.permute.xlu0 %494
        %vm496 = vcmask 916480
        %v497 = vsel %vm496, %v493, %v495
        %v500 = vsel %vm496, %v495, 0.0
        %v501 = vlaneseq
        %v502 = vshrl.u32 %v501, 7
        %v503 = vsub.s32 7, %v502
        %v504 = vrot.slane %v361, %v503
        %v505 = vlaneseq
        %v506 = vshrl.u32 %v505, 7
        %v507 = vsub.s32 7, %v506
        %v508 = vrot.slane %v362, %v507
        %v509 = vmul.f32 %v497, %v504
        %v510 = vmul.f32 %v500, %v508
        %511 = vrot.lane.b32.xlu0 %v373, 111
        %v512 = vpop.permute.xlu0 %511
        %513 = vrot.lane.b32.xlu0 %v374, 111
        %v514 = vpop.permute.xlu0 %513
        %vm515 = vcmask 908288
        %v516 = vsel %vm515, %v512, %v514
        %v519 = vsel %vm515, %v514, 0.0
        %v520 = vlaneseq
        %v521 = vshrl.u32 %v520, 7
        %v522 = vsub.s32 0, %v521
        %v523 = vrot.slane %v363, %v522
        %v524 = vlaneseq
        %v525 = vshrl.u32 %v524, 7
        %v526 = vsub.s32 0, %v525
        %v527 = vrot.slane %v364, %v526
        %v528 = vmul.f32 %v516, %v523
        %v529 = vmul.f32 %v519, %v527
        %v530 = vld [vmem:[#allocation9] sm:$0xff]
        %532 = vset.pattern.permute.xlu0 0
        %533 = vperm.xlu0 %532, %v530
        %v534 = vpop.permute.xlu0 %533
        %vm536 = vcmask 588800
        %v538 = vsel %vm536, %v375, 0
        %540 = vmatprep.subr.mxu0 %v396
        %541 = vmatpush1.msra.mxu0 %v395
        %542 = vmatprep.subr.mxu0 %v415
        %543 = vmatpush1.msra.mxu0 %v414
        %544 = vmatprep.subr.mxu0 %v434
        %545 = vmatpush1.msra.mxu0 %v433
        %546 = vmatprep.subr.mxu0 %v453
        %547 = vmatpush1.msra.mxu0 %v452
        %548 = vmatprep.subr.mxu0 %v374
        %549 = vmatpush1.msra.mxu0 %v373
        %550 = vmatprep.subr.mxu0 %v472
        %551 = vmatpush1.msra.mxu0 %v471
        %552 = vmatprep.subr.mxu0 %v491
        %553 = vmatpush1.msra.mxu0 %v490
        %554 = vmatprep.subr.mxu0 %v510
        %555 = vmatpush1.msra.mxu0 %v509
        %556 = vmatprep.subr.mxu0 %v529
        %557 = vmatpush1.msra.mxu0 %v528
        %558 = vmatprep.subr.mxu0 0.0
        %559 = vmatpush1.msra.mxu0 0.0
        %560 = vmatprep.subr.mxu0 0.0
        %561 = vmatpush1.msra.mxu0 0.0
        %562 = vmatprep.subr.mxu0 0.0
        %563 = vmatpush1.msra.mxu0 0.0
        %564 = vmatprep.subr.mxu0 0.0
        %565 = vmatpush1.msra.mxu0 0.0
        %566 = vmatprep.subr.mxu0 0.0
        %567 = vmatpush1.msra.mxu0 0.0
        %568 = vmatprep.subr.mxu0 0.0
        %569 = vmatpush1.msra.mxu0 0.0
        %570 = vmatprep.subr.mxu0 0.0
        %571 = vmatpush1.msra.mxu0 0.0
        %572 = vmatprep.subr.mxu0 0.0
        %573 = vmatpush1.msra.mxu0 0.0
        %574 = vmatprep.subr.mxu0 0.0
        %575 = vmatpush1.msra.mxu0 0.0
        %576 = vmatprep.subr.mxu0 0.0
        %577 = vmatpush1.msra.mxu0 0.0
        %578 = vmatprep.subr.mxu0 0.0
        %579 = vmatpush1.msra.mxu0 0.0
        %580 = vmatprep.subr.mxu0 0.0
        %581 = vmatpush1.msra.mxu0 0.0
        %582 = vmatprep.subr.mxu0 0.0
        %583 = vmatpush1.msra.mxu0 0.0
        %584 = vmatprep.subr.mxu0 0.0
        %585 = vmatpush1.msra.mxu0 0.0
        %586 = vmatprep.subr.mxu0 0.0
        %587 = vmatpush1.msra.mxu0 0.0
        %588 = vmatprep.subr.mxu0 0.0
        %589 = vmatpush1.msra.mxu0 0.0
        %590 = vmatprep.subr.mxu0 0.0
        %591 = vmatpush1.msra.mxu0 0.0
        %592 = vmatprep.subr.mxu0 0.0
        %593 = vmatpush1.msra.mxu0 0.0
        %594 = vmatprep.subr.mxu0 0.0
        %595 = vmatpush1.msra.mxu0 0.0
        %596 = vmatprep.subr.mxu0 0.0
        %597 = vmatpush1.msra.mxu0 0.0
        %598 = vmatprep.subr.mxu0 0.0
        %599 = vmatpush1.msra.mxu0 0.0
        %600 = vmatprep.subr.mxu0 0.0
        %601 = vmatpush1.msra.mxu0 0.0
        %602 = vmatprep.subr.mxu0 0.0
        %603 = vmatpush1.msra.mxu0 0.0
        %604 = vmatprep.mubr.f32.mxu0 0.0
        %605 = vmatmul.mubr.f32.gmra.mrb[0].mxu0 %v538
        %v606 = vpop.f32.mrb[0].mxu0
        %v607 = vadd.f32 %v534, %v606
        %v608 = vpop.f32.mrb[0].mxu0
        %v609 = vadd.f32 %v534, %v608
        %610 = vdwg.mxu0
        %v611 = vld [vmem:[#allocation11] sm:$0xff]
        %614 = vrot.lane.b32.xlu0 %v607, 17
        %v615 = vpop.permute.xlu0 %614
        %616 = vrot.lane.b32.xlu0 %v609, 17
        %v617 = vpop.permute.xlu0 %616
        %v618 = vsel %vm382, %v615, %v617
        %v621 = vsel %vm382, 0.0, %v615
        %v622 = vmul.f32 %v621, %v390
        %v623 = vmul.f32 %v618, %v394
        %624 = vrot.lane.b32.xlu0 %v607, 16
        %v625 = vpop.permute.xlu0 %624
        %626 = vrot.lane.b32.xlu0 %v609, 16
        %v627 = vpop.permute.xlu0 %626
        %v628 = vsel %vm401, %v625, %v627
        %v631 = vsel %vm401, 0.0, %v625
        %v632 = vmul.f32 %v631, %v409
        %v633 = vmul.f32 %v628, %v413
        %634 = vrot.lane.b32.xlu0 %v607, 15
        %v635 = vpop.permute.xlu0 %634
        %636 = vrot.lane.b32.xlu0 %v609, 15
        %v637 = vpop.permute.xlu0 %636
        %v638 = vsel %vm420, %v635, %v637
        %v641 = vsel %vm420, 0.0, %v635
        %v642 = vmul.f32 %v641, %v428
        %v643 = vmul.f32 %v638, %v432
        %644 = vrot.lane.b32.xlu0 %v607, 1
        %v645 = vpop.permute.xlu0 %644
        %646 = vrot.lane.b32.xlu0 %v609, 1
        %v647 = vpop.permute.xlu0 %646
        %v648 = vsel %vm439, %v645, %v647
        %v651 = vsel %vm439, 0.0, %v645
        %v652 = vmul.f32 %v651, %v447
        %v653 = vmul.f32 %v648, %v451
        %654 = vrot.lane.b32.xlu0 %v607, 127
        %v655 = vpop.permute.xlu0 %654
        %656 = vrot.lane.b32.xlu0 %v609, 127
        %v657 = vpop.permute.xlu0 %656
        %v658 = vsel %vm458, %v655, %v657
        %v661 = vsel %vm458, %v657, 0.0
        %v662 = vmul.f32 %v658, %v466
        %v663 = vmul.f32 %v661, %v470
        %664 = vrot.lane.b32.xlu0 %v607, 113
        %v665 = vpop.permute.xlu0 %664
        %666 = vrot.lane.b32.xlu0 %v609, 113
        %v667 = vpop.permute.xlu0 %666
        %v668 = vsel %vm477, %v665, %v667
        %v671 = vsel %vm477, %v667, 0.0
        %v672 = vmul.f32 %v668, %v485
        %v673 = vmul.f32 %v671, %v489
        %674 = vrot.lane.b32.xlu0 %v607, 112
        %v675 = vpop.permute.xlu0 %674
        %676 = vrot.lane.b32.xlu0 %v609, 112
        %v677 = vpop.permute.xlu0 %676
        %v678 = vsel %vm496, %v675, %v677
        %v681 = vsel %vm496, %v677, 0.0
        %v682 = vmul.f32 %v678, %v504
        %v683 = vmul.f32 %v681, %v508
        %684 = vrot.lane.b32.xlu0 %v607, 111
        %v685 = vpop.permute.xlu0 %684
        %686 = vrot.lane.b32.xlu0 %v609, 111
        %v687 = vpop.permute.xlu0 %686
        %v688 = vsel %vm515, %v685, %v687
        %v691 = vsel %vm515, %v687, 0.0
        %v692 = vmul.f32 %v688, %v523
        %v693 = vmul.f32 %v691, %v527
        %v694 = vld [vmem:[#allocation12] sm:$0xff]
        %696 = vset.pattern.permute.xlu0 0
        %697 = vperm.xlu0 %696, %v694
        %v698 = vpop.permute.xlu0 %697
        %v701 = vsel %vm536, %v611, 0
        %703 = vmatprep.subr.mxu0 %v623
        %704 = vmatpush1.msra.mxu0 %v622
        %705 = vmatprep.subr.mxu0 %v633
        %706 = vmatpush1.msra.mxu0 %v632
        %707 = vmatprep.subr.mxu0 %v643
        %708 = vmatpush1.msra.mxu0 %v642
        %709 = vmatprep.subr.mxu0 %v653
        %710 = vmatpush1.msra.mxu0 %v652
        %711 = vmatprep.subr.mxu0 %v609
        %712 = vmatpush1.msra.mxu0 %v607
        %713 = vmatprep.subr.mxu0 %v663
        %714 = vmatpush1.msra.mxu0 %v662
        %715 = vmatprep.subr.mxu0 %v673
        %716 = vmatpush1.msra.mxu0 %v672
        %717 = vmatprep.subr.mxu0 %v683
        %718 = vmatpush1.msra.mxu0 %v682
        %719 = vmatprep.subr.mxu0 %v693
        %720 = vmatpush1.msra.mxu0 %v692
        %721 = vmatprep.subr.mxu0 0.0
        %722 = vmatpush1.msra.mxu0 0.0
        %723 = vmatprep.subr.mxu0 0.0
        %724 = vmatpush1.msra.mxu0 0.0
        %725 = vmatprep.subr.mxu0 0.0
        %726 = vmatpush1.msra.mxu0 0.0
        %727 = vmatprep.subr.mxu0 0.0
        %728 = vmatpush1.msra.mxu0 0.0
        %729 = vmatprep.subr.mxu0 0.0
        %730 = vmatpush1.msra.mxu0 0.0
        %731 = vmatprep.subr.mxu0 0.0
        %732 = vmatpush1.msra.mxu0 0.0
        %733 = vmatprep.subr.mxu0 0.0
        %734 = vmatpush1.msra.mxu0 0.0
        %735 = vmatprep.subr.mxu0 0.0
        %736 = vmatpush1.msra.mxu0 0.0
        %737 = vmatprep.subr.mxu0 0.0
        %738 = vmatpush1.msra.mxu0 0.0
        %739 = vmatprep.subr.mxu0 0.0
        %740 = vmatpush1.msra.mxu0 0.0
        %741 = vmatprep.subr.mxu0 0.0
        %742 = vmatpush1.msra.mxu0 0.0
        %743 = vmatprep.subr.mxu0 0.0
        %744 = vmatpush1.msra.mxu0 0.0
        %745 = vmatprep.subr.mxu0 0.0
        %746 = vmatpush1.msra.mxu0 0.0
        %747 = vmatprep.subr.mxu0 0.0
        %748 = vmatpush1.msra.mxu0 0.0
        %749 = vmatprep.subr.mxu0 0.0
        %750 = vmatpush1.msra.mxu0 0.0
        %751 = vmatprep.subr.mxu0 0.0
        %752 = vmatpush1.msra.mxu0 0.0
        %753 = vmatprep.subr.mxu0 0.0
        %754 = vmatpush1.msra.mxu0 0.0
        %755 = vmatprep.subr.mxu0 0.0
        %756 = vmatpush1.msra.mxu0 0.0
        %757 = vmatprep.subr.mxu0 0.0
        %758 = vmatpush1.msra.mxu0 0.0
        %759 = vmatprep.subr.mxu0 0.0
        %760 = vmatpush1.msra.mxu0 0.0
        %761 = vmatprep.subr.mxu0 0.0
        %762 = vmatpush1.msra.mxu0 0.0
        %763 = vmatprep.subr.mxu0 0.0
        %764 = vmatpush1.msra.mxu0 0.0
        %765 = vmatprep.subr.mxu0 0.0
        %766 = vmatpush1.msra.mxu0 0.0
        %767 = vmatprep.mubr.f32.mxu0 0.0
        %768 = vmatmul.mubr.f32.gmra.mrb[0].mxu0 %v701
        %v769 = vpop.f32.mrb[0].mxu0
        %v770 = vadd.f32 %v698, %v769
        %v771 = vpop.f32.mrb[0].mxu0
        %v772 = vadd.f32 %v698, %v771
        %773 = vdwg.mxu0
        %v774 = vadd.f32 %v365, %v770
        %v775 = vadd.f32 %v366, %v772
        %776 = vst [vmem:[%s360] sm:$0xff] %v774
        %777 = vst [vmem:[%s360 + $0x8] sm:$0xff] %v775
        %s778 = sand.u32 %s188, 1
        %s779 = scalar_lea.sflag [#allocation5], %s778
        %s780 = sand.u32 %s188, 1
        %s781 = smul.addr %s780, 16
        %s782 = scalar_lea.vmem [#allocation14], %s781
        // Predicated region
        $region73: #{rdb_forward_nchw.10} parent=47 // pred_check
          %p783 = pneg %p198
        $region74: #{rdb_forward_nchw.10} parent=47 // pred_check_branch
          %785 = sbr.rel (%p783) target = $region76
        $region75: #{rdb_forward_nchw.10} parent=47 // pred_region
          %s787 = ssub.s32 256, 256
          %788 = vsyncadd %s779, %s787
          %s789 = smul.addr %s28, 2
          %s790 = smul.addr %s789, 128
          %s791 = scalar_lea.hbm %s7, %s790
          %s793 = sshll.u32 %s782, 4
          %s794 = int_to_ptr.vmem [resolvable:$true] %s793
          %796 = dma.vmem_to_hbm [thread:$0]  %s794, 256, %s791, %s779
        $region76: #{rdb_forward_nchw.10} parent=47 // pred_fallthru
          _
      $region48: #{rdb_forward_nchw.10} parent=5 // pred_fallthru
        _
      %p797 = scmp.le.s32.totalorder 2, %s23
      // Predicated region
      $region77: #{rdb_forward_nchw.10} parent=5 // pred_check
        %p798 = pneg %p797
      $region78: #{rdb_forward_nchw.10} parent=5 // pred_check_branch
        %800 = sbr.rel (%p798) target = $region80
      $region79: #{rdb_forward_nchw.10} parent=5 // pred_region
        %s801 = ssub.s32 %s23, 2
        // Predicated region
        $region81: #{rdb_forward_nchw.10} parent=79 // pred_check
          %p802 = pneg %p204
        $region82: #{rdb_forward_nchw.10} parent=79 // pred_check_branch
          %804 = sbr.rel (%p802) target = $region84
        $region83: #{rdb_forward_nchw.10} parent=79 // pred_region
          %s805 = sand.u32 %s189, 1
          %s806 = scalar_lea.sflag [#allocation5], %s805
          %s807 = sand.u32 %s189, 1
          %s808 = smul.addr %s807, 16
          %s809 = scalar_lea.vmem [#allocation14], %s808
          %810 = dma.done %s806, 256
        $region84: #{rdb_forward_nchw.10} parent=79 // pred_fallthru
          _
      $region80: #{rdb_forward_nchw.10} parent=5 // pred_fallthru
        _
    $region6: #{rdb_forward_nchw.10} parent=1 // loop_footer
      %s27 = sadd.s32 1, %s23
    $region7: #{rdb_forward_nchw.10} parent=1 // loop_footer_branch
      %22 = sbr.rel target = $region3
    $region8: #{rdb_forward_nchw.10} parent=1 // loop_exit
      _
    %811 = vsyncpa [#allocation4], 1
    %s812 = scalar_lea.sflag [#allocation4], 1
    %813 = vsyncpa %s812, 1
    %814 = vsyncpa [#allocation7], 1
    %815 = vsyncpa [#allocation10], 1
    %816 = vsyncpa [#allocation13], 1
    %817 = vsyncpa [#allocation5], 1
    %s818 = scalar_lea.sflag [#allocation5], 1
    %819 = vsyncpa %s818, 1

// kernel: rdb_forward_nchw.11
$region0: #{rdb_forward_nchw.11}
  #allocation0 [shape = 'u32[]', space=smem, size = 0x4, offset = 0x4, fixed_abs, tag = 'smem constant byte address 0x4 - core index']
  #allocation1 [shape = 'u32[144,128]{1,0:T(1,128)}', space=vmem, size = 0x12000, scoped, tag = 'internal scratch']
  #allocation2 [shape = 'f32[1]{0:T(128)S(6)}', space=smem, size = 0x200, scoped, tag = 'scoped memory for rdb_forward_nchw.11']
  %s0 = inlined_call_operand.hbm [shape: f32[2,20,256], index: 0, kind: input, shape index: {}]
  %s1 = inlined_call_operand.hbm [shape: f32[9,256], index: 1, kind: input, shape index: {}]
  %s2 = inlined_call_operand.hbm [shape: f32[20,180], index: 2, kind: input, shape index: {}]
  %s3 = inlined_call_operand.hbm [shape: f32[20,1], index: 3, kind: input, shape index: {}]
  %s4 = inlined_call_operand.hbm [shape: f32[20,180], index: 4, kind: input, shape index: {}]
  %s5 = inlined_call_operand.hbm [shape: f32[20,1], index: 5, kind: input, shape index: {}]
  %s6 = inlined_call_operand.<no memory space> [shape: f32[1], index: 6, kind: input, shape index: {}]
  %s7 = inlined_call_operand.hbm [shape: f32[2,20,256], index: 7, kind: output, shape index: {}]
  %s8 = sld [smem:[#allocation0]]
  $region85: #{rdb_forward_nchw.11} parent=0
    _
  %s10 = ssub.s32 1, %s8
  %s11 = scalar_select 0, %s10, %s8
  %12 = sst [smem:[#allocation2]] %s6
  $region1: #{rdb_forward_nchw.11} parent=0
    #allocation3 [shape = 'u8[49152]{0}', space=vmem, size = 0xc000, scoped, tag = 'input window, operand 0']
    #allocation4 [shape = 's32[2]{0}', space=sflag, size = 0x8, scoped, tag = 'scoped memory for rdb_forward_nchw.11']
    #allocation5 [shape = 's32[2]{0}', space=sflag, size = 0x8, scoped, tag = 'scoped memory for rdb_forward_nchw.11']
    #allocation6 [shape = 'u8[16384]{0}', space=vmem, size = 0x4000, scoped, tag = 'input window, operand 1, single buffered']
    #allocation7 [shape = 's32[1]{0}', space=sflag, size = 0x4, scoped, tag = 'scoped memory for rdb_forward_nchw.11']
    #allocation8 [shape = 'u8[24576]{0}', space=vmem, size = 0x6000, scoped, tag = 'input window, operand 2, single buffered']
    #allocation9 [shape = 'u8[12288]{0}', space=vmem, size = 0x3000, scoped, tag = 'input window, operand 3, single buffered']
    #allocation10 [shape = 's32[1]{0}', space=sflag, size = 0x4, scoped, tag = 'scoped memory for rdb_forward_nchw.11']
    #allocation11 [shape = 'u8[24576]{0}', space=vmem, size = 0x6000, scoped, tag = 'input window, operand 4, single buffered']
    #allocation12 [shape = 'u8[12288]{0}', space=vmem, size = 0x3000, scoped, tag = 'input window, operand 5, single buffered']
    #allocation13 [shape = 's32[1]{0}', space=sflag, size = 0x4, scoped, tag = 'scoped memory for rdb_forward_nchw.11']
    #allocation14 [shape = 'u8[49152]{0}', space=vmem, size = 0xc000, scoped, tag = 'output window, operand 0']
    %13 = vsyncpa [#allocation4], 0
    %s14 = scalar_lea.sflag [#allocation4], 1
    %15 = vsyncpa %s14, 0
    %16 = vsyncpa [#allocation7], 0
    %17 = vsyncpa [#allocation10], 0
    %18 = vsyncpa [#allocation13], 0
    %19 = vsyncpa [#allocation5], 0
    %s20 = scalar_lea.sflag [#allocation5], 1
    %21 = vsyncpa %s20, 0
    loop: start=0, step=1, limit=4
    $region2: #{rdb_forward_nchw.11} parent=1 // loop_pre_header
      _
    $region3: #{rdb_forward_nchw.11} parent=1 // loop_header
      %s23 = sphi 0, %s27
      %p24 = scmp.ge.s32.totalorder %s23, 4
      %s33 = sphi 0, %s35
      %s36 = sphi 0, %s33
      %s37 = sphi 0, %s36
      %s53 = sphi 0, %s37
      %s57 = sphi 0, %s57
      %s59 = sphi 0, %s57
      %s60 = sphi 0, %s59
      %s74 = sphi 0, %s60
      %s78 = sphi 0, %s78
      %s80 = sphi 0, %s78
      %s81 = sphi 0, %s80
      %s95 = sphi 0, %s81
      %s99 = sphi 0, %s99
      %s101 = sphi 0, %s99
      %s102 = sphi 0, %s101
      %s116 = sphi 0, %s102
      %s120 = sphi 0, %s120
      %s122 = sphi 0, %s120
      %s123 = sphi 0, %s122
      %s137 = sphi 0, %s123
      %s141 = sphi 0, %s141
      %s143 = sphi 0, %s141
      %s144 = sphi 0, %s143
      %s158 = sphi 0, %s144
      %s162 = sphi 0, %s162
      %s164 = sphi 0, %s162
      %s165 = sphi 0, %s164
      %s179 = sphi 0, %s165
      %s185 = sphi 0, %s187
      %s188 = sphi 0, %s185
      %s189 = sphi 0, %s188
      %s205 = sphi 0, %s189
    $region4: #{rdb_forward_nchw.11} parent=1 // loop_header_branch
      %26 = sbr.rel (%p24) target = $region8
    $region5: #{rdb_forward_nchw.11} parent=1 // loop_body
      %s28 = ssub.s32 %s23, 1
      %s29 = ssub.s32 %s23, 2
      %s30 = sadd.s32 %s23, 1
      %s31 = ssub.s32 %s23, %s30
      %p32 = scmp.eq.s32.totalorder %s31, 0
      %s34 = sadd.s32 %s33, 1
      %s35 = scalar_select %p32, %s33, %s34
      %p38 = pneg %p32
      %p39 = scmp.eq.s32.totalorder %s23, 1
      %p40 = por %p38, %p39
      %p41 = scmp.ne.s32.totalorder %s33, %s36
      %p42 = scmp.eq.s32.totalorder %s23, 0
      %p43 = por %p41, %p42
      %p44 = scmp.ne.s32.totalorder %s33, %s36
      %p45 = scmp.eq.s32.totalorder %s28, 1
      %p46 = por %p44, %p45
      %p47 = scmp.ne.s32.totalorder %s36, %s37
      %p48 = scmp.eq.s32.totalorder %s28, 0
      %p49 = por %p47, %p48
      %p50 = scmp.ne.s32.totalorder %s36, %s37
      %p51 = scmp.eq.s32.totalorder %s29, 1
      %p52 = por %p50, %p51
      %p54 = scmp.ne.s32.totalorder %s37, %s53
      %p55 = scmp.eq.s32.totalorder %s29, 0
      %p56 = por %p54, %p55
      %s58 = sadd.s32 %s57, 1
      %p61 = scmp.eq.s32.totalorder %s23, 1
      %p62 = scmp.ne.s32.totalorder %s57, %s59
      %p63 = scmp.eq.s32.totalorder %s23, 0
      %p64 = por %p62, %p63
      %p65 = scmp.ne.s32.totalorder %s57, %s59
      %p66 = scmp.eq.s32.totalorder %s28, 1
      %p67 = por %p65, %p66
      %p68 = scmp.ne.s32.totalorder %s59, %s60
      %p69 = scmp.eq.s32.totalorder %s28, 0
      %p70 = por %p68, %p69
      %p71 = scmp.ne.s32.totalorder %s59, %s60
      %p72 = scmp.eq.s32.totalorder %s29, 1
      %p73 = por %p71, %p72
      %p75 = scmp.ne.s32.totalorder %s60, %s74
      %p76 = scmp.eq.s32.totalorder %s29, 0
      %p77 = por %p75, %p76
      %s79 = sadd.s32 %s78, 1
      %p82 = scmp.eq.s32.totalorder %s23, 1
      %p83 = scmp.ne.s32.totalorder %s78, %s80
      %p84 = scmp.eq.s32.totalorder %s23, 0
      %p85 = por %p83, %p84
      %p86 = scmp.ne.s32.totalorder %s78, %s80
      %p87 = scmp.eq.s32.totalorder %s28, 1
      %p88 = por %p86, %p87
      %p89 = scmp.ne.s32.totalorder %s80, %s81
      %p90 = scmp.eq.s32.totalorder %s28, 0
      %p91 = por %p89, %p90
      %p92 = scmp.ne.s32.totalorder %s80, %s81
      %p93 = scmp.eq.s32.totalorder %s29, 1
      %p94 = por %p92, %p93
      %p96 = scmp.ne.s32.totalorder %s81, %s95
      %p97 = scmp.eq.s32.totalorder %s29, 0
      %p98 = por %p96, %p97
      %s100 = sadd.s32 %s99, 1
      %p103 = scmp.eq.s32.totalorder %s23, 1
      %p104 = scmp.ne.s32.totalorder %s99, %s101
      %p105 = scmp.eq.s32.totalorder %s23, 0
      %p106 = por %p104, %p105
      %p107 = scmp.ne.s32.totalorder %s99, %s101
      %p108 = scmp.eq.s32.totalorder %s28, 1
      %p109 = por %p107, %p108
      %p110 = scmp.ne.s32.totalorder %s101, %s102
      %p111 = scmp.eq.s32.totalorder %s28, 0
      %p112 = por %p110, %p111
      %p113 = scmp.ne.s32.totalorder %s101, %s102
      %p114 = scmp.eq.s32.totalorder %s29, 1
      %p115 = por %p113, %p114
      %p117 = scmp.ne.s32.totalorder %s102, %s116
      %p118 = scmp.eq.s32.totalorder %s29, 0
      %p119 = por %p117, %p118
      %s121 = sadd.s32 %s120, 1
      %p124 = scmp.eq.s32.totalorder %s23, 1
      %p125 = scmp.ne.s32.totalorder %s120, %s122
      %p126 = scmp.eq.s32.totalorder %s23, 0
      %p127 = por %p125, %p126
      %p128 = scmp.ne.s32.totalorder %s120, %s122
      %p129 = scmp.eq.s32.totalorder %s28, 1
      %p130 = por %p128, %p129
      %p131 = scmp.ne.s32.totalorder %s122, %s123
      %p132 = scmp.eq.s32.totalorder %s28, 0
      %p133 = por %p131, %p132
      %p134 = scmp.ne.s32.totalorder %s122, %s123
      %p135 = scmp.eq.s32.totalorder %s29, 1
      %p136 = por %p134, %p135
      %p138 = scmp.ne.s32.totalorder %s123, %s137
      %p139 = scmp.eq.s32.totalorder %s29, 0
      %p140 = por %p138, %p139
      %s142 = sadd.s32 %s141, 1
      %p145 = scmp.eq.s32.totalorder %s23, 1
      %p146 = scmp.ne.s32.totalorder %s141, %s143
      %p147 = scmp.eq.s32.totalorder %s23, 0
      %p148 = por %p146, %p147
      %p149 = scmp.ne.s32.totalorder %s141, %s143
      %p150 = scmp.eq.s32.totalorder %s28, 1
      %p151 = por %p149, %p150
      %p152 = scmp.ne.s32.totalorder %s143, %s144
      %p153 = scmp.eq.s32.totalorder %s28, 0
      %p154 = por %p152, %p153
      %p155 = scmp.ne.s32.totalorder %s143, %s144
      %p156 = scmp.eq.s32.totalorder %s29, 1
      %p157 = por %p155, %p156
      %p159 = scmp.ne.s32.totalorder %s144, %s158
      %p160 = scmp.eq.s32.totalorder %s29, 0
      %p161 = por %p159, %p160
      %s163 = sadd.s32 %s162, 1
      %p166 = scmp.eq.s32.totalorder %s23, 1
      %p167 = scmp.ne.s32.totalorder %s162, %s164
      %p168 = scmp.eq.s32.totalorder %s23, 0
      %p169 = por %p167, %p168
      %p170 = scmp.ne.s32.totalorder %s162, %s164
      %p171 = scmp.eq.s32.totalorder %s28, 1
      %p172 = por %p170, %p171
      %p173 = scmp.ne.s32.totalorder %s164, %s165
      %p174 = scmp.eq.s32.totalorder %s28, 0
      %p175 = por %p173, %p174
      %p176 = scmp.ne.s32.totalorder %s164, %s165
      %p177 = scmp.eq.s32.totalorder %s29, 1
      %p178 = por %p176, %p177
      %p180 = scmp.ne.s32.totalorder %s165, %s179
      %p181 = scmp.eq.s32.totalorder %s29, 0
      %p182 = por %p180, %p181
      %s183 = ssub.s32 %s23, %s30
      %p184 = scmp.eq.s32.totalorder %s183, 0
      %s186 = sadd.s32 %s185, 1
      %s187 = scalar_select %p184, %s185, %s186
      %p190 = pneg %p184
      %p191 = scmp.eq.s32.totalorder %s23, 1
      %p192 = por %p190, %p191
      %p193 = scmp.ne.s32.totalorder %s185, %s188
      %p194 = scmp.eq.s32.totalorder %s23, 0
      %p195 = por %p193, %p194
      %p196 = scmp.ne.s32.totalorder %s185, %s188
      %p197 = scmp.eq.s32.totalorder %s28, 1
      %p198 = por %p196, %p197
      %p199 = scmp.ne.s32.totalorder %s188, %s189
      %p200 = scmp.eq.s32.totalorder %s28, 0
      %p201 = por %p199, %p200
      %p202 = scmp.ne.s32.totalorder %s188, %s189
      %p203 = scmp.eq.s32.totalorder %s29, 1
      %p204 = por %p202, %p203
      %p206 = scmp.ne.s32.totalorder %s189, %s205
      %p207 = scmp.eq.s32.totalorder %s29, 0
      %p208 = por %p206, %p207
      %p209 = scmp.le.s32.totalorder 1, %s23
      %p210 = scmp.lt.s32.totalorder %s23, 3
      %p211 = pnand %p209, %p210
      %p212 = pneg %p211
      // Predicated region
      $region9: #{rdb_forward_nchw.11} parent=5 // pred_check
        _
      $region10: #{rdb_forward_nchw.11} parent=5 // pred_check_branch
        %214 = sbr.rel (%p211) target = $region12
      $region11: #{rdb_forward_nchw.11} parent=5 // pred_region
        %s215 = ssub.s32 %s23, 1
        // Predicated region
        $region13: #{rdb_forward_nchw.11} parent=11 // pred_check
          %p216 = pneg %p70
        $region14: #{rdb_forward_nchw.11} parent=11 // pred_check_branch
          %218 = sbr.rel (%p216) target = $region16
        $region15: #{rdb_forward_nchw.11} parent=11 // pred_region
          %s220 = ssub.s32 512, 512
          %221 = vsyncadd [#allocation7], %s220
          %s222 = sshll.u32 [#allocation6], 4
          %s223 = int_to_ptr.vmem [resolvable:$true] %s222
          %228 = dma.hbm_to_vmem [thread:$0]  %s1, 512, %s223, [#allocation7], 256, 256, 16
        $region16: #{rdb_forward_nchw.11} parent=11 // pred_fallthru
          _
        // Predicated region
        $region17: #{rdb_forward_nchw.11} parent=11 // pred_check
          %p229 = pneg %p91
        $region18: #{rdb_forward_nchw.11} parent=11 // pred_check_branch
          %231 = sbr.rel (%p229) target = $region20
        $region19: #{rdb_forward_nchw.11} parent=11 // pred_region
          %s233 = ssub.s32 768, 768
          %234 = vsyncadd [#allocation7], %s233
          %s235 = sshll.u32 [#allocation8], 4
          %s236 = int_to_ptr.vmem [resolvable:$true] %s235
          %241 = dma.hbm_to_vmem [thread:$0]  %s2, 768, %s236, [#allocation7], 256, 256, 16
        $region20: #{rdb_forward_nchw.11} parent=11 // pred_fallthru
          _
        // Predicated region
        $region21: #{rdb_forward_nchw.11} parent=11 // pred_check
          %p242 = pneg %p112
        $region22: #{rdb_forward_nchw.11} parent=11 // pred_check_branch
          %244 = sbr.rel (%p242) target = $region24
        $region23: #{rdb_forward_nchw.11} parent=11 // pred_region
          %s246 = ssub.s32 384, 384
          %247 = vsyncadd [#allocation10], %s246
          %s248 = sshll.u32 [#allocation9], 4
          %s249 = int_to_ptr.vmem [resolvable:$true] %s248
          %254 = dma.hbm_to_vmem [thread:$0]  %s3, 384, %s249, [#allocation10], 128, 128, 8
        $region24: #{rdb_forward_nchw.11} parent=11 // pred_fallthru
          _
        // Predicated region
        $region25: #{rdb_forward_nchw.11} parent=11 // pred_check
          %p255 = pneg %p133
        $region26: #{rdb_forward_nchw.11} parent=11 // pred_check_branch
          %257 = sbr.rel (%p255) target = $region28
        $region27: #{rdb_forward_nchw.11} parent=11 // pred_region
          %s259 = ssub.s32 768, 768
          %260 = vsyncadd [#allocation10], %s259
          %s261 = sshll.u32 [#allocation11], 4
          %s262 = int_to_ptr.vmem [resolvable:$true] %s261
          %267 = dma.hbm_to_vmem [thread:$0]  %s4, 768, %s262, [#allocation10], 256, 256, 16
        $region28: #{rdb_forward_nchw.11} parent=11 // pred_fallthru
          _
        // Predicated region
        $region29: #{rdb_forward_nchw.11} parent=11 // pred_check
          %p268 = pneg %p154
        $region30: #{rdb_forward_nchw.11} parent=11 // pred_check_branch
          %270 = sbr.rel (%p268) target = $region32
        $region31: #{rdb_forward_nchw.11} parent=11 // pred_region
          %s272 = ssub.s32 384, 384
          %273 = vsyncadd [#allocation13], %s272
          %s274 = sshll.u32 [#allocation12], 4
          %s275 = int_to_ptr.vmem [resolvable:$true] %s274
          %280 = dma.hbm_to_vmem [thread:$0]  %s5, 384, %s275, [#allocation13], 128, 128, 8
        $region32: #{rdb_forward_nchw.11} parent=11 // pred_fallthru
          _
        // Predicated region
        $region33: #{rdb_forward_nchw.11} parent=11 // pred_check
          %p281 = pneg %p175
        $region34: #{rdb_forward_nchw.11} parent=11 // pred_check_branch
          %283 = sbr.rel (%p281) target = $region36
        $region35: #{rdb_forward_nchw.11} parent=11 // pred_region
          _
        $region36: #{rdb_forward_nchw.11} parent=11 // pred_fallthru
          _
      $region12: #{rdb_forward_nchw.11} parent=5 // pred_fallthru
        _
      %p284 = scmp.lt.s32.totalorder %s23, 2
      // Predicated region
      $region37: #{rdb_forward_nchw.11} parent=5 // pred_check
        %p285 = pneg %p284
      $region38: #{rdb_forward_nchw.11} parent=5 // pred_check_branch
        %287 = sbr.rel (%p285) target = $region40
      $region39: #{rdb_forward_nchw.11} parent=5 // pred_region
        // Predicated region
        $region41: #{rdb_forward_nchw.11} parent=39 // pred_check
          %p288 = pneg %p43
        $region42: #{rdb_forward_nchw.11} parent=39 // pred_check_branch
          %290 = sbr.rel (%p288) target = $region44
        $region43: #{rdb_forward_nchw.11} parent=39 // pred_region
          %s291 = sand.u32 %s33, 1
          %s292 = scalar_lea.sflag [#allocation4], %s291
          %s293 = sand.u32 %s33, 1
          %s294 = smul.addr %s293, 48
          %s295 = scalar_lea.vmem [#allocation3], %s294
          %s297 = ssub.s32 768, 768
          %298 = vsyncadd %s292, %s297
          %s299 = smul.addr %s23, 6
          %s300 = smul.addr %s299, 128
          %s301 = scalar_lea.hbm %s0, %s300
          %s302 = sshll.u32 %s295, 4
          %s303 = int_to_ptr.vmem [resolvable:$true] %s302
          %308 = dma.hbm_to_vmem [thread:$0]  %s301, 768, %s303, %s292, 256, 256, 16
        $region44: #{rdb_forward_nchw.11} parent=39 // pred_fallthru
          _
      $region40: #{rdb_forward_nchw.11} parent=5 // pred_fallthru
        _
      %p309 = scmp.le.s32.totalorder 1, %s23
      %p310 = scmp.lt.s32.totalorder %s23, 3
      %p311 = pnand %p309, %p310
      %p312 = pneg %p311
      // Predicated region
      $region45: #{rdb_forward_nchw.11} parent=5 // pred_check
        _
      $region46: #{rdb_forward_nchw.11} parent=5 // pred_check_branch
        %314 = sbr.rel (%p311) target = $region48
      $region47: #{rdb_forward_nchw.11} parent=5 // pred_region
        %s315 = ssub.s32 %s23, 1
        %s316 = sand.u32 %s36, 1
        %s317 = scalar_lea.sflag [#allocation4], %s316
        %s318 = sand.u32 %s36, 1
        %s319 = smul.addr %s318, 48
        %s320 = scalar_lea.vmem [#allocation3], %s319
        // Predicated region
        $region49: #{rdb_forward_nchw.11} parent=47 // pred_check
          %p321 = pneg %p49
        $region50: #{rdb_forward_nchw.11} parent=47 // pred_check_branch
          %323 = sbr.rel (%p321) target = $region52
        $region51: #{rdb_forward_nchw.11} parent=47 // pred_region
          %324 = dma.done %s317, 768
        $region52: #{rdb_forward_nchw.11} parent=47 // pred_fallthru
          _
        // Predicated region
        $region53: #{rdb_forward_nchw.11} parent=47 // pred_check
          %p325 = pneg %p70
        $region54: #{rdb_forward_nchw.11} parent=47 // pred_check_branch
          %327 = sbr.rel (%p325) target = $region56
        $region55: #{rdb_forward_nchw.11} parent=47 // pred_region
          %328 = dma.done [#allocation7], 512
        $region56: #{rdb_forward_nchw.11} parent=47 // pred_fallthru
          _
        // Predicated region
        $region57: #{rdb_forward_nchw.11} parent=47 // pred_check
          %p329 = pneg %p91
        $region58: #{rdb_forward_nchw.11} parent=47 // pred_check_branch
          %331 = sbr.rel (%p329) target = $region60
        $region59: #{rdb_forward_nchw.11} parent=47 // pred_region
          %332 = dma.done [#allocation7], 768
        $region60: #{rdb_forward_nchw.11} parent=47 // pred_fallthru
          _
        // Predicated region
        $region61: #{rdb_forward_nchw.11} parent=47 // pred_check
          %p333 = pneg %p112
        $region62: #{rdb_forward_nchw.11} parent=47 // pred_check_branch
          %335 = sbr.rel (%p333) target = $region64
        $region63: #{rdb_forward_nchw.11} parent=47 // pred_region
          %336 = dma.done [#allocation10], 384
        $region64: #{rdb_forward_nchw.11} parent=47 // pred_fallthru
          _
        // Predicated region
        $region65: #{rdb_forward_nchw.11} parent=47 // pred_check
          %p337 = pneg %p133
        $region66: #{rdb_forward_nchw.11} parent=47 // pred_check_branch
          %339 = sbr.rel (%p337) target = $region68
        $region67: #{rdb_forward_nchw.11} parent=47 // pred_region
          %340 = dma.done [#allocation10], 768
        $region68: #{rdb_forward_nchw.11} parent=47 // pred_fallthru
          _
        // Predicated region
        $region69: #{rdb_forward_nchw.11} parent=47 // pred_check
          %p341 = pneg %p154
        $region70: #{rdb_forward_nchw.11} parent=47 // pred_check_branch
          %343 = sbr.rel (%p341) target = $region72
        $region71: #{rdb_forward_nchw.11} parent=47 // pred_region
          %344 = dma.done [#allocation13], 384
        $region72: #{rdb_forward_nchw.11} parent=47 // pred_fallthru
          _
        %s345 = sand.u32 %s36, 1
        %s346 = scalar_lea.sflag [#allocation4], %s345
        %s347 = sand.u32 %s36, 1
        %s348 = smul.addr %s347, 48
        %s349 = scalar_lea.vmem [#allocation3], %s348
        %p350 = pneg %p49
        %p351 = pneg %p46
        %p352 = pneg %p70
        %p353 = pneg %p67
        %p354 = pneg %p91
        %p355 = pneg %p88
        %p356 = pneg %p112
        %p357 = pneg %p109
        %p358 = pneg %p133
        %p359 = pneg %p130
        %p360 = pneg %p154
        %p361 = pneg %p151
        %p362 = pneg %p175
        %p363 = pneg %p172
        %p364 = pneg %p201
        %p365 = pneg %p198
        %s366 = sand.u32 %s188, 1
        %s367 = scalar_lea.sflag [#allocation5], %s366
        %s368 = sand.u32 %s188, 1
        %s369 = smul.addr %s368, 48
        %s370 = scalar_lea.vmem [#allocation14], %s369
        %v371 = vld [vmem:[#allocation6] sm:$0xff]
        %v372 = vld [vmem:[#allocation6 + $0x8] sm:$0xff]
        %v373 = vld [vmem:[#allocation6 + $0x10] sm:$0x1]
        %v374 = vld [vmem:[#allocation6 + $0x18] sm:$0x1]
        %v375 = vld [vmem:[%s320] sm:$0xff]
        %v376 = vld [vmem:[%s320 + $0x8] sm:$0xff]
        %v377 = vld [vmem:[%s320 + $0x10] sm:$0xff]
        %v378 = vld [vmem:[%s320 + $0x18] sm:$0xff]
        %v379 = vld [vmem:[%s320 + $0x20] sm:$0xf]
        %v380 = vld [vmem:[%s320 + $0x28] sm:$0xf]
        %s381 = sld [smem:[#allocation2]]
        %vm382 = vcmp.ge.f32.partialorder %v375, 0.0
        %vm383 = vcmp.ge.f32.partialorder %v376, 0.0
        %vm384 = vcmp.ge.f32.partialorder %v377, 0.0
        %vm385 = vcmp.ge.f32.partialorder %v378, 0.0
        %vm386 = vcmp.ge.f32.partialorder %v379, 0.0
        %vm387 = vcmp.ge.f32.partialorder %v380, 0.0
        %v388 = vstv %s381
        %v389 = vmul.f32 %v388, %v375
        %v390 = vmul.f32 %v388, %v376
        %v391 = vmul.f32 %v388, %v377
        %v392 = vmul.f32 %v388, %v378
        %v393 = vmul.f32 %v388, %v379
        %v394 = vmul.f32 %v388, %v380
        %v395 = vsel %vm382, %v375, %v389
        %v396 = vsel %vm383, %v376, %v390
        %v397 = vsel %vm384, %v377, %v391
        %v398 = vsel %vm385, %v378, %v392
        %v399 = vsel %vm386, %v379, %v393
        %v400 = vsel %vm387, %v380, %v394
        %v401 = vld [vmem:[#allocation8] sm:$0xff]
        %v402 = vld [vmem:[#allocation8 + $0x8] sm:$0xff]
        %v403 = vld [vmem:[#allocation8 + $0x10] sm:$0xff]
        %v404 = vld [vmem:[#allocation8 + $0x18] sm:$0xff]
        %v405 = vld [vmem:[#allocation8 + $0x20] sm:$0xf]
        %v406 = vld [vmem:[#allocation8 + $0x28] sm:$0xf]
        %413 = vrot.lane.b32.xlu0 %v395, 17
        %v414 = vpop.permute.xlu0 %413
        %415 = vrot.lane.b32.xlu0 %v396, 17
        %v416 = vpop.permute.xlu0 %415
        %417 = vrot.lane.b32.xlu0 %v397, 17
        %v418 = vpop.permute.xlu0 %417
        %419 = vrot.lane.b32.xlu0 %v398, 17
        %v420 = vpop.permute.xlu0 %419
        %421 = vrot.lane.b32.xlu0 %v399, 17
        %v422 = vpop.permute.xlu0 %421
        %423 = vrot.lane.b32.xlu0 %v400, 17
        %v424 = vpop.permute.xlu0 %423
        %vm425 = vcmask 138240
        %v426 = vsel %vm425, %v414, %v416
        %v427 = vsel %vm425, %v418, %v420
        %v428 = vsel %vm425, %v422, %v424
        %v435 = vsel %vm425, 0.0, %v414
        %v436 = vsel %vm425, 0.0, %v418
        %v437 = vsel %vm425, 0.0, %v422
        %v438 = vlaneseq
        %v439 = vshrl.u32 %v438, 7
        %v440 = vsub.s32 0, %v439
        %v441 = vrot.slane %v371, %v440
        %v442 = vlaneseq
        %v443 = vshrl.u32 %v442, 7
        %v444 = vsub.s32 0, %v443
        %v445 = vrot.slane %v372, %v444
        %v446 = vmul.f32 %v435, %v441
        %v447 = vmul.f32 %v426, %v445
        %v448 = vmul.f32 %v436, %v441
        %v449 = vmul.f32 %v427, %v445
        %v450 = vmul.f32 %v437, %v441
        %v451 = vmul.f32 %v428, %v445
        %452 = vrot.lane.b32.xlu0 %v395, 16
        %v453 = vpop.permute.xlu0 %452
        %454 = vrot.lane.b32.xlu0 %v396, 16
        %v455 = vpop.permute.xlu0 %454
        %456 = vrot.lane.b32.xlu0 %v397, 16
        %v457 = vpop.permute.xlu0 %456
        %458 = vrot.lane.b32.xlu0 %v398, 16
        %v459 = vpop.permute.xlu0 %458
        %460 = vrot.lane.b32.xlu0 %v399, 16
        %v461 = vpop.permute.xlu0 %460
        %462 = vrot.lane.b32.xlu0 %v400, 16
        %v463 = vpop.permute.xlu0 %462
        %vm464 = vcmask 130048
        %v465 = vsel %vm464, %v453, %v455
        %v466 = vsel %vm464, %v457, %v459
        %v467 = vsel %vm464, %v461, %v463
        %v474 = vsel %vm464, 0.0, %v453
        %v475 = vsel %vm464, 0.0, %v457
        %v476 = vsel %vm464, 0.0, %v461
        %v477 = vlaneseq
        %v478 = vshrl.u32 %v477, 7
        %v479 = vsub.s32 1, %v478
        %v480 = vrot.slane %v371, %v479
        %v481 = vlaneseq
        %v482 = vshrl.u32 %v481, 7
        %v483 = vsub.s32 1, %v482
        %v484 = vrot.slane %v372, %v483
        %v485 = vmul.f32 %v474, %v480
        %v486 = vmul.f32 %v465, %v484
        %v487 = vmul.f32 %v475, %v480
        %v488 = vmul.f32 %v466, %v484
        %v489 = vmul.f32 %v476, %v480
        %v490 = vmul.f32 %v467, %v484
        %491 = vrot.lane.b32.xlu0 %v395, 15
        %v492 = vpop.permute.xlu0 %491
        %493 = vrot.lane.b32.xlu0 %v396, 15
        %v494 = vpop.permute.xlu0 %493
        %495 = vrot.lane.b32.xlu0 %v397, 15
        %v496 = vpop.permute.xlu0 %495
        %497 = vrot.lane.b32.xlu0 %v398, 15
        %v498 = vpop.permute.xlu0 %497
        %499 = vrot.lane.b32.xlu0 %v399, 15
        %v500 = vpop.permute.xlu0 %499
        %501 = vrot.lane.b32.xlu0 %v400, 15
        %v502 = vpop.permute.xlu0 %501
        %vm503 = vcmask 121856
        %v504 = vsel %vm503, %v492, %v494
        %v505 = vsel %vm503, %v496, %v498
        %v506 = vsel %vm503, %v500, %v502
        %v513 = vsel %vm503, 0.0, %v492
        %v514 = vsel %vm503, 0.0, %v496
        %v515 = vsel %vm503, 0.0, %v500
        %v516 = vlaneseq
        %v517 = vshrl.u32 %v516, 7
        %v518 = vsub.s32 2, %v517
        %v519 = vrot.slane %v371, %v518
        %v520 = vlaneseq
        %v521 = vshrl.u32 %v520, 7
        %v522 = vsub.s32 2, %v521
        %v523 = vrot.slane %v372, %v522
        %v524 = vmul.f32 %v513, %v519
        %v525 = vmul.f32 %v504, %v523
        %v526 = vmul.f32 %v514, %v519
        %v527 = vmul.f32 %v505, %v523
        %v528 = vmul.f32 %v515, %v519
        %v529 = vmul.f32 %v506, %v523
        %530 = vrot.lane.b32.xlu0 %v395, 1
        %v531 = vpop.permute.xlu0 %530
        %532 = vrot.lane.b32.xlu0 %v396, 1
        %v533 = vpop.permute.xlu0 %532
        %534 = vrot.lane.b32.xlu0 %v397, 1
        %v535 = vpop.permute.xlu0 %534
        %536 = vrot.lane.b32.xlu0 %v398, 1
        %v537 = vpop.permute.xlu0 %536
        %538 = vrot.lane.b32.xlu0 %v399, 1
        %v539 = vpop.permute.xlu0 %538
        %540 = vrot.lane.b32.xlu0 %v400, 1
        %v541 = vpop.permute.xlu0 %540
        %vm542 = vcmask 7168
        %v543 = vsel %vm542, %v531, %v533
        %v544 = vsel %vm542, %v535, %v537
        %v545 = vsel %vm542, %v539, %v541
        %v552 = vsel %vm542, 0.0, %v531
        %v553 = vsel %vm542, 0.0, %v535
        %v554 = vsel %vm542, 0.0, %v539
        %v555 = vlaneseq
        %v556 = vshrl.u32 %v555, 7
        %v557 = vsub.s32 3, %v556
        %v558 = vrot.slane %v371, %v557
        %v559 = vlaneseq
        %v560 = vshrl.u32 %v559, 7
        %v561 = vsub.s32 3, %v560
        %v562 = vrot.slane %v372, %v561
        %v563 = vmul.f32 %v552, %v558
        %v564 = vmul.f32 %v543, %v562
        %v565 = vmul.f32 %v553, %v558
        %v566 = vmul.f32 %v544, %v562
        %v567 = vmul.f32 %v554, %v558
        %v568 = vmul.f32 %v545, %v562
        %569 = vrot.lane.b32.xlu0 %v395, 127
        %v570 = vpop.permute.xlu0 %569
        %571 = vrot.lane.b32.xlu0 %v396, 127
        %v572 = vpop.permute.xlu0 %571
        %573 = vrot.lane.b32.xlu0 %v397, 127
        %v574 = vpop.permute.xlu0 %573
        %575 = vrot.lane.b32.xlu0 %v398, 127
        %v576 = vpop.permute.xlu0 %575
        %577 = vrot.lane.b32.xlu0 %v399, 127
        %v578 = vpop.permute.xlu0 %577
        %579 = vrot.lane.b32.xlu0 %v400, 127
        %v580 = vpop.permute.xlu0 %579
        %vm581 = vcmask 1039360
        %v582 = vsel %vm581, %v570, %v572
        %v583 = vsel %vm581, %v574, %v576
        %v584 = vsel %vm581, %v578, %v580
        %v591 = vsel %vm581, %v572, 0.0
        %v592 = vsel %vm581, %v576, 0.0
        %v593 = vsel %vm581, %v580, 0.0
        %v594 = vlaneseq
        %v595 = vshrl.u32 %v594, 7
        %v596 = vsub.s32 5, %v595
        %v597 = vrot.slane %v371, %v596
        %v598 = vlaneseq
        %v599 = vshrl.u32 %v598, 7
        %v600 = vsub.s32 5, %v599
        %v601 = vrot.slane %v372, %v600
        %v602 = vmul.f32 %v582, %v597
        %v603 = vmul.f32 %v591, %v601
        %v604 = vmul.f32 %v583, %v597
        %v605 = vmul.f32 %v592, %v601
        %v606 = vmul.f32 %v584, %v597
        %v607 = vmul.f32 %v593, %v601
        %608 = vrot.lane.b32.xlu0 %v395, 113
        %v609 = vpop.permute.xlu0 %608
        %610 = vrot.lane.b32.xlu0 %v396, 113
        %v611 = vpop.permute.xlu0 %610
        %612 = vrot.lane.b32.xlu0 %v397, 113
        %v613 = vpop.permute.xlu0 %612
        %614 = vrot.lane.b32.xlu0 %v398, 113
        %v615 = vpop.permute.xlu0 %614
        %616 = vrot.lane.b32.xlu0 %v399, 113
        %v617 = vpop.permute.xlu0 %616
        %618 = vrot.lane.b32.xlu0 %v400, 113
        %v619 = vpop.permute.xlu0 %618
        %vm620 = vcmask 924672
        %v621 = vsel %vm620, %v609, %v611
        %v622 = vsel %vm620, %v613, %v615
        %v623 = vsel %vm620, %v617, %v619
        %v630 = vsel %vm620, %v611, 0.0
        %v631 = vsel %vm620, %v615, 0.0
        %v632 = vsel %vm620, %v619, 0.0
        %v633 = vlaneseq
        %v634 = vshrl.u32 %v633, 7
        %v635 = vsub.s32 6, %v634
        %v636 = vrot.slane %v371, %v635
        %v637 = vlaneseq
        %v638 = vshrl.u32 %v637, 7
        %v639 = vsub.s32 6, %v638
        %v640 = vrot.slane %v372, %v639
        %v641 = vmul.f32 %v621, %v636
        %v642 = vmul.f32 %v630, %v640
        %v643 = vmul.f32 %v622, %v636
        %v644 = vmul.f32 %v631, %v640
        %v645 = vmul.f32 %v623, %v636
        %v646 = vmul.f32 %v632, %v640
        %647 = vrot.lane.b32.xlu0 %v395, 112
        %v648 = vpop.permute.xlu0 %647
        %649 = vrot.lane.b32.xlu0 %v396, 112
        %v650 = vpop.permute.xlu0 %649
        %651 = vrot.lane.b32.xlu0 %v397, 112
        %v652 = vpop.permute.xlu0 %651
        %653 = vrot.lane.b32.xlu0 %v398, 112
        %v654 = vpop.permute.xlu0 %653
        %655 = vrot.lane.b32.xlu0 %v399, 112
        %v656 = vpop.permute.xlu0 %655
        %657 = vrot.lane.b32.xlu0 %v400, 112
        %v658 = vpop.permute.xlu0 %657
        %vm659 = vcmask 916480
        %v660 = vsel %vm659, %v648, %v650
        %v661 = vsel %vm659, %v652, %v654
        %v662 = vsel %vm659, %v656, %v658
        %v669 = vsel %vm659, %v650, 0.0
        %v670 = vsel %vm659, %v654, 0.0
        %v671 = vsel %vm659, %v658, 0.0
        %v672 = vlaneseq
        %v673 = vshrl.u32 %v672, 7
        %v674 = vsub.s32 7, %v673
        %v675 = vrot.slane %v371, %v674
        %v676 = vlaneseq
        %v677 = vshrl.u32 %v676, 7
        %v678 = vsub.s32 7, %v677
        %v679 = vrot.slane %v372, %v678
        %v680 = vmul.f32 %v660, %v675
        %v681 = vmul.f32 %v669, %v679
        %v682 = vmul.f32 %v661, %v675
        %v683 = vmul.f32 %v670, %v679
        %v684 = vmul.f32 %v662, %v675
        %v685 = vmul.f32 %v671, %v679
        %686 = vrot.lane.b32.xlu0 %v395, 111
        %v687 = vpop.permute.xlu0 %686
        %688 = vrot.lane.b32.xlu0 %v396, 111
        %v689 = vpop.permute.xlu0 %688
        %690 = vrot.lane.b32.xlu0 %v397, 111
        %v691 = vpop.permute.xlu0 %690
        %692 = vrot.lane.b32.xlu0 %v398, 111
        %v693 = vpop.permute.xlu0 %692
        %694 = vrot.lane.b32.xlu0 %v399, 111
        %v695 = vpop.permute.xlu0 %694
        %696 = vrot.lane.b32.xlu0 %v400, 111
        %v697 = vpop.permute.xlu0 %696
        %vm698 = vcmask 908288
        %v699 = vsel %vm698, %v687, %v689
        %v700 = vsel %vm698, %v691, %v693
        %v701 = vsel %vm698, %v695, %v697
        %v708 = vsel %vm698, %v689, 0.0
        %v709 = vsel %vm698, %v693, 0.0
        %v710 = vsel %vm698, %v697, 0.0
        %v711 = vlaneseq
        %v712 = vshrl.u32 %v711, 7
        %v713 = vsub.s32 0, %v712
        %v714 = vrot.slane %v373, %v713
        %v715 = vlaneseq
        %v716 = vshrl.u32 %v715, 7
        %v717 = vsub.s32 0, %v716
        %v718 = vrot.slane %v374, %v717
        %v719 = vmul.f32 %v699, %v714
        %v720 = vmul.f32 %v708, %v718
        %v721 = vmul.f32 %v700, %v714
        %v722 = vmul.f32 %v709, %v718
        %v723 = vmul.f32 %v701, %v714
        %v724 = vmul.f32 %v710, %v718
        %vm731 = vcmask 1043456
        %v732 = vrot.slane %v485, 4
        %v733 = vrot.slane %v486, 4
        %v734 = vrot.slane %v487, 4
        %v735 = vsel %vm731, %v732, %v734
        %v736 = vrot.slane %v488, 4
        %v737 = vsel %vm731, %v733, %v736
        %v738 = vrot.slane %v489, 4
        %v739 = vsel %vm731, %v734, %v738
        %v740 = vrot.slane %v490, 4
        %v741 = vsel %vm731, %v736, %v740
        %v754 = vrot.slane %v563, 4
        %v755 = vrot.slane %v564, 4
        %v756 = vrot.slane %v565, 4
        %v757 = vsel %vm731, %v754, %v756
        %v758 = vrot.slane %v566, 4
        %v759 = vsel %vm731, %v755, %v758
        %v760 = vrot.slane %v567, 4
        %v761 = vsel %vm731, %v756, %v760
        %v762 = vrot.slane %v568, 4
        %v763 = vsel %vm731, %v758, %v762
        %v776 = vrot.slane %v602, 4
        %v777 = vrot.slane %v603, 4
        %v778 = vrot.slane %v604, 4
        %v779 = vsel %vm731, %v776, %v778
        %v780 = vrot.slane %v605, 4
        %v781 = vsel %vm731, %v777, %v780
        %v782 = vrot.slane %v606, 4
        %v783 = vsel %vm731, %v778, %v782
        %v784 = vrot.slane %v607, 4
        %v785 = vsel %vm731, %v780, %v784
        %v798 = vrot.slane %v680, 4
        %v799 = vrot.slane %v681, 4
        %v800 = vrot.slane %v682, 4
        %v801 = vsel %vm731, %v798, %v800
        %v802 = vrot.slane %v683, 4
        %v803 = vsel %vm731, %v799, %v802
        %v804 = vrot.slane %v684, 4
        %v805 = vsel %vm731, %v800, %v804
        %v806 = vrot.slane %v685, 4
        %v807 = vsel %vm731, %v802, %v806
        %v814 = vsel %vm731, %v450, %v732
        %v815 = vsel %vm731, %v451, %v733
        %v816 = vsel %vm731, %v528, %v754
        %v817 = vsel %vm731, %v529, %v755
        %v818 = vsel %vm731, %v399, %v776
        %v819 = vsel %vm731, %v400, %v777
        %v820 = vsel %vm731, %v645, %v798
        %v821 = vsel %vm731, %v646, %v799
        %v822 = vld [vmem:[#allocation9] sm:$0xff]
        %v823 = vld [vmem:[#allocation9 + $0x8] sm:$0xff]
        %v824 = vld [vmem:[#allocation9 + $0x10] sm:$0xf]
        %826 = vset.pattern.permute.xlu0 0
        %827 = vperm.xlu0 %826, %v822
        %v828 = vpop.permute.xlu0 %827
        %831 = vset.pattern.permute.xlu0 0
        %832 = vperm.xlu0 %831, %v823
        %v833 = vpop.permute.xlu0 %832
        %836 = vset.pattern.permute.xlu0 0
        %837 = vperm.xlu0 %836, %v824
        %v838 = vpop.permute.xlu0 %837
        %vm840 = vcmask 424960
        %v842 = vsel %vm840, %v402, 0
        %v845 = vsel %vm840, %v404, 0
        %v848 = vsel %vm840, %v406, 0
        %v851 = vsel %vm731, %v723, 0
        %v854 = vsel %vm731, %v724, 0
        %856 = vmatprep.subr.mxu0 %v447
        %857 = vmatpush1.msra.mxu0 %v446
        %858 = vmatprep.subr.mxu0 %v449
        %859 = vmatpush1.msra.mxu0 %v448
        %860 = vmatprep.subr.mxu0 %v815
        %861 = vmatpush1.msra.mxu0 %v814
        %862 = vmatprep.subr.mxu0 %v737
        %863 = vmatpush1.msra.mxu0 %v735
        %864 = vmatprep.subr.mxu0 %v741
        %865 = vmatpush1.msra.mxu0 %v739
        %866 = vmatprep.subr.mxu0 %v525
        %867 = vmatpush1.msra.mxu0 %v524
        %868 = vmatprep.subr.mxu0 %v527
        %869 = vmatpush1.msra.mxu0 %v526
        %870 = vmatprep.subr.mxu0 %v817
        %871 = vmatpush1.msra.mxu0 %v816
        %872 = vmatprep.subr.mxu0 %v759
        %873 = vmatpush1.msra.mxu0 %v757
        %874 = vmatprep.subr.mxu0 %v763
        %875 = vmatpush1.msra.mxu0 %v761
        %876 = vmatprep.subr.mxu0 %v396
        %877 = vmatpush1.msra.mxu0 %v395
        %878 = vmatprep.subr.mxu0 %v398
        %879 = vmatpush1.msra.mxu0 %v397
        %880 = vmatprep.subr.mxu0 %v819
        %881 = vmatpush1.msra.mxu0 %v818
        %882 = vmatprep.subr.mxu0 %v781
        %883 = vmatpush1.msra.mxu0 %v779
        %884 = vmatprep.subr.mxu0 %v785
        %885 = vmatpush1.msra.mxu0 %v783
        %886 = vmatprep.subr.mxu0 %v642
        %887 = vmatpush1.msra.mxu0 %v641
        %888 = vmatprep.subr.mxu0 %v644
        %889 = vmatpush1.msra.mxu0 %v643
        %890 = vmatprep.subr.mxu0 %v821
        %891 = vmatpush1.msra.mxu0 %v820
        %892 = vmatprep.subr.mxu0 %v803
        %893 = vmatpush1.msra.mxu0 %v801
        %894 = vmatprep.subr.mxu0 %v807
        %895 = vmatpush1.msra.mxu0 %v805
        %896 = vmatprep.subr.mxu0 %v720
        %897 = vmatpush1.msra.mxu0 %v719
        %898 = vmatprep.subr.mxu0 %v722
        %899 = vmatpush1.msra.mxu0 %v721
        %900 = vmatprep.subr.mxu0 %v854
        %901 = vmatpush1.msra.mxu0 %v851
        %902 = vmatprep.subr.mxu0 0.0
        %903 = vmatpush1.msra.mxu0 0.0
        %904 = vmatprep.subr.mxu0 0.0
        %905 = vmatpush1.msra.mxu0 0.0
        %906 = vmatprep.subr.mxu0 0.0
        %907 = vmatpush1.msra.mxu0 0.0
        %908 = vmatprep.subr.mxu0 0.0
        %909 = vmatpush1.msra.mxu0 0.0
        %910 = vmatprep.subr.mxu0 0.0
        %911 = vmatpush1.msra.mxu0 0.0
        %912 = vmatprep.subr.mxu0 0.0
        %913 = vmatpush1.msra.mxu0 0.0
        %914 = vmatprep.subr.mxu0 0.0
        %915 = vmatpush1.msra.mxu0 0.0
        %916 = vmatprep.subr.mxu0 0.0
        %917 = vmatpush1.msra.mxu0 0.0
        %918 = vmatprep.subr.mxu0 0.0
        %919 = vmatpush1.msra.mxu0 0.0
        %920 = vmatprep.mubr.f32.mxu0 %v842
        %921 = vmatmul.mubr.f32.gmra.mrb[0].mxu0 %v401
        %v922 = vpop.f32.mrb[0].mxu0
        %v923 = vadd.f32 %v828, %v922
        %v924 = vpop.f32.mrb[0].mxu0
        %v925 = vadd.f32 %v828, %v924
        %926 = vmatprep.mubr.f32.mxu0 %v845
        %927 = vmatmul.mubr.f32.gmra.mrb[0].mxu0 %v403
        %v928 = vpop.f32.mrb[0].mxu0
        %v929 = vadd.f32 %v833, %v928
        %v930 = vpop.f32.mrb[0].mxu0
        %v931 = vadd.f32 %v833, %v930
        %932 = vmatprep.mubr.f32.mxu0 %v848
        %933 = vmatmul.mubr.f32.gmra.mrb[0].mxu0 %v405
        %v934 = vpop.f32.mrb[0].mxu0
        %v935 = vadd.f32 %v838, %v934
        %v936 = vpop.f32.mrb[0].mxu0
        %v937 = vadd.f32 %v838, %v936
        %938 = vdwg.mxu0
        %v939 = vld [vmem:[#allocation11] sm:$0xff]
        %v940 = vld [vmem:[#allocation11 + $0x8] sm:$0xff]
        %v941 = vld [vmem:[#allocation11 + $0x10] sm:$0xff]
        %v942 = vld [vmem:[#allocation11 + $0x18] sm:$0xff]
        %v943 = vld [vmem:[#allocation11 + $0x20] sm:$0xf]
        %v944 = vld [vmem:[#allocation11 + $0x28] sm:$0xf]
        %951 = vrot.lane.b32.xlu0 %v923, 17
        %v952 = vpop.permute.xlu0 %951
        %953 = vrot.lane.b32.xlu0 %v925, 17
        %v954 = vpop.permute.xlu0 %953
        %955 = vrot.lane.b32.xlu0 %v929, 17
        %v956 = vpop.permute.xlu0 %955
        %957 = vrot.lane.b32.xlu0 %v931, 17
        %v958 = vpop.permute.xlu0 %957
        %959 = vrot.lane.b32.xlu0 %v935, 17
        %v960 = vpop.permute.xlu0 %959
        %961 = vrot.lane.b32.xlu0 %v937, 17
        %v962 = vpop.permute.xlu0 %961
        %v963 = vsel %vm425, %v952, %v954
        %v964 = vsel %vm425, %v956, %v958
        %v965 = vsel %vm425, %v960, %v962
        %v972 = vsel %vm425, 0.0, %v952
        %v973 = vsel %vm425, 0.0, %v956
        %v974 = vsel %vm425, 0.0, %v960
        %v975 = vmul.f32 %v972, %v441
        %v976 = vmul.f32 %v963, %v445
        %v977 = vmul.f32 %v973, %v441
        %v978 = vmul.f32 %v964, %v445
        %v979 = vmul.f32 %v974, %v441
        %v980 = vmul.f32 %v965, %v445
        %981 = vrot.lane.b32.xlu0 %v923, 16
        %v982 = vpop.permute.xlu0 %981
        %983 = vrot.lane.b32.xlu0 %v925, 16
        %v984 = vpop.permute.xlu0 %983
        %985 = vrot.lane.b32.xlu0 %v929, 16
        %v986 = vpop.permute.xlu0 %985
        %987 = vrot.lane.b32.xlu0 %v931, 16
        %v988 = vpop.permute.xlu0 %987
        %989 = vrot.lane.b32.xlu0 %v935, 16
        %v990 = vpop.permute.xlu0 %989
        %991 = vrot.lane.b32.xlu0 %v937, 16
        %v992 = vpop.permute.xlu0 %991
        %v993 = vsel %vm464, %v982, %v984
        %v994 = vsel %vm464, %v986, %v988
        %v995 = vsel %vm464, %v990, %v992
        %v1002 = vsel %vm464, 0.0, %v982
        %v1003 = vsel %vm464, 0.0, %v986
        %v1004 = vsel %vm464, 0.0, %v990
        %v1005 = vmul.f32 %v1002, %v480
        %v1006 = vmul.f32 %v993, %v484
        %v1007 = vmul.f32 %v1003, %v480
        %v1008 = vmul.f32 %v994, %v484
        %v1009 = vmul.f32 %v1004, %v480
        %v1010 = vmul.f32 %v995, %v484
        %1011 = vrot.lane.b32.xlu0 %v923, 15
        %v1012 = vpop.permute.xlu0 %1011
        %1013 = vrot.lane.b32.xlu0 %v925, 15
        %v1014 = vpop.permute.xlu0 %1013
        %1015 = vrot.lane.b32.xlu0 %v929, 15
        %v1016 = vpop.permute.xlu0 %1015
        %1017 = vrot.lane.b32.xlu0 %v931, 15
        %v1018 = vpop.permute.xlu0 %1017
        %1019 = vrot.lane.b32.xlu0 %v935, 15
        %v1020 = vpop.permute.xlu0 %1019
        %1021 = vrot.lane.b32.xlu0 %v937, 15
        %v1022 = vpop.permute.xlu0 %1021
        %v1023 = vsel %vm503, %v1012, %v1014
        %v1024 = vsel %vm503, %v1016, %v1018
        %v1025 = vsel %vm503, %v1020, %v1022
        %v1032 = vsel %vm503, 0.0, %v1012
        %v1033 = vsel %vm503, 0.0, %v1016
        %v1034 = vsel %vm503, 0.0, %v1020
        %v1035 = vmul.f32 %v1032, %v519
        %v1036 = vmul.f32 %v1023, %v523
        %v1037 = vmul.f32 %v1033, %v519
        %v1038 = vmul.f32 %v1024, %v523
        %v1039 = vmul.f32 %v1034, %v519
        %v1040 = vmul.f32 %v1025, %v523
        %1041 = vrot.lane.b32.xlu0 %v923, 1
        %v1042 = vpop.permute.xlu0 %1041
        %1043 = vrot.lane.b32.xlu0 %v925, 1
        %v1044 = vpop.permute.xlu0 %1043
        %1045 = vrot.lane.b32.xlu0 %v929, 1
        %v1046 = vpop.permute.xlu0 %1045
        %1047 = vrot.lane.b32.xlu0 %v931, 1
        %v1048 = vpop.permute.xlu0 %1047
        %1049 = vrot.lane.b32.xlu0 %v935, 1
        %v1050 = vpop.permute.xlu0 %1049
        %1051 = vrot.lane.b32.xlu0 %v937, 1
        %v1052 = vpop.permute.xlu0 %1051
        %v1053 = vsel %vm542, %v1042, %v1044
        %v1054 = vsel %vm542, %v1046, %v1048
        %v1055 = vsel %vm542, %v1050, %v1052
        %v1062 = vsel %vm542, 0.0, %v1042
        %v1063 = vsel %vm542, 0.0, %v1046
        %v1064 = vsel %vm542, 0.0, %v1050
        %v1065 = vmul.f32 %v1062, %v558
        %v1066 = vmul.f32 %v1053, %v562
        %v1067 = vmul.f32 %v1063, %v558
        %v1068 = vmul.f32 %v1054, %v562
        %v1069 = vmul.f32 %v1064, %v558
        %v1070 = vmul.f32 %v1055, %v562
        %1071 = vrot.lane.b32.xlu0 %v923, 127
        %v1072 = vpop.permute.xlu0 %1071
        %1073 = vrot.lane.b32.xlu0 %v925, 127
        %v1074 = vpop.permute.xlu0 %1073
        %1075 = vrot.lane.b32.xlu0 %v929, 127
        %v1076 = vpop.permute.xlu0 %1075
        %1077 = vrot.lane.b32.xlu0 %v931, 127
        %v1078 = vpop.permute.xlu0 %1077
        %1079 = vrot.lane.b32.xlu0 %v935, 127
        %v1080 = vpop.permute.xlu0 %1079
        %1081 = vrot.lane.b32.xlu0 %v937, 127
        %v1082 = vpop.permute.xlu0 %1081
        %v1083 = vsel %vm581, %v1072, %v1074
        %v1084 = vsel %vm581, %v1076, %v1078
        %v1085 = vsel %vm581, %v1080, %v1082
        %v1092 = vsel %vm581, %v1074, 0.0
        %v1093 = vsel %vm581, %v1078, 0.0
        %v1094 = vsel %vm581, %v1082, 0.0
        %v1095 = vmul.f32 %v1083, %v597
        %v1096 = vmul.f32 %v1092, %v601
        %v1097 = vmul.f32 %v1084, %v597
        %v1098 = vmul.f32 %v1093, %v601
        %v1099 = vmul.f32 %v1085, %v597
        %v1100 = vmul.f32 %v1094, %v601
        %1101 = vrot.lane.b32.xlu0 %v923, 113
        %v1102 = vpop.permute.xlu0 %1101
        %1103 = vrot.lane.b32.xlu0 %v925, 113
        %v1104 = vpop.permute.xlu0 %1103
        %1105 = vrot.lane.b32.xlu0 %v929, 113
        %v1106 = vpop.permute.xlu0 %1105
        %1107 = vrot.lane.b32.xlu0 %v931, 113
        %v1108 = vpop.permute.xlu0 %1107
        %1109 = vrot.lane.b32.xlu0 %v935, 113
        %v1110 = vpop.permute.xlu0 %1109
        %1111 = vrot.lane.b32.xlu0 %v937, 113
        %v1112 = vpop.permute.xlu0 %1111
        %v1113 = vsel %vm620, %v1102, %v1104
        %v1114 = vsel %vm620, %v1106, %v1108
        %v1115 = vsel %vm620, %v1110, %v1112
        %v1122 = vsel %vm620, %v1104, 0.0
        %v1123 = vsel %vm620, %v1108, 0.0
        %v1124 = vsel %vm620, %v1112, 0.0
        %v1125 = vmul.f32 %v1113, %v636
        %v1126 = vmul.f32 %v1122, %v640
        %v1127 = vmul.f32 %v1114, %v636
        %v1128 = vmul.f32 %v1123, %v640
        %v1129 = vmul.f32 %v1115, %v636
        %v1130 = vmul.f32 %v1124, %v640
        %1131 = vrot.lane.b32.xlu0 %v923, 112
        %v1132 = vpop.permute.xlu0 %1131
        %1133 = vrot.lane.b32.xlu0 %v925, 112
        %v1134 = vpop.permute.xlu0 %1133
        %1135 = vrot.lane.b32.xlu0 %v929, 112
        %v1136 = vpop.permute.xlu0 %1135
        %1137 = vrot.lane.b32.xlu0 %v931, 112
        %v1138 = vpop.permute.xlu0 %1137
        %1139 = vrot.lane.b32.xlu0 %v935, 112
        %v1140 = vpop.permute.xlu0 %1139
        %1141 = vrot.lane.b32.xlu0 %v937, 112
        %v1142 = vpop.permute.xlu0 %1141
        %v1143 = vsel %vm659, %v1132, %v1134
        %v1144 = vsel %vm659, %v1136, %v1138
        %v1145 = vsel %vm659, %v1140, %v1142
        %v1152 = vsel %vm659, %v1134, 0.0
        %v1153 = vsel %vm659, %v1138, 0.0
        %v1154 = vsel %vm659, %v1142, 0.0
        %v1155 = vmul.f32 %v1143, %v675
        %v1156 = vmul.f32 %v1152, %v679
        %v1157 = vmul.f32 %v1144, %v675
        %v1158 = vmul.f32 %v1153, %v679
        %v1159 = vmul.f32 %v1145, %v675
        %v1160 = vmul.f32 %v1154, %v679
        %1161 = vrot.lane.b32.xlu0 %v923, 111
        %v1162 = vpop.permute.xlu0 %1161
        %1163 = vrot.lane.b32.xlu0 %v925, 111
        %v1164 = vpop.permute.xlu0 %1163
        %1165 = vrot.lane.b32.xlu0 %v929, 111
        %v1166 = vpop.permute.xlu0 %1165
        %1167 = vrot.lane.b32.xlu0 %v931, 111
        %v1168 = vpop.permute.xlu0 %1167
        %1169 = vrot.lane.b32.xlu0 %v935, 111
        %v1170 = vpop.permute.xlu0 %1169
        %1171 = vrot.lane.b32.xlu0 %v937, 111
        %v1172 = vpop.permute.xlu0 %1171
        %v1173 = vsel %vm698, %v1162, %v1164
        %v1174 = vsel %vm698, %v1166, %v1168
        %v1175 = vsel %vm698, %v1170, %v1172
        %v1182 = vsel %vm698, %v1164, 0.0
        %v1183 = vsel %vm698, %v1168, 0.0
        %v1184 = vsel %vm698, %v1172, 0.0
        %v1185 = vmul.f32 %v1173, %v714
        %v1186 = vmul.f32 %v1182, %v718
        %v1187 = vmul.f32 %v1174, %v714
        %v1188 = vmul.f32 %v1183, %v718
        %v1189 = vmul.f32 %v1175, %v714
        %v1190 = vmul.f32 %v1184, %v718
        %v1197 = vrot.slane %v1005, 4
        %v1198 = vrot.slane %v1006, 4
        %v1199 = vrot.slane %v1007, 4
        %v1200 = vsel %vm731, %v1197, %v1199
        %v1201 = vrot.slane %v1008, 4
        %v1202 = vsel %vm731, %v1198, %v1201
        %v1203 = vrot.slane %v1009, 4
        %v1204 = vsel %vm731, %v1199, %v1203
        %v1205 = vrot.slane %v1010, 4
        %v1206 = vsel %vm731, %v1201, %v1205
        %v1219 = vrot.slane %v1065, 4
        %v1220 = vrot.slane %v1066, 4
        %v1221 = vrot.slane %v1067, 4
        %v1222 = vsel %vm731, %v1219, %v1221
        %v1223 = vrot.slane %v1068, 4
        %v1224 = vsel %vm731, %v1220, %v1223
        %v1225 = vrot.slane %v1069, 4
        %v1226 = vsel %vm731, %v1221, %v1225
        %v1227 = vrot.slane %v1070, 4
        %v1228 = vsel %vm731, %v1223, %v1227
        %v1241 = vrot.slane %v1095, 4
        %v1242 = vrot.slane %v1096, 4
        %v1243 = vrot.slane %v1097, 4
        %v1244 = vsel %vm731, %v1241, %v1243
        %v1245 = vrot.slane %v1098, 4
        %v1246 = vsel %vm731, %v1242, %v1245
        %v1247 = vrot.slane %v1099, 4
        %v1248 = vsel %vm731, %v1243, %v1247
        %v1249 = vrot.slane %v1100, 4
        %v1250 = vsel %vm731, %v1245, %v1249
        %v1263 = vrot.slane %v1155, 4
        %v1264 = vrot.slane %v1156, 4
        %v1265 = vrot.slane %v1157, 4
        %v1266 = vsel %vm731, %v1263, %v1265
        %v1267 = vrot.slane %v1158, 4
        %v1268 = vsel %vm731, %v1264, %v1267
        %v1269 = vrot.slane %v1159, 4
        %v1270 = vsel %vm731, %v1265, %v1269
        %v1271 = vrot.slane %v1160, 4
        %v1272 = vsel %vm731, %v1267, %v1271
        %v1279 = vsel %vm731, %v979, %v1197
        %v1280 = vsel %vm731, %v980, %v1198
        %v1281 = vsel %vm731, %v1039, %v1219
        %v1282 = vsel %vm731, %v1040, %v1220
        %v1283 = vsel %vm731, %v935, %v1241
        %v1284 = vsel %vm731, %v937, %v1242
        %v1285 = vsel %vm731, %v1129, %v1263
        %v1286 = vsel %vm731, %v1130, %v1264
        %v1287 = vld [vmem:[#allocation12] sm:$0xff]
        %v1288 = vld [vmem:[#allocation12 + $0x8] sm:$0xff]
        %v1289 = vld [vmem:[#allocation12 + $0x10] sm:$0xf]
        %1291 = vset.pattern.permute.xlu0 0
        %1292 = vperm.xlu0 %1291, %v1287
        %v1293 = vpop.permute.xlu0 %1292
        %1296 = vset.pattern.permute.xlu0 0
        %1297 = vperm.xlu0 %1296, %v1288
        %v1298 = vpop.permute.xlu0 %1297
        %1301 = vset.pattern.permute.xlu0 0
        %1302 = vperm.xlu0 %1301, %v1289
        %v1303 = vpop.permute.xlu0 %1302
        %v1306 = vsel %vm840, %v940, 0
        %v1309 = vsel %vm840, %v942, 0
        %v1312 = vsel %vm840, %v944, 0
        %v1315 = vsel %vm731, %v1189, 0
        %v1318 = vsel %vm731, %v1190, 0
        %1320 = vmatprep.subr.mxu0 %v976
        %1321 = vmatpush1.msra.mxu0 %v975
        %1322 = vmatprep.subr.mxu0 %v978
        %1323 = vmatpush1.msra.mxu0 %v977
        %1324 = vmatprep.subr.mxu0 %v1280
        %1325 = vmatpush1.msra.mxu0 %v1279
        %1326 = vmatprep.subr.mxu0 %v1202
        %1327 = vmatpush1.msra.mxu0 %v1200
        %1328 = vmatprep.subr.mxu0 %v1206
        %1329 = vmatpush1.msra.mxu0 %v1204
        %1330 = vmatprep.subr.mxu0 %v1036
        %1331 = vmatpush1.msra.mxu0 %v1035
        %1332 = vmatprep.subr.mxu0 %v1038
        %1333 = vmatpush1.msra.mxu0 %v1037
        %1334 = vmatprep.subr.mxu0 %v1282
        %1335 = vmatpush1.msra.mxu0 %v1281
        %1336 = vmatprep.subr.mxu0 %v1224
        %1337 = vmatpush1.msra.mxu0 %v1222
        %1338 = vmatprep.subr.mxu0 %v1228
        %1339 = vmatpush1.msra.mxu0 %v1226
        %1340 = vmatprep.subr.mxu0 %v925
        %1341 = vmatpush1.msra.mxu0 %v923
        %1342 = vmatprep.subr.mxu0 %v931
        %1343 = vmatpush1.msra.mxu0 %v929
        %1344 = vmatprep.subr.mxu0 %v1284
        %1345 = vmatpush1.msra.mxu0 %v1283
        %1346 = vmatprep.subr.mxu0 %v1246
        %1347 = vmatpush1.msra.mxu0 %v1244
        %1348 = vmatprep.subr.mxu0 %v1250
        %1349 = vmatpush1.msra.mxu0 %v1248
        %1350 = vmatprep.subr.mxu0 %v1126
        %1351 = vmatpush1.msra.mxu0 %v1125
        %1352 = vmatprep.subr.mxu0 %v1128
        %1353 = vmatpush1.msra.mxu0 %v1127
        %1354 = vmatprep.subr.mxu0 %v1286
        %1355 = vmatpush1.msra.mxu0 %v1285
        %1356 = vmatprep.subr.mxu0 %v1268
        %1357 = vmatpush1.msra.mxu0 %v1266
        %1358 = vmatprep.subr.mxu0 %v1272
        %1359 = vmatpush1.msra.mxu0 %v1270
        %1360 = vmatprep.subr.mxu0 %v1186
        %1361 = vmatpush1.msra.mxu0 %v1185
        %1362 = vmatprep.subr.mxu0 %v1188
        %1363 = vmatpush1.msra.mxu0 %v1187
        %1364 = vmatprep.subr.mxu0 %v1318
        %1365 = vmatpush1.msra.mxu0 %v1315
        %1366 = vmatprep.subr.mxu0 0.0
        %1367 = vmatpush1.msra.mxu0 0.0
        %1368 = vmatprep.subr.mxu0 0.0
        %1369 = vmatpush1.msra.mxu0 0.0
        %1370 = vmatprep.subr.mxu0 0.0
        %1371 = vmatpush1.msra.mxu0 0.0
        %1372 = vmatprep.subr.mxu0 0.0
        %1373 = vmatpush1.msra.mxu0 0.0
        %1374 = vmatprep.subr.mxu0 0.0
        %1375 = vmatpush1.msra.mxu0 0.0
        %1376 = vmatprep.subr.mxu0 0.0
        %1377 = vmatpush1.msra.mxu0 0.0
        %1378 = vmatprep.subr.mxu0 0.0
        %1379 = vmatpush1.msra.mxu0 0.0
        %1380 = vmatprep.subr.mxu0 0.0
        %1381 = vmatpush1.msra.mxu0 0.0
        %1382 = vmatprep.subr.mxu0 0.0
        %1383 = vmatpush1.msra.mxu0 0.0
        %1384 = vmatprep.mubr.f32.mxu0 %v1306
        %1385 = vmatmul.mubr.f32.gmra.mrb[0].mxu0 %v939
        %v1386 = vpop.f32.mrb[0].mxu0
        %v1387 = vadd.f32 %v1293, %v1386
        %v1388 = vpop.f32.mrb[0].mxu0
        %v1389 = vadd.f32 %v1293, %v1388
        %1390 = vmatprep.mubr.f32.mxu0 %v1309
        %1391 = vmatmul.mubr.f32.gmra.mrb[0].mxu0 %v941
        %v1392 = vpop.f32.mrb[0].mxu0
        %v1393 = vadd.f32 %v1298, %v1392
        %v1394 = vpop.f32.mrb[0].mxu0
        %v1395 = vadd.f32 %v1298, %v1394
        %1396 = vmatprep.mubr.f32.mxu0 %v1312
        %1397 = vmatmul.mubr.f32.gmra.mrb[0].mxu0 %v943
        %v1398 = vpop.f32.mrb[0].mxu0
        %v1399 = vadd.f32 %v1303, %v1398
        %v1400 = vpop.f32.mrb[0].mxu0
        %v1401 = vadd.f32 %v1303, %v1400
        %1402 = vdwg.mxu0
        %v1403 = vadd.f32 %v375, %v1387
        %v1404 = vadd.f32 %v376, %v1389
        %v1405 = vadd.f32 %v377, %v1393
        %v1406 = vadd.f32 %v378, %v1395
        %v1407 = vadd.f32 %v379, %v1399
        %v1408 = vadd.f32 %v380, %v1401
        %1409 = vst [vmem:[%s370] sm:$0xff] %v1403
        %1410 = vst [vmem:[%s370 + $0x8] sm:$0xff] %v1404
        %1411 = vst [vmem:[%s370 + $0x10] sm:$0xff] %v1405
        %1412 = vst [vmem:[%s370 + $0x18] sm:$0xff] %v1406
        %1413 = vst [vmem:[%s370 + $0x20] sm:$0xf] %v1407
        %1414 = vst [vmem:[%s370 + $0x28] sm:$0xf] %v1408
        %s1415 = sand.u32 %s188, 1
        %s1416 = scalar_lea.sflag [#allocation5], %s1415
        %s1417 = sand.u32 %s188, 1
        %s1418 = smul.addr %s1417, 48
        %s1419 = scalar_lea.vmem [#allocation14], %s1418
        // Predicated region
        $region73: #{rdb_forward_nchw.11} parent=47 // pred_check
          %p1420 = pneg %p198
        $region74: #{rdb_forward_nchw.11} parent=47 // pred_check_branch
          %1422 = sbr.rel (%p1420) target = $region76
        $region75: #{rdb_forward_nchw.11} parent=47 // pred_region
          %s1424 = ssub.s32 768, 768
          %1425 = vsyncadd %s1416, %s1424
          %s1426 = smul.addr %s28, 6
          %s1427 = smul.addr %s1426, 128
          %s1428 = scalar_lea.hbm %s7, %s1427
          %s1429 = sshll.u32 %s1419, 4
          %s1430 = int_to_ptr.vmem [resolvable:$true] %s1429
          %1435 = dma.vmem_to_hbm [thread:$0]  %s1430, 768, %s1428, %s1416, 256, 256, 16
        $region76: #{rdb_forward_nchw.11} parent=47 // pred_fallthru
          _
      $region48: #{rdb_forward_nchw.11} parent=5 // pred_fallthru
        _
      %p1436 = scmp.le.s32.totalorder 2, %s23
      // Predicated region
      $region77: #{rdb_forward_nchw.11} parent=5 // pred_check
        %p1437 = pneg %p1436
      $region78: #{rdb_forward_nchw.11} parent=5 // pred_check_branch
        %1439 = sbr.rel (%p1437) target = $region80
      $region79: #{rdb_forward_nchw.11} parent=5 // pred_region
        %s1440 = ssub.s32 %s23, 2
        // Predicated region
        $region81: #{rdb_forward_nchw.11} parent=79 // pred_check
          %p1441 = pneg %p204
        $region82: #{rdb_forward_nchw.11} parent=79 // pred_check_branch
          %1443 = sbr.rel (%p1441) target = $region84
        $region83: #{rdb_forward_nchw.11} parent=79 // pred_region
          %s1444 = sand.u32 %s189, 1
          %s1445 = scalar_lea.sflag [#allocation5], %s1444
          %s1446 = sand.u32 %s189, 1
          %s1447 = smul.addr %s1446, 48
          %s1448 = scalar_lea.vmem [#allocation14], %s1447
          %1449 = dma.done %s1445, 768
        $region84: #{rdb_forward_nchw.11} parent=79 // pred_fallthru
          _
      $region80: #{rdb_forward_nchw.11} parent=5 // pred_fallthru
        _
    $region6: #{rdb_forward_nchw.11} parent=1 // loop_footer
      %s27 = sadd.s32 1, %s23
    $region7: #{rdb_forward_nchw.11} parent=1 // loop_footer_branch
      %22 = sbr.rel target = $region3
    $region8: #{rdb_forward_nchw.11} parent=1 // loop_exit
      _
    %1450 = vsyncpa [#allocation4], 1
    %s1451 = scalar_lea.sflag [#allocation4], 1
    %1452 = vsyncpa %s1451, 1
    %1453 = vsyncpa [#allocation7], 1
    %1454 = vsyncpa [#allocation10], 1
    %1455 = vsyncpa [#allocation13], 1
    %1456 = vsyncpa [#allocation5], 1
    %s1457 = scalar_lea.sflag [#allocation5], 1
    %1458 = vsyncpa %s1457, 1

// kernel: rdb_forward_nchw.17
$region0: #{rdb_forward_nchw.17}
  #allocation0 [shape = 'u32[]', space=smem, size = 0x4, offset = 0x4, fixed_abs, tag = 'smem constant byte address 0x4 - core index']
  #allocation1 [shape = 'u32[144,128]{1,0:T(1,128)}', space=vmem, size = 0x12000, scoped, tag = 'internal scratch']
  %s0 = inlined_call_operand.hbm [shape: f32[2,4,256], index: 0, kind: input, shape index: {}]
  %s1 = inlined_call_operand.hbm [shape: f32[9,256], index: 1, kind: input, shape index: {}]
  %s2 = inlined_call_operand.hbm [shape: f32[4,36], index: 2, kind: input, shape index: {}]
  %s3 = inlined_call_operand.hbm [shape: f32[4,1], index: 3, kind: input, shape index: {}]
  %s4 = inlined_call_operand.hbm [shape: f32[2,4,256], index: 4, kind: input, shape index: {}]
  %s5 = inlined_call_operand.hbm [shape: f32[2,4,256], index: 5, kind: output, shape index: {}]
  %s6 = sld [smem:[#allocation0]]
  $region73: #{rdb_forward_nchw.17} parent=0
    _
  %s8 = ssub.s32 1, %s6
  %s9 = scalar_select 0, %s8, %s6
  $region1: #{rdb_forward_nchw.17} parent=0
    #allocation2 [shape = 'u8[8192]{0}', space=vmem, size = 0x2000, scoped, tag = 'input window, operand 0']
    #allocation3 [shape = 's32[2]{0}', space=sflag, size = 0x8, scoped, tag = 'scoped memory for rdb_forward_nchw.17']
    #allocation4 [shape = 's32[2]{0}', space=sflag, size = 0x8, scoped, tag = 'scoped memory for rdb_forward_nchw.17']
    #allocation5 [shape = 'u8[16384]{0}', space=vmem, size = 0x4000, scoped, tag = 'input window, operand 1, single buffered']
    #allocation6 [shape = 's32[1]{0}', space=sflag, size = 0x4, scoped, tag = 'scoped memory for rdb_forward_nchw.17']
    #allocation7 [shape = 'u8[2048]{0}', space=vmem, size = 0x800, scoped, tag = 'input window, operand 2, single buffered']
    #allocation8 [shape = 'u8[2048]{0}', space=vmem, size = 0x800, scoped, tag = 'input window, operand 3, single buffered']
    #allocation9 [shape = 's32[1]{0}', space=sflag, size = 0x4, scoped, tag = 'scoped memory for rdb_forward_nchw.17']
    #allocation10 [shape = 'u8[8192]{0}', space=vmem, size = 0x2000, scoped, tag = 'input window, operand 4']
    #allocation11 [shape = 'u8[8192]{0}', space=vmem, size = 0x2000, scoped, tag = 'output window, operand 0']
    %10 = vsyncpa [#allocation3], 0
    %s11 = scalar_lea.sflag [#allocation3], 1
    %12 = vsyncpa %s11, 0
    %13 = vsyncpa [#allocation6], 0
    %14 = vsyncpa [#allocation9], 0
    %15 = vsyncpa [#allocation4], 0
    %s16 = scalar_lea.sflag [#allocation4], 1
    %17 = vsyncpa %s16, 0
    loop: start=0, step=1, limit=4
    $region2: #{rdb_forward_nchw.17} parent=1 // loop_pre_header
      _
    $region3: #{rdb_forward_nchw.17} parent=1 // loop_header
      %s19 = sphi 0, %s23
      %p20 = scmp.ge.s32.totalorder %s19, 4
      %s29 = sphi 0, %s31
      %s32 = sphi 0, %s29
      %s33 = sphi 0, %s32
      %s49 = sphi 0, %s33
      %s53 = sphi 0, %s53
      %s55 = sphi 0, %s53
      %s56 = sphi 0, %s55
      %s70 = sphi 0, %s56
      %s74 = sphi 0, %s74
      %s76 = sphi 0, %s74
      %s77 = sphi 0, %s76
      %s91 = sphi 0, %s77
      %s95 = sphi 0, %s95
      %s97 = sphi 0, %s95
      %s98 = sphi 0, %s97
      %s112 = sphi 0, %s98
      %s118 = sphi 0, %s120
      %s121 = sphi 0, %s118
      %s122 = sphi 0, %s121
      %s138 = sphi 0, %s122
      %s144 = sphi 0, %s146
      %s147 = sphi 0, %s144
      %s148 = sphi 0, %s147
      %s164 = sphi 0, %s148
    $region4: #{rdb_forward_nchw.17} parent=1 // loop_header_branch
      %22 = sbr.rel (%p20) target = $region8
    $region5: #{rdb_forward_nchw.17} parent=1 // loop_body
      %s24 = ssub.s32 %s19, 1
      %s25 = ssub.s32 %s19, 2
      %s26 = sadd.s32 %s19, 1
      %s27 = ssub.s32 %s19, %s26
      %p28 = scmp.eq.s32.totalorder %s27, 0
      %s30 = sadd.s32 %s29, 1
      %s31 = scalar_select %p28, %s29, %s30
      %p34 = pneg %p28
      %p35 = scmp.eq.s32.totalorder %s19, 1
      %p36 = por %p34, %p35
      %p37 = scmp.ne.s32.totalorder %s29, %s32
      %p38 = scmp.eq.s32.totalorder %s19, 0
      %p39 = por %p37, %p38
      %p40 = scmp.ne.s32.totalorder %s29, %s32
      %p41 = scmp.eq.s32.totalorder %s24, 1
      %p42 = por %p40, %p41
      %p43 = scmp.ne.s32.totalorder %s32, %s33
      %p44 = scmp.eq.s32.totalorder %s24, 0
      %p45 = por %p43, %p44
      %p46 = scmp.ne.s32.totalorder %s32, %s33
      %p47 = scmp.eq.s32.totalorder %s25, 1
      %p48 = por %p46, %p47
      %p50 = scmp.ne.s32.totalorder %s33, %s49
      %p51 = scmp.eq.s32.totalorder %s25, 0
      %p52 = por %p50, %p51
      %s54 = sadd.s32 %s53, 1
      %p57 = scmp.eq.s32.totalorder %s19, 1
      %p58 = scmp.ne.s32.totalorder %s53, %s55
      %p59 = scmp.eq.s32.totalorder %s19, 0
      %p60 = por %p58, %p59
      %p61 = scmp.ne.s32.totalorder %s53, %s55
      %p62 = scmp.eq.s32.totalorder %s24, 1
      %p63 = por %p61, %p62
      %p64 = scmp.ne.s32.totalorder %s55, %s56
      %p65 = scmp.eq.s32.totalorder %s24, 0
      %p66 = por %p64, %p65
      %p67 = scmp.ne.s32.totalorder %s55, %s56
      %p68 = scmp.eq.s32.totalorder %s25, 1
      %p69 = por %p67, %p68
      %p71 = scmp.ne.s32.totalorder %s56, %s70
      %p72 = scmp.eq.s32.totalorder %s25, 0
      %p73 = por %p71, %p72
      %s75 = sadd.s32 %s74, 1
      %p78 = scmp.eq.s32.totalorder %s19, 1
      %p79 = scmp.ne.s32.totalorder %s74, %s76
      %p80 = scmp.eq.s32.totalorder %s19, 0
      %p81 = por %p79, %p80
      %p82 = scmp.ne.s32.totalorder %s74, %s76
      %p83 = scmp.eq.s32.totalorder %s24, 1
      %p84 = por %p82, %p83
      %p85 = scmp.ne.s32.totalorder %s76, %s77
      %p86 = scmp.eq.s32.totalorder %s24, 0
      %p87 = por %p85, %p86
      %p88 = scmp.ne.s32.totalorder %s76, %s77
      %p89 = scmp.eq.s32.totalorder %s25, 1
      %p90 = por %p88, %p89
      %p92 = scmp.ne.s32.totalorder %s77, %s91
      %p93 = scmp.eq.s32.totalorder %s25, 0
      %p94 = por %p92, %p93
      %s96 = sadd.s32 %s95, 1
      %p99 = scmp.eq.s32.totalorder %s19, 1
      %p100 = scmp.ne.s32.totalorder %s95, %s97
      %p101 = scmp.eq.s32.totalorder %s19, 0
      %p102 = por %p100, %p101
      %p103 = scmp.ne.s32.totalorder %s95, %s97
      %p104 = scmp.eq.s32.totalorder %s24, 1
      %p105 = por %p103, %p104
      %p106 = scmp.ne.s32.totalorder %s97, %s98
      %p107 = scmp.eq.s32.totalorder %s24, 0
      %p108 = por %p106, %p107
      %p109 = scmp.ne.s32.totalorder %s97, %s98
      %p110 = scmp.eq.s32.totalorder %s25, 1
      %p111 = por %p109, %p110
      %p113 = scmp.ne.s32.totalorder %s98, %s112
      %p114 = scmp.eq.s32.totalorder %s25, 0
      %p115 = por %p113, %p114
      %s116 = ssub.s32 %s19, %s26
      %p117 = scmp.eq.s32.totalorder %s116, 0
      %s119 = sadd.s32 %s118, 1
      %s120 = scalar_select %p117, %s118, %s119
      %p123 = pneg %p117
      %p124 = scmp.eq.s32.totalorder %s19, 1
      %p125 = por %p123, %p124
      %p126 = scmp.ne.s32.totalorder %s118, %s121
      %p127 = scmp.eq.s32.totalorder %s19, 0
      %p128 = por %p126, %p127
      %p129 = scmp.ne.s32.totalorder %s118, %s121
      %p130 = scmp.eq.s32.totalorder %s24, 1
      %p131 = por %p129, %p130
      %p132 = scmp.ne.s32.totalorder %s121, %s122
      %p133 = scmp.eq.s32.totalorder %s24, 0
      %p134 = por %p132, %p133
      %p135 = scmp.ne.s32.totalorder %s121, %s122
      %p136 = scmp.eq.s32.totalorder %s25, 1
      %p137 = por %p135, %p136
      %p139 = scmp.ne.s32.totalorder %s122, %s138
      %p140 = scmp.eq.s32.totalorder %s25, 0
      %p141 = por %p139, %p140
      %s142 = ssub.s32 %s19, %s26
      %p143 = scmp.eq.s32.totalorder %s142, 0
      %s145 = sadd.s32 %s144, 1
      %s146 = scalar_select %p143, %s144, %s145
      %p149 = pneg %p143
      %p150 = scmp.eq.s32.totalorder %s19, 1
      %p151 = por %p149, %p150
      %p152 = scmp.ne.s32.totalorder %s144, %s147
      %p153 = scmp.eq.s32.totalorder %s19, 0
      %p154 = por %p152, %p153
      %p155 = scmp.ne.s32.totalorder %s144, %s147
      %p156 = scmp.eq.s32.totalorder %s24, 1
      %p157 = por %p155, %p156
      %p158 = scmp.ne.s32.totalorder %s147, %s148
      %p159 = scmp.eq.s32.totalorder %s24, 0
      %p160 = por %p158, %p159
      %p161 = scmp.ne.s32.totalorder %s147, %s148
      %p162 = scmp.eq.s32.totalorder %s25, 1
      %p163 = por %p161, %p162
      %p165 = scmp.ne.s32.totalorder %s148, %s164
      %p166 = scmp.eq.s32.totalorder %s25, 0
      %p167 = por %p165, %p166
      %p168 = scmp.le.s32.totalorder 1, %s19
      %p169 = scmp.lt.s32.totalorder %s19, 3
      %p170 = pnand %p168, %p169
      %p171 = pneg %p170
      // Predicated region
      $region9: #{rdb_forward_nchw.17} parent=5 // pred_check
        _
      $region10: #{rdb_forward_nchw.17} parent=5 // pred_check_branch
        %173 = sbr.rel (%p170) target = $region12
      $region11: #{rdb_forward_nchw.17} parent=5 // pred_region
        %s174 = ssub.s32 %s19, 1
        // Predicated region
        $region13: #{rdb_forward_nchw.17} parent=11 // pred_check
          %p175 = pneg %p66
        $region14: #{rdb_forward_nchw.17} parent=11 // pred_check_branch
          %177 = sbr.rel (%p175) target = $region16
        $region15: #{rdb_forward_nchw.17} parent=11 // pred_region
          %s179 = ssub.s32 512, 512
          %180 = vsyncadd [#allocation6], %s179
          %s181 = sshll.u32 [#allocation5], 4
          %s182 = int_to_ptr.vmem [resolvable:$true] %s181
          %187 = dma.hbm_to_vmem [thread:$0]  %s1, 512, %s182, [#allocation6], 256, 256, 16
        $region16: #{rdb_forward_nchw.17} parent=11 // pred_fallthru
          _
        // Predicated region
        $region17: #{rdb_forward_nchw.17} parent=11 // pred_check
          %p188 = pneg %p87
        $region18: #{rdb_forward_nchw.17} parent=11 // pred_check_branch
          %190 = sbr.rel (%p188) target = $region20
        $region19: #{rdb_forward_nchw.17} parent=11 // pred_region
          %s192 = ssub.s32 64, 64
          %193 = vsyncadd [#allocation6], %s192
          %s195 = sshll.u32 [#allocation7], 4
          %s196 = int_to_ptr.vmem [resolvable:$true] %s195
          %198 = dma.hbm_to_vmem [thread:$0]  %s2, 64, %s196, [#allocation6]
        $region20: #{rdb_forward_nchw.17} parent=11 // pred_fallthru
          _
        // Predicated region
        $region21: #{rdb_forward_nchw.17} parent=11 // pred_check
          %p199 = pneg %p108
        $region22: #{rdb_forward_nchw.17} parent=11 // pred_check_branch
          %201 = sbr.rel (%p199) target = $region24
        $region23: #{rdb_forward_nchw.17} parent=11 // pred_region
          %s203 = ssub.s32 64, 64
          %204 = vsyncadd [#allocation9], %s203
          %s206 = sshll.u32 [#allocation8], 4
          %s207 = int_to_ptr.vmem [resolvable:$true] %s206
          %209 = dma.hbm_to_vmem [thread:$0]  %s3, 64, %s207, [#allocation9]
        $region24: #{rdb_forward_nchw.17} parent=11 // pred_fallthru
          _
      $region12: #{rdb_forward_nchw.17} parent=5 // pred_fallthru
        _
      %p210 = scmp.lt.s32.totalorder %s19, 2
      // Predicated region
      $region25: #{rdb_forward_nchw.17} parent=5 // pred_check
        %p211 = pneg %p210
      $region26: #{rdb_forward_nchw.17} parent=5 // pred_check_branch
        %213 = sbr.rel (%p211) target = $region28
      $region27: #{rdb_forward_nchw.17} parent=5 // pred_region
        // Predicated region
        $region29: #{rdb_forward_nchw.17} parent=27 // pred_check
          %p214 = pneg %p39
        $region30: #{rdb_forward_nchw.17} parent=27 // pred_check_branch
          %216 = sbr.rel (%p214) target = $region32
        $region31: #{rdb_forward_nchw.17} parent=27 // pred_region
          %s217 = sand.u32 %s19, 1
          %s218 = scalar_lea.sflag [#allocation3], %s217
          %s219 = sand.u32 %s29, 1
          %s220 = smul.addr %s219, 8
          %s221 = scalar_lea.vmem [#allocation2], %s220
          %s223 = ssub.s32 128, 128
          %224 = vsyncadd %s218, %s223
          %s225 = smul.addr %s19, 2
          %s226 = smul.addr %s225, 64
          %s227 = scalar_lea.hbm %s0, %s226
          %s229 = sshll.u32 %s221, 4
          %s230 = int_to_ptr.vmem [resolvable:$true] %s229
          %232 = dma.hbm_to_vmem [thread:$0]  %s227, 128, %s230, %s218
        $region32: #{rdb_forward_nchw.17} parent=27 // pred_fallthru
          _
        // Predicated region
        $region33: #{rdb_forward_nchw.17} parent=27 // pred_check
          %p233 = pneg %p128
        $region34: #{rdb_forward_nchw.17} parent=27 // pred_check_branch
          %235 = sbr.rel (%p233) target = $region36
        $region35: #{rdb_forward_nchw.17} parent=27 // pred_region
          %s236 = sand.u32 %s19, 1
          %s237 = scalar_lea.sflag [#allocation3], %s236
          %s238 = sand.u32 %s118, 1
          %s239 = smul.addr %s238, 8
          %s240 = scalar_lea.vmem [#allocation10], %s239
          %s242 = ssub.s32 128, 128
          %243 = vsyncadd %s237, %s242
          %s244 = smul.addr %s19, 2
          %s245 = smul.addr %s244, 64
          %s246 = scalar_lea.hbm %s4, %s245
          %s248 = sshll.u32 %s240, 4
          %s249 = int_to_ptr.vmem [resolvable:$true] %s248
          %251 = dma.hbm_to_vmem [thread:$0]  %s246, 128, %s249, %s237
        $region36: #{rdb_forward_nchw.17} parent=27 // pred_fallthru
          _
      $region28: #{rdb_forward_nchw.17} parent=5 // pred_fallthru
        _
      %p252 = scmp.le.s32.totalorder 1, %s19
      %p253 = scmp.lt.s32.totalorder %s19, 3
      %p254 = pnand %p252, %p253
      %p255 = pneg %p254
      // Predicated region
      $region37: #{rdb_forward_nchw.17} parent=5 // pred_check
        _
      $region38: #{rdb_forward_nchw.17} parent=5 // pred_check_branch
        %257 = sbr.rel (%p254) target = $region40
      $region39: #{rdb_forward_nchw.17} parent=5 // pred_region
        %s258 = ssub.s32 %s19, 1
        %s259 = sand.u32 %s24, 1
        %s260 = scalar_lea.sflag [#allocation3], %s259
        %s261 = sand.u32 %s32, 1
        %s262 = smul.addr %s261, 8
        %s263 = scalar_lea.vmem [#allocation2], %s262
        // Predicated region
        $region41: #{rdb_forward_nchw.17} parent=39 // pred_check
          %p264 = pneg %p45
        $region42: #{rdb_forward_nchw.17} parent=39 // pred_check_branch
          %266 = sbr.rel (%p264) target = $region44
        $region43: #{rdb_forward_nchw.17} parent=39 // pred_region
          %267 = dma.done %s260, 128
        $region44: #{rdb_forward_nchw.17} parent=39 // pred_fallthru
          _
        // Predicated region
        $region45: #{rdb_forward_nchw.17} parent=39 // pred_check
          %p268 = pneg %p66
        $region46: #{rdb_forward_nchw.17} parent=39 // pred_check_branch
          %270 = sbr.rel (%p268) target = $region48
        $region47: #{rdb_forward_nchw.17} parent=39 // pred_region
          %271 = dma.done [#allocation6], 512
        $region48: #{rdb_forward_nchw.17} parent=39 // pred_fallthru
          _
        // Predicated region
        $region49: #{rdb_forward_nchw.17} parent=39 // pred_check
          %p272 = pneg %p87
        $region50: #{rdb_forward_nchw.17} parent=39 // pred_check_branch
          %274 = sbr.rel (%p272) target = $region52
        $region51: #{rdb_forward_nchw.17} parent=39 // pred_region
          %275 = dma.done [#allocation6], 64
        $region52: #{rdb_forward_nchw.17} parent=39 // pred_fallthru
          _
        // Predicated region
        $region53: #{rdb_forward_nchw.17} parent=39 // pred_check
          %p276 = pneg %p108
        $region54: #{rdb_forward_nchw.17} parent=39 // pred_check_branch
          %278 = sbr.rel (%p276) target = $region56
        $region55: #{rdb_forward_nchw.17} parent=39 // pred_region
          %279 = dma.done [#allocation9], 64
        $region56: #{rdb_forward_nchw.17} parent=39 // pred_fallthru
          _
        %s280 = sand.u32 %s24, 1
        %s281 = scalar_lea.sflag [#allocation3], %s280
        %s282 = sand.u32 %s121, 1
        %s283 = smul.addr %s282, 8
        %s284 = scalar_lea.vmem [#allocation10], %s283
        // Predicated region
        $region57: #{rdb_forward_nchw.17} parent=39 // pred_check
          %p285 = pneg %p134
        $region58: #{rdb_forward_nchw.17} parent=39 // pred_check_branch
          %287 = sbr.rel (%p285) target = $region60
        $region59: #{rdb_forward_nchw.17} parent=39 // pred_region
          %288 = dma.done %s281, 128
        $region60: #{rdb_forward_nchw.17} parent=39 // pred_fallthru
          _
        %s289 = sand.u32 %s24, 1
        %s290 = scalar_lea.sflag [#allocation3], %s289
        %s291 = sand.u32 %s32, 1
        %s292 = smul.addr %s291, 8
        %s293 = scalar_lea.vmem [#allocation2], %s292
        %p294 = pneg %p45
        %p295 = pneg %p42
        %p296 = pneg %p66
        %p297 = pneg %p63
        %p298 = pneg %p87
        %p299 = pneg %p84
        %p300 = pneg %p108
        %p301 = pneg %p105
        %s302 = sand.u32 %s24, 1
        %s303 = scalar_lea.sflag [#allocation3], %s302
        %s304 = sand.u32 %s121, 1
        %s305 = smul.addr %s304, 8
        %s306 = scalar_lea.vmem [#allocation10], %s305
        %p307 = pneg %p134
        %p308 = pneg %p131
        %p309 = pneg %p160
        %p310 = pneg %p157
        %s311 = sand.u32 %s147, 1
        %s312 = scalar_lea.sflag [#allocation4], %s311
        %s313 = sand.u32 %s147, 1
        %s314 = smul.addr %s313, 8
        %s315 = scalar_lea.vmem [#allocation11], %s314
        %v316 = vld [vmem:[#allocation5] sm:$0xff]
        %v317 = vld [vmem:[#allocation5 + $0x8] sm:$0xff]
        %v318 = vld [vmem:[#allocation5 + $0x10] sm:$0x1]
        %v319 = vld [vmem:[#allocation5 + $0x18] sm:$0x1]
        %v320 = vld [vmem:[%s263] sm:$0xff]
        %v321 = vld [vmem:[#allocation7] sm:$0xf]
        %v323 = vcombine.high %v320, %v320
        %324 = vrot.lane.b32.xlu0 %v320, 17
        %v325 = vpop.permute.xlu0 %324
        %326 = vrot.lane.b32.xlu0 %v323, 17
        %v327 = vpop.permute.xlu0 %326
        %vm328 = vcmask 138240
        %v329 = vsel %vm328, %v325, %v327
        %v332 = vsel %vm328, 0.0, %v325
        %v333 = vlaneseq
        %v334 = vshrl.u32 %v333, 7
        %v335 = vsub.s32 0, %v334
        %v336 = vrot.slane %v316, %v335
        %v337 = vlaneseq
        %v338 = vshrl.u32 %v337, 7
        %v339 = vsub.s32 0, %v338
        %v340 = vrot.slane %v317, %v339
        %v341 = vmul.f32 %v332, %v336
        %v342 = vmul.f32 %v329, %v340
        %343 = vrot.lane.b32.xlu0 %v320, 16
        %v344 = vpop.permute.xlu0 %343
        %345 = vrot.lane.b32.xlu0 %v323, 16
        %v346 = vpop.permute.xlu0 %345
        %vm347 = vcmask 130048
        %v348 = vsel %vm347, %v344, %v346
        %v351 = vsel %vm347, 0.0, %v344
        %v352 = vlaneseq
        %v353 = vshrl.u32 %v352, 7
        %v354 = vsub.s32 1, %v353
        %v355 = vrot.slane %v316, %v354
        %v356 = vlaneseq
        %v357 = vshrl.u32 %v356, 7
        %v358 = vsub.s32 1, %v357
        %v359 = vrot.slane %v317, %v358
        %v360 = vmul.f32 %v351, %v355
        %v361 = vmul.f32 %v348, %v359
        %362 = vrot.lane.b32.xlu0 %v320, 15
        %v363 = vpop.permute.xlu0 %362
        %364 = vrot.lane.b32.xlu0 %v323, 15
        %v365 = vpop.permute.xlu0 %364
        %vm366 = vcmask 121856
        %v367 = vsel %vm366, %v363, %v365
        %v370 = vsel %vm366, 0.0, %v363
        %v371 = vlaneseq
        %v372 = vshrl.u32 %v371, 7
        %v373 = vsub.s32 2, %v372
        %v374 = vrot.slane %v316, %v373
        %v375 = vlaneseq
        %v376 = vshrl.u32 %v375, 7
        %v377 = vsub.s32 2, %v376
        %v378 = vrot.slane %v317, %v377
        %v379 = vmul.f32 %v370, %v374
        %v380 = vmul.f32 %v367, %v378
        %381 = vrot.lane.b32.xlu0 %v320, 1
        %v382 = vpop.permute.xlu0 %381
        %383 = vrot.lane.b32.xlu0 %v323, 1
        %v384 = vpop.permute.xlu0 %383
        %vm385 = vcmask 7168
        %v386 = vsel %vm385, %v382, %v384
        %v389 = vsel %vm385, 0.0, %v382
        %v390 = vlaneseq
        %v391 = vshrl.u32 %v390, 7
        %v392 = vsub.s32 3, %v391
        %v393 = vrot.slane %v316, %v392
        %v394 = vlaneseq
        %v395 = vshrl.u32 %v394, 7
        %v396 = vsub.s32 3, %v395
        %v397 = vrot.slane %v317, %v396
        %v398 = vmul.f32 %v389, %v393
        %v399 = vmul.f32 %v386, %v397
        %400 = vrot.lane.b32.xlu0 %v320, 127
        %v401 = vpop.permute.xlu0 %400
        %402 = vrot.lane.b32.xlu0 %v323, 127
        %v403 = vpop.permute.xlu0 %402
        %vm404 = vcmask 1039360
        %v405 = vsel %vm404, %v401, %v403
        %v408 = vsel %vm404, %v403, 0.0
        %v409 = vlaneseq
        %v410 = vshrl.u32 %v409, 7
        %v411 = vsub.s32 5, %v410
        %v412 = vrot.slane %v316, %v411
        %v413 = vlaneseq
        %v414 = vshrl.u32 %v413, 7
        %v415 = vsub.s32 5, %v414
        %v416 = vrot.slane %v317, %v415
        %v417 = vmul.f32 %v405, %v412
        %v418 = vmul.f32 %v408, %v416
        %419 = vrot.lane.b32.xlu0 %v320, 113
        %v420 = vpop.permute.xlu0 %419
        %421 = vrot.lane.b32.xlu0 %v323, 113
        %v422 = vpop.permute.xlu0 %421
        %vm423 = vcmask 924672
        %v424 = vsel %vm423, %v420, %v422
        %v427 = vsel %vm423, %v422, 0.0
        %v428 = vlaneseq
        %v429 = vshrl.u32 %v428, 7
        %v430 = vsub.s32 6, %v429
        %v431 = vrot.slane %v316, %v430
        %v432 = vlaneseq
        %v433 = vshrl.u32 %v432, 7
        %v434 = vsub.s32 6, %v433
        %v435 = vrot.slane %v317, %v434
        %v436 = vmul.f32 %v424, %v431
        %v437 = vmul.f32 %v427, %v435
        %438 = vrot.lane.b32.xlu0 %v320, 112
        %v439 = vpop.permute.xlu0 %438
        %440 = vrot.lane.b32.xlu0 %v323, 112
        %v441 = vpop.permute.xlu0 %440
        %vm442 = vcmask 916480
        %v443 = vsel %vm442, %v439, %v441
        %v446 = vsel %vm442, %v441, 0.0
        %v447 = vlaneseq
        %v448 = vshrl.u32 %v447, 7
        %v449 = vsub.s32 7, %v448
        %v450 = vrot.slane %v316, %v449
        %v451 = vlaneseq
        %v452 = vshrl.u32 %v451, 7
        %v453 = vsub.s32 7, %v452
        %v454 = vrot.slane %v317, %v453
        %v455 = vmul.f32 %v443, %v450
        %v456 = vmul.f32 %v446, %v454
        %457 = vrot.lane.b32.xlu0 %v320, 111
        %v458 = vpop.permute.xlu0 %457
        %459 = vrot.lane.b32.xlu0 %v323, 111
        %v460 = vpop.permute.xlu0 %459
        %vm461 = vcmask 908288
        %v462 = vsel %vm461, %v458, %v460
        %v465 = vsel %vm461, %v460, 0.0
        %v466 = vlaneseq
        %v467 = vshrl.u32 %v466, 7
        %v468 = vsub.s32 0, %v467
        %v469 = vrot.slane %v318, %v468
        %v470 = vlaneseq
        %v471 = vshrl.u32 %v470, 7
        %v472 = vsub.s32 0, %v471
        %v473 = vrot.slane %v319, %v472
        %v474 = vmul.f32 %v462, %v469
        %v475 = vmul.f32 %v465, %v473
        %v478 = vrot.slane %v360, 4
        %v479 = vrot.slane %v361, 4
        %v484 = vrot.slane %v398, 4
        %v485 = vrot.slane %v399, 4
        %v491 = vrot.slane %v417, 4
        %v492 = vrot.slane %v418, 4
        %v497 = vrot.slane %v455, 4
        %v498 = vrot.slane %v456, 4
        %vm501 = vcmask 1043456
        %v502 = vsel %vm501, %v341, %v478
        %v503 = vsel %vm501, %v342, %v479
        %v504 = vsel %vm501, %v379, %v484
        %v505 = vsel %vm501, %v380, %v485
        %v506 = vsel %vm501, %v320, %v491
        %v507 = vsel %vm501, %v323, %v492
        %v508 = vsel %vm501, %v436, %v497
        %v509 = vsel %vm501, %v437, %v498
        %v510 = vld [vmem:[#allocation8] sm:$0xf]
        %512 = vset.pattern.permute.xlu0 0
        %513 = vperm.xlu0 %512, %v510
        %v514 = vpop.permute.xlu0 %513
        %vm516 = vcmask 293888
        %v518 = vsel %vm516, %v321, 0
        %v521 = vsel %vm501, %v474, 0
        %v524 = vsel %vm501, %v475, 0
        %526 = vmatprep.subr.mxu0 %v503
        %527 = vmatpush1.msra.mxu0 %v502
        %528 = vmatprep.subr.mxu0 %v505
        %529 = vmatpush1.msra.mxu0 %v504
        %530 = vmatprep.subr.mxu0 %v507
        %531 = vmatpush1.msra.mxu0 %v506
        %532 = vmatprep.subr.mxu0 %v509
        %533 = vmatpush1.msra.mxu0 %v508
        %534 = vmatprep.subr.mxu0 %v524
        %535 = vmatpush1.msra.mxu0 %v521
        %536 = vmatprep.subr.mxu0 0.0
        %537 = vmatpush1.msra.mxu0 0.0
        %538 = vmatprep.subr.mxu0 0.0
        %539 = vmatpush1.msra.mxu0 0.0
        %540 = vmatprep.subr.mxu0 0.0
        %541 = vmatpush1.msra.mxu0 0.0
        %542 = vmatprep.subr.mxu0 0.0
        %543 = vmatpush1.msra.mxu0 0.0
        %544 = vmatprep.subr.mxu0 0.0
        %545 = vmatpush1.msra.mxu0 0.0
        %546 = vmatprep.subr.mxu0 0.0
        %547 = vmatpush1.msra.mxu0 0.0
        %548 = vmatprep.subr.mxu0 0.0
        %549 = vmatpush1.msra.mxu0 0.0
        %550 = vmatprep.subr.mxu0 0.0
        %551 = vmatpush1.msra.mxu0 0.0
        %552 = vmatprep.subr.mxu0 0.0
        %553 = vmatpush1.msra.mxu0 0.0
        %554 = vmatprep.subr.mxu0 0.0
        %555 = vmatpush1.msra.mxu0 0.0
        %556 = vmatprep.subr.mxu0 0.0
        %557 = vmatpush1.msra.mxu0 0.0
        %558 = vmatprep.subr.mxu0 0.0
        %559 = vmatpush1.msra.mxu0 0.0
        %560 = vmatprep.subr.mxu0 0.0
        %561 = vmatpush1.msra.mxu0 0.0
        %562 = vmatprep.subr.mxu0 0.0
        %563 = vmatpush1.msra.mxu0 0.0
        %564 = vmatprep.subr.mxu0 0.0
        %565 = vmatpush1.msra.mxu0 0.0
        %566 = vmatprep.subr.mxu0 0.0
        %567 = vmatpush1.msra.mxu0 0.0
        %568 = vmatprep.subr.mxu0 0.0
        %569 = vmatpush1.msra.mxu0 0.0
        %570 = vmatprep.subr.mxu0 0.0
        %571 = vmatpush1.msra.mxu0 0.0
        %572 = vmatprep.subr.mxu0 0.0
        %573 = vmatpush1.msra.mxu0 0.0
        %574 = vmatprep.subr.mxu0 0.0
        %575 = vmatpush1.msra.mxu0 0.0
        %576 = vmatprep.subr.mxu0 0.0
        %577 = vmatpush1.msra.mxu0 0.0
        %578 = vmatprep.subr.mxu0 0.0
        %579 = vmatpush1.msra.mxu0 0.0
        %580 = vmatprep.subr.mxu0 0.0
        %581 = vmatpush1.msra.mxu0 0.0
        %582 = vmatprep.subr.mxu0 0.0
        %583 = vmatpush1.msra.mxu0 0.0
        %584 = vmatprep.subr.mxu0 0.0
        %585 = vmatpush1.msra.mxu0 0.0
        %586 = vmatprep.subr.mxu0 0.0
        %587 = vmatpush1.msra.mxu0 0.0
        %588 = vmatprep.subr.mxu0 0.0
        %589 = vmatpush1.msra.mxu0 0.0
        %590 = vmatprep.mubr.f32.mxu0 0.0
        %591 = vmatmul.mubr.f32.gmra.mrb[0].mxu0 %v518
        %v592 = vpop.f32.mrb[0].mxu0
        %v593 = vadd.f32 %v514, %v592
        %v594 = vpop.f32.mrb[0].mxu0
        %v595 = vadd.f32 %v514, %v594
        %596 = vdwg.mxu0
        %v597 = vld [vmem:[%s284] sm:$0xff]
        %v599 = vcombine.high %v597, %v597
        %v601 = vadd.f32 %v593, %v597
        %v602 = vadd.f32 %v595, %v599
        %v605 = vcombine.low %v601, %v602
        %607 = vst [vmem:[%s315] sm:$0xff] %v605
        %s608 = sand.u32 %s147, 1
        %s609 = scalar_lea.sflag [#allocation4], %s608
        %s610 = sand.u32 %s147, 1
        %s611 = smul.addr %s610, 8
        %s612 = scalar_lea.vmem [#allocation11], %s611
        // Predicated region
        $region61: #{rdb_forward_nchw.17} parent=39 // pred_check
          %p613 = pneg %p157
        $region62: #{rdb_forward_nchw.17} parent=39 // pred_check_branch
          %615 = sbr.rel (%p613) target = $region64
        $region63: #{rdb_forward_nchw.17} parent=39 // pred_region
          %s617 = ssub.s32 128, 128
          %618 = vsyncadd %s609, %s617
          %s619 = smul.addr %s24, 2
          %s620 = smul.addr %s619, 64
          %s621 = scalar_lea.hbm %s5, %s620
          %s623 = sshll.u32 %s612, 4
          %s624 = int_to_ptr.vmem [resolvable:$true] %s623
          %626 = dma.vmem_to_hbm [thread:$0]  %s624, 128, %s621, %s609
        $region64: #{rdb_forward_nchw.17} parent=39 // pred_fallthru
          _
      $region40: #{rdb_forward_nchw.17} parent=5 // pred_fallthru
        _
      %p627 = scmp.le.s32.totalorder 2, %s19
      // Predicated region
      $region65: #{rdb_forward_nchw.17} parent=5 // pred_check
        %p628 = pneg %p627
      $region66: #{rdb_forward_nchw.17} parent=5 // pred_check_branch
        %630 = sbr.rel (%p628) target = $region68
      $region67: #{rdb_forward_nchw.17} parent=5 // pred_region
        %s631 = ssub.s32 %s19, 2
        // Predicated region
        $region69: #{rdb_forward_nchw.17} parent=67 // pred_check
          %p632 = pneg %p163
        $region70: #{rdb_forward_nchw.17} parent=67 // pred_check_branch
          %634 = sbr.rel (%p632) target = $region72
        $region71: #{rdb_forward_nchw.17} parent=67 // pred_region
          %s635 = sand.u32 %s148, 1
          %s636 = scalar_lea.sflag [#allocation4], %s635
          %s637 = sand.u32 %s148, 1
          %s638 = smul.addr %s637, 8
          %s639 = scalar_lea.vmem [#allocation11], %s638
          %640 = dma.done %s636, 128
        $region72: #{rdb_forward_nchw.17} parent=67 // pred_fallthru
          _
      $region68: #{rdb_forward_nchw.17} parent=5 // pred_fallthru
        _
    $region6: #{rdb_forward_nchw.17} parent=1 // loop_footer
      %s23 = sadd.s32 1, %s19
    $region7: #{rdb_forward_nchw.17} parent=1 // loop_footer_branch
      %18 = sbr.rel target = $region3
    $region8: #{rdb_forward_nchw.17} parent=1 // loop_exit
      _
    %641 = vsyncpa [#allocation3], 1
    %s642 = scalar_lea.sflag [#allocation3], 1
    %643 = vsyncpa %s642, 1
    %644 = vsyncpa [#allocation6], 1
    %645 = vsyncpa [#allocation9], 1
    %646 = vsyncpa [#allocation4], 1
    %s647 = scalar_lea.sflag [#allocation4], 1
    %648 = vsyncpa %s647, 1

// kernel: rdb_forward_nchw.12
$region0: #{rdb_forward_nchw.12}
  #allocation0 [shape = 'u32[]', space=smem, size = 0x4, offset = 0x4, fixed_abs, tag = 'smem constant byte address 0x4 - core index']
  #allocation1 [shape = 'u32[144,128]{1,0:T(1,128)}', space=vmem, size = 0x12000, scoped, tag = 'internal scratch']
  #allocation2 [shape = 'f32[1]{0:T(128)S(6)}', space=smem, size = 0x200, scoped, tag = 'scoped memory for rdb_forward_nchw.12']
  %s0 = inlined_call_operand.hbm [shape: f32[2,4,256], index: 0, kind: input, shape index: {}]
  %s1 = inlined_call_operand.hbm [shape: f32[2,8,256], index: 1, kind: input, shape index: {}]
  %s2 = inlined_call_operand.hbm [shape: f32[2,20,256], index: 2, kind: input, shape index: {}]
  %s3 = inlined_call_operand.hbm [shape: f32[2,20,256], index: 3, kind: input, shape index: {}]
  %s4 = inlined_call_operand.hbm [shape: f32[9,256], index: 4, kind: input, shape index: {}]
  %s5 = inlined_call_operand.hbm [shape: f32[4,36], index: 5, kind: input, shape index: {}]
  %s6 = inlined_call_operand.hbm [shape: f32[4,72], index: 6, kind: input, shape index: {}]
  %s7 = inlined_call_operand.hbm [shape: f32[4,180], index: 7, kind: input, shape index: {}]
  %s8 = inlined_call_operand.hbm [shape: f32[4,180], index: 8, kind: input, shape index: {}]
  %s9 = inlined_call_operand.hbm [shape: f32[4,1], index: 9, kind: input, shape index: {}]
  %s10 = inlined_call_operand.hbm [shape: f32[4,4], index: 10, kind: input, shape index: {}]
  %s11 = inlined_call_operand.hbm [shape: f32[4,4], index: 11, kind: input, shape index: {}]
  %s12 = inlined_call_operand.hbm [shape: f32[4,4], index: 12, kind: input, shape index: {}]
  %s13 = inlined_call_operand.hbm [shape: f32[4,1], index: 13, kind: input, shape index: {}]
  %s14 = inlined_call_operand.hbm [shape: f32[1,4], index: 14, kind: input, shape index: {}]
  %s15 = inlined_call_operand.<no memory space> [shape: f32[1], index: 15, kind: input, shape index: {}]
  %s16 = inlined_call_operand.hbm [shape: f32[4,72], index: 16, kind: input, shape index: {}]
  %s17 = inlined_call_operand.hbm [shape: f32[4,1], index: 17, kind: input, shape index: {}]
  %s18 = inlined_call_operand.hbm [shape: f32[2,4,256], index: 18, kind: output, shape index: {}]
  %s19 = sld [smem:[#allocation0]]
  $region173: #{rdb_forward_nchw.12} parent=0
    _
  %s21 = ssub.s32 1, %s19
  %s22 = scalar_select 0, %s21, %s19
  %23 = sst [smem:[#allocation2]] %s15
  $region1: #{rdb_forward_nchw.12} parent=0
    #allocation3 [shape = 'u8[8192]{0}', space=vmem, size = 0x2000, scoped, tag = 'input window, operand 0']
    #allocation4 [shape = 's32[2]{0}', space=sflag, size = 0x8, scoped, tag = 'scoped memory for rdb_forward_nchw.12']
    #allocation5 [shape = 's32[2]{0}', space=sflag, size = 0x8, scoped, tag = 'scoped memory for rdb_forward_nchw.12']
    #allocation6 [shape = 'u8[16384]{0}', space=vmem, size = 0x4000, scoped, tag = 'input window, operand 1']
    #allocation7 [shape = 's32[2]{0}', space=sflag, size = 0x8, scoped, tag = 'scoped memory for rdb_forward_nchw.12']
    #allocation8 [shape = 'u8[49152]{0}', space=vmem, size = 0xc000, scoped, tag = 'input window, operand 2']
    #allocation9 [shape = 'u8[49152]{0}', space=vmem, size = 0xc000, scoped, tag = 'input window, operand 3']
    #allocation10 [shape = 's32[2]{0}', space=sflag, size = 0x8, scoped, tag = 'scoped memory for rdb_forward_nchw.12']
    #allocation11 [shape = 'u8[16384]{0}', space=vmem, size = 0x4000, scoped, tag = 'input window, operand 4, single buffered']
    #allocation12 [shape = 'u8[2048]{0}', space=vmem, size = 0x800, scoped, tag = 'input window, operand 5, single buffered']
    #allocation13 [shape = 's32[1]{0}', space=sflag, size = 0x4, scoped, tag = 'scoped memory for rdb_forward_nchw.12']
    #allocation14 [shape = 'u8[2048]{0}', space=vmem, size = 0x800, scoped, tag = 'input window, operand 6, single buffered']
    #allocation15 [shape = 'u8[4096]{0}', space=vmem, size = 0x1000, scoped, tag = 'input window, operand 7, single buffered']
    #allocation16 [shape = 's32[1]{0}', space=sflag, size = 0x4, scoped, tag = 'scoped memory for rdb_forward_nchw.12']
    #allocation17 [shape = 'u8[4096]{0}', space=vmem, size = 0x1000, scoped, tag = 'input window, operand 8, single buffered']
    #allocation18 [shape = 'u8[2048]{0}', space=vmem, size = 0x800, scoped, tag = 'input window, operand 9, single buffered']
    #allocation19 [shape = 's32[1]{0}', space=sflag, size = 0x4, scoped, tag = 'scoped memory for rdb_forward_nchw.12']
    #allocation20 [shape = 'u8[2048]{0}', space=vmem, size = 0x800, scoped, tag = 'input window, operand 10, single buffered']
    #allocation21 [shape = 'u8[2048]{0}', space=vmem, size = 0x800, scoped, tag = 'input window, operand 11, single buffered']
    #allocation22 [shape = 's32[1]{0}', space=sflag, size = 0x4, scoped, tag = 'scoped memory for rdb_forward_nchw.12']
    #allocation23 [shape = 'u8[2048]{0}', space=vmem, size = 0x800, scoped, tag = 'input window, operand 12, single buffered']
    #allocation24 [shape = 'u8[2048]{0}', space=vmem, size = 0x800, scoped, tag = 'input window, operand 13, single buffered']
    #allocation25 [shape = 's32[1]{0}', space=sflag, size = 0x4, scoped, tag = 'scoped memory for rdb_forward_nchw.12']
    #allocation26 [shape = 'u8[512]{0}', space=vmem, size = 0x400, scoped, tag = 'input window, operand 14, single buffered']
    #allocation27 [shape = 'u8[2048]{0}', space=vmem, size = 0x800, scoped, tag = 'input window, operand 16, single buffered']
    #allocation28 [shape = 's32[1]{0}', space=sflag, size = 0x4, scoped, tag = 'scoped memory for rdb_forward_nchw.12']
    #allocation29 [shape = 'u8[2048]{0}', space=vmem, size = 0x800, scoped, tag = 'input window, operand 17, single buffered']
    #allocation30 [shape = 'u8[8192]{0}', space=vmem, size = 0x2000, scoped, tag = 'output window, operand 0']
    %24 = vsyncpa [#allocation4], 0
    %s25 = scalar_lea.sflag [#allocation4], 1
    %26 = vsyncpa %s25, 0
    %27 = vsyncpa [#allocation7], 0
    %s28 = scalar_lea.sflag [#allocation7], 1
    %29 = vsyncpa %s28, 0
    %30 = vsyncpa [#allocation10], 0
    %s31 = scalar_lea.sflag [#allocation10], 1
    %32 = vsyncpa %s31, 0
    %33 = vsyncpa [#allocation13], 0
    %34 = vsyncpa [#allocation16], 0
    %35 = vsyncpa [#allocation19], 0
    %36 = vsyncpa [#allocation22], 0
    %37 = vsyncpa [#allocation25], 0
    %38 = vsyncpa [#allocation28], 0
    %39 = vsyncpa [#allocation5], 0
    %s40 = scalar_lea.sflag [#allocation5], 1
    %41 = vsyncpa %s40, 0
    loop: start=0, step=1, limit=4
    $region2: #{rdb_forward_nchw.12} parent=1 // loop_pre_header
      _
    $region3: #{rdb_forward_nchw.12} parent=1 // loop_header
      %s43 = sphi 0, %s47
      %p44 = scmp.ge.s32.totalorder %s43, 4
      %s53 = sphi 0, %s55
      %s56 = sphi 0, %s53
      %s57 = sphi 0, %s56
      %s73 = sphi 0, %s57
      %s79 = sphi 0, %s81
      %s82 = sphi 0, %s79
      %s83 = sphi 0, %s82
      %s99 = sphi 0, %s83
      %s105 = sphi 0, %s107
      %s108 = sphi 0, %s105
      %s109 = sphi 0, %s108
      %s125 = sphi 0, %s109
      %s131 = sphi 0, %s133
      %s134 = sphi 0, %s131
      %s135 = sphi 0, %s134
      %s151 = sphi 0, %s135
      %s155 = sphi 0, %s155
      %s157 = sphi 0, %s155
      %s158 = sphi 0, %s157
      %s172 = sphi 0, %s158
      %s176 = sphi 0, %s176
      %s178 = sphi 0, %s176
      %s179 = sphi 0, %s178
      %s193 = sphi 0, %s179
      %s197 = sphi 0, %s197
      %s199 = sphi 0, %s197
      %s200 = sphi 0, %s199
      %s214 = sphi 0, %s200
      %s218 = sphi 0, %s218
      %s220 = sphi 0, %s218
      %s221 = sphi 0, %s220
      %s235 = sphi 0, %s221
      %s239 = sphi 0, %s239
      %s241 = sphi 0, %s239
      %s242 = sphi 0, %s241
      %s256 = sphi 0, %s242
      %s260 = sphi 0, %s260
      %s262 = sphi 0, %s260
      %s263 = sphi 0, %s262
      %s277 = sphi 0, %s263
      %s281 = sphi 0, %s281
      %s283 = sphi 0, %s281
      %s284 = sphi 0, %s283
      %s298 = sphi 0, %s284
      %s302 = sphi 0, %s302
      %s304 = sphi 0, %s302
      %s305 = sphi 0, %s304
      %s319 = sphi 0, %s305
      %s323 = sphi 0, %s323
      %s325 = sphi 0, %s323
      %s326 = sphi 0, %s325
      %s340 = sphi 0, %s326
      %s344 = sphi 0, %s344
      %s346 = sphi 0, %s344
      %s347 = sphi 0, %s346
      %s361 = sphi 0, %s347
      %s365 = sphi 0, %s365
      %s367 = sphi 0, %s365
      %s368 = sphi 0, %s367
      %s382 = sphi 0, %s368
      %s386 = sphi 0, %s386
      %s388 = sphi 0, %s386
      %s389 = sphi 0, %s388
      %s403 = sphi 0, %s389
      %s407 = sphi 0, %s407
      %s409 = sphi 0, %s407
      %s410 = sphi 0, %s409
      %s424 = sphi 0, %s410
      %s428 = sphi 0, %s428
      %s430 = sphi 0, %s428
      %s431 = sphi 0, %s430
      %s445 = sphi 0, %s431
      %s451 = sphi 0, %s453
      %s454 = sphi 0, %s451
      %s455 = sphi 0, %s454
      %s471 = sphi 0, %s455
    $region4: #{rdb_forward_nchw.12} parent=1 // loop_header_branch
      %46 = sbr.rel (%p44) target = $region8
    $region5: #{rdb_forward_nchw.12} parent=1 // loop_body
      %s48 = ssub.s32 %s43, 1
      %s49 = ssub.s32 %s43, 2
      %s50 = sadd.s32 %s43, 1
      %s51 = ssub.s32 %s43, %s50
      %p52 = scmp.eq.s32.totalorder %s51, 0
      %s54 = sadd.s32 %s53, 1
      %s55 = scalar_select %p52, %s53, %s54
      %p58 = pneg %p52
      %p59 = scmp.eq.s32.totalorder %s43, 1
      %p60 = por %p58, %p59
      %p61 = scmp.ne.s32.totalorder %s53, %s56
      %p62 = scmp.eq.s32.totalorder %s43, 0
      %p63 = por %p61, %p62
      %p64 = scmp.ne.s32.totalorder %s53, %s56
      %p65 = scmp.eq.s32.totalorder %s48, 1
      %p66 = por %p64, %p65
      %p67 = scmp.ne.s32.totalorder %s56, %s57
      %p68 = scmp.eq.s32.totalorder %s48, 0
      %p69 = por %p67, %p68
      %p70 = scmp.ne.s32.totalorder %s56, %s57
      %p71 = scmp.eq.s32.totalorder %s49, 1
      %p72 = por %p70, %p71
      %p74 = scmp.ne.s32.totalorder %s57, %s73
      %p75 = scmp.eq.s32.totalorder %s49, 0
      %p76 = por %p74, %p75
      %s77 = ssub.s32 %s43, %s50
      %p78 = scmp.eq.s32.totalorder %s77, 0
      %s80 = sadd.s32 %s79, 1
      %s81 = scalar_select %p78, %s79, %s80
      %p84 = pneg %p78
      %p85 = scmp.eq.s32.totalorder %s43, 1
      %p86 = por %p84, %p85
      %p87 = scmp.ne.s32.totalorder %s79, %s82
      %p88 = scmp.eq.s32.totalorder %s43, 0
      %p89 = por %p87, %p88
      %p90 = scmp.ne.s32.totalorder %s79, %s82
      %p91 = scmp.eq.s32.totalorder %s48, 1
      %p92 = por %p90, %p91
      %p93 = scmp.ne.s32.totalorder %s82, %s83
      %p94 = scmp.eq.s32.totalorder %s48, 0
      %p95 = por %p93, %p94
      %p96 = scmp.ne.s32.totalorder %s82, %s83
      %p97 = scmp.eq.s32.totalorder %s49, 1
      %p98 = por %p96, %p97
      %p100 = scmp.ne.s32.totalorder %s83, %s99
      %p101 = scmp.eq.s32.totalorder %s49, 0
      %p102 = por %p100, %p101
      %s103 = ssub.s32 %s43, %s50
      %p104 = scmp.eq.s32.totalorder %s103, 0
      %s106 = sadd.s32 %s105, 1
      %s107 = scalar_select %p104, %s105, %s106
      %p110 = pneg %p104
      %p111 = scmp.eq.s32.totalorder %s43, 1
      %p112 = por %p110, %p111
      %p113 = scmp.ne.s32.totalorder %s105, %s108
      %p114 = scmp.eq.s32.totalorder %s43, 0
      %p115 = por %p113, %p114
      %p116 = scmp.ne.s32.totalorder %s105, %s108
      %p117 = scmp.eq.s32.totalorder %s48, 1
      %p118 = por %p116, %p117
      %p119 = scmp.ne.s32.totalorder %s108, %s109
      %p120 = scmp.eq.s32.totalorder %s48, 0
      %p121 = por %p119, %p120
      %p122 = scmp.ne.s32.totalorder %s108, %s109
      %p123 = scmp.eq.s32.totalorder %s49, 1
      %p124 = por %p122, %p123
      %p126 = scmp.ne.s32.totalorder %s109, %s125
      %p127 = scmp.eq.s32.totalorder %s49, 0
      %p128 = por %p126, %p127
      %s129 = ssub.s32 %s43, %s50
      %p130 = scmp.eq.s32.totalorder %s129, 0
      %s132 = sadd.s32 %s131, 1
      %s133 = scalar_select %p130, %s131, %s132
      %p136 = pneg %p130
      %p137 = scmp.eq.s32.totalorder %s43, 1
      %p138 = por %p136, %p137
      %p139 = scmp.ne.s32.totalorder %s131, %s134
      %p140 = scmp.eq.s32.totalorder %s43, 0
      %p141 = por %p139, %p140
      %p142 = scmp.ne.s32.totalorder %s131, %s134
      %p143 = scmp.eq.s32.totalorder %s48, 1
      %p144 = por %p142, %p143
      %p145 = scmp.ne.s32.totalorder %s134, %s135
      %p146 = scmp.eq.s32.totalorder %s48, 0
      %p147 = por %p145, %p146
      %p148 = scmp.ne.s32.totalorder %s134, %s135
      %p149 = scmp.eq.s32.totalorder %s49, 1
      %p150 = por %p148, %p149
      %p152 = scmp.ne.s32.totalorder %s135, %s151
      %p153 = scmp.eq.s32.totalorder %s49, 0
      %p154 = por %p152, %p153
      %s156 = sadd.s32 %s155, 1
      %p159 = scmp.eq.s32.totalorder %s43, 1
      %p160 = scmp.ne.s32.totalorder %s155, %s157
      %p161 = scmp.eq.s32.totalorder %s43, 0
      %p162 = por %p160, %p161
      %p163 = scmp.ne.s32.totalorder %s155, %s157
      %p164 = scmp.eq.s32.totalorder %s48, 1
      %p165 = por %p163, %p164
      %p166 = scmp.ne.s32.totalorder %s157, %s158
      %p167 = scmp.eq.s32.totalorder %s48, 0
      %p168 = por %p166, %p167
      %p169 = scmp.ne.s32.totalorder %s157, %s158
      %p170 = scmp.eq.s32.totalorder %s49, 1
      %p171 = por %p169, %p170
      %p173 = scmp.ne.s32.totalorder %s158, %s172
      %p174 = scmp.eq.s32.totalorder %s49, 0
      %p175 = por %p173, %p174
      %s177 = sadd.s32 %s176, 1
      %p180 = scmp.eq.s32.totalorder %s43, 1
      %p181 = scmp.ne.s32.totalorder %s176, %s178
      %p182 = scmp.eq.s32.totalorder %s43, 0
      %p183 = por %p181, %p182
      %p184 = scmp.ne.s32.totalorder %s176, %s178
      %p185 = scmp.eq.s32.totalorder %s48, 1
      %p186 = por %p184, %p185
      %p187 = scmp.ne.s32.totalorder %s178, %s179
      %p188 = scmp.eq.s32.totalorder %s48, 0
      %p189 = por %p187, %p188
      %p190 = scmp.ne.s32.totalorder %s178, %s179
      %p191 = scmp.eq.s32.totalorder %s49, 1
      %p192 = por %p190, %p191
      %p194 = scmp.ne.s32.totalorder %s179, %s193
      %p195 = scmp.eq.s32.totalorder %s49, 0
      %p196 = por %p194, %p195
      %s198 = sadd.s32 %s197, 1
      %p201 = scmp.eq.s32.totalorder %s43, 1
      %p202 = scmp.ne.s32.totalorder %s197, %s199
      %p203 = scmp.eq.s32.totalorder %s43, 0
      %p204 = por %p202, %p203
      %p205 = scmp.ne.s32.totalorder %s197, %s199
      %p206 = scmp.eq.s32.totalorder %s48, 1
      %p207 = por %p205, %p206
      %p208 = scmp.ne.s32.totalorder %s199, %s200
      %p209 = scmp.eq.s32.totalorder %s48, 0
      %p210 = por %p208, %p209
      %p211 = scmp.ne.s32.totalorder %s199, %s200
      %p212 = scmp.eq.s32.totalorder %s49, 1
      %p213 = por %p211, %p212
      %p215 = scmp.ne.s32.totalorder %s200, %s214
      %p216 = scmp.eq.s32.totalorder %s49, 0
      %p217 = por %p215, %p216
      %s219 = sadd.s32 %s218, 1
      %p222 = scmp.eq.s32.totalorder %s43, 1
      %p223 = scmp.ne.s32.totalorder %s218, %s220
      %p224 = scmp.eq.s32.totalorder %s43, 0
      %p225 = por %p223, %p224
      %p226 = scmp.ne.s32.totalorder %s218, %s220
      %p227 = scmp.eq.s32.totalorder %s48, 1
      %p228 = por %p226, %p227
      %p229 = scmp.ne.s32.totalorder %s220, %s221
      %p230 = scmp.eq.s32.totalorder %s48, 0
      %p231 = por %p229, %p230
      %p232 = scmp.ne.s32.totalorder %s220, %s221
      %p233 = scmp.eq.s32.totalorder %s49, 1
      %p234 = por %p232, %p233
      %p236 = scmp.ne.s32.totalorder %s221, %s235
      %p237 = scmp.eq.s32.totalorder %s49, 0
      %p238 = por %p236, %p237
      %s240 = sadd.s32 %s239, 1
      %p243 = scmp.eq.s32.totalorder %s43, 1
      %p244 = scmp.ne.s32.totalorder %s239, %s241
      %p245 = scmp.eq.s32.totalorder %s43, 0
      %p246 = por %p244, %p245
      %p247 = scmp.ne.s32.totalorder %s239, %s241
      %p248 = scmp.eq.s32.totalorder %s48, 1
      %p249 = por %p247, %p248
      %p250 = scmp.ne.s32.totalorder %s241, %s242
      %p251 = scmp.eq.s32.totalorder %s48, 0
      %p252 = por %p250, %p251
      %p253 = scmp.ne.s32.totalorder %s241, %s242
      %p254 = scmp.eq.s32.totalorder %s49, 1
      %p255 = por %p253, %p254
      %p257 = scmp.ne.s32.totalorder %s242, %s256
      %p258 = scmp.eq.s32.totalorder %s49, 0
      %p259 = por %p257, %p258
      %s261 = sadd.s32 %s260, 1
      %p264 = scmp.eq.s32.totalorder %s43, 1
      %p265 = scmp.ne.s32.totalorder %s260, %s262
      %p266 = scmp.eq.s32.totalorder %s43, 0
      %p267 = por %p265, %p266
      %p268 = scmp.ne.s32.totalorder %s260, %s262
      %p269 = scmp.eq.s32.totalorder %s48, 1
      %p270 = por %p268, %p269
      %p271 = scmp.ne.s32.totalorder %s262, %s263
      %p272 = scmp.eq.s32.totalorder %s48, 0
      %p273 = por %p271, %p272
      %p274 = scmp.ne.s32.totalorder %s262, %s263
      %p275 = scmp.eq.s32.totalorder %s49, 1
      %p276 = por %p274, %p275
      %p278 = scmp.ne.s32.totalorder %s263, %s277
      %p279 = scmp.eq.s32.totalorder %s49, 0
      %p280 = por %p278, %p279
      %s282 = sadd.s32 %s281, 1
      %p285 = scmp.eq.s32.totalorder %s43, 1
      %p286 = scmp.ne.s32.totalorder %s281, %s283
      %p287 = scmp.eq.s32.totalorder %s43, 0
      %p288 = por %p286, %p287
      %p289 = scmp.ne.s32.totalorder %s281, %s283
      %p290 = scmp.eq.s32.totalorder %s48, 1
      %p291 = por %p289, %p290
      %p292 = scmp.ne.s32.totalorder %s283, %s284
      %p293 = scmp.eq.s32.totalorder %s48, 0
      %p294 = por %p292, %p293
      %p295 = scmp.ne.s32.totalorder %s283, %s284
      %p296 = scmp.eq.s32.totalorder %s49, 1
      %p297 = por %p295, %p296
      %p299 = scmp.ne.s32.totalorder %s284, %s298
      %p300 = scmp.eq.s32.totalorder %s49, 0
      %p301 = por %p299, %p300
      %s303 = sadd.s32 %s302, 1
      %p306 = scmp.eq.s32.totalorder %s43, 1
      %p307 = scmp.ne.s32.totalorder %s302, %s304
      %p308 = scmp.eq.s32.totalorder %s43, 0
      %p309 = por %p307, %p308
      %p310 = scmp.ne.s32.totalorder %s302, %s304
      %p311 = scmp.eq.s32.totalorder %s48, 1
      %p312 = por %p310, %p311
      %p313 = scmp.ne.s32.totalorder %s304, %s305
      %p314 = scmp.eq.s32.totalorder %s48, 0
      %p315 = por %p313, %p314
      %p316 = scmp.ne.s32.totalorder %s304, %s305
      %p317 = scmp.eq.s32.totalorder %s49, 1
      %p318 = por %p316, %p317
      %p320 = scmp.ne.s32.totalorder %s305, %s319
      %p321 = scmp.eq.s32.totalorder %s49, 0
      %p322 = por %p320, %p321
      %s324 = sadd.s32 %s323, 1
      %p327 = scmp.eq.s32.totalorder %s43, 1
      %p328 = scmp.ne.s32.totalorder %s323, %s325
      %p329 = scmp.eq.s32.totalorder %s43, 0
      %p330 = por %p328, %p329
      %p331 = scmp.ne.s32.totalorder %s323, %s325
      %p332 = scmp.eq.s32.totalorder %s48, 1
      %p333 = por %p331, %p332
      %p334 = scmp.ne.s32.totalorder %s325, %s326
      %p335 = scmp.eq.s32.totalorder %s48, 0
      %p336 = por %p334, %p335
      %p337 = scmp.ne.s32.totalorder %s325, %s326
      %p338 = scmp.eq.s32.totalorder %s49, 1
      %p339 = por %p337, %p338
      %p341 = scmp.ne.s32.totalorder %s326, %s340
      %p342 = scmp.eq.s32.totalorder %s49, 0
      %p343 = por %p341, %p342
      %s345 = sadd.s32 %s344, 1
      %p348 = scmp.eq.s32.totalorder %s43, 1
      %p349 = scmp.ne.s32.totalorder %s344, %s346
      %p350 = scmp.eq.s32.totalorder %s43, 0
      %p351 = por %p349, %p350
      %p352 = scmp.ne.s32.totalorder %s344, %s346
      %p353 = scmp.eq.s32.totalorder %s48, 1
      %p354 = por %p352, %p353
      %p355 = scmp.ne.s32.totalorder %s346, %s347
      %p356 = scmp.eq.s32.totalorder %s48, 0
      %p357 = por %p355, %p356
      %p358 = scmp.ne.s32.totalorder %s346, %s347
      %p359 = scmp.eq.s32.totalorder %s49, 1
      %p360 = por %p358, %p359
      %p362 = scmp.ne.s32.totalorder %s347, %s361
      %p363 = scmp.eq.s32.totalorder %s49, 0
      %p364 = por %p362, %p363
      %s366 = sadd.s32 %s365, 1
      %p369 = scmp.eq.s32.totalorder %s43, 1
      %p370 = scmp.ne.s32.totalorder %s365, %s367
      %p371 = scmp.eq.s32.totalorder %s43, 0
      %p372 = por %p370, %p371
      %p373 = scmp.ne.s32.totalorder %s365, %s367
      %p374 = scmp.eq.s32.totalorder %s48, 1
      %p375 = por %p373, %p374
      %p376 = scmp.ne.s32.totalorder %s367, %s368
      %p377 = scmp.eq.s32.totalorder %s48, 0
      %p378 = por %p376, %p377
      %p379 = scmp.ne.s32.totalorder %s367, %s368
      %p380 = scmp.eq.s32.totalorder %s49, 1
      %p381 = por %p379, %p380
      %p383 = scmp.ne.s32.totalorder %s368, %s382
      %p384 = scmp.eq.s32.totalorder %s49, 0
      %p385 = por %p383, %p384
      %s387 = sadd.s32 %s386, 1
      %p390 = scmp.eq.s32.totalorder %s43, 1
      %p391 = scmp.ne.s32.totalorder %s386, %s388
      %p392 = scmp.eq.s32.totalorder %s43, 0
      %p393 = por %p391, %p392
      %p394 = scmp.ne.s32.totalorder %s386, %s388
      %p395 = scmp.eq.s32.totalorder %s48, 1
      %p396 = por %p394, %p395
      %p397 = scmp.ne.s32.totalorder %s388, %s389
      %p398 = scmp.eq.s32.totalorder %s48, 0
      %p399 = por %p397, %p398
      %p400 = scmp.ne.s32.totalorder %s388, %s389
      %p401 = scmp.eq.s32.totalorder %s49, 1
      %p402 = por %p400, %p401
      %p404 = scmp.ne.s32.totalorder %s389, %s403
      %p405 = scmp.eq.s32.totalorder %s49, 0
      %p406 = por %p404, %p405
      %s408 = sadd.s32 %s407, 1
      %p411 = scmp.eq.s32.totalorder %s43, 1
      %p412 = scmp.ne.s32.totalorder %s407, %s409
      %p413 = scmp.eq.s32.totalorder %s43, 0
      %p414 = por %p412, %p413
      %p415 = scmp.ne.s32.totalorder %s407, %s409
      %p416 = scmp.eq.s32.totalorder %s48, 1
      %p417 = por %p415, %p416
      %p418 = scmp.ne.s32.totalorder %s409, %s410
      %p419 = scmp.eq.s32.totalorder %s48, 0
      %p420 = por %p418, %p419
      %p421 = scmp.ne.s32.totalorder %s409, %s410
      %p422 = scmp.eq.s32.totalorder %s49, 1
      %p423 = por %p421, %p422
      %p425 = scmp.ne.s32.totalorder %s410, %s424
      %p426 = scmp.eq.s32.totalorder %s49, 0
      %p427 = por %p425, %p426
      %s429 = sadd.s32 %s428, 1
      %p432 = scmp.eq.s32.totalorder %s43, 1
      %p433 = scmp.ne.s32.totalorder %s428, %s430
      %p434 = scmp.eq.s32.totalorder %s43, 0
      %p435 = por %p433, %p434
      %p436 = scmp.ne.s32.totalorder %s428, %s430
      %p437 = scmp.eq.s32.totalorder %s48, 1
      %p438 = por %p436, %p437
      %p439 = scmp.ne.s32.totalorder %s430, %s431
      %p440 = scmp.eq.s32.totalorder %s48, 0
      %p441 = por %p439, %p440
      %p442 = scmp.ne.s32.totalorder %s430, %s431
      %p443 = scmp.eq.s32.totalorder %s49, 1
      %p444 = por %p442, %p443
      %p446 = scmp.ne.s32.totalorder %s431, %s445
      %p447 = scmp.eq.s32.totalorder %s49, 0
      %p448 = por %p446, %p447
      %s449 = ssub.s32 %s43, %s50
      %p450 = scmp.eq.s32.totalorder %s449, 0
      %s452 = sadd.s32 %s451, 1
      %s453 = scalar_select %p450, %s451, %s452
      %p456 = pneg %p450
      %p457 = scmp.eq.s32.totalorder %s43, 1
      %p458 = por %p456, %p457
      %p459 = scmp.ne.s32.totalorder %s451, %s454
      %p460 = scmp.eq.s32.totalorder %s43, 0
      %p461 = por %p459, %p460
      %p462 = scmp.ne.s32.totalorder %s451, %s454
      %p463 = scmp.eq.s32.totalorder %s48, 1
      %p464 = por %p462, %p463
      %p465 = scmp.ne.s32.totalorder %s454, %s455
      %p466 = scmp.eq.s32.totalorder %s48, 0
      %p467 = por %p465, %p466
      %p468 = scmp.ne.s32.totalorder %s454, %s455
      %p469 = scmp.eq.s32.totalorder %s49, 1
      %p470 = por %p468, %p469
      %p472 = scmp.ne.s32.totalorder %s455, %s471
      %p473 = scmp.eq.s32.totalorder %s49, 0
      %p474 = por %p472, %p473
      %p475 = scmp.le.s32.totalorder 1, %s43
      %p476 = scmp.lt.s32.totalorder %s43, 3
      %p477 = pnand %p475, %p476
      %p478 = pneg %p477
      // Predicated region
      $region9: #{rdb_forward_nchw.12} parent=5 // pred_check
        _
      $region10: #{rdb_forward_nchw.12} parent=5 // pred_check_branch
        %480 = sbr.rel (%p477) target = $region12
      $region11: #{rdb_forward_nchw.12} parent=5 // pred_region
        %s481 = ssub.s32 %s43, 1
        // Predicated region
        $region13: #{rdb_forward_nchw.12} parent=11 // pred_check
          %p482 = pneg %p168
        $region14: #{rdb_forward_nchw.12} parent=11 // pred_check_branch
          %484 = sbr.rel (%p482) target = $region16
        $region15: #{rdb_forward_nchw.12} parent=11 // pred_region
          %s486 = ssub.s32 512, 512
          %487 = vsyncadd [#allocation10], %s486
          %s488 = sshll.u32 [#allocation11], 4
          %s489 = int_to_ptr.vmem [resolvable:$true] %s488
          %494 = dma.hbm_to_vmem [thread:$0]  %s4, 512, %s489, [#allocation10], 256, 256, 16
        $region16: #{rdb_forward_nchw.12} parent=11 // pred_fallthru
          _
        // Predicated region
        $region17: #{rdb_forward_nchw.12} parent=11 // pred_check
          %p495 = pneg %p189
        $region18: #{rdb_forward_nchw.12} parent=11 // pred_check_branch
          %497 = sbr.rel (%p495) target = $region20
        $region19: #{rdb_forward_nchw.12} parent=11 // pred_region
          %s499 = ssub.s32 64, 64
          %500 = vsyncadd [#allocation13], %s499
          %s502 = sshll.u32 [#allocation12], 4
          %s503 = int_to_ptr.vmem [resolvable:$true] %s502
          %505 = dma.hbm_to_vmem [thread:$0]  %s5, 64, %s503, [#allocation13]
        $region20: #{rdb_forward_nchw.12} parent=11 // pred_fallthru
          _
        // Predicated region
        $region21: #{rdb_forward_nchw.12} parent=11 // pred_check
          %p506 = pneg %p210
        $region22: #{rdb_forward_nchw.12} parent=11 // pred_check_branch
          %508 = sbr.rel (%p506) target = $region24
        $region23: #{rdb_forward_nchw.12} parent=11 // pred_region
          %s510 = ssub.s32 64, 64
          %511 = vsyncadd [#allocation13], %s510
          %s513 = sshll.u32 [#allocation14], 4
          %s514 = int_to_ptr.vmem [resolvable:$true] %s513
          %516 = dma.hbm_to_vmem [thread:$0]  %s6, 64, %s514, [#allocation13]
        $region24: #{rdb_forward_nchw.12} parent=11 // pred_fallthru
          _
        // Predicated region
        $region25: #{rdb_forward_nchw.12} parent=11 // pred_check
          %p517 = pneg %p231
        $region26: #{rdb_forward_nchw.12} parent=11 // pred_check_branch
          %519 = sbr.rel (%p517) target = $region28
        $region27: #{rdb_forward_nchw.12} parent=11 // pred_region
          %s521 = ssub.s32 128, 128
          %522 = vsyncadd [#allocation16], %s521
          %s524 = sshll.u32 [#allocation15], 4
          %s525 = int_to_ptr.vmem [resolvable:$true] %s524
          %527 = dma.hbm_to_vmem [thread:$0]  %s7, 128, %s525, [#allocation16]
        $region28: #{rdb_forward_nchw.12} parent=11 // pred_fallthru
          _
        // Predicated region
        $region29: #{rdb_forward_nchw.12} parent=11 // pred_check
          %p528 = pneg %p252
        $region30: #{rdb_forward_nchw.12} parent=11 // pred_check_branch
          %530 = sbr.rel (%p528) target = $region32
        $region31: #{rdb_forward_nchw.12} parent=11 // pred_region
          %s532 = ssub.s32 128, 128
          %533 = vsyncadd [#allocation16], %s532
          %s535 = sshll.u32 [#allocation17], 4
          %s536 = int_to_ptr.vmem [resolvable:$true] %s535
          %538 = dma.hbm_to_vmem [thread:$0]  %s8, 128, %s536, [#allocation16]
        $region32: #{rdb_forward_nchw.12} parent=11 // pred_fallthru
          _
        // Predicated region
        $region33: #{rdb_forward_nchw.12} parent=11 // pred_check
          %p539 = pneg %p273
        $region34: #{rdb_forward_nchw.12} parent=11 // pred_check_branch
          %541 = sbr.rel (%p539) target = $region36
        $region35: #{rdb_forward_nchw.12} parent=11 // pred_region
          %s543 = ssub.s32 64, 64
          %544 = vsyncadd [#allocation19], %s543
          %s546 = sshll.u32 [#allocation18], 4
          %s547 = int_to_ptr.vmem [resolvable:$true] %s546
          %549 = dma.hbm_to_vmem [thread:$0]  %s9, 64, %s547, [#allocation19]
        $region36: #{rdb_forward_nchw.12} parent=11 // pred_fallthru
          _
        // Predicated region
        $region37: #{rdb_forward_nchw.12} parent=11 // pred_check
          %p550 = pneg %p294
        $region38: #{rdb_forward_nchw.12} parent=11 // pred_check_branch
          %552 = sbr.rel (%p550) target = $region40
        $region39: #{rdb_forward_nchw.12} parent=11 // pred_region
          %s554 = ssub.s32 64, 64
          %555 = vsyncadd [#allocation19], %s554
          %s557 = sshll.u32 [#allocation20], 4
          %s558 = int_to_ptr.vmem [resolvable:$true] %s557
          %560 = dma.hbm_to_vmem [thread:$0]  %s10, 64, %s558, [#allocation19]
        $region40: #{rdb_forward_nchw.12} parent=11 // pred_fallthru
          _
        // Predicated region
        $region41: #{rdb_forward_nchw.12} parent=11 // pred_check
          %p561 = pneg %p315
        $region42: #{rdb_forward_nchw.12} parent=11 // pred_check_branch
          %563 = sbr.rel (%p561) target = $region44
        $region43: #{rdb_forward_nchw.12} parent=11 // pred_region
          %s565 = ssub.s32 64, 64
          %566 = vsyncadd [#allocation22], %s565
          %s568 = sshll.u32 [#allocation21], 4
          %s569 = int_to_ptr.vmem [resolvable:$true] %s568
          %571 = dma.hbm_to_vmem [thread:$0]  %s11, 64, %s569, [#allocation22]
        $region44: #{rdb_forward_nchw.12} parent=11 // pred_fallthru
          _
        // Predicated region
        $region45: #{rdb_forward_nchw.12} parent=11 // pred_check
          %p572 = pneg %p336
        $region46: #{rdb_forward_nchw.12} parent=11 // pred_check_branch
          %574 = sbr.rel (%p572) target = $region48
        $region47: #{rdb_forward_nchw.12} parent=11 // pred_region
          %s576 = ssub.s32 64, 64
          %577 = vsyncadd [#allocation22], %s576
          %s579 = sshll.u32 [#allocation23], 4
          %s580 = int_to_ptr.vmem [resolvable:$true] %s579
          %582 = dma.hbm_to_vmem [thread:$0]  %s12, 64, %s580, [#allocation22]
        $region48: #{rdb_forward_nchw.12} parent=11 // pred_fallthru
          _
        // Predicated region
        $region49: #{rdb_forward_nchw.12} parent=11 // pred_check
          %p583 = pneg %p357
        $region50: #{rdb_forward_nchw.12} parent=11 // pred_check_branch
          %585 = sbr.rel (%p583) target = $region52
        $region51: #{rdb_forward_nchw.12} parent=11 // pred_region
          %s587 = ssub.s32 64, 64
          %588 = vsyncadd [#allocation25], %s587
          %s590 = sshll.u32 [#allocation24], 4
          %s591 = int_to_ptr.vmem [resolvable:$true] %s590
          %593 = dma.hbm_to_vmem [thread:$0]  %s13, 64, %s591, [#allocation25]
        $region52: #{rdb_forward_nchw.12} parent=11 // pred_fallthru
          _
        // Predicated region
        $region53: #{rdb_forward_nchw.12} parent=11 // pred_check
          %p594 = pneg %p378
        $region54: #{rdb_forward_nchw.12} parent=11 // pred_check_branch
          %596 = sbr.rel (%p594) target = $region56
        $region55: #{rdb_forward_nchw.12} parent=11 // pred_region
          %s598 = ssub.s32 16, 16
          %599 = vsyncadd [#allocation25], %s598
          %s601 = sshll.u32 [#allocation26], 4
          %s602 = int_to_ptr.vmem [resolvable:$true] %s601
          %604 = dma.hbm_to_vmem [thread:$0]  %s14, 16, %s602, [#allocation25]
        $region56: #{rdb_forward_nchw.12} parent=11 // pred_fallthru
          _
        // Predicated region
        $region57: #{rdb_forward_nchw.12} parent=11 // pred_check
          %p605 = pneg %p399
        $region58: #{rdb_forward_nchw.12} parent=11 // pred_check_branch
          %607 = sbr.rel (%p605) target = $region60
        $region59: #{rdb_forward_nchw.12} parent=11 // pred_region
          _
        $region60: #{rdb_forward_nchw.12} parent=11 // pred_fallthru
          _
        // Predicated region
        $region61: #{rdb_forward_nchw.12} parent=11 // pred_check
          %p608 = pneg %p420
        $region62: #{rdb_forward_nchw.12} parent=11 // pred_check_branch
          %610 = sbr.rel (%p608) target = $region64
        $region63: #{rdb_forward_nchw.12} parent=11 // pred_region
          %s612 = ssub.s32 64, 64
          %613 = vsyncadd [#allocation28], %s612
          %s615 = sshll.u32 [#allocation27], 4
          %s616 = int_to_ptr.vmem [resolvable:$true] %s615
          %618 = dma.hbm_to_vmem [thread:$0]  %s16, 64, %s616, [#allocation28]
        $region64: #{rdb_forward_nchw.12} parent=11 // pred_fallthru
          _
        // Predicated region
        $region65: #{rdb_forward_nchw.12} parent=11 // pred_check
          %p619 = pneg %p441
        $region66: #{rdb_forward_nchw.12} parent=11 // pred_check_branch
          %621 = sbr.rel (%p619) target = $region68
        $region67: #{rdb_forward_nchw.12} parent=11 // pred_region
          %s623 = ssub.s32 64, 64
          %624 = vsyncadd [#allocation28], %s623
          %s626 = sshll.u32 [#allocation29], 4
          %s627 = int_to_ptr.vmem [resolvable:$true] %s626
          %629 = dma.hbm_to_vmem [thread:$0]  %s17, 64, %s627, [#allocation28]
        $region68: #{rdb_forward_nchw.12} parent=11 // pred_fallthru
          _
      $region12: #{rdb_forward_nchw.12} parent=5 // pred_fallthru
        _
      %p630 = scmp.lt.s32.totalorder %s43, 2
      // Predicated region
      $region69: #{rdb_forward_nchw.12} parent=5 // pred_check
        %p631 = pneg %p630
      $region70: #{rdb_forward_nchw.12} parent=5 // pred_check_branch
        %633 = sbr.rel (%p631) target = $region72
      $region71: #{rdb_forward_nchw.12} parent=5 // pred_region
        // Predicated region
        $region73: #{rdb_forward_nchw.12} parent=71 // pred_check
          %p634 = pneg %p63
        $region74: #{rdb_forward_nchw.12} parent=71 // pred_check_branch
          %636 = sbr.rel (%p634) target = $region76
        $region75: #{rdb_forward_nchw.12} parent=71 // pred_region
          %s637 = sand.u32 %s53, 1
          %s638 = scalar_lea.sflag [#allocation4], %s637
          %s639 = sand.u32 %s53, 1
          %s640 = smul.addr %s639, 8
          %s641 = scalar_lea.vmem [#allocation3], %s640
          %s643 = ssub.s32 128, 128
          %644 = vsyncadd %s638, %s643
          %s645 = smul.addr %s43, 2
          %s646 = smul.addr %s645, 64
          %s647 = scalar_lea.hbm %s0, %s646
          %s649 = sshll.u32 %s641, 4
          %s650 = int_to_ptr.vmem [resolvable:$true] %s649
          %652 = dma.hbm_to_vmem [thread:$0]  %s647, 128, %s650, %s638
        $region76: #{rdb_forward_nchw.12} parent=71 // pred_fallthru
          _
        // Predicated region
        $region77: #{rdb_forward_nchw.12} parent=71 // pred_check
          %p653 = pneg %p89
        $region78: #{rdb_forward_nchw.12} parent=71 // pred_check_branch
          %655 = sbr.rel (%p653) target = $region80
        $region79: #{rdb_forward_nchw.12} parent=71 // pred_region
          %s656 = sand.u32 %s43, 1
          %s657 = scalar_lea.sflag [#allocation7], %s656
          %s658 = sand.u32 %s79, 1
          %s659 = smul.addr %s658, 16
          %s660 = scalar_lea.vmem [#allocation6], %s659
          %s662 = ssub.s32 256, 256
          %663 = vsyncadd %s657, %s662
          %s664 = smul.addr %s43, 2
          %s665 = smul.addr %s664, 128
          %s666 = scalar_lea.hbm %s1, %s665
          %s668 = sshll.u32 %s660, 4
          %s669 = int_to_ptr.vmem [resolvable:$true] %s668
          %671 = dma.hbm_to_vmem [thread:$0]  %s666, 256, %s669, %s657
        $region80: #{rdb_forward_nchw.12} parent=71 // pred_fallthru
          _
        // Predicated region
        $region81: #{rdb_forward_nchw.12} parent=71 // pred_check
          %p672 = pneg %p115
        $region82: #{rdb_forward_nchw.12} parent=71 // pred_check_branch
          %674 = sbr.rel (%p672) target = $region84
        $region83: #{rdb_forward_nchw.12} parent=71 // pred_region
          %s675 = sand.u32 %s43, 1
          %s676 = scalar_lea.sflag [#allocation7], %s675
          %s677 = sand.u32 %s105, 1
          %s678 = smul.addr %s677, 48
          %s679 = scalar_lea.vmem [#allocation8], %s678
          %s681 = ssub.s32 768, 768
          %682 = vsyncadd %s676, %s681
          %s683 = smul.addr %s43, 6
          %s684 = smul.addr %s683, 128
          %s685 = scalar_lea.hbm %s2, %s684
          %s686 = sshll.u32 %s679, 4
          %s687 = int_to_ptr.vmem [resolvable:$true] %s686
          %692 = dma.hbm_to_vmem [thread:$0]  %s685, 768, %s687, %s676, 256, 256, 16
        $region84: #{rdb_forward_nchw.12} parent=71 // pred_fallthru
          _
        // Predicated region
        $region85: #{rdb_forward_nchw.12} parent=71 // pred_check
          %p693 = pneg %p141
        $region86: #{rdb_forward_nchw.12} parent=71 // pred_check_branch
          %695 = sbr.rel (%p693) target = $region88
        $region87: #{rdb_forward_nchw.12} parent=71 // pred_region
          %s696 = sand.u32 %s43, 1
          %s697 = scalar_lea.sflag [#allocation10], %s696
          %s698 = sand.u32 %s131, 1
          %s699 = smul.addr %s698, 48
          %s700 = scalar_lea.vmem [#allocation9], %s699
          %s702 = ssub.s32 768, 768
          %703 = vsyncadd %s697, %s702
          %s704 = smul.addr %s43, 6
          %s705 = smul.addr %s704, 128
          %s706 = scalar_lea.hbm %s3, %s705
          %s707 = sshll.u32 %s700, 4
          %s708 = int_to_ptr.vmem [resolvable:$true] %s707
          %713 = dma.hbm_to_vmem [thread:$0]  %s706, 768, %s708, %s697, 256, 256, 16
        $region88: #{rdb_forward_nchw.12} parent=71 // pred_fallthru
          _
      $region72: #{rdb_forward_nchw.12} parent=5 // pred_fallthru
        _
      %p714 = scmp.le.s32.totalorder 1, %s43
      %p715 = scmp.lt.s32.totalorder %s43, 3
      %p716 = pnand %p714, %p715
      %p717 = pneg %p716
      // Predicated region
      $region89: #{rdb_forward_nchw.12} parent=5 // pred_check
        _
      $region90: #{rdb_forward_nchw.12} parent=5 // pred_check_branch
        %719 = sbr.rel (%p716) target = $region92
      $region91: #{rdb_forward_nchw.12} parent=5 // pred_region
        %s720 = ssub.s32 %s43, 1
        %s721 = sand.u32 %s56, 1
        %s722 = scalar_lea.sflag [#allocation4], %s721
        %s723 = sand.u32 %s56, 1
        %s724 = smul.addr %s723, 8
        %s725 = scalar_lea.vmem [#allocation3], %s724
        // Predicated region
        $region93: #{rdb_forward_nchw.12} parent=91 // pred_check
          %p726 = pneg %p69
        $region94: #{rdb_forward_nchw.12} parent=91 // pred_check_branch
          %728 = sbr.rel (%p726) target = $region96
        $region95: #{rdb_forward_nchw.12} parent=91 // pred_region
          %729 = dma.done %s722, 128
        $region96: #{rdb_forward_nchw.12} parent=91 // pred_fallthru
          _
        %s730 = sand.u32 %s48, 1
        %s731 = scalar_lea.sflag [#allocation7], %s730
        %s732 = sand.u32 %s82, 1
        %s733 = smul.addr %s732, 16
        %s734 = scalar_lea.vmem [#allocation6], %s733
        // Predicated region
        $region97: #{rdb_forward_nchw.12} parent=91 // pred_check
          %p735 = pneg %p95
        $region98: #{rdb_forward_nchw.12} parent=91 // pred_check_branch
          %737 = sbr.rel (%p735) target = $region100
        $region99: #{rdb_forward_nchw.12} parent=91 // pred_region
          %738 = dma.done %s731, 256
        $region100: #{rdb_forward_nchw.12} parent=91 // pred_fallthru
          _
        %s739 = sand.u32 %s48, 1
        %s740 = scalar_lea.sflag [#allocation7], %s739
        %s741 = sand.u32 %s108, 1
        %s742 = smul.addr %s741, 48
        %s743 = scalar_lea.vmem [#allocation8], %s742
        // Predicated region
        $region101: #{rdb_forward_nchw.12} parent=91 // pred_check
          %p744 = pneg %p121
        $region102: #{rdb_forward_nchw.12} parent=91 // pred_check_branch
          %746 = sbr.rel (%p744) target = $region104
        $region103: #{rdb_forward_nchw.12} parent=91 // pred_region
          %747 = dma.done %s740, 768
        $region104: #{rdb_forward_nchw.12} parent=91 // pred_fallthru
          _
        %s748 = sand.u32 %s48, 1
        %s749 = scalar_lea.sflag [#allocation10], %s748
        %s750 = sand.u32 %s134, 1
        %s751 = smul.addr %s750, 48
        %s752 = scalar_lea.vmem [#allocation9], %s751
        // Predicated region
        $region105: #{rdb_forward_nchw.12} parent=91 // pred_check
          %p753 = pneg %p147
        $region106: #{rdb_forward_nchw.12} parent=91 // pred_check_branch
          %755 = sbr.rel (%p753) target = $region108
        $region107: #{rdb_forward_nchw.12} parent=91 // pred_region
          %756 = dma.done %s749, 768
        $region108: #{rdb_forward_nchw.12} parent=91 // pred_fallthru
          _
        // Predicated region
        $region109: #{rdb_forward_nchw.12} parent=91 // pred_check
          %p757 = pneg %p168
        $region110: #{rdb_forward_nchw.12} parent=91 // pred_check_branch
          %759 = sbr.rel (%p757) target = $region112
        $region111: #{rdb_forward_nchw.12} parent=91 // pred_region
          %760 = dma.done [#allocation10], 512
        $region112: #{rdb_forward_nchw.12} parent=91 // pred_fallthru
          _
        // Predicated region
        $region113: #{rdb_forward_nchw.12} parent=91 // pred_check
          %p761 = pneg %p189
        $region114: #{rdb_forward_nchw.12} parent=91 // pred_check_branch
          %763 = sbr.rel (%p761) target = $region116
        $region115: #{rdb_forward_nchw.12} parent=91 // pred_region
          %764 = dma.done [#allocation13], 64
        $region116: #{rdb_forward_nchw.12} parent=91 // pred_fallthru
          _
        // Predicated region
        $region117: #{rdb_forward_nchw.12} parent=91 // pred_check
          %p765 = pneg %p210
        $region118: #{rdb_forward_nchw.12} parent=91 // pred_check_branch
          %767 = sbr.rel (%p765) target = $region120
        $region119: #{rdb_forward_nchw.12} parent=91 // pred_region
          %768 = dma.done [#allocation13], 64
        $region120: #{rdb_forward_nchw.12} parent=91 // pred_fallthru
          _
        // Predicated region
        $region121: #{rdb_forward_nchw.12} parent=91 // pred_check
          %p769 = pneg %p231
        $region122: #{rdb_forward_nchw.12} parent=91 // pred_check_branch
          %771 = sbr.rel (%p769) target = $region124
        $region123: #{rdb_forward_nchw.12} parent=91 // pred_region
          %772 = dma.done [#allocation16], 128
        $region124: #{rdb_forward_nchw.12} parent=91 // pred_fallthru
          _
        // Predicated region
        $region125: #{rdb_forward_nchw.12} parent=91 // pred_check
          %p773 = pneg %p252
        $region126: #{rdb_forward_nchw.12} parent=91 // pred_check_branch
          %775 = sbr.rel (%p773) target = $region128
        $region127: #{rdb_forward_nchw.12} parent=91 // pred_region
          %776 = dma.done [#allocation16], 128
        $region128: #{rdb_forward_nchw.12} parent=91 // pred_fallthru
          _
        // Predicated region
        $region129: #{rdb_forward_nchw.12} parent=91 // pred_check
          %p777 = pneg %p273
        $region130: #{rdb_forward_nchw.12} parent=91 // pred_check_branch
          %779 = sbr.rel (%p777) target = $region132
        $region131: #{rdb_forward_nchw.12} parent=91 // pred_region
          %780 = dma.done [#allocation19], 64
        $region132: #{rdb_forward_nchw.12} parent=91 // pred_fallthru
          _
        // Predicated region
        $region133: #{rdb_forward_nchw.12} parent=91 // pred_check
          %p781 = pneg %p294
        $region134: #{rdb_forward_nchw.12} parent=91 // pred_check_branch
          %783 = sbr.rel (%p781) target = $region136
        $region135: #{rdb_forward_nchw.12} parent=91 // pred_region
          %784 = dma.done [#allocation19], 64
        $region136: #{rdb_forward_nchw.12} parent=91 // pred_fallthru
          _
        // Predicated region
        $region137: #{rdb_forward_nchw.12} parent=91 // pred_check
          %p785 = pneg %p315
        $region138: #{rdb_forward_nchw.12} parent=91 // pred_check_branch
          %787 = sbr.rel (%p785) target = $region140
        $region139: #{rdb_forward_nchw.12} parent=91 // pred_region
          %788 = dma.done [#allocation22], 64
        $region140: #{rdb_forward_nchw.12} parent=91 // pred_fallthru
          _
        // Predicated region
        $region141: #{rdb_forward_nchw.12} parent=91 // pred_check
          %p789 = pneg %p336
        $region142: #{rdb_forward_nchw.12} parent=91 // pred_check_branch
          %791 = sbr.rel (%p789) target = $region144
        $region143: #{rdb_forward_nchw.12} parent=91 // pred_region
          %792 = dma.done [#allocation22], 64
        $region144: #{rdb_forward_nchw.12} parent=91 // pred_fallthru
          _
        // Predicated region
        $region145: #{rdb_forward_nchw.12} parent=91 // pred_check
          %p793 = pneg %p357
        $region146: #{rdb_forward_nchw.12} parent=91 // pred_check_branch
          %795 = sbr.rel (%p793) target = $region148
        $region147: #{rdb_forward_nchw.12} parent=91 // pred_region
          %796 = dma.done [#allocation25], 64
        $region148: #{rdb_forward_nchw.12} parent=91 // pred_fallthru
          _
        // Predicated region
        $region149: #{rdb_forward_nchw.12} parent=91 // pred_check
          %p797 = pneg %p378
        $region150: #{rdb_forward_nchw.12} parent=91 // pred_check_branch
          %799 = sbr.rel (%p797) target = $region152
        $region151: #{rdb_forward_nchw.12} parent=91 // pred_region
          %800 = dma.done [#allocation25], 16
        $region152: #{rdb_forward_nchw.12} parent=91 // pred_fallthru
          _
        // Predicated region
        $region153: #{rdb_forward_nchw.12} parent=91 // pred_check
          %p801 = pneg %p420
        $region154: #{rdb_forward_nchw.12} parent=91 // pred_check_branch
          %803 = sbr.rel (%p801) target = $region156
        $region155: #{rdb_forward_nchw.12} parent=91 // pred_region
          %804 = dma.done [#allocation28], 64
        $region156: #{rdb_forward_nchw.12} parent=91 // pred_fallthru
          _
        // Predicated region
        $region157: #{rdb_forward_nchw.12} parent=91 // pred_check
          %p805 = pneg %p441
        $region158: #{rdb_forward_nchw.12} parent=91 // pred_check_branch
          %807 = sbr.rel (%p805) target = $region160
        $region159: #{rdb_forward_nchw.12} parent=91 // pred_region
          %808 = dma.done [#allocation28], 64
        $region160: #{rdb_forward_nchw.12} parent=91 // pred_fallthru
          _
        %s809 = sand.u32 %s56, 1
        %s810 = scalar_lea.sflag [#allocation4], %s809
        %s811 = sand.u32 %s56, 1
        %s812 = smul.addr %s811, 8
        %s813 = scalar_lea.vmem [#allocation3], %s812
        %p814 = pneg %p69
        %p815 = pneg %p66
        %s816 = sand.u32 %s48, 1
        %s817 = scalar_lea.sflag [#allocation7], %s816
        %s818 = sand.u32 %s82, 1
        %s819 = smul.addr %s818, 16
        %s820 = scalar_lea.vmem [#allocation6], %s819
        %p821 = pneg %p95
        %p822 = pneg %p92
        %s823 = sand.u32 %s48, 1
        %s824 = scalar_lea.sflag [#allocation7], %s823
        %s825 = sand.u32 %s108, 1
        %s826 = smul.addr %s825, 48
        %s827 = scalar_lea.vmem [#allocation8], %s826
        %p828 = pneg %p121
        %p829 = pneg %p118
        %s830 = sand.u32 %s48, 1
        %s831 = scalar_lea.sflag [#allocation10], %s830
        %s832 = sand.u32 %s134, 1
        %s833 = smul.addr %s832, 48
        %s834 = scalar_lea.vmem [#allocation9], %s833
        %p835 = pneg %p147
        %p836 = pneg %p144
        %p837 = pneg %p168
        %p838 = pneg %p165
        %p839 = pneg %p189
        %p840 = pneg %p186
        %p841 = pneg %p210
        %p842 = pneg %p207
        %p843 = pneg %p231
        %p844 = pneg %p228
        %p845 = pneg %p252
        %p846 = pneg %p249
        %p847 = pneg %p273
        %p848 = pneg %p270
        %p849 = pneg %p294
        %p850 = pneg %p291
        %p851 = pneg %p315
        %p852 = pneg %p312
        %p853 = pneg %p336
        %p854 = pneg %p333
        %p855 = pneg %p357
        %p856 = pneg %p354
        %p857 = pneg %p378
        %p858 = pneg %p375
        %p859 = pneg %p399
        %p860 = pneg %p396
        %p861 = pneg %p420
        %p862 = pneg %p417
        %p863 = pneg %p441
        %p864 = pneg %p438
        %p865 = pneg %p467
        %p866 = pneg %p464
        %s867 = sand.u32 %s454, 1
        %s868 = scalar_lea.sflag [#allocation5], %s867
        %s869 = sand.u32 %s454, 1
        %s870 = smul.addr %s869, 8
        %s871 = scalar_lea.vmem [#allocation30], %s870
        %v872 = vld [vmem:[#allocation11] sm:$0xff]
        %v873 = vld [vmem:[#allocation11 + $0x8] sm:$0xff]
        %v874 = vld [vmem:[#allocation11 + $0x10] sm:$0x1]
        %v875 = vld [vmem:[#allocation11 + $0x18] sm:$0x1]
        %v876 = vld [vmem:[%s725] sm:$0xff]
        %v877 = vld [vmem:[#allocation12] sm:$0xf]
        %v879 = vcombine.high %v876, %v876
        %880 = vrot.lane.b32.xlu0 %v876, 17
        %v881 = vpop.permute.xlu0 %880
        %882 = vrot.lane.b32.xlu0 %v879, 17
        %v883 = vpop.permute.xlu0 %882
        %vm884 = vcmask 138240
        %v885 = vsel %vm884, %v881, %v883
        %v888 = vsel %vm884, 0.0, %v881
        %v889 = vlaneseq
        %v890 = vshrl.u32 %v889, 7
        %v891 = vsub.s32 0, %v890
        %v892 = vrot.slane %v872, %v891
        %v893 = vlaneseq
        %v894 = vshrl.u32 %v893, 7
        %v895 = vsub.s32 0, %v894
        %v896 = vrot.slane %v873, %v895
        %v897 = vmul.f32 %v888, %v892
        %v898 = vmul.f32 %v885, %v896
        %899 = vrot.lane.b32.xlu0 %v876, 16
        %v900 = vpop.permute.xlu0 %899
        %901 = vrot.lane.b32.xlu0 %v879, 16
        %v902 = vpop.permute.xlu0 %901
        %vm903 = vcmask 130048
        %v904 = vsel %vm903, %v900, %v902
        %v907 = vsel %vm903, 0.0, %v900
        %v908 = vlaneseq
        %v909 = vshrl.u32 %v908, 7
        %v910 = vsub.s32 1, %v909
        %v911 = vrot.slane %v872, %v910
        %v912 = vlaneseq
        %v913 = vshrl.u32 %v912, 7
        %v914 = vsub.s32 1, %v913
        %v915 = vrot.slane %v873, %v914
        %v916 = vmul.f32 %v907, %v911
        %v917 = vmul.f32 %v904, %v915
        %918 = vrot.lane.b32.xlu0 %v876, 15
        %v919 = vpop.permute.xlu0 %918
        %920 = vrot.lane.b32.xlu0 %v879, 15
        %v921 = vpop.permute.xlu0 %920
        %vm922 = vcmask 121856
        %v923 = vsel %vm922, %v919, %v921
        %v926 = vsel %vm922, 0.0, %v919
        %v927 = vlaneseq
        %v928 = vshrl.u32 %v927, 7
        %v929 = vsub.s32 2, %v928
        %v930 = vrot.slane %v872, %v929
        %v931 = vlaneseq
        %v932 = vshrl.u32 %v931, 7
        %v933 = vsub.s32 2, %v932
        %v934 = vrot.slane %v873, %v933
        %v935 = vmul.f32 %v926, %v930
        %v936 = vmul.f32 %v923, %v934
        %937 = vrot.lane.b32.xlu0 %v876, 1
        %v938 = vpop.permute.xlu0 %937
        %939 = vrot.lane.b32.xlu0 %v879, 1
        %v940 = vpop.permute.xlu0 %939
        %vm941 = vcmask 7168
        %v942 = vsel %vm941, %v938, %v940
        %v945 = vsel %vm941, 0.0, %v938
        %v946 = vlaneseq
        %v947 = vshrl.u32 %v946, 7
        %v948 = vsub.s32 3, %v947
        %v949 = vrot.slane %v872, %v948
        %v950 = vlaneseq
        %v951 = vshrl.u32 %v950, 7
        %v952 = vsub.s32 3, %v951
        %v953 = vrot.slane %v873, %v952
        %v954 = vmul.f32 %v945, %v949
        %v955 = vmul.f32 %v942, %v953
        %956 = vrot.lane.b32.xlu0 %v876, 127
        %v957 = vpop.permute.xlu0 %956
        %958 = vrot.lane.b32.xlu0 %v879, 127
        %v959 = vpop.permute.xlu0 %958
        %vm960 = vcmask 1039360
        %v961 = vsel %vm960, %v957, %v959
        %v964 = vsel %vm960, %v959, 0.0
        %v965 = vlaneseq
        %v966 = vshrl.u32 %v965, 7
        %v967 = vsub.s32 5, %v966
        %v968 = vrot.slane %v872, %v967
        %v969 = vlaneseq
        %v970 = vshrl.u32 %v969, 7
        %v971 = vsub.s32 5, %v970
        %v972 = vrot.slane %v873, %v971
        %v973 = vmul.f32 %v961, %v968
        %v974 = vmul.f32 %v964, %v972
        %975 = vrot.lane.b32.xlu0 %v876, 113
        %v976 = vpop.permute.xlu0 %975
        %977 = vrot.lane.b32.xlu0 %v879, 113
        %v978 = vpop.permute.xlu0 %977
        %vm979 = vcmask 924672
        %v980 = vsel %vm979, %v976, %v978
        %v983 = vsel %vm979, %v978, 0.0
        %v984 = vlaneseq
        %v985 = vshrl.u32 %v984, 7
        %v986 = vsub.s32 6, %v985
        %v987 = vrot.slane %v872, %v986
        %v988 = vlaneseq
        %v989 = vshrl.u32 %v988, 7
        %v990 = vsub.s32 6, %v989
        %v991 = vrot.slane %v873, %v990
        %v992 = vmul.f32 %v980, %v987
        %v993 = vmul.f32 %v983, %v991
        %994 = vrot.lane.b32.xlu0 %v876, 112
        %v995 = vpop.permute.xlu0 %994
        %996 = vrot.lane.b32.xlu0 %v879, 112
        %v997 = vpop.permute.xlu0 %996
        %vm998 = vcmask 916480
        %v999 = vsel %vm998, %v995, %v997
        %v1002 = vsel %vm998, %v997, 0.0
        %v1003 = vlaneseq
        %v1004 = vshrl.u32 %v1003, 7
        %v1005 = vsub.s32 7, %v1004
        %v1006 = vrot.slane %v872, %v1005
        %v1007 = vlaneseq
        %v1008 = vshrl.u32 %v1007, 7
        %v1009 = vsub.s32 7, %v1008
        %v1010 = vrot.slane %v873, %v1009
        %v1011 = vmul.f32 %v999, %v1006
        %v1012 = vmul.f32 %v1002, %v1010
        %1013 = vrot.lane.b32.xlu0 %v876, 111
        %v1014 = vpop.permute.xlu0 %1013
        %1015 = vrot.lane.b32.xlu0 %v879, 111
        %v1016 = vpop.permute.xlu0 %1015
        %vm1017 = vcmask 908288
        %v1018 = vsel %vm1017, %v1014, %v1016
        %v1021 = vsel %vm1017, %v1016, 0.0
        %v1022 = vlaneseq
        %v1023 = vshrl.u32 %v1022, 7
        %v1024 = vsub.s32 0, %v1023
        %v1025 = vrot.slane %v874, %v1024
        %v1026 = vlaneseq
        %v1027 = vshrl.u32 %v1026, 7
        %v1028 = vsub.s32 0, %v1027
        %v1029 = vrot.slane %v875, %v1028
        %v1030 = vmul.f32 %v1018, %v1025
        %v1031 = vmul.f32 %v1021, %v1029
        %v1034 = vrot.slane %v916, 4
        %v1035 = vrot.slane %v917, 4
        %v1040 = vrot.slane %v954, 4
        %v1041 = vrot.slane %v955, 4
        %v1047 = vrot.slane %v973, 4
        %v1048 = vrot.slane %v974, 4
        %v1053 = vrot.slane %v1011, 4
        %v1054 = vrot.slane %v1012, 4
        %vm1057 = vcmask 1043456
        %v1058 = vsel %vm1057, %v897, %v1034
        %v1059 = vsel %vm1057, %v898, %v1035
        %v1060 = vsel %vm1057, %v935, %v1040
        %v1061 = vsel %vm1057, %v936, %v1041
        %v1062 = vsel %vm1057, %v876, %v1047
        %v1063 = vsel %vm1057, %v879, %v1048
        %v1064 = vsel %vm1057, %v992, %v1053
        %v1065 = vsel %vm1057, %v993, %v1054
        %v1066 = vld [vmem:[#allocation14] sm:$0xf]
        %v1067 = vld [vmem:[%s734] sm:$0xff]
        %v1068 = vld [vmem:[%s734 + $0x8] sm:$0xff]
        %1071 = vrot.lane.b32.xlu0 %v1067, 17
        %v1072 = vpop.permute.xlu0 %1071
        %1073 = vrot.lane.b32.xlu0 %v1068, 17
        %v1074 = vpop.permute.xlu0 %1073
        %v1075 = vsel %vm884, %v1072, %v1074
        %v1078 = vsel %vm884, 0.0, %v1072
        %v1079 = vmul.f32 %v1078, %v892
        %v1080 = vmul.f32 %v1075, %v896
        %1081 = vrot.lane.b32.xlu0 %v1067, 16
        %v1082 = vpop.permute.xlu0 %1081
        %1083 = vrot.lane.b32.xlu0 %v1068, 16
        %v1084 = vpop.permute.xlu0 %1083
        %v1085 = vsel %vm903, %v1082, %v1084
        %v1088 = vsel %vm903, 0.0, %v1082
        %v1089 = vmul.f32 %v1088, %v911
        %v1090 = vmul.f32 %v1085, %v915
        %1091 = vrot.lane.b32.xlu0 %v1067, 15
        %v1092 = vpop.permute.xlu0 %1091
        %1093 = vrot.lane.b32.xlu0 %v1068, 15
        %v1094 = vpop.permute.xlu0 %1093
        %v1095 = vsel %vm922, %v1092, %v1094
        %v1098 = vsel %vm922, 0.0, %v1092
        %v1099 = vmul.f32 %v1098, %v930
        %v1100 = vmul.f32 %v1095, %v934
        %1101 = vrot.lane.b32.xlu0 %v1067, 1
        %v1102 = vpop.permute.xlu0 %1101
        %1103 = vrot.lane.b32.xlu0 %v1068, 1
        %v1104 = vpop.permute.xlu0 %1103
        %v1105 = vsel %vm941, %v1102, %v1104
        %v1108 = vsel %vm941, 0.0, %v1102
        %v1109 = vmul.f32 %v1108, %v949
        %v1110 = vmul.f32 %v1105, %v953
        %1111 = vrot.lane.b32.xlu0 %v1067, 127
        %v1112 = vpop.permute.xlu0 %1111
        %1113 = vrot.lane.b32.xlu0 %v1068, 127
        %v1114 = vpop.permute.xlu0 %1113
        %v1115 = vsel %vm960, %v1112, %v1114
        %v1118 = vsel %vm960, %v1114, 0.0
        %v1119 = vmul.f32 %v1115, %v968
        %v1120 = vmul.f32 %v1118, %v972
        %1121 = vrot.lane.b32.xlu0 %v1067, 113
        %v1122 = vpop.permute.xlu0 %1121
        %1123 = vrot.lane.b32.xlu0 %v1068, 113
        %v1124 = vpop.permute.xlu0 %1123
        %v1125 = vsel %vm979, %v1122, %v1124
        %v1128 = vsel %vm979, %v1124, 0.0
        %v1129 = vmul.f32 %v1125, %v987
        %v1130 = vmul.f32 %v1128, %v991
        %1131 = vrot.lane.b32.xlu0 %v1067, 112
        %v1132 = vpop.permute.xlu0 %1131
        %1133 = vrot.lane.b32.xlu0 %v1068, 112
        %v1134 = vpop.permute.xlu0 %1133
        %v1135 = vsel %vm998, %v1132, %v1134
        %v1138 = vsel %vm998, %v1134, 0.0
        %v1139 = vmul.f32 %v1135, %v1006
        %v1140 = vmul.f32 %v1138, %v1010
        %1141 = vrot.lane.b32.xlu0 %v1067, 111
        %v1142 = vpop.permute.xlu0 %1141
        %1143 = vrot.lane.b32.xlu0 %v1068, 111
        %v1144 = vpop.permute.xlu0 %1143
        %v1145 = vsel %vm1017, %v1142, %v1144
        %v1148 = vsel %vm1017, %v1144, 0.0
        %v1149 = vmul.f32 %v1145, %v1025
        %v1150 = vmul.f32 %v1148, %v1029
        %vm1151 = vcmask 588800
        %v1153 = vsel %vm1151, %v1066, 0
        %1155 = vmatprep.subr.mxu0 %v1080
        %1156 = vmatpush1.msra.mxu0 %v1079
        %1157 = vmatprep.subr.mxu0 %v1090
        %1158 = vmatpush1.msra.mxu0 %v1089
        %1159 = vmatprep.subr.mxu0 %v1100
        %1160 = vmatpush1.msra.mxu0 %v1099
        %1161 = vmatprep.subr.mxu0 %v1110
        %1162 = vmatpush1.msra.mxu0 %v1109
        %1163 = vmatprep.subr.mxu0 %v1068
        %1164 = vmatpush1.msra.mxu0 %v1067
        %1165 = vmatprep.subr.mxu0 %v1120
        %1166 = vmatpush1.msra.mxu0 %v1119
        %1167 = vmatprep.subr.mxu0 %v1130
        %1168 = vmatpush1.msra.mxu0 %v1129
        %1169 = vmatprep.subr.mxu0 %v1140
        %1170 = vmatpush1.msra.mxu0 %v1139
        %1171 = vmatprep.subr.mxu0 %v1150
        %1172 = vmatpush1.msra.mxu0 %v1149
        %1173 = vmatprep.subr.mxu0 0.0
        %1174 = vmatpush1.msra.mxu0 0.0
        %1175 = vmatprep.subr.mxu0 0.0
        %1176 = vmatpush1.msra.mxu0 0.0
        %1177 = vmatprep.subr.mxu0 0.0
        %1178 = vmatpush1.msra.mxu0 0.0
        %1179 = vmatprep.subr.mxu0 0.0
        %1180 = vmatpush1.msra.mxu0 0.0
        %1181 = vmatprep.subr.mxu0 0.0
        %1182 = vmatpush1.msra.mxu0 0.0
        %1183 = vmatprep.subr.mxu0 0.0
        %1184 = vmatpush1.msra.mxu0 0.0
        %1185 = vmatprep.subr.mxu0 0.0
        %1186 = vmatpush1.msra.mxu0 0.0
        %1187 = vmatprep.subr.mxu0 0.0
        %1188 = vmatpush1.msra.mxu0 0.0
        %1189 = vmatprep.subr.mxu0 0.0
        %1190 = vmatpush1.msra.mxu0 0.0
        %1191 = vmatprep.subr.mxu0 0.0
        %1192 = vmatpush1.msra.mxu0 0.0
        %1193 = vmatprep.subr.mxu0 0.0
        %1194 = vmatpush1.msra.mxu0 0.0
        %1195 = vmatprep.subr.mxu0 0.0
        %1196 = vmatpush1.msra.mxu0 0.0
        %1197 = vmatprep.subr.mxu0 0.0
        %1198 = vmatpush1.msra.mxu0 0.0
        %1199 = vmatprep.subr.mxu0 0.0
        %1200 = vmatpush1.msra.mxu0 0.0
        %1201 = vmatprep.subr.mxu0 0.0
        %1202 = vmatpush1.msra.mxu0 0.0
        %1203 = vmatprep.subr.mxu0 0.0
        %1204 = vmatpush1.msra.mxu0 0.0
        %1205 = vmatprep.subr.mxu0 0.0
        %1206 = vmatpush1.msra.mxu0 0.0
        %1207 = vmatprep.subr.mxu0 0.0
        %1208 = vmatpush1.msra.mxu0 0.0
        %1209 = vmatprep.subr.mxu0 0.0
        %1210 = vmatpush1.msra.mxu0 0.0
        %1211 = vmatprep.subr.mxu0 0.0
        %1212 = vmatpush1.msra.mxu0 0.0
        %1213 = vmatprep.subr.mxu0 0.0
        %1214 = vmatpush1.msra.mxu0 0.0
        %1215 = vmatprep.subr.mxu0 0.0
        %1216 = vmatpush1.msra.mxu0 0.0
        %1217 = vmatprep.subr.mxu0 0.0
        %1218 = vmatpush1.msra.mxu0 0.0
        %1219 = vmatprep.mubr.f32.mxu0 0.0
        %1220 = vmatmul.mubr.f32.gmra.mrb[0].mxu0 %v1153
        %v1221 = vpop.f32.mrb[0].mxu0
        %v1222 = vadd.f32 0.0, %v1221
        %v1223 = vpop.f32.mrb[0].mxu0
        %v1224 = vadd.f32 0.0, %v1223
        %1225 = vdwg.mxu0
        %vm1226 = vcmask 293888
        %v1228 = vsel %vm1226, %v877, 0
        %v1231 = vsel %vm1057, %v1030, 0
        %v1234 = vsel %vm1057, %v1031, 0
        %1236 = vmatprep.subr.mxu0 %v1059
        %1237 = vmatpush1.msra.mxu0 %v1058
        %1238 = vmatprep.subr.mxu0 %v1061
        %1239 = vmatpush1.msra.mxu0 %v1060
        %1240 = vmatprep.subr.mxu0 %v1063
        %1241 = vmatpush1.msra.mxu0 %v1062
        %1242 = vmatprep.subr.mxu0 %v1065
        %1243 = vmatpush1.msra.mxu0 %v1064
        %1244 = vmatprep.subr.mxu0 %v1234
        %1245 = vmatpush1.msra.mxu0 %v1231
        %1246 = vmatprep.subr.mxu0 0.0
        %1247 = vmatpush1.msra.mxu0 0.0
        %1248 = vmatprep.subr.mxu0 0.0
        %1249 = vmatpush1.msra.mxu0 0.0
        %1250 = vmatprep.subr.mxu0 0.0
        %1251 = vmatpush1.msra.mxu0 0.0
        %1252 = vmatprep.subr.mxu0 0.0
        %1253 = vmatpush1.msra.mxu0 0.0
        %1254 = vmatprep.subr.mxu0 0.0
        %1255 = vmatpush1.msra.mxu0 0.0
        %1256 = vmatprep.subr.mxu0 0.0
        %1257 = vmatpush1.msra.mxu0 0.0
        %1258 = vmatprep.subr.mxu0 0.0
        %1259 = vmatpush1.msra.mxu0 0.0
        %1260 = vmatprep.subr.mxu0 0.0
        %1261 = vmatpush1.msra.mxu0 0.0
        %1262 = vmatprep.subr.mxu0 0.0
        %1263 = vmatpush1.msra.mxu0 0.0
        %1264 = vmatprep.subr.mxu0 0.0
        %1265 = vmatpush1.msra.mxu0 0.0
        %1266 = vmatprep.subr.mxu0 0.0
        %1267 = vmatpush1.msra.mxu0 0.0
        %1268 = vmatprep.subr.mxu0 0.0
        %1269 = vmatpush1.msra.mxu0 0.0
        %1270 = vmatprep.subr.mxu0 0.0
        %1271 = vmatpush1.msra.mxu0 0.0
        %1272 = vmatprep.subr.mxu0 0.0
        %1273 = vmatpush1.msra.mxu0 0.0
        %1274 = vmatprep.subr.mxu0 0.0
        %1275 = vmatpush1.msra.mxu0 0.0
        %1276 = vmatprep.subr.mxu0 0.0
        %1277 = vmatpush1.msra.mxu0 0.0
        %1278 = vmatprep.subr.mxu0 0.0
        %1279 = vmatpush1.msra.mxu0 0.0
        %1280 = vmatprep.subr.mxu0 0.0
        %1281 = vmatpush1.msra.mxu0 0.0
        %1282 = vmatprep.subr.mxu0 0.0
        %1283 = vmatpush1.msra.mxu0 0.0
        %1284 = vmatprep.subr.mxu0 0.0
        %1285 = vmatpush1.msra.mxu0 0.0
        %1286 = vmatprep.subr.mxu0 0.0
        %1287 = vmatpush1.msra.mxu0 0.0
        %1288 = vmatprep.subr.mxu0 0.0
        %1289 = vmatpush1.msra.mxu0 0.0
        %1290 = vmatprep.subr.mxu0 0.0
        %1291 = vmatpush1.msra.mxu0 0.0
        %1292 = vmatprep.subr.mxu0 0.0
        %1293 = vmatpush1.msra.mxu0 0.0
        %1294 = vmatprep.subr.mxu0 0.0
        %1295 = vmatpush1.msra.mxu0 0.0
        %1296 = vmatprep.subr.mxu0 0.0
        %1297 = vmatpush1.msra.mxu0 0.0
        %1298 = vmatprep.subr.mxu0 0.0
        %1299 = vmatpush1.msra.mxu0 0.0
        %1300 = vmatprep.mubr.f32.mxu0 0.0
        %1301 = vmatmul.mubr.f32.gmra.mrb[0].mxu0 %v1228
        %v1302 = vpop.f32.mrb[0].mxu0
        %v1303 = vadd.f32 %v1222, %v1302
        %v1304 = vpop.f32.mrb[0].mxu0
        %v1305 = vadd.f32 %v1224, %v1304
        %1306 = vdwg.mxu0
        %v1307 = vld [vmem:[#allocation15] sm:$0xff]
        %v1308 = vld [vmem:[%s743] sm:$0xff]
        %v1309 = vld [vmem:[%s743 + $0x8] sm:$0xff]
        %v1310 = vld [vmem:[%s743 + $0x10] sm:$0xff]
        %v1311 = vld [vmem:[%s743 + $0x18] sm:$0xff]
        %v1312 = vld [vmem:[%s743 + $0x20] sm:$0xf]
        %v1313 = vld [vmem:[%s743 + $0x28] sm:$0xf]
        %1320 = vrot.lane.b32.xlu0 %v1308, 17
        %v1321 = vpop.permute.xlu0 %1320
        %1322 = vrot.lane.b32.xlu0 %v1309, 17
        %v1323 = vpop.permute.xlu0 %1322
        %1324 = vrot.lane.b32.xlu0 %v1310, 17
        %v1325 = vpop.permute.xlu0 %1324
        %1326 = vrot.lane.b32.xlu0 %v1311, 17
        %v1327 = vpop.permute.xlu0 %1326
        %1328 = vrot.lane.b32.xlu0 %v1312, 17
        %v1329 = vpop.permute.xlu0 %1328
        %1330 = vrot.lane.b32.xlu0 %v1313, 17
        %v1331 = vpop.permute.xlu0 %1330
        %v1332 = vsel %vm884, %v1321, %v1323
        %v1333 = vsel %vm884, %v1325, %v1327
        %v1334 = vsel %vm884, %v1329, %v1331
        %v1341 = vsel %vm884, 0.0, %v1321
        %v1342 = vsel %vm884, 0.0, %v1325
        %v1343 = vsel %vm884, 0.0, %v1329
        %v1344 = vmul.f32 %v1341, %v892
        %v1345 = vmul.f32 %v1332, %v896
        %v1346 = vmul.f32 %v1342, %v892
        %v1347 = vmul.f32 %v1333, %v896
        %v1348 = vmul.f32 %v1343, %v892
        %v1349 = vmul.f32 %v1334, %v896
        %1350 = vrot.lane.b32.xlu0 %v1308, 16
        %v1351 = vpop.permute.xlu0 %1350
        %1352 = vrot.lane.b32.xlu0 %v1309, 16
        %v1353 = vpop.permute.xlu0 %1352
        %1354 = vrot.lane.b32.xlu0 %v1310, 16
        %v1355 = vpop.permute.xlu0 %1354
        %1356 = vrot.lane.b32.xlu0 %v1311, 16
        %v1357 = vpop.permute.xlu0 %1356
        %1358 = vrot.lane.b32.xlu0 %v1312, 16
        %v1359 = vpop.permute.xlu0 %1358
        %1360 = vrot.lane.b32.xlu0 %v1313, 16
        %v1361 = vpop.permute.xlu0 %1360
        %v1362 = vsel %vm903, %v1351, %v1353
        %v1363 = vsel %vm903, %v1355, %v1357
        %v1364 = vsel %vm903, %v1359, %v1361
        %v1371 = vsel %vm903, 0.0, %v1351
        %v1372 = vsel %vm903, 0.0, %v1355
        %v1373 = vsel %vm903, 0.0, %v1359
        %v1374 = vmul.f32 %v1371, %v911
        %v1375 = vmul.f32 %v1362, %v915
        %v1376 = vmul.f32 %v1372, %v911
        %v1377 = vmul.f32 %v1363, %v915
        %v1378 = vmul.f32 %v1373, %v911
        %v1379 = vmul.f32 %v1364, %v915
        %1380 = vrot.lane.b32.xlu0 %v1308, 15
        %v1381 = vpop.permute.xlu0 %1380
        %1382 = vrot.lane.b32.xlu0 %v1309, 15
        %v1383 = vpop.permute.xlu0 %1382
        %1384 = vrot.lane.b32.xlu0 %v1310, 15
        %v1385 = vpop.permute.xlu0 %1384
        %1386 = vrot.lane.b32.xlu0 %v1311, 15
        %v1387 = vpop.permute.xlu0 %1386
        %1388 = vrot.lane.b32.xlu0 %v1312, 15
        %v1389 = vpop.permute.xlu0 %1388
        %1390 = vrot.lane.b32.xlu0 %v1313, 15
        %v1391 = vpop.permute.xlu0 %1390
        %v1392 = vsel %vm922, %v1381, %v1383
        %v1393 = vsel %vm922, %v1385, %v1387
        %v1394 = vsel %vm922, %v1389, %v1391
        %v1401 = vsel %vm922, 0.0, %v1381
        %v1402 = vsel %vm922, 0.0, %v1385
        %v1403 = vsel %vm922, 0.0, %v1389
        %v1404 = vmul.f32 %v1401, %v930
        %v1405 = vmul.f32 %v1392, %v934
        %v1406 = vmul.f32 %v1402, %v930
        %v1407 = vmul.f32 %v1393, %v934
        %v1408 = vmul.f32 %v1403, %v930
        %v1409 = vmul.f32 %v1394, %v934
        %1410 = vrot.lane.b32.xlu0 %v1308, 1
        %v1411 = vpop.permute.xlu0 %1410
        %1412 = vrot.lane.b32.xlu0 %v1309, 1
        %v1413 = vpop.permute.xlu0 %1412
        %1414 = vrot.lane.b32.xlu0 %v1310, 1
        %v1415 = vpop.permute.xlu0 %1414
        %1416 = vrot.lane.b32.xlu0 %v1311, 1
        %v1417 = vpop.permute.xlu0 %1416
        %1418 = vrot.lane.b32.xlu0 %v1312, 1
        %v1419 = vpop.permute.xlu0 %1418
        %1420 = vrot.lane.b32.xlu0 %v1313, 1
        %v1421 = vpop.permute.xlu0 %1420
        %v1422 = vsel %vm941, %v1411, %v1413
        %v1423 = vsel %vm941, %v1415, %v1417
        %v1424 = vsel %vm941, %v1419, %v1421
        %v1431 = vsel %vm941, 0.0, %v1411
        %v1432 = vsel %vm941, 0.0, %v1415
        %v1433 = vsel %vm941, 0.0, %v1419
        %v1434 = vmul.f32 %v1431, %v949
        %v1435 = vmul.f32 %v1422, %v953
        %v1436 = vmul.f32 %v1432, %v949
        %v1437 = vmul.f32 %v1423, %v953
        %v1438 = vmul.f32 %v1433, %v949
        %v1439 = vmul.f32 %v1424, %v953
        %1440 = vrot.lane.b32.xlu0 %v1308, 127
        %v1441 = vpop.permute.xlu0 %1440
        %1442 = vrot.lane.b32.xlu0 %v1309, 127
        %v1443 = vpop.permute.xlu0 %1442
        %1444 = vrot.lane.b32.xlu0 %v1310, 127
        %v1445 = vpop.permute.xlu0 %1444
        %1446 = vrot.lane.b32.xlu0 %v1311, 127
        %v1447 = vpop.permute.xlu0 %1446
        %1448 = vrot.lane.b32.xlu0 %v1312, 127
        %v1449 = vpop.permute.xlu0 %1448
        %1450 = vrot.lane.b32.xlu0 %v1313, 127
        %v1451 = vpop.permute.xlu0 %1450
        %v1452 = vsel %vm960, %v1441, %v1443
        %v1453 = vsel %vm960, %v1445, %v1447
        %v1454 = vsel %vm960, %v1449, %v1451
        %v1461 = vsel %vm960, %v1443, 0.0
        %v1462 = vsel %vm960, %v1447, 0.0
        %v1463 = vsel %vm960, %v1451, 0.0
        %v1464 = vmul.f32 %v1452, %v968
        %v1465 = vmul.f32 %v1461, %v972
        %v1466 = vmul.f32 %v1453, %v968
        %v1467 = vmul.f32 %v1462, %v972
        %v1468 = vmul.f32 %v1454, %v968
        %v1469 = vmul.f32 %v1463, %v972
        %1470 = vrot.lane.b32.xlu0 %v1308, 113
        %v1471 = vpop.permute.xlu0 %1470
        %1472 = vrot.lane.b32.xlu0 %v1309, 113
        %v1473 = vpop.permute.xlu0 %1472
        %1474 = vrot.lane.b32.xlu0 %v1310, 113
        %v1475 = vpop.permute.xlu0 %1474
        %1476 = vrot.lane.b32.xlu0 %v1311, 113
        %v1477 = vpop.permute.xlu0 %1476
        %1478 = vrot.lane.b32.xlu0 %v1312, 113
        %v1479 = vpop.permute.xlu0 %1478
        %1480 = vrot.lane.b32.xlu0 %v1313, 113
        %v1481 = vpop.permute.xlu0 %1480
        %v1482 = vsel %vm979, %v1471, %v1473
        %v1483 = vsel %vm979, %v1475, %v1477
        %v1484 = vsel %vm979, %v1479, %v1481
        %v1491 = vsel %vm979, %v1473, 0.0
        %v1492 = vsel %vm979, %v1477, 0.0
        %v1493 = vsel %vm979, %v1481, 0.0
        %v1494 = vmul.f32 %v1482, %v987
        %v1495 = vmul.f32 %v1491, %v991
        %v1496 = vmul.f32 %v1483, %v987
        %v1497 = vmul.f32 %v1492, %v991
        %v1498 = vmul.f32 %v1484, %v987
        %v1499 = vmul.f32 %v1493, %v991
        %1500 = vrot.lane.b32.xlu0 %v1308, 112
        %v1501 = vpop.permute.xlu0 %1500
        %1502 = vrot.lane.b32.xlu0 %v1309, 112
        %v1503 = vpop.permute.xlu0 %1502
        %1504 = vrot.lane.b32.xlu0 %v1310, 112
        %v1505 = vpop.permute.xlu0 %1504
        %1506 = vrot.lane.b32.xlu0 %v1311, 112
        %v1507 = vpop.permute.xlu0 %1506
        %1508 = vrot.lane.b32.xlu0 %v1312, 112
        %v1509 = vpop.permute.xlu0 %1508
        %1510 = vrot.lane.b32.xlu0 %v1313, 112
        %v1511 = vpop.permute.xlu0 %1510
        %v1512 = vsel %vm998, %v1501, %v1503
        %v1513 = vsel %vm998, %v1505, %v1507
        %v1514 = vsel %vm998, %v1509, %v1511
        %v1521 = vsel %vm998, %v1503, 0.0
        %v1522 = vsel %vm998, %v1507, 0.0
        %v1523 = vsel %vm998, %v1511, 0.0
        %v1524 = vmul.f32 %v1512, %v1006
        %v1525 = vmul.f32 %v1521, %v1010
        %v1526 = vmul.f32 %v1513, %v1006
        %v1527 = vmul.f32 %v1522, %v1010
        %v1528 = vmul.f32 %v1514, %v1006
        %v1529 = vmul.f32 %v1523, %v1010
        %1530 = vrot.lane.b32.xlu0 %v1308, 111
        %v1531 = vpop.permute.xlu0 %1530
        %1532 = vrot.lane.b32.xlu0 %v1309, 111
        %v1533 = vpop.permute.xlu0 %1532
        %1534 = vrot.lane.b32.xlu0 %v1310, 111
        %v1535 = vpop.permute.xlu0 %1534
        %1536 = vrot.lane.b32.xlu0 %v1311, 111
        %v1537 = vpop.permute.xlu0 %1536
        %1538 = vrot.lane.b32.xlu0 %v1312, 111
        %v1539 = vpop.permute.xlu0 %1538
        %1540 = vrot.lane.b32.xlu0 %v1313, 111
        %v1541 = vpop.permute.xlu0 %1540
        %v1542 = vsel %vm1017, %v1531, %v1533
        %v1543 = vsel %vm1017, %v1535, %v1537
        %v1544 = vsel %vm1017, %v1539, %v1541
        %v1551 = vsel %vm1017, %v1533, 0.0
        %v1552 = vsel %vm1017, %v1537, 0.0
        %v1553 = vsel %vm1017, %v1541, 0.0
        %v1554 = vmul.f32 %v1542, %v1025
        %v1555 = vmul.f32 %v1551, %v1029
        %v1556 = vmul.f32 %v1543, %v1025
        %v1557 = vmul.f32 %v1552, %v1029
        %v1558 = vmul.f32 %v1544, %v1025
        %v1559 = vmul.f32 %v1553, %v1029
        %v1566 = vrot.slane %v1374, 4
        %v1567 = vrot.slane %v1375, 4
        %v1568 = vrot.slane %v1376, 4
        %v1569 = vsel %vm1057, %v1566, %v1568
        %v1570 = vrot.slane %v1377, 4
        %v1571 = vsel %vm1057, %v1567, %v1570
        %v1572 = vrot.slane %v1378, 4
        %v1573 = vsel %vm1057, %v1568, %v1572
        %v1574 = vrot.slane %v1379, 4
        %v1575 = vsel %vm1057, %v1570, %v1574
        %v1588 = vrot.slane %v1434, 4
        %v1589 = vrot.slane %v1435, 4
        %v1590 = vrot.slane %v1436, 4
        %v1591 = vsel %vm1057, %v1588, %v1590
        %v1592 = vrot.slane %v1437, 4
        %v1593 = vsel %vm1057, %v1589, %v1592
        %v1594 = vrot.slane %v1438, 4
        %v1595 = vsel %vm1057, %v1590, %v1594
        %v1596 = vrot.slane %v1439, 4
        %v1597 = vsel %vm1057, %v1592, %v1596
        %v1610 = vrot.slane %v1464, 4
        %v1611 = vrot.slane %v1465, 4
        %v1612 = vrot.slane %v1466, 4
        %v1613 = vsel %vm1057, %v1610, %v1612
        %v1614 = vrot.slane %v1467, 4
        %v1615 = vsel %vm1057, %v1611, %v1614
        %v1616 = vrot.slane %v1468, 4
        %v1617 = vsel %vm1057, %v1612, %v1616
        %v1618 = vrot.slane %v1469, 4
        %v1619 = vsel %vm1057, %v1614, %v1618
        %v1632 = vrot.slane %v1524, 4
        %v1633 = vrot.slane %v1525, 4
        %v1634 = vrot.slane %v1526, 4
        %v1635 = vsel %vm1057, %v1632, %v1634
        %v1636 = vrot.slane %v1527, 4
        %v1637 = vsel %vm1057, %v1633, %v1636
        %v1638 = vrot.slane %v1528, 4
        %v1639 = vsel %vm1057, %v1634, %v1638
        %v1640 = vrot.slane %v1529, 4
        %v1641 = vsel %vm1057, %v1636, %v1640
        %v1648 = vsel %vm1057, %v1348, %v1566
        %v1649 = vsel %vm1057, %v1349, %v1567
        %v1650 = vsel %vm1057, %v1408, %v1588
        %v1651 = vsel %vm1057, %v1409, %v1589
        %v1652 = vsel %vm1057, %v1312, %v1610
        %v1653 = vsel %vm1057, %v1313, %v1611
        %v1654 = vsel %vm1057, %v1498, %v1632
        %v1655 = vsel %vm1057, %v1499, %v1633
        %v1657 = vcombine.high %v1307, %v1307
        %vm1658 = vcmask 424960
        %v1659 = vsel %vm1658, %v1657, 0
        %v1662 = vsel %vm1057, %v1558, 0
        %v1665 = vsel %vm1057, %v1559, 0
        %1667 = vmatprep.subr.mxu0 %v1345
        %1668 = vmatpush1.msra.mxu0 %v1344
        %1669 = vmatprep.subr.mxu0 %v1347
        %1670 = vmatpush1.msra.mxu0 %v1346
        %1671 = vmatprep.subr.mxu0 %v1649
        %1672 = vmatpush1.msra.mxu0 %v1648
        %1673 = vmatprep.subr.mxu0 %v1571
        %1674 = vmatpush1.msra.mxu0 %v1569
        %1675 = vmatprep.subr.mxu0 %v1575
        %1676 = vmatpush1.msra.mxu0 %v1573
        %1677 = vmatprep.subr.mxu0 %v1405
        %1678 = vmatpush1.msra.mxu0 %v1404
        %1679 = vmatprep.subr.mxu0 %v1407
        %1680 = vmatpush1.msra.mxu0 %v1406
        %1681 = vmatprep.subr.mxu0 %v1651
        %1682 = vmatpush1.msra.mxu0 %v1650
        %1683 = vmatprep.subr.mxu0 %v1593
        %1684 = vmatpush1.msra.mxu0 %v1591
        %1685 = vmatprep.subr.mxu0 %v1597
        %1686 = vmatpush1.msra.mxu0 %v1595
        %1687 = vmatprep.subr.mxu0 %v1309
        %1688 = vmatpush1.msra.mxu0 %v1308
        %1689 = vmatprep.subr.mxu0 %v1311
        %1690 = vmatpush1.msra.mxu0 %v1310
        %1691 = vmatprep.subr.mxu0 %v1653
        %1692 = vmatpush1.msra.mxu0 %v1652
        %1693 = vmatprep.subr.mxu0 %v1615
        %1694 = vmatpush1.msra.mxu0 %v1613
        %1695 = vmatprep.subr.mxu0 %v1619
        %1696 = vmatpush1.msra.mxu0 %v1617
        %1697 = vmatprep.subr.mxu0 %v1495
        %1698 = vmatpush1.msra.mxu0 %v1494
        %1699 = vmatprep.subr.mxu0 %v1497
        %1700 = vmatpush1.msra.mxu0 %v1496
        %1701 = vmatprep.subr.mxu0 %v1655
        %1702 = vmatpush1.msra.mxu0 %v1654
        %1703 = vmatprep.subr.mxu0 %v1637
        %1704 = vmatpush1.msra.mxu0 %v1635
        %1705 = vmatprep.subr.mxu0 %v1641
        %1706 = vmatpush1.msra.mxu0 %v1639
        %1707 = vmatprep.subr.mxu0 %v1555
        %1708 = vmatpush1.msra.mxu0 %v1554
        %1709 = vmatprep.subr.mxu0 %v1557
        %1710 = vmatpush1.msra.mxu0 %v1556
        %1711 = vmatprep.subr.mxu0 %v1665
        %1712 = vmatpush1.msra.mxu0 %v1662
        %1713 = vmatprep.subr.mxu0 0.0
        %1714 = vmatpush1.msra.mxu0 0.0
        %1715 = vmatprep.subr.mxu0 0.0
        %1716 = vmatpush1.msra.mxu0 0.0
        %1717 = vmatprep.subr.mxu0 0.0
        %1718 = vmatpush1.msra.mxu0 0.0
        %1719 = vmatprep.subr.mxu0 0.0
        %1720 = vmatpush1.msra.mxu0 0.0
        %1721 = vmatprep.subr.mxu0 0.0
        %1722 = vmatpush1.msra.mxu0 0.0
        %1723 = vmatprep.subr.mxu0 0.0
        %1724 = vmatpush1.msra.mxu0 0.0
        %1725 = vmatprep.subr.mxu0 0.0
        %1726 = vmatpush1.msra.mxu0 0.0
        %1727 = vmatprep.subr.mxu0 0.0
        %1728 = vmatpush1.msra.mxu0 0.0
        %1729 = vmatprep.subr.mxu0 0.0
        %1730 = vmatpush1.msra.mxu0 0.0
        %1731 = vmatprep.mubr.f32.mxu0 %v1659
        %1732 = vmatmul.mubr.f32.gmra.mrb[0].mxu0 %v1307
        %v1733 = vpop.f32.mrb[0].mxu0
        %v1734 = vadd.f32 0.0, %v1733
        %v1735 = vpop.f32.mrb[0].mxu0
        %v1736 = vadd.f32 0.0, %v1735
        %1737 = vdwg.mxu0
        %v1738 = vadd.f32 %v1303, %v1734
        %v1739 = vadd.f32 %v1305, %v1736
        %v1740 = vld [vmem:[#allocation17] sm:$0xff]
        %v1741 = vld [vmem:[%s752] sm:$0xff]
        %v1742 = vld [vmem:[%s752 + $0x8] sm:$0xff]
        %v1743 = vld [vmem:[%s752 + $0x10] sm:$0xff]
        %v1744 = vld [vmem:[%s752 + $0x18] sm:$0xff]
        %v1745 = vld [vmem:[%s752 + $0x20] sm:$0xf]
        %v1746 = vld [vmem:[%s752 + $0x28] sm:$0xf]
        %1753 = vrot.lane.b32.xlu0 %v1741, 17
        %v1754 = vpop.permute.xlu0 %1753
        %1755 = vrot.lane.b32.xlu0 %v1742, 17
        %v1756 = vpop.permute.xlu0 %1755
        %1757 = vrot.lane.b32.xlu0 %v1743, 17
        %v1758 = vpop.permute.xlu0 %1757
        %1759 = vrot.lane.b32.xlu0 %v1744, 17
        %v1760 = vpop.permute.xlu0 %1759
        %1761 = vrot.lane.b32.xlu0 %v1745, 17
        %v1762 = vpop.permute.xlu0 %1761
        %1763 = vrot.lane.b32.xlu0 %v1746, 17
        %v1764 = vpop.permute.xlu0 %1763
        %v1765 = vsel %vm884, %v1754, %v1756
        %v1766 = vsel %vm884, %v1758, %v1760
        %v1767 = vsel %vm884, %v1762, %v1764
        %v1774 = vsel %vm884, 0.0, %v1754
        %v1775 = vsel %vm884, 0.0, %v1758
        %v1776 = vsel %vm884, 0.0, %v1762
        %v1777 = vmul.f32 %v1774, %v892
        %v1778 = vmul.f32 %v1765, %v896
        %v1779 = vmul.f32 %v1775, %v892
        %v1780 = vmul.f32 %v1766, %v896
        %v1781 = vmul.f32 %v1776, %v892
        %v1782 = vmul.f32 %v1767, %v896
        %1783 = vrot.lane.b32.xlu0 %v1741, 16
        %v1784 = vpop.permute.xlu0 %1783
        %1785 = vrot.lane.b32.xlu0 %v1742, 16
        %v1786 = vpop.permute.xlu0 %1785
        %1787 = vrot.lane.b32.xlu0 %v1743, 16
        %v1788 = vpop.permute.xlu0 %1787
        %1789 = vrot.lane.b32.xlu0 %v1744, 16
        %v1790 = vpop.permute.xlu0 %1789
        %1791 = vrot.lane.b32.xlu0 %v1745, 16
        %v1792 = vpop.permute.xlu0 %1791
        %1793 = vrot.lane.b32.xlu0 %v1746, 16
        %v1794 = vpop.permute.xlu0 %1793
        %v1795 = vsel %vm903, %v1784, %v1786
        %v1796 = vsel %vm903, %v1788, %v1790
        %v1797 = vsel %vm903, %v1792, %v1794
        %v1804 = vsel %vm903, 0.0, %v1784
        %v1805 = vsel %vm903, 0.0, %v1788
        %v1806 = vsel %vm903, 0.0, %v1792
        %v1807 = vmul.f32 %v1804, %v911
        %v1808 = vmul.f32 %v1795, %v915
        %v1809 = vmul.f32 %v1805, %v911
        %v1810 = vmul.f32 %v1796, %v915
        %v1811 = vmul.f32 %v1806, %v911
        %v1812 = vmul.f32 %v1797, %v915
        %1813 = vrot.lane.b32.xlu0 %v1741, 15
        %v1814 = vpop.permute.xlu0 %1813
        %1815 = vrot.lane.b32.xlu0 %v1742, 15
        %v1816 = vpop.permute.xlu0 %1815
        %1817 = vrot.lane.b32.xlu0 %v1743, 15
        %v1818 = vpop.permute.xlu0 %1817
        %1819 = vrot.lane.b32.xlu0 %v1744, 15
        %v1820 = vpop.permute.xlu0 %1819
        %1821 = vrot.lane.b32.xlu0 %v1745, 15
        %v1822 = vpop.permute.xlu0 %1821
        %1823 = vrot.lane.b32.xlu0 %v1746, 15
        %v1824 = vpop.permute.xlu0 %1823
        %v1825 = vsel %vm922, %v1814, %v1816
        %v1826 = vsel %vm922, %v1818, %v1820
        %v1827 = vsel %vm922, %v1822, %v1824
        %v1834 = vsel %vm922, 0.0, %v1814
        %v1835 = vsel %vm922, 0.0, %v1818
        %v1836 = vsel %vm922, 0.0, %v1822
        %v1837 = vmul.f32 %v1834, %v930
        %v1838 = vmul.f32 %v1825, %v934
        %v1839 = vmul.f32 %v1835, %v930
        %v1840 = vmul.f32 %v1826, %v934
        %v1841 = vmul.f32 %v1836, %v930
        %v1842 = vmul.f32 %v1827, %v934
        %1843 = vrot.lane.b32.xlu0 %v1741, 1
        %v1844 = vpop.permute.xlu0 %1843
        %1845 = vrot.lane.b32.xlu0 %v1742, 1
        %v1846 = vpop.permute.xlu0 %1845
        %1847 = vrot.lane.b32.xlu0 %v1743, 1
        %v1848 = vpop.permute.xlu0 %1847
        %1849 = vrot.lane.b32.xlu0 %v1744, 1
        %v1850 = vpop.permute.xlu0 %1849
        %1851 = vrot.lane.b32.xlu0 %v1745, 1
        %v1852 = vpop.permute.xlu0 %1851
        %1853 = vrot.lane.b32.xlu0 %v1746, 1
        %v1854 = vpop.permute.xlu0 %1853
        %v1855 = vsel %vm941, %v1844, %v1846
        %v1856 = vsel %vm941, %v1848, %v1850
        %v1857 = vsel %vm941, %v1852, %v1854
        %v1864 = vsel %vm941, 0.0, %v1844
        %v1865 = vsel %vm941, 0.0, %v1848
        %v1866 = vsel %vm941, 0.0, %v1852
        %v1867 = vmul.f32 %v1864, %v949
        %v1868 = vmul.f32 %v1855, %v953
        %v1869 = vmul.f32 %v1865, %v949
        %v1870 = vmul.f32 %v1856, %v953
        %v1871 = vmul.f32 %v1866, %v949
        %v1872 = vmul.f32 %v1857, %v953
        %1873 = vrot.lane.b32.xlu0 %v1741, 127
        %v1874 = vpop.permute.xlu0 %1873
        %1875 = vrot.lane.b32.xlu0 %v1742, 127
        %v1876 = vpop.permute.xlu0 %1875
        %1877 = vrot.lane.b32.xlu0 %v1743, 127
        %v1878 = vpop.permute.xlu0 %1877
        %1879 = vrot.lane.b32.xlu0 %v1744, 127
        %v1880 = vpop.permute.xlu0 %1879
        %1881 = vrot.lane.b32.xlu0 %v1745, 127
        %v1882 = vpop.permute.xlu0 %1881
        %1883 = vrot.lane.b32.xlu0 %v1746, 127
        %v1884 = vpop.permute.xlu0 %1883
        %v1885 = vsel %vm960, %v1874, %v1876
        %v1886 = vsel %vm960, %v1878, %v1880
        %v1887 = vsel %vm960, %v1882, %v1884
        %v1894 = vsel %vm960, %v1876, 0.0
        %v1895 = vsel %vm960, %v1880, 0.0
        %v1896 = vsel %vm960, %v1884, 0.0
        %v1897 = vmul.f32 %v1885, %v968
        %v1898 = vmul.f32 %v1894, %v972
        %v1899 = vmul.f32 %v1886, %v968
        %v1900 = vmul.f32 %v1895, %v972
        %v1901 = vmul.f32 %v1887, %v968
        %v1902 = vmul.f32 %v1896, %v972
        %1903 = vrot.lane.b32.xlu0 %v1741, 113
        %v1904 = vpop.permute.xlu0 %1903
        %1905 = vrot.lane.b32.xlu0 %v1742, 113
        %v1906 = vpop.permute.xlu0 %1905
        %1907 = vrot.lane.b32.xlu0 %v1743, 113
        %v1908 = vpop.permute.xlu0 %1907
        %1909 = vrot.lane.b32.xlu0 %v1744, 113
        %v1910 = vpop.permute.xlu0 %1909
        %1911 = vrot.lane.b32.xlu0 %v1745, 113
        %v1912 = vpop.permute.xlu0 %1911
        %1913 = vrot.lane.b32.xlu0 %v1746, 113
        %v1914 = vpop.permute.xlu0 %1913
        %v1915 = vsel %vm979, %v1904, %v1906
        %v1916 = vsel %vm979, %v1908, %v1910
        %v1917 = vsel %vm979, %v1912, %v1914
        %v1924 = vsel %vm979, %v1906, 0.0
        %v1925 = vsel %vm979, %v1910, 0.0
        %v1926 = vsel %vm979, %v1914, 0.0
        %v1927 = vmul.f32 %v1915, %v987
        %v1928 = vmul.f32 %v1924, %v991
        %v1929 = vmul.f32 %v1916, %v987
        %v1930 = vmul.f32 %v1925, %v991
        %v1931 = vmul.f32 %v1917, %v987
        %v1932 = vmul.f32 %v1926, %v991
        %1933 = vrot.lane.b32.xlu0 %v1741, 112
        %v1934 = vpop.permute.xlu0 %1933
        %1935 = vrot.lane.b32.xlu0 %v1742, 112
        %v1936 = vpop.permute.xlu0 %1935
        %1937 = vrot.lane.b32.xlu0 %v1743, 112
        %v1938 = vpop.permute.xlu0 %1937
        %1939 = vrot.lane.b32.xlu0 %v1744, 112
        %v1940 = vpop.permute.xlu0 %1939
        %1941 = vrot.lane.b32.xlu0 %v1745, 112
        %v1942 = vpop.permute.xlu0 %1941
        %1943 = vrot.lane.b32.xlu0 %v1746, 112
        %v1944 = vpop.permute.xlu0 %1943
        %v1945 = vsel %vm998, %v1934, %v1936
        %v1946 = vsel %vm998, %v1938, %v1940
        %v1947 = vsel %vm998, %v1942, %v1944
        %v1954 = vsel %vm998, %v1936, 0.0
        %v1955 = vsel %vm998, %v1940, 0.0
        %v1956 = vsel %vm998, %v1944, 0.0
        %v1957 = vmul.f32 %v1945, %v1006
        %v1958 = vmul.f32 %v1954, %v1010
        %v1959 = vmul.f32 %v1946, %v1006
        %v1960 = vmul.f32 %v1955, %v1010
        %v1961 = vmul.f32 %v1947, %v1006
        %v1962 = vmul.f32 %v1956, %v1010
        %1963 = vrot.lane.b32.xlu0 %v1741, 111
        %v1964 = vpop.permute.xlu0 %1963
        %1965 = vrot.lane.b32.xlu0 %v1742, 111
        %v1966 = vpop.permute.xlu0 %1965
        %1967 = vrot.lane.b32.xlu0 %v1743, 111
        %v1968 = vpop.permute.xlu0 %1967
        %1969 = vrot.lane.b32.xlu0 %v1744, 111
        %v1970 = vpop.permute.xlu0 %1969
        %1971 = vrot.lane.b32.xlu0 %v1745, 111
        %v1972 = vpop.permute.xlu0 %1971
        %1973 = vrot.lane.b32.xlu0 %v1746, 111
        %v1974 = vpop.permute.xlu0 %1973
        %v1975 = vsel %vm1017, %v1964, %v1966
        %v1976 = vsel %vm1017, %v1968, %v1970
        %v1977 = vsel %vm1017, %v1972, %v1974
        %v1984 = vsel %vm1017, %v1966, 0.0
        %v1985 = vsel %vm1017, %v1970, 0.0
        %v1986 = vsel %vm1017, %v1974, 0.0
        %v1987 = vmul.f32 %v1975, %v1025
        %v1988 = vmul.f32 %v1984, %v1029
        %v1989 = vmul.f32 %v1976, %v1025
        %v1990 = vmul.f32 %v1985, %v1029
        %v1991 = vmul.f32 %v1977, %v1025
        %v1992 = vmul.f32 %v1986, %v1029
        %v1999 = vrot.slane %v1807, 4
        %v2000 = vrot.slane %v1808, 4
        %v2001 = vrot.slane %v1809, 4
        %v2002 = vsel %vm1057, %v1999, %v2001
        %v2003 = vrot.slane %v1810, 4
        %v2004 = vsel %vm1057, %v2000, %v2003
        %v2005 = vrot.slane %v1811, 4
        %v2006 = vsel %vm1057, %v2001, %v2005
        %v2007 = vrot.slane %v1812, 4
        %v2008 = vsel %vm1057, %v2003, %v2007
        %v2021 = vrot.slane %v1867, 4
        %v2022 = vrot.slane %v1868, 4
        %v2023 = vrot.slane %v1869, 4
        %v2024 = vsel %vm1057, %v2021, %v2023
        %v2025 = vrot.slane %v1870, 4
        %v2026 = vsel %vm1057, %v2022, %v2025
        %v2027 = vrot.slane %v1871, 4
        %v2028 = vsel %vm1057, %v2023, %v2027
        %v2029 = vrot.slane %v1872, 4
        %v2030 = vsel %vm1057, %v2025, %v2029
        %v2043 = vrot.slane %v1897, 4
        %v2044 = vrot.slane %v1898, 4
        %v2045 = vrot.slane %v1899, 4
        %v2046 = vsel %vm1057, %v2043, %v2045
        %v2047 = vrot.slane %v1900, 4
        %v2048 = vsel %vm1057, %v2044, %v2047
        %v2049 = vrot.slane %v1901, 4
        %v2050 = vsel %vm1057, %v2045, %v2049
        %v2051 = vrot.slane %v1902, 4
        %v2052 = vsel %vm1057, %v2047, %v2051
        %v2065 = vrot.slane %v1957, 4
        %v2066 = vrot.slane %v1958, 4
        %v2067 = vrot.slane %v1959, 4
        %v2068 = vsel %vm1057, %v2065, %v2067
        %v2069 = vrot.slane %v1960, 4
        %v2070 = vsel %vm1057, %v2066, %v2069
        %v2071 = vrot.slane %v1961, 4
        %v2072 = vsel %vm1057, %v2067, %v2071
        %v2073 = vrot.slane %v1962, 4
        %v2074 = vsel %vm1057, %v2069, %v2073
        %v2081 = vsel %vm1057, %v1781, %v1999
        %v2082 = vsel %vm1057, %v1782, %v2000
        %v2083 = vsel %vm1057, %v1841, %v2021
        %v2084 = vsel %vm1057, %v1842, %v2022
        %v2085 = vsel %vm1057, %v1745, %v2043
        %v2086 = vsel %vm1057, %v1746, %v2044
        %v2087 = vsel %vm1057, %v1931, %v2065
        %v2088 = vsel %vm1057, %v1932, %v2066
        %v2090 = vcombine.high %v1740, %v1740
        %v2091 = vsel %vm1658, %v2090, 0
        %v2094 = vsel %vm1057, %v1991, 0
        %v2097 = vsel %vm1057, %v1992, 0
        %2099 = vmatprep.subr.mxu0 %v1778
        %2100 = vmatpush1.msra.mxu0 %v1777
        %2101 = vmatprep.subr.mxu0 %v1780
        %2102 = vmatpush1.msra.mxu0 %v1779
        %2103 = vmatprep.subr.mxu0 %v2082
        %2104 = vmatpush1.msra.mxu0 %v2081
        %2105 = vmatprep.subr.mxu0 %v2004
        %2106 = vmatpush1.msra.mxu0 %v2002
        %2107 = vmatprep.subr.mxu0 %v2008
        %2108 = vmatpush1.msra.mxu0 %v2006
        %2109 = vmatprep.subr.mxu0 %v1838
        %2110 = vmatpush1.msra.mxu0 %v1837
        %2111 = vmatprep.subr.mxu0 %v1840
        %2112 = vmatpush1.msra.mxu0 %v1839
        %2113 = vmatprep.subr.mxu0 %v2084
        %2114 = vmatpush1.msra.mxu0 %v2083
        %2115 = vmatprep.subr.mxu0 %v2026
        %2116 = vmatpush1.msra.mxu0 %v2024
        %2117 = vmatprep.subr.mxu0 %v2030
        %2118 = vmatpush1.msra.mxu0 %v2028
        %2119 = vmatprep.subr.mxu0 %v1742
        %2120 = vmatpush1.msra.mxu0 %v1741
        %2121 = vmatprep.subr.mxu0 %v1744
        %2122 = vmatpush1.msra.mxu0 %v1743
        %2123 = vmatprep.subr.mxu0 %v2086
        %2124 = vmatpush1.msra.mxu0 %v2085
        %2125 = vmatprep.subr.mxu0 %v2048
        %2126 = vmatpush1.msra.mxu0 %v2046
        %2127 = vmatprep.subr.mxu0 %v2052
        %2128 = vmatpush1.msra.mxu0 %v2050
        %2129 = vmatprep.subr.mxu0 %v1928
        %2130 = vmatpush1.msra.mxu0 %v1927
        %2131 = vmatprep.subr.mxu0 %v1930
        %2132 = vmatpush1.msra.mxu0 %v1929
        %2133 = vmatprep.subr.mxu0 %v2088
        %2134 = vmatpush1.msra.mxu0 %v2087
        %2135 = vmatprep.subr.mxu0 %v2070
        %2136 = vmatpush1.msra.mxu0 %v2068
        %2137 = vmatprep.subr.mxu0 %v2074
        %2138 = vmatpush1.msra.mxu0 %v2072
        %2139 = vmatprep.subr.mxu0 %v1988
        %2140 = vmatpush1.msra.mxu0 %v1987
        %2141 = vmatprep.subr.mxu0 %v1990
        %2142 = vmatpush1.msra.mxu0 %v1989
        %2143 = vmatprep.subr.mxu0 %v2097
        %2144 = vmatpush1.msra.mxu0 %v2094
        %2145 = vmatprep.subr.mxu0 0.0
        %2146 = vmatpush1.msra.mxu0 0.0
        %2147 = vmatprep.subr.mxu0 0.0
        %2148 = vmatpush1.msra.mxu0 0.0
        %2149 = vmatprep.subr.mxu0 0.0
        %2150 = vmatpush1.msra.mxu0 0.0
        %2151 = vmatprep.subr.mxu0 0.0
        %2152 = vmatpush1.msra.mxu0 0.0
        %2153 = vmatprep.subr.mxu0 0.0
        %2154 = vmatpush1.msra.mxu0 0.0
        %2155 = vmatprep.subr.mxu0 0.0
        %2156 = vmatpush1.msra.mxu0 0.0
        %2157 = vmatprep.subr.mxu0 0.0
        %2158 = vmatpush1.msra.mxu0 0.0
        %2159 = vmatprep.subr.mxu0 0.0
        %2160 = vmatpush1.msra.mxu0 0.0
        %2161 = vmatprep.subr.mxu0 0.0
        %2162 = vmatpush1.msra.mxu0 0.0
        %2163 = vmatprep.mubr.f32.mxu0 %v2091
        %2164 = vmatmul.mubr.f32.gmra.mrb[0].mxu0 %v1740
        %v2165 = vpop.f32.mrb[0].mxu0
        %v2166 = vadd.f32 0.0, %v2165
        %v2167 = vpop.f32.mrb[0].mxu0
        %v2168 = vadd.f32 0.0, %v2167
        %2169 = vdwg.mxu0
        %v2170 = vadd.f32 %v1738, %v2166
        %v2171 = vadd.f32 %v1739, %v2168
        %v2172 = vld [vmem:[#allocation18] sm:$0xf]
        %2174 = vset.pattern.permute.xlu0 0
        %2175 = vperm.xlu0 %2174, %v2172
        %v2176 = vpop.permute.xlu0 %2175
        %v2178 = vadd.f32 %v2170, %v2176
        %v2179 = vadd.f32 %v2171, %v2176
        %v2180 = vsel %vm1057, %v2178, 0.0
        %v2181 = vsel %vm1057, %v2179, 0.0
        %v2182 = vadd.f32 %v2180, %v2181
        %2183 = vadd.xlane.f32.xlu0 %v2182
        %v2184 = vpop.xlane.xlu0 %2183
        %v2185 = vmul.f32 %v2184, 0.00390625
        %v2186 = vld [vmem:[#allocation20] sm:$0xf]
        %vm2187 = vcmask 31744
        %v2189 = vsel %vm2187, %v2186, 0
        %v2192 = vsel %vm1057, %v2185, 0
        %2194 = vmatprep.subr.mxu0 0.0
        %2195 = vmatpush1.msra.mxu0 %v2192
        %2196 = vmatprep.subr.mxu0 0.0
        %2197 = vmatpush1.msra.mxu0 0.0
        %2198 = vmatprep.subr.mxu0 0.0
        %2199 = vmatpush1.msra.mxu0 0.0
        %2200 = vmatprep.subr.mxu0 0.0
        %2201 = vmatpush1.msra.mxu0 0.0
        %2202 = vmatprep.subr.mxu0 0.0
        %2203 = vmatpush1.msra.mxu0 0.0
        %2204 = vmatprep.subr.mxu0 0.0
        %2205 = vmatpush1.msra.mxu0 0.0
        %2206 = vmatprep.subr.mxu0 0.0
        %2207 = vmatpush1.msra.mxu0 0.0
        %2208 = vmatprep.subr.mxu0 0.0
        %2209 = vmatpush1.msra.mxu0 0.0
        %2210 = vmatprep.subr.mxu0 0.0
        %2211 = vmatpush1.msra.mxu0 0.0
        %2212 = vmatprep.subr.mxu0 0.0
        %2213 = vmatpush1.msra.mxu0 0.0
        %2214 = vmatprep.subr.mxu0 0.0
        %2215 = vmatpush1.msra.mxu0 0.0
        %2216 = vmatprep.subr.mxu0 0.0
        %2217 = vmatpush1.msra.mxu0 0.0
        %2218 = vmatprep.subr.mxu0 0.0
        %2219 = vmatpush1.msra.mxu0 0.0
        %2220 = vmatprep.subr.mxu0 0.0
        %2221 = vmatpush1.msra.mxu0 0.0
        %2222 = vmatprep.subr.mxu0 0.0
        %2223 = vmatpush1.msra.mxu0 0.0
        %2224 = vmatprep.subr.mxu0 0.0
        %2225 = vmatpush1.msra.mxu0 0.0
        %2226 = vmatprep.subr.mxu0 0.0
        %2227 = vmatpush1.msra.mxu0 0.0
        %2228 = vmatprep.subr.mxu0 0.0
        %2229 = vmatpush1.msra.mxu0 0.0
        %2230 = vmatprep.subr.mxu0 0.0
        %2231 = vmatpush1.msra.mxu0 0.0
        %2232 = vmatprep.subr.mxu0 0.0
        %2233 = vmatpush1.msra.mxu0 0.0
        %2234 = vmatprep.subr.mxu0 0.0
        %2235 = vmatpush1.msra.mxu0 0.0
        %2236 = vmatprep.subr.mxu0 0.0
        %2237 = vmatpush1.msra.mxu0 0.0
        %2238 = vmatprep.subr.mxu0 0.0
        %2239 = vmatpush1.msra.mxu0 0.0
        %2240 = vmatprep.subr.mxu0 0.0
        %2241 = vmatpush1.msra.mxu0 0.0
        %2242 = vmatprep.subr.mxu0 0.0
        %2243 = vmatpush1.msra.mxu0 0.0
        %2244 = vmatprep.subr.mxu0 0.0
        %2245 = vmatpush1.msra.mxu0 0.0
        %2246 = vmatprep.subr.mxu0 0.0
        %2247 = vmatpush1.msra.mxu0 0.0
        %2248 = vmatprep.subr.mxu0 0.0
        %2249 = vmatpush1.msra.mxu0 0.0
        %2250 = vmatprep.subr.mxu0 0.0
        %2251 = vmatpush1.msra.mxu0 0.0
        %2252 = vmatprep.subr.mxu0 0.0
        %2253 = vmatpush1.msra.mxu0 0.0
        %2254 = vmatprep.subr.mxu0 0.0
        %2255 = vmatpush1.msra.mxu0 0.0
        %2256 = vmatprep.subr.mxu0 0.0
        %2257 = vmatpush1.msra.mxu0 0.0
        %2258 = vmatprep.mubr.f32.mxu0 0.0
        %2259 = vmatmul.mubr.f32.gmra.mrb[0].mxu0 %v2189
        %v2260 = vpop.f32.mrb[0].mxu0
        %v2261 = vadd.f32 0.0, %v2260
        %v2262 = vpop.f32.mrb[0].mxu0
        %2263 = vdwg.mxu0
        %v2264 = vmax.f32 %v2261, 0.0
        %v2265 = vld [vmem:[#allocation21] sm:$0xf]
        %v2267 = vsel %vm2187, %v2265, 0
        %v2270 = vsel %vm1057, %v2264, 0
        %2272 = vmatprep.subr.mxu0 0.0
        %2273 = vmatpush1.msra.mxu0 %v2270
        %2274 = vmatprep.subr.mxu0 0.0
        %2275 = vmatpush1.msra.mxu0 0.0
        %2276 = vmatprep.subr.mxu0 0.0
        %2277 = vmatpush1.msra.mxu0 0.0
        %2278 = vmatprep.subr.mxu0 0.0
        %2279 = vmatpush1.msra.mxu0 0.0
        %2280 = vmatprep.subr.mxu0 0.0
        %2281 = vmatpush1.msra.mxu0 0.0
        %2282 = vmatprep.subr.mxu0 0.0
        %2283 = vmatpush1.msra.mxu0 0.0
        %2284 = vmatprep.subr.mxu0 0.0
        %2285 = vmatpush1.msra.mxu0 0.0
        %2286 = vmatprep.subr.mxu0 0.0
        %2287 = vmatpush1.msra.mxu0 0.0
        %2288 = vmatprep.subr.mxu0 0.0
        %2289 = vmatpush1.msra.mxu0 0.0
        %2290 = vmatprep.subr.mxu0 0.0
        %2291 = vmatpush1.msra.mxu0 0.0
        %2292 = vmatprep.subr.mxu0 0.0
        %2293 = vmatpush1.msra.mxu0 0.0
        %2294 = vmatprep.subr.mxu0 0.0
        %2295 = vmatpush1.msra.mxu0 0.0
        %2296 = vmatprep.subr.mxu0 0.0
        %2297 = vmatpush1.msra.mxu0 0.0
        %2298 = vmatprep.subr.mxu0 0.0
        %2299 = vmatpush1.msra.mxu0 0.0
        %2300 = vmatprep.subr.mxu0 0.0
        %2301 = vmatpush1.msra.mxu0 0.0
        %2302 = vmatprep.subr.mxu0 0.0
        %2303 = vmatpush1.msra.mxu0 0.0
        %2304 = vmatprep.subr.mxu0 0.0
        %2305 = vmatpush1.msra.mxu0 0.0
        %2306 = vmatprep.subr.mxu0 0.0
        %2307 = vmatpush1.msra.mxu0 0.0
        %2308 = vmatprep.subr.mxu0 0.0
        %2309 = vmatpush1.msra.mxu0 0.0
        %2310 = vmatprep.subr.mxu0 0.0
        %2311 = vmatpush1.msra.mxu0 0.0
        %2312 = vmatprep.subr.mxu0 0.0
        %2313 = vmatpush1.msra.mxu0 0.0
        %2314 = vmatprep.subr.mxu0 0.0
        %2315 = vmatpush1.msra.mxu0 0.0
        %2316 = vmatprep.subr.mxu0 0.0
        %2317 = vmatpush1.msra.mxu0 0.0
        %2318 = vmatprep.subr.mxu0 0.0
        %2319 = vmatpush1.msra.mxu0 0.0
        %2320 = vmatprep.subr.mxu0 0.0
        %2321 = vmatpush1.msra.mxu0 0.0
        %2322 = vmatprep.subr.mxu0 0.0
        %2323 = vmatpush1.msra.mxu0 0.0
        %2324 = vmatprep.subr.mxu0 0.0
        %2325 = vmatpush1.msra.mxu0 0.0
        %2326 = vmatprep.subr.mxu0 0.0
        %2327 = vmatpush1.msra.mxu0 0.0
        %2328 = vmatprep.subr.mxu0 0.0
        %2329 = vmatpush1.msra.mxu0 0.0
        %2330 = vmatprep.subr.mxu0 0.0
        %2331 = vmatpush1.msra.mxu0 0.0
        %2332 = vmatprep.subr.mxu0 0.0
        %2333 = vmatpush1.msra.mxu0 0.0
        %2334 = vmatprep.subr.mxu0 0.0
        %2335 = vmatpush1.msra.mxu0 0.0
        %2336 = vmatprep.mubr.f32.mxu0 0.0
        %2337 = vmatmul.mubr.f32.gmra.mrb[0].mxu0 %v2267
        %v2338 = vpop.f32.mrb[0].mxu0
        %v2339 = vadd.f32 0.0, %v2338
        %v2340 = vpop.f32.mrb[0].mxu0
        %2341 = vdwg.mxu0
        %v2342 = vsub.f32 0.0, %v2339
        %v2343 = vmul.f32 %v2342, 1.442695
        %v2344 = vpow.pop %v2343
        %v2345 = vadd.f32 %v2344, 1.0
        %v2346 = vrcp.pop %v2345
        %v2347 = vmul.f32 1.0, %v2346
        %2349 = vset.pattern.permute.xlu0 0
        %2350 = vperm.xlu0 %2349, %v2347
        %v2351 = vpop.permute.xlu0 %2350
        %v2353 = vmul.f32 %v2178, %v2351
        %v2354 = vmul.f32 %v2179, %v2351
        %v2355 = vld [vmem:[#allocation23] sm:$0xf]
        %v2356 = vld [vmem:[#allocation24] sm:$0xf]
        %2358 = vset.pattern.permute.xlu0 0
        %2359 = vperm.xlu0 %2358, %v2356
        %v2360 = vpop.permute.xlu0 %2359
        %v2363 = vsel %vm2187, %v2355, 0
        %v2366 = vsel %vm1057, %v2178, 0
        %v2369 = vsel %vm1057, %v2179, 0
        %2371 = vmatprep.subr.mxu0 %v2369
        %2372 = vmatpush1.msra.mxu0 %v2366
        %2373 = vmatprep.subr.mxu0 0.0
        %2374 = vmatpush1.msra.mxu0 0.0
        %2375 = vmatprep.subr.mxu0 0.0
        %2376 = vmatpush1.msra.mxu0 0.0
        %2377 = vmatprep.subr.mxu0 0.0
        %2378 = vmatpush1.msra.mxu0 0.0
        %2379 = vmatprep.subr.mxu0 0.0
        %2380 = vmatpush1.msra.mxu0 0.0
        %2381 = vmatprep.subr.mxu0 0.0
        %2382 = vmatpush1.msra.mxu0 0.0
        %2383 = vmatprep.subr.mxu0 0.0
        %2384 = vmatpush1.msra.mxu0 0.0
        %2385 = vmatprep.subr.mxu0 0.0
        %2386 = vmatpush1.msra.mxu0 0.0
        %2387 = vmatprep.subr.mxu0 0.0
        %2388 = vmatpush1.msra.mxu0 0.0
        %2389 = vmatprep.subr.mxu0 0.0
        %2390 = vmatpush1.msra.mxu0 0.0
        %2391 = vmatprep.subr.mxu0 0.0
        %2392 = vmatpush1.msra.mxu0 0.0
        %2393 = vmatprep.subr.mxu0 0.0
        %2394 = vmatpush1.msra.mxu0 0.0
        %2395 = vmatprep.subr.mxu0 0.0
        %2396 = vmatpush1.msra.mxu0 0.0
        %2397 = vmatprep.subr.mxu0 0.0
        %2398 = vmatpush1.msra.mxu0 0.0
        %2399 = vmatprep.subr.mxu0 0.0
        %2400 = vmatpush1.msra.mxu0 0.0
        %2401 = vmatprep.subr.mxu0 0.0
        %2402 = vmatpush1.msra.mxu0 0.0
        %2403 = vmatprep.subr.mxu0 0.0
        %2404 = vmatpush1.msra.mxu0 0.0
        %2405 = vmatprep.subr.mxu0 0.0
        %2406 = vmatpush1.msra.mxu0 0.0
        %2407 = vmatprep.subr.mxu0 0.0
        %2408 = vmatpush1.msra.mxu0 0.0
        %2409 = vmatprep.subr.mxu0 0.0
        %2410 = vmatpush1.msra.mxu0 0.0
        %2411 = vmatprep.subr.mxu0 0.0
        %2412 = vmatpush1.msra.mxu0 0.0
        %2413 = vmatprep.subr.mxu0 0.0
        %2414 = vmatpush1.msra.mxu0 0.0
        %2415 = vmatprep.subr.mxu0 0.0
        %2416 = vmatpush1.msra.mxu0 0.0
        %2417 = vmatprep.subr.mxu0 0.0
        %2418 = vmatpush1.msra.mxu0 0.0
        %2419 = vmatprep.subr.mxu0 0.0
        %2420 = vmatpush1.msra.mxu0 0.0
        %2421 = vmatprep.subr.mxu0 0.0
        %2422 = vmatpush1.msra.mxu0 0.0
        %2423 = vmatprep.subr.mxu0 0.0
        %2424 = vmatpush1.msra.mxu0 0.0
        %2425 = vmatprep.subr.mxu0 0.0
        %2426 = vmatpush1.msra.mxu0 0.0
        %2427 = vmatprep.subr.mxu0 0.0
        %2428 = vmatpush1.msra.mxu0 0.0
        %2429 = vmatprep.subr.mxu0 0.0
        %2430 = vmatpush1.msra.mxu0 0.0
        %2431 = vmatprep.subr.mxu0 0.0
        %2432 = vmatpush1.msra.mxu0 0.0
        %2433 = vmatprep.subr.mxu0 0.0
        %2434 = vmatpush1.msra.mxu0 0.0
        %2435 = vmatprep.mubr.f32.mxu0 0.0
        %2436 = vmatmul.mubr.f32.gmra.mrb[0].mxu0 %v2363
        %v2437 = vpop.f32.mrb[0].mxu0
        %v2438 = vadd.f32 %v2360, %v2437
        %v2439 = vpop.f32.mrb[0].mxu0
        %v2440 = vadd.f32 %v2360, %v2439
        %2441 = vdwg.mxu0
        %v2442 = vmax.f32 %v2438, 0.0
        %v2443 = vmax.f32 %v2440, 0.0
        %v2444 = vld [vmem:[#allocation26] sm:$0x1]
        %s2445 = sld [smem:[#allocation2]]
        %v2446 = vstv %s2445
        %v2448 = vsel %vm2187, %v2444, 0
        %v2451 = vsel %vm1057, %v2442, 0
        %v2454 = vsel %vm1057, %v2443, 0
        %2456 = vmatprep.subr.mxu0 %v2454
        %2457 = vmatpush1.msra.mxu0 %v2451
        %2458 = vmatprep.subr.mxu0 0.0
        %2459 = vmatpush1.msra.mxu0 0.0
        %2460 = vmatprep.subr.mxu0 0.0
        %2461 = vmatpush1.msra.mxu0 0.0
        %2462 = vmatprep.subr.mxu0 0.0
        %2463 = vmatpush1.msra.mxu0 0.0
        %2464 = vmatprep.subr.mxu0 0.0
        %2465 = vmatpush1.msra.mxu0 0.0
        %2466 = vmatprep.subr.mxu0 0.0
        %2467 = vmatpush1.msra.mxu0 0.0
        %2468 = vmatprep.subr.mxu0 0.0
        %2469 = vmatpush1.msra.mxu0 0.0
        %2470 = vmatprep.subr.mxu0 0.0
        %2471 = vmatpush1.msra.mxu0 0.0
        %2472 = vmatprep.subr.mxu0 0.0
        %2473 = vmatpush1.msra.mxu0 0.0
        %2474 = vmatprep.subr.mxu0 0.0
        %2475 = vmatpush1.msra.mxu0 0.0
        %2476 = vmatprep.subr.mxu0 0.0
        %2477 = vmatpush1.msra.mxu0 0.0
        %2478 = vmatprep.subr.mxu0 0.0
        %2479 = vmatpush1.msra.mxu0 0.0
        %2480 = vmatprep.subr.mxu0 0.0
        %2481 = vmatpush1.msra.mxu0 0.0
        %2482 = vmatprep.subr.mxu0 0.0
        %2483 = vmatpush1.msra.mxu0 0.0
        %2484 = vmatprep.subr.mxu0 0.0
        %2485 = vmatpush1.msra.mxu0 0.0
        %2486 = vmatprep.subr.mxu0 0.0
        %2487 = vmatpush1.msra.mxu0 0.0
        %2488 = vmatprep.subr.mxu0 0.0
        %2489 = vmatpush1.msra.mxu0 0.0
        %2490 = vmatprep.subr.mxu0 0.0
        %2491 = vmatpush1.msra.mxu0 0.0
        %2492 = vmatprep.subr.mxu0 0.0
        %2493 = vmatpush1.msra.mxu0 0.0
        %2494 = vmatprep.subr.mxu0 0.0
        %2495 = vmatpush1.msra.mxu0 0.0
        %2496 = vmatprep.subr.mxu0 0.0
        %2497 = vmatpush1.msra.mxu0 0.0
        %2498 = vmatprep.subr.mxu0 0.0
        %2499 = vmatpush1.msra.mxu0 0.0
        %2500 = vmatprep.subr.mxu0 0.0
        %2501 = vmatpush1.msra.mxu0 0.0
        %2502 = vmatprep.subr.mxu0 0.0
        %2503 = vmatpush1.msra.mxu0 0.0
        %2504 = vmatprep.subr.mxu0 0.0
        %2505 = vmatpush1.msra.mxu0 0.0
        %2506 = vmatprep.subr.mxu0 0.0
        %2507 = vmatpush1.msra.mxu0 0.0
        %2508 = vmatprep.subr.mxu0 0.0
        %2509 = vmatpush1.msra.mxu0 0.0
        %2510 = vmatprep.subr.mxu0 0.0
        %2511 = vmatpush1.msra.mxu0 0.0
        %2512 = vmatprep.subr.mxu0 0.0
        %2513 = vmatpush1.msra.mxu0 0.0
        %2514 = vmatprep.subr.mxu0 0.0
        %2515 = vmatpush1.msra.mxu0 0.0
        %2516 = vmatprep.subr.mxu0 0.0
        %2517 = vmatpush1.msra.mxu0 0.0
        %2518 = vmatprep.subr.mxu0 0.0
        %2519 = vmatpush1.msra.mxu0 0.0
        %2520 = vmatprep.mubr.f32.mxu0 0.0
        %2521 = vmatmul.mubr.f32.gmra.mrb[0].mxu0 %v2448
        %v2522 = vpop.f32.mrb[0].mxu0
        %v2523 = vadd.f32 %v2446, %v2522
        %v2524 = vpop.f32.mrb[0].mxu0
        %v2525 = vadd.f32 %v2446, %v2524
        %2526 = vdwg.mxu0
        %v2527 = vsub.f32 0.0, %v2523
        %v2528 = vsub.f32 0.0, %v2525
        %v2529 = vmul.f32 %v2527, 1.442695
        %v2530 = vpow.pop %v2529
        %v2531 = vmul.f32 %v2528, 1.442695
        %v2532 = vpow.pop %v2531
        %v2533 = vadd.f32 %v2530, 1.0
        %v2534 = vadd.f32 %v2532, 1.0
        %v2535 = vrcp.pop %v2533
        %v2536 = vmul.f32 1.0, %v2535
        %v2537 = vrcp.pop %v2534
        %v2538 = vmul.f32 1.0, %v2537
        %v2539 = vlaneseq
        %v2540 = vshrl.u32 %v2539, 7
        %v2541 = vsub.s32 0, %v2540
        %v2542 = vrot.slane %v2536, %v2541
        %v2543 = vlaneseq
        %v2544 = vshrl.u32 %v2543, 7
        %v2545 = vsub.s32 0, %v2544
        %v2546 = vrot.slane %v2538, %v2545
        %v2547 = vmul.f32 %v2178, %v2542
        %v2548 = vmul.f32 %v2179, %v2546
        %v2551 = vrot.slane %v2547, 4
        %v2552 = vrot.slane %v2548, 4
        %v2555 = vsel %vm1057, %v2353, %v2551
        %v2556 = vsel %vm1057, %v2354, %v2552
        %v2557 = vld [vmem:[#allocation27] sm:$0xf]
        %2560 = vrot.lane.b32.xlu0 %v2555, 17
        %v2561 = vpop.permute.xlu0 %2560
        %2562 = vrot.lane.b32.xlu0 %v2556, 17
        %v2563 = vpop.permute.xlu0 %2562
        %v2564 = vsel %vm884, %v2561, %v2563
        %v2567 = vsel %vm884, 0.0, %v2561
        %v2568 = vmul.f32 %v2567, %v892
        %v2569 = vmul.f32 %v2564, %v896
        %2570 = vrot.lane.b32.xlu0 %v2555, 16
        %v2571 = vpop.permute.xlu0 %2570
        %2572 = vrot.lane.b32.xlu0 %v2556, 16
        %v2573 = vpop.permute.xlu0 %2572
        %v2574 = vsel %vm903, %v2571, %v2573
        %v2577 = vsel %vm903, 0.0, %v2571
        %v2578 = vmul.f32 %v2577, %v911
        %v2579 = vmul.f32 %v2574, %v915
        %2580 = vrot.lane.b32.xlu0 %v2555, 15
        %v2581 = vpop.permute.xlu0 %2580
        %2582 = vrot.lane.b32.xlu0 %v2556, 15
        %v2583 = vpop.permute.xlu0 %2582
        %v2584 = vsel %vm922, %v2581, %v2583
        %v2587 = vsel %vm922, 0.0, %v2581
        %v2588 = vmul.f32 %v2587, %v930
        %v2589 = vmul.f32 %v2584, %v934
        %2590 = vrot.lane.b32.xlu0 %v2555, 1
        %v2591 = vpop.permute.xlu0 %2590
        %2592 = vrot.lane.b32.xlu0 %v2556, 1
        %v2593 = vpop.permute.xlu0 %2592
        %v2594 = vsel %vm941, %v2591, %v2593
        %v2597 = vsel %vm941, 0.0, %v2591
        %v2598 = vmul.f32 %v2597, %v949
        %v2599 = vmul.f32 %v2594, %v953
        %2600 = vrot.lane.b32.xlu0 %v2555, 127
        %v2601 = vpop.permute.xlu0 %2600
        %2602 = vrot.lane.b32.xlu0 %v2556, 127
        %v2603 = vpop.permute.xlu0 %2602
        %v2604 = vsel %vm960, %v2601, %v2603
        %v2607 = vsel %vm960, %v2603, 0.0
        %v2608 = vmul.f32 %v2604, %v968
        %v2609 = vmul.f32 %v2607, %v972
        %2610 = vrot.lane.b32.xlu0 %v2555, 113
        %v2611 = vpop.permute.xlu0 %2610
        %2612 = vrot.lane.b32.xlu0 %v2556, 113
        %v2613 = vpop.permute.xlu0 %2612
        %v2614 = vsel %vm979, %v2611, %v2613
        %v2617 = vsel %vm979, %v2613, 0.0
        %v2618 = vmul.f32 %v2614, %v987
        %v2619 = vmul.f32 %v2617, %v991
        %2620 = vrot.lane.b32.xlu0 %v2555, 112
        %v2621 = vpop.permute.xlu0 %2620
        %2622 = vrot.lane.b32.xlu0 %v2556, 112
        %v2623 = vpop.permute.xlu0 %2622
        %v2624 = vsel %vm998, %v2621, %v2623
        %v2627 = vsel %vm998, %v2623, 0.0
        %v2628 = vmul.f32 %v2624, %v1006
        %v2629 = vmul.f32 %v2627, %v1010
        %2630 = vrot.lane.b32.xlu0 %v2555, 111
        %v2631 = vpop.permute.xlu0 %2630
        %2632 = vrot.lane.b32.xlu0 %v2556, 111
        %v2633 = vpop.permute.xlu0 %2632
        %v2634 = vsel %vm1017, %v2631, %v2633
        %v2637 = vsel %vm1017, %v2633, 0.0
        %v2638 = vmul.f32 %v2634, %v1025
        %v2639 = vmul.f32 %v2637, %v1029
        %v2640 = vld [vmem:[#allocation29] sm:$0xf]
        %2642 = vset.pattern.permute.xlu0 0
        %2643 = vperm.xlu0 %2642, %v2640
        %v2644 = vpop.permute.xlu0 %2643
        %v2647 = vsel %vm1151, %v2557, 0
        %2649 = vmatprep.subr.mxu0 %v2569
        %2650 = vmatpush1.msra.mxu0 %v2568
        %2651 = vmatprep.subr.mxu0 %v2579
        %2652 = vmatpush1.msra.mxu0 %v2578
        %2653 = vmatprep.subr.mxu0 %v2589
        %2654 = vmatpush1.msra.mxu0 %v2588
        %2655 = vmatprep.subr.mxu0 %v2599
        %2656 = vmatpush1.msra.mxu0 %v2598
        %2657 = vmatprep.subr.mxu0 %v2556
        %2658 = vmatpush1.msra.mxu0 %v2555
        %2659 = vmatprep.subr.mxu0 %v2609
        %2660 = vmatpush1.msra.mxu0 %v2608
        %2661 = vmatprep.subr.mxu0 %v2619
        %2662 = vmatpush1.msra.mxu0 %v2618
        %2663 = vmatprep.subr.mxu0 %v2629
        %2664 = vmatpush1.msra.mxu0 %v2628
        %2665 = vmatprep.subr.mxu0 %v2639
        %2666 = vmatpush1.msra.mxu0 %v2638
        %2667 = vmatprep.subr.mxu0 0.0
        %2668 = vmatpush1.msra.mxu0 0.0
        %2669 = vmatprep.subr.mxu0 0.0
        %2670 = vmatpush1.msra.mxu0 0.0
        %2671 = vmatprep.subr.mxu0 0.0
        %2672 = vmatpush1.msra.mxu0 0.0
        %2673 = vmatprep.subr.mxu0 0.0
        %2674 = vmatpush1.msra.mxu0 0.0
        %2675 = vmatprep.subr.mxu0 0.0
        %2676 = vmatpush1.msra.mxu0 0.0
        %2677 = vmatprep.subr.mxu0 0.0
        %2678 = vmatpush1.msra.mxu0 0.0
        %2679 = vmatprep.subr.mxu0 0.0
        %2680 = vmatpush1.msra.mxu0 0.0
        %2681 = vmatprep.subr.mxu0 0.0
        %2682 = vmatpush1.msra.mxu0 0.0
        %2683 = vmatprep.subr.mxu0 0.0
        %2684 = vmatpush1.msra.mxu0 0.0
        %2685 = vmatprep.subr.mxu0 0.0
        %2686 = vmatpush1.msra.mxu0 0.0
        %2687 = vmatprep.subr.mxu0 0.0
        %2688 = vmatpush1.msra.mxu0 0.0
        %2689 = vmatprep.subr.mxu0 0.0
        %2690 = vmatpush1.msra.mxu0 0.0
        %2691 = vmatprep.subr.mxu0 0.0
        %2692 = vmatpush1.msra.mxu0 0.0
        %2693 = vmatprep.subr.mxu0 0.0
        %2694 = vmatpush1.msra.mxu0 0.0
        %2695 = vmatprep.subr.mxu0 0.0
        %2696 = vmatpush1.msra.mxu0 0.0
        %2697 = vmatprep.subr.mxu0 0.0
        %2698 = vmatpush1.msra.mxu0 0.0
        %2699 = vmatprep.subr.mxu0 0.0
        %2700 = vmatpush1.msra.mxu0 0.0
        %2701 = vmatprep.subr.mxu0 0.0
        %2702 = vmatpush1.msra.mxu0 0.0
        %2703 = vmatprep.subr.mxu0 0.0
        %2704 = vmatpush1.msra.mxu0 0.0
        %2705 = vmatprep.subr.mxu0 0.0
        %2706 = vmatpush1.msra.mxu0 0.0
        %2707 = vmatprep.subr.mxu0 0.0
        %2708 = vmatpush1.msra.mxu0 0.0
        %2709 = vmatprep.subr.mxu0 0.0
        %2710 = vmatpush1.msra.mxu0 0.0
        %2711 = vmatprep.subr.mxu0 0.0
        %2712 = vmatpush1.msra.mxu0 0.0
        %2713 = vmatprep.mubr.f32.mxu0 0.0
        %2714 = vmatmul.mubr.f32.gmra.mrb[0].mxu0 %v2647
        %v2715 = vpop.f32.mrb[0].mxu0
        %v2716 = vadd.f32 %v2644, %v2715
        %v2717 = vpop.f32.mrb[0].mxu0
        %v2718 = vadd.f32 %v2644, %v2717
        %2719 = vdwg.mxu0
        %v2722 = vcombine.low %v2716, %v2718
        %v2724 = vadd.f32 %v876, %v2722
        %2725 = vst [vmem:[%s871] sm:$0xff] %v2724
        %s2726 = sand.u32 %s454, 1
        %s2727 = scalar_lea.sflag [#allocation5], %s2726
        %s2728 = sand.u32 %s454, 1
        %s2729 = smul.addr %s2728, 8
        %s2730 = scalar_lea.vmem [#allocation30], %s2729
        // Predicated region
        $region161: #{rdb_forward_nchw.12} parent=91 // pred_check
          %p2731 = pneg %p464
        $region162: #{rdb_forward_nchw.12} parent=91 // pred_check_branch
          %2733 = sbr.rel (%p2731) target = $region164
        $region163: #{rdb_forward_nchw.12} parent=91 // pred_region
          %s2735 = ssub.s32 128, 128
          %2736 = vsyncadd %s2727, %s2735
          %s2737 = smul.addr %s48, 2
          %s2738 = smul.addr %s2737, 64
          %s2739 = scalar_lea.hbm %s18, %s2738
          %s2741 = sshll.u32 %s2730, 4
          %s2742 = int_to_ptr.vmem [resolvable:$true] %s2741
          %2744 = dma.vmem_to_hbm [thread:$0]  %s2742, 128, %s2739, %s2727
        $region164: #{rdb_forward_nchw.12} parent=91 // pred_fallthru
          _
      $region92: #{rdb_forward_nchw.12} parent=5 // pred_fallthru
        _
      %p2745 = scmp.le.s32.totalorder 2, %s43
      // Predicated region
      $region165: #{rdb_forward_nchw.12} parent=5 // pred_check
        %p2746 = pneg %p2745
      $region166: #{rdb_forward_nchw.12} parent=5 // pred_check_branch
        %2748 = sbr.rel (%p2746) target = $region168
      $region167: #{rdb_forward_nchw.12} parent=5 // pred_region
        %s2749 = ssub.s32 %s43, 2
        // Predicated region
        $region169: #{rdb_forward_nchw.12} parent=167 // pred_check
          %p2750 = pneg %p470
        $region170: #{rdb_forward_nchw.12} parent=167 // pred_check_branch
          %2752 = sbr.rel (%p2750) target = $region172
        $region171: #{rdb_forward_nchw.12} parent=167 // pred_region
          %s2753 = sand.u32 %s455, 1
          %s2754 = scalar_lea.sflag [#allocation5], %s2753
          %s2755 = sand.u32 %s455, 1
          %s2756 = smul.addr %s2755, 8
          %s2757 = scalar_lea.vmem [#allocation30], %s2756
          %2758 = dma.done %s2754, 128
        $region172: #{rdb_forward_nchw.12} parent=167 // pred_fallthru
          _
      $region168: #{rdb_forward_nchw.12} parent=5 // pred_fallthru
        _
    $region6: #{rdb_forward_nchw.12} parent=1 // loop_footer
      %s47 = sadd.s32 1, %s43
    $region7: #{rdb_forward_nchw.12} parent=1 // loop_footer_branch
      %42 = sbr.rel target = $region3
    $region8: #{rdb_forward_nchw.12} parent=1 // loop_exit
      _
    %2759 = vsyncpa [#allocation4], 1
    %s2760 = scalar_lea.sflag [#allocation4], 1
    %2761 = vsyncpa %s2760, 1
    %2762 = vsyncpa [#allocation7], 1
    %s2763 = scalar_lea.sflag [#allocation7], 1
    %2764 = vsyncpa %s2763, 1
    %2765 = vsyncpa [#allocation10], 1
    %s2766 = scalar_lea.sflag [#allocation10], 1
    %2767 = vsyncpa %s2766, 1
    %2768 = vsyncpa [#allocation13], 1
    %2769 = vsyncpa [#allocation16], 1
    %2770 = vsyncpa [#allocation19], 1
    %2771 = vsyncpa [#allocation22], 1
    %2772 = vsyncpa [#allocation25], 1
    %2773 = vsyncpa [#allocation28], 1
    %2774 = vsyncpa [#allocation5], 1
    %s2775 = scalar_lea.sflag [#allocation5], 1
    %2776 = vsyncpa %s2775, 1

</llo_original>
